<compile_context>
chip_gen: v5e
topology: v5e:2x2
jax: 0.10.0
libtpu: 0.0.40
codegen_flags: <defaults>
</compile_context>

<pallas_src>
import dataclasses
import functools

import jax
import jax.numpy as jnp
from jax.experimental import pallas as pl
from jax.experimental.pallas import tpu as pltpu


_VMEM_SPEC = pl.BlockSpec(memory_space=pltpu.MemorySpace.VMEM)


# --------------------------------------------------------------------------
# Config / parameters
# --------------------------------------------------------------------------

@dataclasses.dataclass(frozen=True)
class Config:
    V: int
    cheb_k: int
    graph_diffusion_step: int
    num_layers: int
    rnn_num_units: int
    input_dim: int


def _xavier_normal(key, shape):
    fan_out, fan_in = shape
    std = (2.0 / (fan_in + fan_out)) ** 0.5
    return std * jax.random.normal(key, shape, jnp.float32)


def make_gcru_cell_params(key, cfg, num_units, input_dim):
    """Mirrors GCRUCell.__init__ parameter shapes (values re-initialized in JAX)."""
    C = num_units + input_dim
    n_sup = 2 * cfg.cheb_k                  # module weight assumes 2 supports
    M = cfg.graph_diffusion_step + 1
    k1, k2, k3 = jax.random.split(key, 3)
    return dict(
        # GCRUCell.weight (2*cheb_k*C, C) stored pre-split per support block.
        w_cheb=_xavier_normal(k1, (n_sup * C, C)).reshape(n_sup, C, C),
        b_cheb=jnp.zeros((1, C), jnp.float32),                     # constant_(0)
        # _gconv_params weights/biases (keyed by shape in the module):
        w_gate=_xavier_normal(k2, (C * M, 2 * num_units)),
        b_gate=jnp.full((1, 2 * num_units), 1.0, jnp.float32),     # bias_start=1.0
        w_cand=_xavier_normal(k3, (C * M, num_units)),
        b_cand=jnp.zeros((1, num_units), jnp.float32),             # bias_start=0.0
    )


def make_decoder_params(key, cfg):
    """Decoder.__init__: cells[0] uses input_dim, cells[1..L-1] use rnn_num_units.
    (The module also allocates one extra, unused cell - omitted.)"""
    H = cfg.rnn_num_units
    keys = jax.random.split(key, max(cfg.num_layers, 1))
    cells = [make_gcru_cell_params(keys[0], cfg, H, cfg.input_dim)]
    for i in range(1, cfg.num_layers):
        cells.append(make_gcru_cell_params(keys[i], cfg, H, H))
    return dict(
        cells=cells,
        ln_w=jnp.ones((cfg.V, H), jnp.float32),     # nn.LayerNorm([V, H])
        ln_b=jnp.zeros((cfg.V, H), jnp.float32),
    )


# --------------------------------------------------------------------------
# Pallas kernels (three fused kernels per decoder layer)
# --------------------------------------------------------------------------

def _sc_full(s_ref, w_ref, b_ref, x, n_sup):
    """supports_cal on a single batch slab x:(V,C) -> (V,C).
    out = sum_k (S_k @ x) @ W_k + bias  (== concat-then-matmul in the module)."""
    acc = None
    for k in range(n_sup):
        t = jnp.dot(
            jnp.dot(s_ref[k], x, preferred_element_type=jnp.float32),
            w_ref[k], preferred_element_type=jnp.float32)
        acc = t if acc is None else acc + t
    return acc + b_ref[...]


def _emit_diffusion_chunks(out_ref, row0, V, x0, s_ref, w_ref, b_ref,
                           n_sup, n_diff, C):
    """Writes the concatenated diffusion chunks [x0, x1, x2, ...] for one batch
    element into rows [row0, row0+V) of out_ref (shape (B*V, C*(n_diff+1)))."""
    out_ref[row0:row0 + V, 0:C] = x0
    x1 = _sc_full(s_ref, w_ref, b_ref, x0, n_sup)
    out_ref[row0:row0 + V, C:2 * C] = x1
    prev, prevprev = x1, x0
    for kd in range(2, n_diff + 1):
        nxt = 2.0 * _sc_full(s_ref, w_ref, b_ref, prev, n_sup) - prevprev
        out_ref[row0:row0 + V, kd * C:(kd + 1) * C] = nxt
        prev, prevprev = nxt, prev


def _make_gate_pre_kernel(B, V, D, H, n_sup, n_diff):
    C = D + H

    def kernel(cur_ref, hx_ref, s_ref, w_ref, b_ref, out_ref, x0_scr):
        for b in range(B):
            x0_scr[:, 0:D] = cur_ref[b]          # x0 = cat([inputs, state], -1)
            x0_scr[:, D:C] = hx_ref[b]
            x0 = x0_scr[...]
            _emit_diffusion_chunks(out_ref, b * V, V, x0, s_ref, w_ref, b_ref,
                                   n_sup, n_diff, C)
    return kernel


def _make_gate_apply_cand_pre_kernel(B, V, D, H, n_sup, n_diff):
    C = D + H

    def kernel(xgs_ref, wg_ref, bg_ref, cur_ref, hx_ref, s_ref, w_ref, b_ref,
               u_ref, out_ref, x0_scr):
        for b in range(B):
            rows = xgs_ref[b * V:(b + 1) * V, :]
            val = jax.nn.sigmoid(
                jnp.dot(rows, wg_ref[...], preferred_element_type=jnp.float32)
                + bg_ref[...])                   # (V, 2H)
            r = val[:, 0:H]
            u_ref[b] = val[:, H:2 * H]
            x0_scr[:, 0:D] = cur_ref[b]          # x0 = cat([inputs, r*h], -1)
            x0_scr[:, D:C] = r * hx_ref[b]
            x0 = x0_scr[...]
            _emit_diffusion_chunks(out_ref, b * V, V, x0, s_ref, w_ref, b_ref,
                                   n_sup, n_diff, C)
    return kernel


def _make_cand_apply_norm_kernel(B, V, H, eps=1e-5):
    inv_n = 1.0 / float(V * H)

    def kernel(xcs_ref, wc_ref, bc_ref, u_ref, hx_ref, lnw_ref, lnb_ref,
               out_ref):
        lnw = lnw_ref[...]
        lnb = lnb_ref[...]
        for b in range(B):
            rows = xcs_ref[b * V:(b + 1) * V, :]
            c = jnp.dot(rows, wc_ref[...],
                        preferred_element_type=jnp.float32) + bc_ref[...]
            u = u_ref[b]
            h = hx_ref[b]
            new = u * h + (1.0 - u) * c                         # GRU update
            # LayerNorm over the whole (V, H) slab (torch LayerNorm([V, H])).
            s = jnp.sum(jnp.sum(new, axis=1, keepdims=True),
                        axis=0, keepdims=True)
            mean = s * inv_n
            cen = new - mean
            s2 = jnp.sum(jnp.sum(cen * cen, axis=1, keepdims=True),
                         axis=0, keepdims=True)
            var = s2 * inv_n
            out_ref[b] = cen * jax.lax.rsqrt(var + eps) * lnw + lnb
    return kernel


# --------------------------------------------------------------------------
# pallas_call wrappers (gridless, everything resident in VMEM)
# --------------------------------------------------------------------------

def _gate_pre_call(cfg, cell, cur, hx, s_all):
    B, _, D = cur.shape
    V, H = cfg.V, cfg.rnn_num_units
    C = D + H
    M = cfg.graph_diffusion_step + 1
    n_sup = s_all.shape[0]
    kern = _make_gate_pre_kernel(B, V, D, H, n_sup, cfg.graph_diffusion_step)
    return pl.pallas_call(
        kern,
        out_shape=jax.ShapeDtypeStruct((B * V, C * M), jnp.float32),
        in_specs=[_VMEM_SPEC] * 5,
        out_specs=_VMEM_SPEC,
        scratch_shapes=[pltpu.VMEM((V, C), jnp.float32)],
    )(cur, hx, s_all, cell['w_cheb'], cell['b_cheb'])


def _gate_apply_cand_pre_call(cfg, cell, xg_s, cur, hx, s_all):
    B, _, D = cur.shape
    V, H = cfg.V, cfg.rnn_num_units
    C = D + H
    M = cfg.graph_diffusion_step + 1
    n_sup = s_all.shape[0]
    kern = _make_gate_apply_cand_pre_kernel(B, V, D, H, n_sup,
                                            cfg.graph_diffusion_step)
    out_shape = (jax.ShapeDtypeStruct((B, V, H), jnp.float32),
                 jax.ShapeDtypeStruct((B * V, C * M), jnp.float32))
    return pl.pallas_call(
        kern,
        out_shape=out_shape,
        in_specs=[_VMEM_SPEC] * 8,
        out_specs=(_VMEM_SPEC, _VMEM_SPEC),
        scratch_shapes=[pltpu.VMEM((V, C), jnp.float32)],
    )(xg_s, cell['w_gate'], cell['b_gate'], cur, hx, s_all,
      cell['w_cheb'], cell['b_cheb'])


def _cand_apply_norm_call(cfg, cell, ln_w, ln_b, xc_s, u, hx):
    B = u.shape[0]
    V, H = cfg.V, cfg.rnn_num_units
    kern = _make_cand_apply_norm_kernel(B, V, H)
    return pl.pallas_call(
        kern,
        out_shape=jax.ShapeDtypeStruct((B, V, H), jnp.float32),
        in_specs=[_VMEM_SPEC] * 7,
        out_specs=_VMEM_SPEC,
    )(xc_s, cell['w_cand'], cell['b_cand'], u, hx, ln_w, ln_b)


def _gconv_scramble(x, B, V, C, M):
    """Bug-compatible reproduction of the module's raw buffer reinterpretation:
    torch.reshape(x,[M,V,C,B]).permute(3,1,2,0).reshape(B*V, C*M)."""
    x = x.reshape(M, V, C, B)
    x = jnp.transpose(x, (3, 1, 2, 0))
    return x.reshape(B * V, C * M)


def build_support_set(cfg, supports):
    """Chebyshev expansion of the supports (done once per forward)."""
    V = cfg.V
    sset = []
    for S in supports:
        S = S.astype(jnp.float32)
        ks = [jnp.eye(V, dtype=jnp.float32), S]
        for _ in range(2, cfg.cheb_k):
            ks.append(2.0 * jnp.matmul(S, ks[-1]) - ks[-2])
        sset.extend(ks)
    return sset


@functools.partial(jax.jit, static_argnums=0)
def decoder_forward(cfg, params, input_, encoder_hidden, supports):
    """Decoder.forward(input_, encoder_hidden, supports) -> (out, output_hidden)."""
    support_list = build_support_set(cfg, supports)
    assert len(support_list) == 2 * cfg.cheb_k  # module weight assumes 2 supports
    s_all = jnp.stack(support_list, axis=0)

    B = input_.shape[0]
    V, H = cfg.V, cfg.rnn_num_units
    M = cfg.graph_diffusion_step + 1

    cur = input_.astype(jnp.float32)
    output_hidden = []
    for i in range(cfg.num_layers):
        cell = params['cells'][i]
        hx = encoder_hidden[i].astype(jnp.float32)
        D = cur.shape[2]
        C = D + H

        xg = _gate_pre_call(cfg, cell, cur, hx, s_all)           # kernel A
        xg_s = _gconv_scramble(xg, B, V, C, M)                   # XLA (tiny)
        u, xc = _gate_apply_cand_pre_call(cfg, cell, xg_s, cur, hx, s_all)  # B
        xc_s = _gconv_scramble(xc, B, V, C, M)                   # XLA (tiny)
        state = _cand_apply_norm_call(cfg, cell, params['ln_w'],
                                      params['ln_b'], xc_s, u, hx)          # C
        output_hidden.append(state)
        cur = state
    return cur, output_hidden


# --------------------------------------------------------------------------
# Pure-JAX reference (direct transcription of the PyTorch module) for checking
# --------------------------------------------------------------------------

def _ref_supports_cal(support_set, x, w, b):
    xg = jnp.concatenate(
        [jnp.einsum('nm,bmc->bnc', S, x, precision=jax.lax.Precision.HIGHEST)
         for S in support_set], axis=-1)
    return jnp.einsum('bni,io->bno', xg, w,
                      precision=jax.lax.Precision.HIGHEST) + b[0]


def _ref_gconv(cfg, cell, support_set, inputs, state, w_out, b_out):
    B, V = inputs.shape[0], cfg.V
    x0 = jnp.concatenate([inputs, state], axis=2)
    C = x0.shape[2]
    w = cell['w_cheb'].reshape(-1, C)
    b = cell['b_cheb']
    x1 = _ref_supports_cal(support_set, x0, w, b)
    x = jnp.concatenate([x0, x1], axis=2)
    xk_1, xk_2 = x1, x0
    for _ in range(2, cfg.graph_diffusion_step + 1):
        x2 = 2.0 * _ref_supports_cal(support_set, xk_1, w, b) - xk_2
        x = jnp.concatenate([x, x2], axis=2)
        xk_1, xk_2 = x2, xk_1
    M = cfg.graph_diffusion_step + 1
    x = x.reshape(M, V, C, B)
    x = jnp.transpose(x, (3, 1, 2, 0)).reshape(B * V, C * M)
    out = jnp.dot(x, w_out, precision=jax.lax.Precision.HIGHEST) + b_out[0]
    return out.reshape(B, V, -1)


def _ref_cell(cfg, cell, support_set, inputs, hx):
    H = cfg.rnn_num_units
    value = jax.nn.sigmoid(_ref_gconv(cfg, cell, support_set, inputs, hx,
                                      cell['w_gate'], cell['b_gate']))
    r, u = value[..., :H], value[..., H:]
    c = _ref_gconv(cfg, cell, support_set, inputs, r * hx,
                   cell['w_cand'], cell['b_cand'])
    return u * hx + (1.0 - u) * c


def reference_decoder_forward(cfg, params, input_, encoder_hidden, supports):
    support_set = build_support_set(cfg, supports)
    cur = input_.astype(jnp.float32)
    hidden = []
    for i in range(cfg.num_layers):
        st = _ref_cell(cfg, params['cells'][i], support_set, cur,
                       encoder_hidden[i].astype(jnp.float32))
        mean = jnp.mean(st, axis=(1, 2), keepdims=True)
        var = jnp.mean((st - mean) ** 2, axis=(1, 2), keepdims=True)
        st = (st - mean) / jnp.sqrt(var + 1e-5) * params['ln_w'] + params['ln_b']
        hidden.append(st)
        cur = st
    return cur, hidden


# --------------------------------------------------------------------------
# Driver
# --------------------------------------------------------------------------

if __name__ == "__main__":
    cfg = Config(V=8, cheb_k=2, graph_diffusion_step=2, num_layers=2,
                 rnn_num_units=16, input_dim=3)

    key = jax.random.PRNGKey(0)
    kp, kin, kh, ks = jax.random.split(key, 4)
    params = make_decoder_params(kp, cfg)

    B = 2
    input_ = jax.random.normal(kin, (B, cfg.V, cfg.input_dim), jnp.float32)
    hkeys = jax.random.split(kh, cfg.num_layers)
    encoder_hidden = [
        jax.random.normal(hkeys[i], (B, cfg.V, cfg.rnn_num_units), jnp.float32)
        for i in range(cfg.num_layers)
    ]
    skeys = jax.random.split(ks, 2)
    supports = [
        jax.nn.softmax(jax.random.normal(skeys[i], (cfg.V, cfg.V), jnp.float32),
                       axis=-1)
        for i in range(2)
    ]

    out, hidden = decoder_forward(cfg, params, input_, encoder_hidden, supports)
    out = jax.block_until_ready(out)

    assert out.shape == (B, cfg.V, cfg.rnn_num_units), out.shape
    assert len(hidden) == cfg.num_layers
    assert all(h.shape == (B, cfg.V, cfg.rnn_num_units) for h in hidden)
    assert bool(jnp.all(jnp.isfinite(out)))

    ref_out, ref_hidden = reference_decoder_forward(cfg, params, input_,
                                                    encoder_hidden, supports)
    assert bool(jnp.allclose(out, ref_out, atol=5e-2, rtol=5e-2)), (
        float(jnp.max(jnp.abs(out - ref_out))))
    for h, rh in zip(hidden, ref_hidden):
        assert bool(jnp.allclose(h, rh, atol=5e-2, rtol=5e-2))

    print("KERNEL_OK")
</pallas_src>

<mosaic_0001>
module attributes {stable_mosaic.version = 11 : i64} {
  func.func @kernel(%arg0: memref<2x8x3xf32, #tpu.memory_space<vmem>>, %arg1: memref<2x8x16xf32, #tpu.memory_space<vmem>>, %arg2: memref<4x8x8xf32, #tpu.memory_space<vmem>>, %arg3: memref<4x19x19xf32, #tpu.memory_space<vmem>>, %arg4: memref<1x19xf32, #tpu.memory_space<vmem>>, %arg5: memref<16x57xf32, #tpu.memory_space<vmem>>, %arg6: memref<8x19xf32, #tpu.memory_space<vmem>>) attributes {dimension_semantics = [], scalar_prefetch = 0 : i64, scratch_operands = 1 : i64, tpu.core_type = #tpu.core_type<tc>} {
    %c0 = arith.constant 0 : index
    %c0_0 = arith.constant 0 : index
    %c0_1 = arith.constant 0 : index
    %0 = vector.load %arg0[%c0, %c0_0, %c0_1] : memref<2x8x3xf32, #tpu.memory_space<vmem>>, vector<1x8x3xf32>
    %1 = vector.shape_cast %0 : vector<1x8x3xf32> to vector<8x3xf32>
    %c0_2 = arith.constant 0 : index
    %c0_3 = arith.constant 0 : index
    %2 = vector.load %arg6[%c0_2, %c0_3] : memref<8x19xf32, #tpu.memory_space<vmem>>, vector<8x3xf32>
    tpu.vector_store %arg6[%c0_2, %c0_3], %1 {strides = array<i32>} : memref<8x19xf32, #tpu.memory_space<vmem>>, vector<8x3xf32>,
    %c0_4 = arith.constant 0 : index
    %c0_5 = arith.constant 0 : index
    %c0_6 = arith.constant 0 : index
    %3 = vector.load %arg1[%c0_4, %c0_5, %c0_6] : memref<2x8x16xf32, #tpu.memory_space<vmem>>, vector<1x8x16xf32>
    %4 = vector.shape_cast %3 : vector<1x8x16xf32> to vector<8x16xf32>
    %c0_7 = arith.constant 0 : index
    %c3 = arith.constant 3 : index
    %5 = vector.load %arg6[%c0_7, %c3] : memref<8x19xf32, #tpu.memory_space<vmem>>, vector<8x16xf32>
    tpu.vector_store %arg6[%c0_7, %c3], %4 {strides = array<i32>} : memref<8x19xf32, #tpu.memory_space<vmem>>, vector<8x16xf32>,
    %c0_8 = arith.constant 0 : index
    %c0_9 = arith.constant 0 : index
    %6 = vector.load %arg6[%c0_8, %c0_9] : memref<8x19xf32, #tpu.memory_space<vmem>>, vector<8x19xf32>
    %c0_10 = arith.constant 0 : index
    %c0_11 = arith.constant 0 : index
    %7 = vector.load %arg5[%c0_10, %c0_11] : memref<16x57xf32, #tpu.memory_space<vmem>>, vector<8x19xf32>
    tpu.vector_store %arg5[%c0_10, %c0_11], %6 {strides = array<i32>} : memref<16x57xf32, #tpu.memory_space<vmem>>, vector<8x19xf32>,
    %c0_12 = arith.constant 0 : index
    %c0_13 = arith.constant 0 : index
    %c0_14 = arith.constant 0 : index
    %8 = vector.load %arg2[%c0_12, %c0_13, %c0_14] : memref<4x8x8xf32, #tpu.memory_space<vmem>>, vector<1x8x8xf32>
    %9 = vector.shape_cast %8 : vector<1x8x8xf32> to vector<8x8xf32>
    %cst = arith.constant dense<0.000000e+00> : vector<8x19xf32>
    %10 = tpu.matmul %9, %6, %cst {dimension_numbers = #tpu.dot_dimension_numbers<[1], [0], [0], [1], [0, 0, 1, 1], [], []>} : vector<8x8xf32>, vector<8x19xf32>, vector<8x19xf32> -> vector<8x19xf32>
    %c0_15 = arith.constant 0 : index
    %c0_16 = arith.constant 0 : index
    %c0_17 = arith.constant 0 : index
    %11 = vector.load %arg3[%c0_15, %c0_16, %c0_17] : memref<4x19x19xf32, #tpu.memory_space<vmem>>, vector<1x19x19xf32>
    %12 = vector.shape_cast %11 : vector<1x19x19xf32> to vector<19x19xf32>
    %cst_18 = arith.constant dense<0.000000e+00> : vector<8x19xf32>
    %13 = tpu.matmul %10, %12, %cst_18 {dimension_numbers = #tpu.dot_dimension_numbers<[1], [0], [0], [1], [0, 0, 1, 1], [], []>} : vector<8x19xf32>, vector<19x19xf32>, vector<8x19xf32> -> vector<8x19xf32>
    %c1 = arith.constant 1 : index
    %c0_19 = arith.constant 0 : index
    %c0_20 = arith.constant 0 : index
    %14 = vector.load %arg2[%c1, %c0_19, %c0_20] : memref<4x8x8xf32, #tpu.memory_space<vmem>>, vector<1x8x8xf32>
    %15 = vector.shape_cast %14 : vector<1x8x8xf32> to vector<8x8xf32>
    %cst_21 = arith.constant dense<0.000000e+00> : vector<8x19xf32>
    %16 = tpu.matmul %15, %6, %cst_21 {dimension_numbers = #tpu.dot_dimension_numbers<[1], [0], [0], [1], [0, 0, 1, 1], [], []>} : vector<8x8xf32>, vector<8x19xf32>, vector<8x19xf32> -> vector<8x19xf32>
    %c1_22 = arith.constant 1 : index
    %c0_23 = arith.constant 0 : index
    %c0_24 = arith.constant 0 : index
    %17 = vector.load %arg3[%c1_22, %c0_23, %c0_24] : memref<4x19x19xf32, #tpu.memory_space<vmem>>, vector<1x19x19xf32>
    %18 = vector.shape_cast %17 : vector<1x19x19xf32> to vector<19x19xf32>
    %cst_25 = arith.constant dense<0.000000e+00> : vector<8x19xf32>
    %19 = tpu.matmul %16, %18, %cst_25 {dimension_numbers = #tpu.dot_dimension_numbers<[1], [0], [0], [1], [0, 0, 1, 1], [], []>} : vector<8x19xf32>, vector<19x19xf32>, vector<8x19xf32> -> vector<8x19xf32>
    %20 = arith.addf %13, %19 : vector<8x19xf32>
    %c2 = arith.constant 2 : index
    %c0_26 = arith.constant 0 : index
    %c0_27 = arith.constant 0 : index
    %21 = vector.load %arg2[%c2, %c0_26, %c0_27] : memref<4x8x8xf32, #tpu.memory_space<vmem>>, vector<1x8x8xf32>
    %22 = vector.shape_cast %21 : vector<1x8x8xf32> to vector<8x8xf32>
    %cst_28 = arith.constant dense<0.000000e+00> : vector<8x19xf32>
    %23 = tpu.matmul %22, %6, %cst_28 {dimension_numbers = #tpu.dot_dimension_numbers<[1], [0], [0], [1], [0, 0, 1, 1], [], []>} : vector<8x8xf32>, vector<8x19xf32>, vector<8x19xf32> -> vector<8x19xf32>
    %c2_29 = arith.constant 2 : index
    %c0_30 = arith.constant 0 : index
    %c0_31 = arith.constant 0 : index
    %24 = vector.load %arg3[%c2_29, %c0_30, %c0_31] : memref<4x19x19xf32, #tpu.memory_space<vmem>>, vector<1x19x19xf32>
    %25 = vector.shape_cast %24 : vector<1x19x19xf32> to vector<19x19xf32>
    %cst_32 = arith.constant dense<0.000000e+00> : vector<8x19xf32>
    %26 = tpu.matmul %23, %25, %cst_32 {dimension_numbers = #tpu.dot_dimension_numbers<[1], [0], [0], [1], [0, 0, 1, 1], [], []>} : vector<8x19xf32>, vector<19x19xf32>, vector<8x19xf32> -> vector<8x19xf32>
    %27 = arith.addf %20, %26 : vector<8x19xf32>
    %c3_33 = arith.constant 3 : index
    %c0_34 = arith.constant 0 : index
    %c0_35 = arith.constant 0 : index
    %28 = vector.load %arg2[%c3_33, %c0_34, %c0_35] : memref<4x8x8xf32, #tpu.memory_space<vmem>>, vector<1x8x8xf32>
    %29 = vector.shape_cast %28 : vector<1x8x8xf32> to vector<8x8xf32>
    %cst_36 = arith.constant dense<0.000000e+00> : vector<8x19xf32>
    %30 = tpu.matmul %29, %6, %cst_36 {dimension_numbers = #tpu.dot_dimension_numbers<[1], [0], [0], [1], [0, 0, 1, 1], [], []>} : vector<8x8xf32>, vector<8x19xf32>, vector<8x19xf32> -> vector<8x19xf32>
    %c3_37 = arith.constant 3 : index
    %c0_38 = arith.constant 0 : index
    %c0_39 = arith.constant 0 : index
    %31 = vector.load %arg3[%c3_37, %c0_38, %c0_39] : memref<4x19x19xf32, #tpu.memory_space<vmem>>, vector<1x19x19xf32>
    %32 = vector.shape_cast %31 : vector<1x19x19xf32> to vector<19x19xf32>
    %cst_40 = arith.constant dense<0.000000e+00> : vector<8x19xf32>
    %33 = tpu.matmul %30, %32, %cst_40 {dimension_numbers = #tpu.dot_dimension_numbers<[1], [0], [0], [1], [0, 0, 1, 1], [], []>} : vector<8x19xf32>, vector<19x19xf32>, vector<8x19xf32> -> vector<8x19xf32>
    %34 = arith.addf %27, %33 : vector<8x19xf32>
    %c0_41 = arith.constant 0 : index
    %c0_42 = arith.constant 0 : index
    %35 = vector.load %arg4[%c0_41, %c0_42] : memref<1x19xf32, #tpu.memory_space<vmem>>, vector<1x19xf32>
    %36 = vector.broadcast %35 : vector<1x19xf32> to vector<8x19xf32>
    %37 = arith.addf %34, %36 : vector<8x19xf32>
    %c0_43 = arith.constant 0 : index
    %c19 = arith.constant 19 : index
    %38 = vector.load %arg5[%c0_43, %c19] : memref<16x57xf32, #tpu.memory_space<vmem>>, vector<8x19xf32>
    tpu.vector_store %arg5[%c0_43, %c19], %37 {strides = array<i32>} : memref<16x57xf32, #tpu.memory_space<vmem>>, vector<8x19xf32>,
    %c0_44 = arith.constant 0 : index
    %c0_45 = arith.constant 0 : index
    %c0_46 = arith.constant 0 : index
    %39 = vector.load %arg2[%c0_44, %c0_45, %c0_46] : memref<4x8x8xf32, #tpu.memory_space<vmem>>, vector<1x8x8xf32>
    %40 = vector.shape_cast %39 : vector<1x8x8xf32> to vector<8x8xf32>
    %cst_47 = arith.constant dense<0.000000e+00> : vector<8x19xf32>
    %41 = tpu.matmul %40, %37, %cst_47 {dimension_numbers = #tpu.dot_dimension_numbers<[1], [0], [0], [1], [0, 0, 1, 1], [], []>} : vector<8x8xf32>, vector<8x19xf32>, vector<8x19xf32> -> vector<8x19xf32>
    %c0_48 = arith.constant 0 : index
    %c0_49 = arith.constant 0 : index
    %c0_50 = arith.constant 0 : index
    %42 = vector.load %arg3[%c0_48, %c0_49, %c0_50] : memref<4x19x19xf32, #tpu.memory_space<vmem>>, vector<1x19x19xf32>
    %43 = vector.shape_cast %42 : vector<1x19x19xf32> to vector<19x19xf32>
    %cst_51 = arith.constant dense<0.000000e+00> : vector<8x19xf32>
    %44 = tpu.matmul %41, %43, %cst_51 {dimension_numbers = #tpu.dot_dimension_numbers<[1], [0], [0], [1], [0, 0, 1, 1], [], []>} : vector<8x19xf32>, vector<19x19xf32>, vector<8x19xf32> -> vector<8x19xf32>
    %c1_52 = arith.constant 1 : index
    %c0_53 = arith.constant 0 : index
    %c0_54 = arith.constant 0 : index
    %45 = vector.load %arg2[%c1_52, %c0_53, %c0_54] : memref<4x8x8xf32, #tpu.memory_space<vmem>>, vector<1x8x8xf32>
    %46 = vector.shape_cast %45 : vector<1x8x8xf32> to vector<8x8xf32>
    %cst_55 = arith.constant dense<0.000000e+00> : vector<8x19xf32>
    %47 = tpu.matmul %46, %37, %cst_55 {dimension_numbers = #tpu.dot_dimension_numbers<[1], [0], [0], [1], [0, 0, 1, 1], [], []>} : vector<8x8xf32>, vector<8x19xf32>, vector<8x19xf32> -> vector<8x19xf32>
    %c1_56 = arith.constant 1 : index
    %c0_57 = arith.constant 0 : index
    %c0_58 = arith.constant 0 : index
    %48 = vector.load %arg3[%c1_56, %c0_57, %c0_58] : memref<4x19x19xf32, #tpu.memory_space<vmem>>, vector<1x19x19xf32>
    %49 = vector.shape_cast %48 : vector<1x19x19xf32> to vector<19x19xf32>
    %cst_59 = arith.constant dense<0.000000e+00> : vector<8x19xf32>
    %50 = tpu.matmul %47, %49, %cst_59 {dimension_numbers = #tpu.dot_dimension_numbers<[1], [0], [0], [1], [0, 0, 1, 1], [], []>} : vector<8x19xf32>, vector<19x19xf32>, vector<8x19xf32> -> vector<8x19xf32>
    %51 = arith.addf %44, %50 : vector<8x19xf32>
    %c2_60 = arith.constant 2 : index
    %c0_61 = arith.constant 0 : index
    %c0_62 = arith.constant 0 : index
    %52 = vector.load %arg2[%c2_60, %c0_61, %c0_62] : memref<4x8x8xf32, #tpu.memory_space<vmem>>, vector<1x8x8xf32>
    %53 = vector.shape_cast %52 : vector<1x8x8xf32> to vector<8x8xf32>
    %cst_63 = arith.constant dense<0.000000e+00> : vector<8x19xf32>
    %54 = tpu.matmul %53, %37, %cst_63 {dimension_numbers = #tpu.dot_dimension_numbers<[1], [0], [0], [1], [0, 0, 1, 1], [], []>} : vector<8x8xf32>, vector<8x19xf32>, vector<8x19xf32> -> vector<8x19xf32>
    %c2_64 = arith.constant 2 : index
    %c0_65 = arith.constant 0 : index
    %c0_66 = arith.constant 0 : index
    %55 = vector.load %arg3[%c2_64, %c0_65, %c0_66] : memref<4x19x19xf32, #tpu.memory_space<vmem>>, vector<1x19x19xf32>
    %56 = vector.shape_cast %55 : vector<1x19x19xf32> to vector<19x19xf32>
    %cst_67 = arith.constant dense<0.000000e+00> : vector<8x19xf32>
    %57 = tpu.matmul %54, %56, %cst_67 {dimension_numbers = #tpu.dot_dimension_numbers<[1], [0], [0], [1], [0, 0, 1, 1], [], []>} : vector<8x19xf32>, vector<19x19xf32>, vector<8x19xf32> -> vector<8x19xf32>
    %58 = arith.addf %51, %57 : vector<8x19xf32>
    %c3_68 = arith.constant 3 : index
    %c0_69 = arith.constant 0 : index
    %c0_70 = arith.constant 0 : index
    %59 = vector.load %arg2[%c3_68, %c0_69, %c0_70] : memref<4x8x8xf32, #tpu.memory_space<vmem>>, vector<1x8x8xf32>
    %60 = vector.shape_cast %59 : vector<1x8x8xf32> to vector<8x8xf32>
    %cst_71 = arith.constant dense<0.000000e+00> : vector<8x19xf32>
    %61 = tpu.matmul %60, %37, %cst_71 {dimension_numbers = #tpu.dot_dimension_numbers<[1], [0], [0], [1], [0, 0, 1, 1], [], []>} : vector<8x8xf32>, vector<8x19xf32>, vector<8x19xf32> -> vector<8x19xf32>
    %c3_72 = arith.constant 3 : index
    %c0_73 = arith.constant 0 : index
    %c0_74 = arith.constant 0 : index
    %62 = vector.load %arg3[%c3_72, %c0_73, %c0_74] : memref<4x19x19xf32, #tpu.memory_space<vmem>>, vector<1x19x19xf32>
    %63 = vector.shape_cast %62 : vector<1x19x19xf32> to vector<19x19xf32>
    %cst_75 = arith.constant dense<0.000000e+00> : vector<8x19xf32>
    %64 = tpu.matmul %61, %63, %cst_75 {dimension_numbers = #tpu.dot_dimension_numbers<[1], [0], [0], [1], [0, 0, 1, 1], [], []>} : vector<8x19xf32>, vector<19x19xf32>, vector<8x19xf32> -> vector<8x19xf32>
    %65 = arith.addf %58, %64 : vector<8x19xf32>
    %c0_76 = arith.constant 0 : index
    %c0_77 = arith.constant 0 : index
    %66 = vector.load %arg4[%c0_76, %c0_77] : memref<1x19xf32, #tpu.memory_space<vmem>>, vector<1x19xf32>
    %67 = vector.broadcast %66 : vector<1x19xf32> to vector<8x19xf32>
    %68 = arith.addf %65, %67 : vector<8x19xf32>
    %cst_78 = arith.constant 2.000000e+00 : f32
    %69 = vector.broadcast %cst_78 : f32 to vector<8x19xf32>
    %70 = arith.mulf %69, %68 : vector<8x19xf32>
    %71 = arith.subf %70, %6 : vector<8x19xf32>
    %c0_79 = arith.constant 0 : index
    %c38 = arith.constant 38 : index
    %72 = vector.load %arg5[%c0_79, %c38] : memref<16x57xf32, #tpu.memory_space<vmem>>, vector<8x19xf32>
    tpu.vector_store %arg5[%c0_79, %c38], %71 {strides = array<i32>} : memref<16x57xf32, #tpu.memory_space<vmem>>, vector<8x19xf32>,
    %c1_80 = arith.constant 1 : index
    %c0_81 = arith.constant 0 : index
    %c0_82 = arith.constant 0 : index
    %73 = vector.load %arg0[%c1_80, %c0_81, %c0_82] : memref<2x8x3xf32, #tpu.memory_space<vmem>>, vector<1x8x3xf32>
    %74 = vector.shape_cast %73 : vector<1x8x3xf32> to vector<8x3xf32>
    %c0_83 = arith.constant 0 : index
    %c0_84 = arith.constant 0 : index
    %75 = vector.load %arg6[%c0_83, %c0_84] : memref<8x19xf32, #tpu.memory_space<vmem>>, vector<8x3xf32>
    tpu.vector_store %arg6[%c0_83, %c0_84], %74 {strides = array<i32>} : memref<8x19xf32, #tpu.memory_space<vmem>>, vector<8x3xf32>,
    %c1_85 = arith.constant 1 : index
    %c0_86 = arith.constant 0 : index
    %c0_87 = arith.constant 0 : index
    %76 = vector.load %arg1[%c1_85, %c0_86, %c0_87] : memref<2x8x16xf32, #tpu.memory_space<vmem>>, vector<1x8x16xf32>
    %77 = vector.shape_cast %76 : vector<1x8x16xf32> to vector<8x16xf32>
    %c0_88 = arith.constant 0 : index
    %c3_89 = arith.constant 3 : index
    %78 = vector.load %arg6[%c0_88, %c3_89] : memref<8x19xf32, #tpu.memory_space<vmem>>, vector<8x16xf32>
    tpu.vector_store %arg6[%c0_88, %c3_89], %77 {strides = array<i32>} : memref<8x19xf32, #tpu.memory_space<vmem>>, vector<8x16xf32>,
    %c0_90 = arith.constant 0 : index
    %c0_91 = arith.constant 0 : index
    %79 = vector.load %arg6[%c0_90, %c0_91] : memref<8x19xf32, #tpu.memory_space<vmem>>, vector<8x19xf32>
    %c8 = arith.constant 8 : index
    %c0_92 = arith.constant 0 : index
    %80 = vector.load %arg5[%c8, %c0_92] : memref<16x57xf32, #tpu.memory_space<vmem>>, vector<8x19xf32>
    tpu.vector_store %arg5[%c8, %c0_92], %79 {strides = array<i32>} : memref<16x57xf32, #tpu.memory_space<vmem>>, vector<8x19xf32>,
    %c0_93 = arith.constant 0 : index
    %c0_94 = arith.constant 0 : index
    %c0_95 = arith.constant 0 : index
    %81 = vector.load %arg2[%c0_93, %c0_94, %c0_95] : memref<4x8x8xf32, #tpu.memory_space<vmem>>, vector<1x8x8xf32>
    %82 = vector.shape_cast %81 : vector<1x8x8xf32> to vector<8x8xf32>
    %cst_96 = arith.constant dense<0.000000e+00> : vector<8x19xf32>
    %83 = tpu.matmul %82, %79, %cst_96 {dimension_numbers = #tpu.dot_dimension_numbers<[1], [0], [0], [1], [0, 0, 1, 1], [], []>} : vector<8x8xf32>, vector<8x19xf32>, vector<8x19xf32> -> vector<8x19xf32>
    %c0_97 = arith.constant 0 : index
    %c0_98 = arith.constant 0 : index
    %c0_99 = arith.constant 0 : index
    %84 = vector.load %arg3[%c0_97, %c0_98, %c0_99] : memref<4x19x19xf32, #tpu.memory_space<vmem>>, vector<1x19x19xf32>
    %85 = vector.shape_cast %84 : vector<1x19x19xf32> to vector<19x19xf32>
    %cst_100 = arith.constant dense<0.000000e+00> : vector<8x19xf32>
    %86 = tpu.matmul %83, %85, %cst_100 {dimension_numbers = #tpu.dot_dimension_numbers<[1], [0], [0], [1], [0, 0, 1, 1], [], []>} : vector<8x19xf32>, vector<19x19xf32>, vector<8x19xf32> -> vector<8x19xf32>
    %c1_101 = arith.constant 1 : index
    %c0_102 = arith.constant 0 : index
    %c0_103 = arith.constant 0 : index
    %87 = vector.load %arg2[%c1_101, %c0_102, %c0_103] : memref<4x8x8xf32, #tpu.memory_space<vmem>>, vector<1x8x8xf32>
    %88 = vector.shape_cast %87 : vector<1x8x8xf32> to vector<8x8xf32>
    %cst_104 = arith.constant dense<0.000000e+00> : vector<8x19xf32>
    %89 = tpu.matmul %88, %79, %cst_104 {dimension_numbers = #tpu.dot_dimension_numbers<[1], [0], [0], [1], [0, 0, 1, 1], [], []>} : vector<8x8xf32>, vector<8x19xf32>, vector<8x19xf32> -> vector<8x19xf32>
    %c1_105 = arith.constant 1 : index
    %c0_106 = arith.constant 0 : index
    %c0_107 = arith.constant 0 : index
    %90 = vector.load %arg3[%c1_105, %c0_106, %c0_107] : memref<4x19x19xf32, #tpu.memory_space<vmem>>, vector<1x19x19xf32>
    %91 = vector.shape_cast %90 : vector<1x19x19xf32> to vector<19x19xf32>
    %cst_108 = arith.constant dense<0.000000e+00> : vector<8x19xf32>
    %92 = tpu.matmul %89, %91, %cst_108 {dimension_numbers = #tpu.dot_dimension_numbers<[1], [0], [0], [1], [0, 0, 1, 1], [], []>} : vector<8x19xf32>, vector<19x19xf32>, vector<8x19xf32> -> vector<8x19xf32>
    %93 = arith.addf %86, %92 : vector<8x19xf32>
    %c2_109 = arith.constant 2 : index
    %c0_110 = arith.constant 0 : index
    %c0_111 = arith.constant 0 : index
    %94 = vector.load %arg2[%c2_109, %c0_110, %c0_111] : memref<4x8x8xf32, #tpu.memory_space<vmem>>, vector<1x8x8xf32>
    %95 = vector.shape_cast %94 : vector<1x8x8xf32> to vector<8x8xf32>
    %cst_112 = arith.constant dense<0.000000e+00> : vector<8x19xf32>
    %96 = tpu.matmul %95, %79, %cst_112 {dimension_numbers = #tpu.dot_dimension_numbers<[1], [0], [0], [1], [0, 0, 1, 1], [], []>} : vector<8x8xf32>, vector<8x19xf32>, vector<8x19xf32> -> vector<8x19xf32>
    %c2_113 = arith.constant 2 : index
    %c0_114 = arith.constant 0 : index
    %c0_115 = arith.constant 0 : index
    %97 = vector.load %arg3[%c2_113, %c0_114, %c0_115] : memref<4x19x19xf32, #tpu.memory_space<vmem>>, vector<1x19x19xf32>
    %98 = vector.shape_cast %97 : vector<1x19x19xf32> to vector<19x19xf32>
    %cst_116 = arith.constant dense<0.000000e+00> : vector<8x19xf32>
    %99 = tpu.matmul %96, %98, %cst_116 {dimension_numbers = #tpu.dot_dimension_numbers<[1], [0], [0], [1], [0, 0, 1, 1], [], []>} : vector<8x19xf32>, vector<19x19xf32>, vector<8x19xf32> -> vector<8x19xf32>
    %100 = arith.addf %93, %99 : vector<8x19xf32>
    %c3_117 = arith.constant 3 : index
    %c0_118 = arith.constant 0 : index
    %c0_119 = arith.constant 0 : index
    %101 = vector.load %arg2[%c3_117, %c0_118, %c0_119] : memref<4x8x8xf32, #tpu.memory_space<vmem>>, vector<1x8x8xf32>
    %102 = vector.shape_cast %101 : vector<1x8x8xf32> to vector<8x8xf32>
    %cst_120 = arith.constant dense<0.000000e+00> : vector<8x19xf32>
    %103 = tpu.matmul %102, %79, %cst_120 {dimension_numbers = #tpu.dot_dimension_numbers<[1], [0], [0], [1], [0, 0, 1, 1], [], []>} : vector<8x8xf32>, vector<8x19xf32>, vector<8x19xf32> -> vector<8x19xf32>
    %c3_121 = arith.constant 3 : index
    %c0_122 = arith.constant 0 : index
    %c0_123 = arith.constant 0 : index
    %104 = vector.load %arg3[%c3_121, %c0_122, %c0_123] : memref<4x19x19xf32, #tpu.memory_space<vmem>>, vector<1x19x19xf32>
    %105 = vector.shape_cast %104 : vector<1x19x19xf32> to vector<19x19xf32>
    %cst_124 = arith.constant dense<0.000000e+00> : vector<8x19xf32>
    %106 = tpu.matmul %103, %105, %cst_124 {dimension_numbers = #tpu.dot_dimension_numbers<[1], [0], [0], [1], [0, 0, 1, 1], [], []>} : vector<8x19xf32>, vector<19x19xf32>, vector<8x19xf32> -> vector<8x19xf32>
    %107 = arith.addf %100, %106 : vector<8x19xf32>
    %c0_125 = arith.constant 0 : index
    %c0_126 = arith.constant 0 : index
    %108 = vector.load %arg4[%c0_125, %c0_126] : memref<1x19xf32, #tpu.memory_space<vmem>>, vector<1x19xf32>
    %109 = vector.broadcast %108 : vector<1x19xf32> to vector<8x19xf32>
    %110 = arith.addf %107, %109 : vector<8x19xf32>
    %c8_127 = arith.constant 8 : index
    %c19_128 = arith.constant 19 : index
    %111 = vector.load %arg5[%c8_127, %c19_128] : memref<16x57xf32, #tpu.memory_space<vmem>>, vector<8x19xf32>
    tpu.vector_store %arg5[%c8_127, %c19_128], %110 {strides = array<i32>} : memref<16x57xf32, #tpu.memory_space<vmem>>, vector<8x19xf32>,
    %c0_129 = arith.constant 0 : index
    %c0_130 = arith.constant 0 : index
    %c0_131 = arith.constant 0 : index
    %112 = vector.load %arg2[%c0_129, %c0_130, %c0_131] : memref<4x8x8xf32, #tpu.memory_space<vmem>>, vector<1x8x8xf32>
    %113 = vector.shape_cast %112 : vector<1x8x8xf32> to vector<8x8xf32>
    %cst_132 = arith.constant dense<0.000000e+00> : vector<8x19xf32>
    %114 = tpu.matmul %113, %110, %cst_132 {dimension_numbers = #tpu.dot_dimension_numbers<[1], [0], [0], [1], [0, 0, 1, 1], [], []>} : vector<8x8xf32>, vector<8x19xf32>, vector<8x19xf32> -> vector<8x19xf32>
    %c0_133 = arith.constant 0 : index
    %c0_134 = arith.constant 0 : index
    %c0_135 = arith.constant 0 : index
    %115 = vector.load %arg3[%c0_133, %c0_134, %c0_135] : memref<4x19x19xf32, #tpu.memory_space<vmem>>, vector<1x19x19xf32>
    %116 = vector.shape_cast %115 : vector<1x19x19xf32> to vector<19x19xf32>
    %cst_136 = arith.constant dense<0.000000e+00> : vector<8x19xf32>
    %117 = tpu.matmul %114, %116, %cst_136 {dimension_numbers = #tpu.dot_dimension_numbers<[1], [0], [0], [1], [0, 0, 1, 1], [], []>} : vector<8x19xf32>, vector<19x19xf32>, vector<8x19xf32> -> vector<8x19xf32>
    %c1_137 = arith.constant 1 : index
    %c0_138 = arith.constant 0 : index
    %c0_139 = arith.constant 0 : index
    %118 = vector.load %arg2[%c1_137, %c0_138, %c0_139] : memref<4x8x8xf32, #tpu.memory_space<vmem>>, vector<1x8x8xf32>
    %119 = vector.shape_cast %118 : vector<1x8x8xf32> to vector<8x8xf32>
    %cst_140 = arith.constant dense<0.000000e+00> : vector<8x19xf32>
    %120 = tpu.matmul %119, %110, %cst_140 {dimension_numbers = #tpu.dot_dimension_numbers<[1], [0], [0], [1], [0, 0, 1, 1], [], []>} : vector<8x8xf32>, vector<8x19xf32>, vector<8x19xf32> -> vector<8x19xf32>
    %c1_141 = arith.constant 1 : index
    %c0_142 = arith.constant 0 : index
    %c0_143 = arith.constant 0 : index
    %121 = vector.load %arg3[%c1_141, %c0_142, %c0_143] : memref<4x19x19xf32, #tpu.memory_space<vmem>>, vector<1x19x19xf32>
    %122 = vector.shape_cast %121 : vector<1x19x19xf32> to vector<19x19xf32>
    %cst_144 = arith.constant dense<0.000000e+00> : vector<8x19xf32>
    %123 = tpu.matmul %120, %122, %cst_144 {dimension_numbers = #tpu.dot_dimension_numbers<[1], [0], [0], [1], [0, 0, 1, 1], [], []>} : vector<8x19xf32>, vector<19x19xf32>, vector<8x19xf32> -> vector<8x19xf32>
    %124 = arith.addf %117, %123 : vector<8x19xf32>
    %c2_145 = arith.constant 2 : index
    %c0_146 = arith.constant 0 : index
    %c0_147 = arith.constant 0 : index
    %125 = vector.load %arg2[%c2_145, %c0_146, %c0_147] : memref<4x8x8xf32, #tpu.memory_space<vmem>>, vector<1x8x8xf32>
    %126 = vector.shape_cast %125 : vector<1x8x8xf32> to vector<8x8xf32>
    %cst_148 = arith.constant dense<0.000000e+00> : vector<8x19xf32>
    %127 = tpu.matmul %126, %110, %cst_148 {dimension_numbers = #tpu.dot_dimension_numbers<[1], [0], [0], [1], [0, 0, 1, 1], [], []>} : vector<8x8xf32>, vector<8x19xf32>, vector<8x19xf32> -> vector<8x19xf32>
    %c2_149 = arith.constant 2 : index
    %c0_150 = arith.constant 0 : index
    %c0_151 = arith.constant 0 : index
    %128 = vector.load %arg3[%c2_149, %c0_150, %c0_151] : memref<4x19x19xf32, #tpu.memory_space<vmem>>, vector<1x19x19xf32>
    %129 = vector.shape_cast %128 : vector<1x19x19xf32> to vector<19x19xf32>
    %cst_152 = arith.constant dense<0.000000e+00> : vector<8x19xf32>
    %130 = tpu.matmul %127, %129, %cst_152 {dimension_numbers = #tpu.dot_dimension_numbers<[1], [0], [0], [1], [0, 0, 1, 1], [], []>} : vector<8x19xf32>, vector<19x19xf32>, vector<8x19xf32> -> vector<8x19xf32>
    %131 = arith.addf %124, %130 : vector<8x19xf32>
    %c3_153 = arith.constant 3 : index
    %c0_154 = arith.constant 0 : index
    %c0_155 = arith.constant 0 : index
    %132 = vector.load %arg2[%c3_153, %c0_154, %c0_155] : memref<4x8x8xf32, #tpu.memory_space<vmem>>, vector<1x8x8xf32>
    %133 = vector.shape_cast %132 : vector<1x8x8xf32> to vector<8x8xf32>
    %cst_156 = arith.constant dense<0.000000e+00> : vector<8x19xf32>
    %134 = tpu.matmul %133, %110, %cst_156 {dimension_numbers = #tpu.dot_dimension_numbers<[1], [0], [0], [1], [0, 0, 1, 1], [], []>} : vector<8x8xf32>, vector<8x19xf32>, vector<8x19xf32> -> vector<8x19xf32>
    %c3_157 = arith.constant 3 : index
    %c0_158 = arith.constant 0 : index
    %c0_159 = arith.constant 0 : index
    %135 = vector.load %arg3[%c3_157, %c0_158, %c0_159] : memref<4x19x19xf32, #tpu.memory_space<vmem>>, vector<1x19x19xf32>
    %136 = vector.shape_cast %135 : vector<1x19x19xf32> to vector<19x19xf32>
    %cst_160 = arith.constant dense<0.000000e+00> : vector<8x19xf32>
    %137 = tpu.matmul %134, %136, %cst_160 {dimension_numbers = #tpu.dot_dimension_numbers<[1], [0], [0], [1], [0, 0, 1, 1], [], []>} : vector<8x19xf32>, vector<19x19xf32>, vector<8x19xf32> -> vector<8x19xf32>
    %138 = arith.addf %131, %137 : vector<8x19xf32>
    %c0_161 = arith.constant 0 : index
    %c0_162 = arith.constant 0 : index
    %139 = vector.load %arg4[%c0_161, %c0_162] : memref<1x19xf32, #tpu.memory_space<vmem>>, vector<1x19xf32>
    %140 = vector.broadcast %139 : vector<1x19xf32> to vector<8x19xf32>
    %141 = arith.addf %138, %140 : vector<8x19xf32>
    %cst_163 = arith.constant 2.000000e+00 : f32
    %142 = vector.broadcast %cst_163 : f32 to vector<8x19xf32>
    %143 = arith.mulf %142, %141 : vector<8x19xf32>
    %144 = arith.subf %143, %79 : vector<8x19xf32>
    %c8_164 = arith.constant 8 : index
    %c38_165 = arith.constant 38 : index
    %145 = vector.load %arg5[%c8_164, %c38_165] : memref<16x57xf32, #tpu.memory_space<vmem>>, vector<8x19xf32>
    tpu.vector_store %arg5[%c8_164, %c38_165], %144 {strides = array<i32>} : memref<16x57xf32, #tpu.memory_space<vmem>>, vector<8x19xf32>,
    return
  }
}

module attributes {stable_mosaic.version = 11 : i64} {
  func.func @kernel(%arg0: memref<16x57xf32, #tpu.memory_space<vmem>>, %arg1: memref<57x32xf32, #tpu.memory_space<vmem>>, %arg2: memref<1x32xf32, #tpu.memory_space<vmem>>, %arg3: memref<2x8x3xf32, #tpu.memory_space<vmem>>, %arg4: memref<2x8x16xf32, #tpu.memory_space<vmem>>, %arg5: memref<4x8x8xf32, #tpu.memory_space<vmem>>, %arg6: memref<4x19x19xf32, #tpu.memory_space<vmem>>, %arg7: memref<1x19xf32, #tpu.memory_space<vmem>>, %arg8: memref<2x8x16xf32, #tpu.memory_space<vmem>>, %arg9: memref<16x57xf32, #tpu.memory_space<vmem>>, %arg10: memref<8x19xf32, #tpu.memory_space<vmem>>) attributes {dimension_semantics = [], scalar_prefetch = 0 : i64, scratch_operands = 1 : i64, tpu.core_type = #tpu.core_type<tc>} {
    %c0 = arith.constant 0 : index
    %c0_0 = arith.constant 0 : index
    %0 = vector.load %arg0[%c0, %c0_0] : memref<16x57xf32, #tpu.memory_space<vmem>>, vector<8x57xf32>
    %c0_1 = arith.constant 0 : index
    %c0_2 = arith.constant 0 : index
    %1 = vector.load %arg1[%c0_1, %c0_2] : memref<57x32xf32, #tpu.memory_space<vmem>>, vector<57x32xf32>
    %cst = arith.constant dense<0.000000e+00> : vector<8x32xf32>
    %2 = tpu.matmul %0, %1, %cst {dimension_numbers = #tpu.dot_dimension_numbers<[1], [0], [0], [1], [0, 0, 1, 1], [], []>} : vector<8x57xf32>, vector<57x32xf32>, vector<8x32xf32> -> vector<8x32xf32>
    %c0_3 = arith.constant 0 : index
    %c0_4 = arith.constant 0 : index
    %3 = vector.load %arg2[%c0_3, %c0_4] : memref<1x32xf32, #tpu.memory_space<vmem>>, vector<1x32xf32>
    %4 = vector.broadcast %3 : vector<1x32xf32> to vector<8x32xf32>
    %5 = arith.addf %2, %4 : vector<8x32xf32>
    %6 = arith.negf %5 : vector<8x32xf32>
    %7 = math.exp %6 : vector<8x32xf32>
    %cst_5 = arith.constant 1.000000e+00 : f32
    %8 = vector.broadcast %cst_5 : f32 to vector<8x32xf32>
    %9 = arith.addf %8, %7 : vector<8x32xf32>
    %10 = arith.divf %8, %9 : vector<8x32xf32>
    %11 = vector.extract_strided_slice %10 {offsets = [0, 0], sizes = [8, 16], strides = [1, 1]} : vector<8x32xf32> to vector<8x16xf32>
    %12 = vector.extract_strided_slice %10 {offsets = [0, 16], sizes = [8, 16], strides = [1, 1]} : vector<8x32xf32> to vector<8x16xf32>
    %c0_6 = arith.constant 0 : index
    %c0_7 = arith.constant 0 : index
    %c0_8 = arith.constant 0 : index
    %13 = vector.load %arg8[%c0_6, %c0_7, %c0_8] : memref<2x8x16xf32, #tpu.memory_space<vmem>>, vector<1x8x16xf32>
    %14 = vector.shape_cast %13 : vector<1x8x16xf32> to vector<8x16xf32>
    %15 = vector.shape_cast %12 : vector<8x16xf32> to vector<1x8x16xf32>
    tpu.vector_store %arg8[%c0_6, %c0_7, %c0_8], %15 {strides = array<i32>} : memref<2x8x16xf32, #tpu.memory_space<vmem>>, vector<1x8x16xf32>,
    %c0_9 = arith.constant 0 : index
    %c0_10 = arith.constant 0 : index
    %c0_11 = arith.constant 0 : index
    %16 = vector.load %arg3[%c0_9, %c0_10, %c0_11] : memref<2x8x3xf32, #tpu.memory_space<vmem>>, vector<1x8x3xf32>
    %17 = vector.shape_cast %16 : vector<1x8x3xf32> to vector<8x3xf32>
    %c0_12 = arith.constant 0 : index
    %c0_13 = arith.constant 0 : index
    %18 = vector.load %arg10[%c0_12, %c0_13] : memref<8x19xf32, #tpu.memory_space<vmem>>, vector<8x3xf32>
    tpu.vector_store %arg10[%c0_12, %c0_13], %17 {strides = array<i32>} : memref<8x19xf32, #tpu.memory_space<vmem>>, vector<8x3xf32>,
    %c0_14 = arith.constant 0 : index
    %c0_15 = arith.constant 0 : index
    %c0_16 = arith.constant 0 : index
    %19 = vector.load %arg4[%c0_14, %c0_15, %c0_16] : memref<2x8x16xf32, #tpu.memory_space<vmem>>, vector<1x8x16xf32>
    %20 = vector.shape_cast %19 : vector<1x8x16xf32> to vector<8x16xf32>
    %21 = arith.mulf %11, %20 : vector<8x16xf32>
    %c0_17 = arith.constant 0 : index
    %c3 = arith.constant 3 : index
    %22 = vector.load %arg10[%c0_17, %c3] : memref<8x19xf32, #tpu.memory_space<vmem>>, vector<8x16xf32>
    tpu.vector_store %arg10[%c0_17, %c3], %21 {strides = array<i32>} : memref<8x19xf32, #tpu.memory_space<vmem>>, vector<8x16xf32>,
    %c0_18 = arith.constant 0 : index
    %c0_19 = arith.constant 0 : index
    %23 = vector.load %arg10[%c0_18, %c0_19] : memref<8x19xf32, #tpu.memory_space<vmem>>, vector<8x19xf32>
    %c0_20 = arith.constant 0 : index
    %c0_21 = arith.constant 0 : index
    %24 = vector.load %arg9[%c0_20, %c0_21] : memref<16x57xf32, #tpu.memory_space<vmem>>, vector<8x19xf32>
    tpu.vector_store %arg9[%c0_20, %c0_21], %23 {strides = array<i32>} : memref<16x57xf32, #tpu.memory_space<vmem>>, vector<8x19xf32>,
    %c0_22 = arith.constant 0 : index
    %c0_23 = arith.constant 0 : index
    %c0_24 = arith.constant 0 : index
    %25 = vector.load %arg5[%c0_22, %c0_23, %c0_24] : memref<4x8x8xf32, #tpu.memory_space<vmem>>, vector<1x8x8xf32>
    %26 = vector.shape_cast %25 : vector<1x8x8xf32> to vector<8x8xf32>
    %cst_25 = arith.constant dense<0.000000e+00> : vector<8x19xf32>
    %27 = tpu.matmul %26, %23, %cst_25 {dimension_numbers = #tpu.dot_dimension_numbers<[1], [0], [0], [1], [0, 0, 1, 1], [], []>} : vector<8x8xf32>, vector<8x19xf32>, vector<8x19xf32> -> vector<8x19xf32>
    %c0_26 = arith.constant 0 : index
    %c0_27 = arith.constant 0 : index
    %c0_28 = arith.constant 0 : index
    %28 = vector.load %arg6[%c0_26, %c0_27, %c0_28] : memref<4x19x19xf32, #tpu.memory_space<vmem>>, vector<1x19x19xf32>
    %29 = vector.shape_cast %28 : vector<1x19x19xf32> to vector<19x19xf32>
    %cst_29 = arith.constant dense<0.000000e+00> : vector<8x19xf32>
    %30 = tpu.matmul %27, %29, %cst_29 {dimension_numbers = #tpu.dot_dimension_numbers<[1], [0], [0], [1], [0, 0, 1, 1], [], []>} : vector<8x19xf32>, vector<19x19xf32>, vector<8x19xf32> -> vector<8x19xf32>
    %c1 = arith.constant 1 : index
    %c0_30 = arith.constant 0 : index
    %c0_31 = arith.constant 0 : index
    %31 = vector.load %arg5[%c1, %c0_30, %c0_31] : memref<4x8x8xf32, #tpu.memory_space<vmem>>, vector<1x8x8xf32>
    %32 = vector.shape_cast %31 : vector<1x8x8xf32> to vector<8x8xf32>
    %cst_32 = arith.constant dense<0.000000e+00> : vector<8x19xf32>
    %33 = tpu.matmul %32, %23, %cst_32 {dimension_numbers = #tpu.dot_dimension_numbers<[1], [0], [0], [1], [0, 0, 1, 1], [], []>} : vector<8x8xf32>, vector<8x19xf32>, vector<8x19xf32> -> vector<8x19xf32>
    %c1_33 = arith.constant 1 : index
    %c0_34 = arith.constant 0 : index
    %c0_35 = arith.constant 0 : index
    %34 = vector.load %arg6[%c1_33, %c0_34, %c0_35] : memref<4x19x19xf32, #tpu.memory_space<vmem>>, vector<1x19x19xf32>
    %35 = vector.shape_cast %34 : vector<1x19x19xf32> to vector<19x19xf32>
    %cst_36 = arith.constant dense<0.000000e+00> : vector<8x19xf32>
    %36 = tpu.matmul %33, %35, %cst_36 {dimension_numbers = #tpu.dot_dimension_numbers<[1], [0], [0], [1], [0, 0, 1, 1], [], []>} : vector<8x19xf32>, vector<19x19xf32>, vector<8x19xf32> -> vector<8x19xf32>
    %37 = arith.addf %30, %36 : vector<8x19xf32>
    %c2 = arith.constant 2 : index
    %c0_37 = arith.constant 0 : index
    %c0_38 = arith.constant 0 : index
    %38 = vector.load %arg5[%c2, %c0_37, %c0_38] : memref<4x8x8xf32, #tpu.memory_space<vmem>>, vector<1x8x8xf32>
    %39 = vector.shape_cast %38 : vector<1x8x8xf32> to vector<8x8xf32>
    %cst_39 = arith.constant dense<0.000000e+00> : vector<8x19xf32>
    %40 = tpu.matmul %39, %23, %cst_39 {dimension_numbers = #tpu.dot_dimension_numbers<[1], [0], [0], [1], [0, 0, 1, 1], [], []>} : vector<8x8xf32>, vector<8x19xf32>, vector<8x19xf32> -> vector<8x19xf32>
    %c2_40 = arith.constant 2 : index
    %c0_41 = arith.constant 0 : index
    %c0_42 = arith.constant 0 : index
    %41 = vector.load %arg6[%c2_40, %c0_41, %c0_42] : memref<4x19x19xf32, #tpu.memory_space<vmem>>, vector<1x19x19xf32>
    %42 = vector.shape_cast %41 : vector<1x19x19xf32> to vector<19x19xf32>
    %cst_43 = arith.constant dense<0.000000e+00> : vector<8x19xf32>
    %43 = tpu.matmul %40, %42, %cst_43 {dimension_numbers = #tpu.dot_dimension_numbers<[1], [0], [0], [1], [0, 0, 1, 1], [], []>} : vector<8x19xf32>, vector<19x19xf32>, vector<8x19xf32> -> vector<8x19xf32>
    %44 = arith.addf %37, %43 : vector<8x19xf32>
    %c3_44 = arith.constant 3 : index
    %c0_45 = arith.constant 0 : index
    %c0_46 = arith.constant 0 : index
    %45 = vector.load %arg5[%c3_44, %c0_45, %c0_46] : memref<4x8x8xf32, #tpu.memory_space<vmem>>, vector<1x8x8xf32>
    %46 = vector.shape_cast %45 : vector<1x8x8xf32> to vector<8x8xf32>
    %cst_47 = arith.constant dense<0.000000e+00> : vector<8x19xf32>
    %47 = tpu.matmul %46, %23, %cst_47 {dimension_numbers = #tpu.dot_dimension_numbers<[1], [0], [0], [1], [0, 0, 1, 1], [], []>} : vector<8x8xf32>, vector<8x19xf32>, vector<8x19xf32> -> vector<8x19xf32>
    %c3_48 = arith.constant 3 : index
    %c0_49 = arith.constant 0 : index
    %c0_50 = arith.constant 0 : index
    %48 = vector.load %arg6[%c3_48, %c0_49, %c0_50] : memref<4x19x19xf32, #tpu.memory_space<vmem>>, vector<1x19x19xf32>
    %49 = vector.shape_cast %48 : vector<1x19x19xf32> to vector<19x19xf32>
    %cst_51 = arith.constant dense<0.000000e+00> : vector<8x19xf32>
    %50 = tpu.matmul %47, %49, %cst_51 {dimension_numbers = #tpu.dot_dimension_numbers<[1], [0], [0], [1], [0, 0, 1, 1], [], []>} : vector<8x19xf32>, vector<19x19xf32>, vector<8x19xf32> -> vector<8x19xf32>
    %51 = arith.addf %44, %50 : vector<8x19xf32>
    %c0_52 = arith.constant 0 : index
    %c0_53 = arith.constant 0 : index
    %52 = vector.load %arg7[%c0_52, %c0_53] : memref<1x19xf32, #tpu.memory_space<vmem>>, vector<1x19xf32>
    %53 = vector.broadcast %52 : vector<1x19xf32> to vector<8x19xf32>
    %54 = arith.addf %51, %53 : vector<8x19xf32>
    %c0_54 = arith.constant 0 : index
    %c19 = arith.constant 19 : index
    %55 = vector.load %arg9[%c0_54, %c19] : memref<16x57xf32, #tpu.memory_space<vmem>>, vector<8x19xf32>
    tpu.vector_store %arg9[%c0_54, %c19], %54 {strides = array<i32>} : memref<16x57xf32, #tpu.memory_space<vmem>>, vector<8x19xf32>,
    %c0_55 = arith.constant 0 : index
    %c0_56 = arith.constant 0 : index
    %c0_57 = arith.constant 0 : index
    %56 = vector.load %arg5[%c0_55, %c0_56, %c0_57] : memref<4x8x8xf32, #tpu.memory_space<vmem>>, vector<1x8x8xf32>
    %57 = vector.shape_cast %56 : vector<1x8x8xf32> to vector<8x8xf32>
    %cst_58 = arith.constant dense<0.000000e+00> : vector<8x19xf32>
    %58 = tpu.matmul %57, %54, %cst_58 {dimension_numbers = #tpu.dot_dimension_numbers<[1], [0], [0], [1], [0, 0, 1, 1], [], []>} : vector<8x8xf32>, vector<8x19xf32>, vector<8x19xf32> -> vector<8x19xf32>
    %c0_59 = arith.constant 0 : index
    %c0_60 = arith.constant 0 : index
    %c0_61 = arith.constant 0 : index
    %59 = vector.load %arg6[%c0_59, %c0_60, %c0_61] : memref<4x19x19xf32, #tpu.memory_space<vmem>>, vector<1x19x19xf32>
    %60 = vector.shape_cast %59 : vector<1x19x19xf32> to vector<19x19xf32>
    %cst_62 = arith.constant dense<0.000000e+00> : vector<8x19xf32>
    %61 = tpu.matmul %58, %60, %cst_62 {dimension_numbers = #tpu.dot_dimension_numbers<[1], [0], [0], [1], [0, 0, 1, 1], [], []>} : vector<8x19xf32>, vector<19x19xf32>, vector<8x19xf32> -> vector<8x19xf32>
    %c1_63 = arith.constant 1 : index
    %c0_64 = arith.constant 0 : index
    %c0_65 = arith.constant 0 : index
    %62 = vector.load %arg5[%c1_63, %c0_64, %c0_65] : memref<4x8x8xf32, #tpu.memory_space<vmem>>, vector<1x8x8xf32>
    %63 = vector.shape_cast %62 : vector<1x8x8xf32> to vector<8x8xf32>
    %cst_66 = arith.constant dense<0.000000e+00> : vector<8x19xf32>
    %64 = tpu.matmul %63, %54, %cst_66 {dimension_numbers = #tpu.dot_dimension_numbers<[1], [0], [0], [1], [0, 0, 1, 1], [], []>} : vector<8x8xf32>, vector<8x19xf32>, vector<8x19xf32> -> vector<8x19xf32>
    %c1_67 = arith.constant 1 : index
    %c0_68 = arith.constant 0 : index
    %c0_69 = arith.constant 0 : index
    %65 = vector.load %arg6[%c1_67, %c0_68, %c0_69] : memref<4x19x19xf32, #tpu.memory_space<vmem>>, vector<1x19x19xf32>
    %66 = vector.shape_cast %65 : vector<1x19x19xf32> to vector<19x19xf32>
    %cst_70 = arith.constant dense<0.000000e+00> : vector<8x19xf32>
    %67 = tpu.matmul %64, %66, %cst_70 {dimension_numbers = #tpu.dot_dimension_numbers<[1], [0], [0], [1], [0, 0, 1, 1], [], []>} : vector<8x19xf32>, vector<19x19xf32>, vector<8x19xf32> -> vector<8x19xf32>
    %68 = arith.addf %61, %67 : vector<8x19xf32>
    %c2_71 = arith.constant 2 : index
    %c0_72 = arith.constant 0 : index
    %c0_73 = arith.constant 0 : index
    %69 = vector.load %arg5[%c2_71, %c0_72, %c0_73] : memref<4x8x8xf32, #tpu.memory_space<vmem>>, vector<1x8x8xf32>
    %70 = vector.shape_cast %69 : vector<1x8x8xf32> to vector<8x8xf32>
    %cst_74 = arith.constant dense<0.000000e+00> : vector<8x19xf32>
    %71 = tpu.matmul %70, %54, %cst_74 {dimension_numbers = #tpu.dot_dimension_numbers<[1], [0], [0], [1], [0, 0, 1, 1], [], []>} : vector<8x8xf32>, vector<8x19xf32>, vector<8x19xf32> -> vector<8x19xf32>
    %c2_75 = arith.constant 2 : index
    %c0_76 = arith.constant 0 : index
    %c0_77 = arith.constant 0 : index
    %72 = vector.load %arg6[%c2_75, %c0_76, %c0_77] : memref<4x19x19xf32, #tpu.memory_space<vmem>>, vector<1x19x19xf32>
    %73 = vector.shape_cast %72 : vector<1x19x19xf32> to vector<19x19xf32>
    %cst_78 = arith.constant dense<0.000000e+00> : vector<8x19xf32>
    %74 = tpu.matmul %71, %73, %cst_78 {dimension_numbers = #tpu.dot_dimension_numbers<[1], [0], [0], [1], [0, 0, 1, 1], [], []>} : vector<8x19xf32>, vector<19x19xf32>, vector<8x19xf32> -> vector<8x19xf32>
    %75 = arith.addf %68, %74 : vector<8x19xf32>
    %c3_79 = arith.constant 3 : index
    %c0_80 = arith.constant 0 : index
    %c0_81 = arith.constant 0 : index
    %76 = vector.load %arg5[%c3_79, %c0_80, %c0_81] : memref<4x8x8xf32, #tpu.memory_space<vmem>>, vector<1x8x8xf32>
    %77 = vector.shape_cast %76 : vector<1x8x8xf32> to vector<8x8xf32>
    %cst_82 = arith.constant dense<0.000000e+00> : vector<8x19xf32>
    %78 = tpu.matmul %77, %54, %cst_82 {dimension_numbers = #tpu.dot_dimension_numbers<[1], [0], [0], [1], [0, 0, 1, 1], [], []>} : vector<8x8xf32>, vector<8x19xf32>, vector<8x19xf32> -> vector<8x19xf32>
    %c3_83 = arith.constant 3 : index
    %c0_84 = arith.constant 0 : index
    %c0_85 = arith.constant 0 : index
    %79 = vector.load %arg6[%c3_83, %c0_84, %c0_85] : memref<4x19x19xf32, #tpu.memory_space<vmem>>, vector<1x19x19xf32>
    %80 = vector.shape_cast %79 : vector<1x19x19xf32> to vector<19x19xf32>
    %cst_86 = arith.constant dense<0.000000e+00> : vector<8x19xf32>
    %81 = tpu.matmul %78, %80, %cst_86 {dimension_numbers = #tpu.dot_dimension_numbers<[1], [0], [0], [1], [0, 0, 1, 1], [], []>} : vector<8x19xf32>, vector<19x19xf32>, vector<8x19xf32> -> vector<8x19xf32>
    %82 = arith.addf %75, %81 : vector<8x19xf32>
    %c0_87 = arith.constant 0 : index
    %c0_88 = arith.constant 0 : index
    %83 = vector.load %arg7[%c0_87, %c0_88] : memref<1x19xf32, #tpu.memory_space<vmem>>, vector<1x19xf32>
    %84 = vector.broadcast %83 : vector<1x19xf32> to vector<8x19xf32>
    %85 = arith.addf %82, %84 : vector<8x19xf32>
    %cst_89 = arith.constant 2.000000e+00 : f32
    %86 = vector.broadcast %cst_89 : f32 to vector<8x19xf32>
    %87 = arith.mulf %86, %85 : vector<8x19xf32>
    %88 = arith.subf %87, %23 : vector<8x19xf32>
    %c0_90 = arith.constant 0 : index
    %c38 = arith.constant 38 : index
    %89 = vector.load %arg9[%c0_90, %c38] : memref<16x57xf32, #tpu.memory_space<vmem>>, vector<8x19xf32>
    tpu.vector_store %arg9[%c0_90, %c38], %88 {strides = array<i32>} : memref<16x57xf32, #tpu.memory_space<vmem>>, vector<8x19xf32>,
    %c8 = arith.constant 8 : index
    %c0_91 = arith.constant 0 : index
    %90 = vector.load %arg0[%c8, %c0_91] : memref<16x57xf32, #tpu.memory_space<vmem>>, vector<8x57xf32>
    %c0_92 = arith.constant 0 : index
    %c0_93 = arith.constant 0 : index
    %91 = vector.load %arg1[%c0_92, %c0_93] : memref<57x32xf32, #tpu.memory_space<vmem>>, vector<57x32xf32>
    %cst_94 = arith.constant dense<0.000000e+00> : vector<8x32xf32>
    %92 = tpu.matmul %90, %91, %cst_94 {dimension_numbers = #tpu.dot_dimension_numbers<[1], [0], [0], [1], [0, 0, 1, 1], [], []>} : vector<8x57xf32>, vector<57x32xf32>, vector<8x32xf32> -> vector<8x32xf32>
    %c0_95 = arith.constant 0 : index
    %c0_96 = arith.constant 0 : index
    %93 = vector.load %arg2[%c0_95, %c0_96] : memref<1x32xf32, #tpu.memory_space<vmem>>, vector<1x32xf32>
    %94 = vector.broadcast %93 : vector<1x32xf32> to vector<8x32xf32>
    %95 = arith.addf %92, %94 : vector<8x32xf32>
    %96 = arith.negf %95 : vector<8x32xf32>
    %97 = math.exp %96 : vector<8x32xf32>
    %cst_97 = arith.constant 1.000000e+00 : f32
    %98 = vector.broadcast %cst_97 : f32 to vector<8x32xf32>
    %99 = arith.addf %98, %97 : vector<8x32xf32>
    %100 = arith.divf %98, %99 : vector<8x32xf32>
    %101 = vector.extract_strided_slice %100 {offsets = [0, 0], sizes = [8, 16], strides = [1, 1]} : vector<8x32xf32> to vector<8x16xf32>
    %102 = vector.extract_strided_slice %100 {offsets = [0, 16], sizes = [8, 16], strides = [1, 1]} : vector<8x32xf32> to vector<8x16xf32>
    %c1_98 = arith.constant 1 : index
    %c0_99 = arith.constant 0 : index
    %c0_100 = arith.constant 0 : index
    %103 = vector.load %arg8[%c1_98, %c0_99, %c0_100] : memref<2x8x16xf32, #tpu.memory_space<vmem>>, vector<1x8x16xf32>
    %104 = vector.shape_cast %103 : vector<1x8x16xf32> to vector<8x16xf32>
    %105 = vector.shape_cast %102 : vector<8x16xf32> to vector<1x8x16xf32>
    tpu.vector_store %arg8[%c1_98, %c0_99, %c0_100], %105 {strides = array<i32>} : memref<2x8x16xf32, #tpu.memory_space<vmem>>, vector<1x8x16xf32>,
    %c1_101 = arith.constant 1 : index
    %c0_102 = arith.constant 0 : index
    %c0_103 = arith.constant 0 : index
    %106 = vector.load %arg3[%c1_101, %c0_102, %c0_103] : memref<2x8x3xf32, #tpu.memory_space<vmem>>, vector<1x8x3xf32>
    %107 = vector.shape_cast %106 : vector<1x8x3xf32> to vector<8x3xf32>
    %c0_104 = arith.constant 0 : index
    %c0_105 = arith.constant 0 : index
    %108 = vector.load %arg10[%c0_104, %c0_105] : memref<8x19xf32, #tpu.memory_space<vmem>>, vector<8x3xf32>
    tpu.vector_store %arg10[%c0_104, %c0_105], %107 {strides = array<i32>} : memref<8x19xf32, #tpu.memory_space<vmem>>, vector<8x3xf32>,
    %c1_106 = arith.constant 1 : index
    %c0_107 = arith.constant 0 : index
    %c0_108 = arith.constant 0 : index
    %109 = vector.load %arg4[%c1_106, %c0_107, %c0_108] : memref<2x8x16xf32, #tpu.memory_space<vmem>>, vector<1x8x16xf32>
    %110 = vector.shape_cast %109 : vector<1x8x16xf32> to vector<8x16xf32>
    %111 = arith.mulf %101, %110 : vector<8x16xf32>
    %c0_109 = arith.constant 0 : index
    %c3_110 = arith.constant 3 : index
    %112 = vector.load %arg10[%c0_109, %c3_110] : memref<8x19xf32, #tpu.memory_space<vmem>>, vector<8x16xf32>
    tpu.vector_store %arg10[%c0_109, %c3_110], %111 {strides = array<i32>} : memref<8x19xf32, #tpu.memory_space<vmem>>, vector<8x16xf32>,
    %c0_111 = arith.constant 0 : index
    %c0_112 = arith.constant 0 : index
    %113 = vector.load %arg10[%c0_111, %c0_112] : memref<8x19xf32, #tpu.memory_space<vmem>>, vector<8x19xf32>
    %c8_113 = arith.constant 8 : index
    %c0_114 = arith.constant 0 : index
    %114 = vector.load %arg9[%c8_113, %c0_114] : memref<16x57xf32, #tpu.memory_space<vmem>>, vector<8x19xf32>
    tpu.vector_store %arg9[%c8_113, %c0_114], %113 {strides = array<i32>} : memref<16x57xf32, #tpu.memory_space<vmem>>, vector<8x19xf32>,
    %c0_115 = arith.constant 0 : index
    %c0_116 = arith.constant 0 : index
    %c0_117 = arith.constant 0 : index
    %115 = vector.load %arg5[%c0_115, %c0_116, %c0_117] : memref<4x8x8xf32, #tpu.memory_space<vmem>>, vector<1x8x8xf32>
    %116 = vector.shape_cast %115 : vector<1x8x8xf32> to vector<8x8xf32>
    %cst_118 = arith.constant dense<0.000000e+00> : vector<8x19xf32>
    %117 = tpu.matmul %116, %113, %cst_118 {dimension_numbers = #tpu.dot_dimension_numbers<[1], [0], [0], [1], [0, 0, 1, 1], [], []>} : vector<8x8xf32>, vector<8x19xf32>, vector<8x19xf32> -> vector<8x19xf32>
    %c0_119 = arith.constant 0 : index
    %c0_120 = arith.constant 0 : index
    %c0_121 = arith.constant 0 : index
    %118 = vector.load %arg6[%c0_119, %c0_120, %c0_121] : memref<4x19x19xf32, #tpu.memory_space<vmem>>, vector<1x19x19xf32>
    %119 = vector.shape_cast %118 : vector<1x19x19xf32> to vector<19x19xf32>
    %cst_122 = arith.constant dense<0.000000e+00> : vector<8x19xf32>
    %120 = tpu.matmul %117, %119, %cst_122 {dimension_numbers = #tpu.dot_dimension_numbers<[1], [0], [0], [1], [0, 0, 1, 1], [], []>} : vector<8x19xf32>, vector<19x19xf32>, vector<8x19xf32> -> vector<8x19xf32>
    %c1_123 = arith.constant 1 : index
    %c0_124 = arith.constant 0 : index
    %c0_125 = arith.constant 0 : index
    %121 = vector.load %arg5[%c1_123, %c0_124, %c0_125] : memref<4x8x8xf32, #tpu.memory_space<vmem>>, vector<1x8x8xf32>
    %122 = vector.shape_cast %121 : vector<1x8x8xf32> to vector<8x8xf32>
    %cst_126 = arith.constant dense<0.000000e+00> : vector<8x19xf32>
    %123 = tpu.matmul %122, %113, %cst_126 {dimension_numbers = #tpu.dot_dimension_numbers<[1], [0], [0], [1], [0, 0, 1, 1], [], []>} : vector<8x8xf32>, vector<8x19xf32>, vector<8x19xf32> -> vector<8x19xf32>
    %c1_127 = arith.constant 1 : index
    %c0_128 = arith.constant 0 : index
    %c0_129 = arith.constant 0 : index
    %124 = vector.load %arg6[%c1_127, %c0_128, %c0_129] : memref<4x19x19xf32, #tpu.memory_space<vmem>>, vector<1x19x19xf32>
    %125 = vector.shape_cast %124 : vector<1x19x19xf32> to vector<19x19xf32>
    %cst_130 = arith.constant dense<0.000000e+00> : vector<8x19xf32>
    %126 = tpu.matmul %123, %125, %cst_130 {dimension_numbers = #tpu.dot_dimension_numbers<[1], [0], [0], [1], [0, 0, 1, 1], [], []>} : vector<8x19xf32>, vector<19x19xf32>, vector<8x19xf32> -> vector<8x19xf32>
    %127 = arith.addf %120, %126 : vector<8x19xf32>
    %c2_131 = arith.constant 2 : index
    %c0_132 = arith.constant 0 : index
    %c0_133 = arith.constant 0 : index
    %128 = vector.load %arg5[%c2_131, %c0_132, %c0_133] : memref<4x8x8xf32, #tpu.memory_space<vmem>>, vector<1x8x8xf32>
    %129 = vector.shape_cast %128 : vector<1x8x8xf32> to vector<8x8xf32>
    %cst_134 = arith.constant dense<0.000000e+00> : vector<8x19xf32>
    %130 = tpu.matmul %129, %113, %cst_134 {dimension_numbers = #tpu.dot_dimension_numbers<[1], [0], [0], [1], [0, 0, 1, 1], [], []>} : vector<8x8xf32>, vector<8x19xf32>, vector<8x19xf32> -> vector<8x19xf32>
    %c2_135 = arith.constant 2 : index
    %c0_136 = arith.constant 0 : index
    %c0_137 = arith.constant 0 : index
    %131 = vector.load %arg6[%c2_135, %c0_136, %c0_137] : memref<4x19x19xf32, #tpu.memory_space<vmem>>, vector<1x19x19xf32>
    %132 = vector.shape_cast %131 : vector<1x19x19xf32> to vector<19x19xf32>
    %cst_138 = arith.constant dense<0.000000e+00> : vector<8x19xf32>
    %133 = tpu.matmul %130, %132, %cst_138 {dimension_numbers = #tpu.dot_dimension_numbers<[1], [0], [0], [1], [0, 0, 1, 1], [], []>} : vector<8x19xf32>, vector<19x19xf32>, vector<8x19xf32> -> vector<8x19xf32>
    %134 = arith.addf %127, %133 : vector<8x19xf32>
    %c3_139 = arith.constant 3 : index
    %c0_140 = arith.constant 0 : index
    %c0_141 = arith.constant 0 : index
    %135 = vector.load %arg5[%c3_139, %c0_140, %c0_141] : memref<4x8x8xf32, #tpu.memory_space<vmem>>, vector<1x8x8xf32>
    %136 = vector.shape_cast %135 : vector<1x8x8xf32> to vector<8x8xf32>
    %cst_142 = arith.constant dense<0.000000e+00> : vector<8x19xf32>
    %137 = tpu.matmul %136, %113, %cst_142 {dimension_numbers = #tpu.dot_dimension_numbers<[1], [0], [0], [1], [0, 0, 1, 1], [], []>} : vector<8x8xf32>, vector<8x19xf32>, vector<8x19xf32> -> vector<8x19xf32>
    %c3_143 = arith.constant 3 : index
    %c0_144 = arith.constant 0 : index
    %c0_145 = arith.constant 0 : index
    %138 = vector.load %arg6[%c3_143, %c0_144, %c0_145] : memref<4x19x19xf32, #tpu.memory_space<vmem>>, vector<1x19x19xf32>
    %139 = vector.shape_cast %138 : vector<1x19x19xf32> to vector<19x19xf32>
    %cst_146 = arith.constant dense<0.000000e+00> : vector<8x19xf32>
    %140 = tpu.matmul %137, %139, %cst_146 {dimension_numbers = #tpu.dot_dimension_numbers<[1], [0], [0], [1], [0, 0, 1, 1], [], []>} : vector<8x19xf32>, vector<19x19xf32>, vector<8x19xf32> -> vector<8x19xf32>
    %141 = arith.addf %134, %140 : vector<8x19xf32>
    %c0_147 = arith.constant 0 : index
    %c0_148 = arith.constant 0 : index
    %142 = vector.load %arg7[%c0_147, %c0_148] : memref<1x19xf32, #tpu.memory_space<vmem>>, vector<1x19xf32>
    %143 = vector.broadcast %142 : vector<1x19xf32> to vector<8x19xf32>
    %144 = arith.addf %141, %143 : vector<8x19xf32>
    %c8_149 = arith.constant 8 : index
    %c19_150 = arith.constant 19 : index
    %145 = vector.load %arg9[%c8_149, %c19_150] : memref<16x57xf32, #tpu.memory_space<vmem>>, vector<8x19xf32>
    tpu.vector_store %arg9[%c8_149, %c19_150], %144 {strides = array<i32>} : memref<16x57xf32, #tpu.memory_space<vmem>>, vector<8x19xf32>,
    %c0_151 = arith.constant 0 : index
    %c0_152 = arith.constant 0 : index
    %c0_153 = arith.constant 0 : index
    %146 = vector.load %arg5[%c0_151, %c0_152, %c0_153] : memref<4x8x8xf32, #tpu.memory_space<vmem>>, vector<1x8x8xf32>
    %147 = vector.shape_cast %146 : vector<1x8x8xf32> to vector<8x8xf32>
    %cst_154 = arith.constant dense<0.000000e+00> : vector<8x19xf32>
    %148 = tpu.matmul %147, %144, %cst_154 {dimension_numbers = #tpu.dot_dimension_numbers<[1], [0], [0], [1], [0, 0, 1, 1], [], []>} : vector<8x8xf32>, vector<8x19xf32>, vector<8x19xf32> -> vector<8x19xf32>
    %c0_155 = arith.constant 0 : index
    %c0_156 = arith.constant 0 : index
    %c0_157 = arith.constant 0 : index
    %149 = vector.load %arg6[%c0_155, %c0_156, %c0_157] : memref<4x19x19xf32, #tpu.memory_space<vmem>>, vector<1x19x19xf32>
    %150 = vector.shape_cast %149 : vector<1x19x19xf32> to vector<19x19xf32>
    %cst_158 = arith.constant dense<0.000000e+00> : vector<8x19xf32>
    %151 = tpu.matmul %148, %150, %cst_158 {dimension_numbers = #tpu.dot_dimension_numbers<[1], [0], [0], [1], [0, 0, 1, 1], [], []>} : vector<8x19xf32>, vector<19x19xf32>, vector<8x19xf32> -> vector<8x19xf32>
    %c1_159 = arith.constant 1 : index
    %c0_160 = arith.constant 0 : index
    %c0_161 = arith.constant 0 : index
    %152 = vector.load %arg5[%c1_159, %c0_160, %c0_161] : memref<4x8x8xf32, #tpu.memory_space<vmem>>, vector<1x8x8xf32>
    %153 = vector.shape_cast %152 : vector<1x8x8xf32> to vector<8x8xf32>
    %cst_162 = arith.constant dense<0.000000e+00> : vector<8x19xf32>
    %154 = tpu.matmul %153, %144, %cst_162 {dimension_numbers = #tpu.dot_dimension_numbers<[1], [0], [0], [1], [0, 0, 1, 1], [], []>} : vector<8x8xf32>, vector<8x19xf32>, vector<8x19xf32> -> vector<8x19xf32>
    %c1_163 = arith.constant 1 : index
    %c0_164 = arith.constant 0 : index
    %c0_165 = arith.constant 0 : index
    %155 = vector.load %arg6[%c1_163, %c0_164, %c0_165] : memref<4x19x19xf32, #tpu.memory_space<vmem>>, vector<1x19x19xf32>
    %156 = vector.shape_cast %155 : vector<1x19x19xf32> to vector<19x19xf32>
    %cst_166 = arith.constant dense<0.000000e+00> : vector<8x19xf32>
    %157 = tpu.matmul %154, %156, %cst_166 {dimension_numbers = #tpu.dot_dimension_numbers<[1], [0], [0], [1], [0, 0, 1, 1], [], []>} : vector<8x19xf32>, vector<19x19xf32>, vector<8x19xf32> -> vector<8x19xf32>
    %158 = arith.addf %151, %157 : vector<8x19xf32>
    %c2_167 = arith.constant 2 : index
    %c0_168 = arith.constant 0 : index
    %c0_169 = arith.constant 0 : index
    %159 = vector.load %arg5[%c2_167, %c0_168, %c0_169] : memref<4x8x8xf32, #tpu.memory_space<vmem>>, vector<1x8x8xf32>
    %160 = vector.shape_cast %159 : vector<1x8x8xf32> to vector<8x8xf32>
    %cst_170 = arith.constant dense<0.000000e+00> : vector<8x19xf32>
    %161 = tpu.matmul %160, %144, %cst_170 {dimension_numbers = #tpu.dot_dimension_numbers<[1], [0], [0], [1], [0, 0, 1, 1], [], []>} : vector<8x8xf32>, vector<8x19xf32>, vector<8x19xf32> -> vector<8x19xf32>
    %c2_171 = arith.constant 2 : index
    %c0_172 = arith.constant 0 : index
    %c0_173 = arith.constant 0 : index
    %162 = vector.load %arg6[%c2_171, %c0_172, %c0_173] : memref<4x19x19xf32, #tpu.memory_space<vmem>>, vector<1x19x19xf32>
    %163 = vector.shape_cast %162 : vector<1x19x19xf32> to vector<19x19xf32>
    %cst_174 = arith.constant dense<0.000000e+00> : vector<8x19xf32>
    %164 = tpu.matmul %161, %163, %cst_174 {dimension_numbers = #tpu.dot_dimension_numbers<[1], [0], [0], [1], [0, 0, 1, 1], [], []>} : vector<8x19xf32>, vector<19x19xf32>, vector<8x19xf32> -> vector<8x19xf32>
    %165 = arith.addf %158, %164 : vector<8x19xf32>
    %c3_175 = arith.constant 3 : index
    %c0_176 = arith.constant 0 : index
    %c0_177 = arith.constant 0 : index
    %166 = vector.load %arg5[%c3_175, %c0_176, %c0_177] : memref<4x8x8xf32, #tpu.memory_space<vmem>>, vector<1x8x8xf32>
    %167 = vector.shape_cast %166 : vector<1x8x8xf32> to vector<8x8xf32>
    %cst_178 = arith.constant dense<0.000000e+00> : vector<8x19xf32>
    %168 = tpu.matmul %167, %144, %cst_178 {dimension_numbers = #tpu.dot_dimension_numbers<[1], [0], [0], [1], [0, 0, 1, 1], [], []>} : vector<8x8xf32>, vector<8x19xf32>, vector<8x19xf32> -> vector<8x19xf32>
    %c3_179 = arith.constant 3 : index
    %c0_180 = arith.constant 0 : index
    %c0_181 = arith.constant 0 : index
    %169 = vector.load %arg6[%c3_179, %c0_180, %c0_181] : memref<4x19x19xf32, #tpu.memory_space<vmem>>, vector<1x19x19xf32>
    %170 = vector.shape_cast %169 : vector<1x19x19xf32> to vector<19x19xf32>
    %cst_182 = arith.constant dense<0.000000e+00> : vector<8x19xf32>
    %171 = tpu.matmul %168, %170, %cst_182 {dimension_numbers = #tpu.dot_dimension_numbers<[1], [0], [0], [1], [0, 0, 1, 1], [], []>} : vector<8x19xf32>, vector<19x19xf32>, vector<8x19xf32> -> vector<8x19xf32>
    %172 = arith.addf %165, %171 : vector<8x19xf32>
    %c0_183 = arith.constant 0 : index
    %c0_184 = arith.constant 0 : index
    %173 = vector.load %arg7[%c0_183, %c0_184] : memref<1x19xf32, #tpu.memory_space<vmem>>, vector<1x19xf32>
    %174 = vector.broadcast %173 : vector<1x19xf32> to vector<8x19xf32>
    %175 = arith.addf %172, %174 : vector<8x19xf32>
    %cst_185 = arith.constant 2.000000e+00 : f32
    %176 = vector.broadcast %cst_185 : f32 to vector<8x19xf32>
    %177 = arith.mulf %176, %175 : vector<8x19xf32>
    %178 = arith.subf %177, %113 : vector<8x19xf32>
    %c8_186 = arith.constant 8 : index
    %c38_187 = arith.constant 38 : index
    %179 = vector.load %arg9[%c8_186, %c38_187] : memref<16x57xf32, #tpu.memory_space<vmem>>, vector<8x19xf32>
    tpu.vector_store %arg9[%c8_186, %c38_187], %178 {strides = array<i32>} : memref<16x57xf32, #tpu.memory_space<vmem>>, vector<8x19xf32>,
    return
  }
}

module attributes {stable_mosaic.version = 11 : i64} {
  func.func @kernel(%arg0: memref<2x8x16xf32, #tpu.memory_space<vmem>>, %arg1: memref<2x8x16xf32, #tpu.memory_space<vmem>>, %arg2: memref<4x8x8xf32, #tpu.memory_space<vmem>>, %arg3: memref<4x32x32xf32, #tpu.memory_space<vmem>>, %arg4: memref<1x32xf32, #tpu.memory_space<vmem>>, %arg5: memref<16x96xf32, #tpu.memory_space<vmem>>, %arg6: memref<8x32xf32, #tpu.memory_space<vmem>>) attributes {dimension_semantics = [], scalar_prefetch = 0 : i64, scratch_operands = 1 : i64, tpu.core_type = #tpu.core_type<tc>} {
    %c0 = arith.constant 0 : index
    %c0_0 = arith.constant 0 : index
    %c0_1 = arith.constant 0 : index
    %0 = vector.load %arg0[%c0, %c0_0, %c0_1] : memref<2x8x16xf32, #tpu.memory_space<vmem>>, vector<1x8x16xf32>
    %1 = vector.shape_cast %0 : vector<1x8x16xf32> to vector<8x16xf32>
    %c0_2 = arith.constant 0 : index
    %c0_3 = arith.constant 0 : index
    %2 = vector.load %arg6[%c0_2, %c0_3] : memref<8x32xf32, #tpu.memory_space<vmem>>, vector<8x16xf32>
    tpu.vector_store %arg6[%c0_2, %c0_3], %1 {strides = array<i32>} : memref<8x32xf32, #tpu.memory_space<vmem>>, vector<8x16xf32>,
    %c0_4 = arith.constant 0 : index
    %c0_5 = arith.constant 0 : index
    %c0_6 = arith.constant 0 : index
    %3 = vector.load %arg1[%c0_4, %c0_5, %c0_6] : memref<2x8x16xf32, #tpu.memory_space<vmem>>, vector<1x8x16xf32>
    %4 = vector.shape_cast %3 : vector<1x8x16xf32> to vector<8x16xf32>
    %c0_7 = arith.constant 0 : index
    %c16 = arith.constant 16 : index
    %5 = vector.load %arg6[%c0_7, %c16] : memref<8x32xf32, #tpu.memory_space<vmem>>, vector<8x16xf32>
    tpu.vector_store %arg6[%c0_7, %c16], %4 {strides = array<i32>} : memref<8x32xf32, #tpu.memory_space<vmem>>, vector<8x16xf32>,
    %c0_8 = arith.constant 0 : index
    %c0_9 = arith.constant 0 : index
    %6 = vector.load %arg6[%c0_8, %c0_9] : memref<8x32xf32, #tpu.memory_space<vmem>>, vector<8x32xf32>
    %c0_10 = arith.constant 0 : index
    %c0_11 = arith.constant 0 : index
    %7 = vector.load %arg5[%c0_10, %c0_11] : memref<16x96xf32, #tpu.memory_space<vmem>>, vector<8x32xf32>
    tpu.vector_store %arg5[%c0_10, %c0_11], %6 {strides = array<i32>} : memref<16x96xf32, #tpu.memory_space<vmem>>, vector<8x32xf32>,
    %c0_12 = arith.constant 0 : index
    %c0_13 = arith.constant 0 : index
    %c0_14 = arith.constant 0 : index
    %8 = vector.load %arg2[%c0_12, %c0_13, %c0_14] : memref<4x8x8xf32, #tpu.memory_space<vmem>>, vector<1x8x8xf32>
    %9 = vector.shape_cast %8 : vector<1x8x8xf32> to vector<8x8xf32>
    %cst = arith.constant dense<0.000000e+00> : vector<8x32xf32>
    %10 = tpu.matmul %9, %6, %cst {dimension_numbers = #tpu.dot_dimension_numbers<[1], [0], [0], [1], [0, 0, 1, 1], [], []>} : vector<8x8xf32>, vector<8x32xf32>, vector<8x32xf32> -> vector<8x32xf32>
    %c0_15 = arith.constant 0 : index
    %c0_16 = arith.constant 0 : index
    %c0_17 = arith.constant 0 : index
    %11 = vector.load %arg3[%c0_15, %c0_16, %c0_17] : memref<4x32x32xf32, #tpu.memory_space<vmem>>, vector<1x32x32xf32>
    %12 = vector.shape_cast %11 : vector<1x32x32xf32> to vector<32x32xf32>
    %cst_18 = arith.constant dense<0.000000e+00> : vector<8x32xf32>
    %13 = tpu.matmul %10, %12, %cst_18 {dimension_numbers = #tpu.dot_dimension_numbers<[1], [0], [0], [1], [0, 0, 1, 1], [], []>} : vector<8x32xf32>, vector<32x32xf32>, vector<8x32xf32> -> vector<8x32xf32>
    %c1 = arith.constant 1 : index
    %c0_19 = arith.constant 0 : index
    %c0_20 = arith.constant 0 : index
    %14 = vector.load %arg2[%c1, %c0_19, %c0_20] : memref<4x8x8xf32, #tpu.memory_space<vmem>>, vector<1x8x8xf32>
    %15 = vector.shape_cast %14 : vector<1x8x8xf32> to vector<8x8xf32>
    %cst_21 = arith.constant dense<0.000000e+00> : vector<8x32xf32>
    %16 = tpu.matmul %15, %6, %cst_21 {dimension_numbers = #tpu.dot_dimension_numbers<[1], [0], [0], [1], [0, 0, 1, 1], [], []>} : vector<8x8xf32>, vector<8x32xf32>, vector<8x32xf32> -> vector<8x32xf32>
    %c1_22 = arith.constant 1 : index
    %c0_23 = arith.constant 0 : index
    %c0_24 = arith.constant 0 : index
    %17 = vector.load %arg3[%c1_22, %c0_23, %c0_24] : memref<4x32x32xf32, #tpu.memory_space<vmem>>, vector<1x32x32xf32>
    %18 = vector.shape_cast %17 : vector<1x32x32xf32> to vector<32x32xf32>
    %cst_25 = arith.constant dense<0.000000e+00> : vector<8x32xf32>
    %19 = tpu.matmul %16, %18, %cst_25 {dimension_numbers = #tpu.dot_dimension_numbers<[1], [0], [0], [1], [0, 0, 1, 1], [], []>} : vector<8x32xf32>, vector<32x32xf32>, vector<8x32xf32> -> vector<8x32xf32>
    %20 = arith.addf %13, %19 : vector<8x32xf32>
    %c2 = arith.constant 2 : index
    %c0_26 = arith.constant 0 : index
    %c0_27 = arith.constant 0 : index
    %21 = vector.load %arg2[%c2, %c0_26, %c0_27] : memref<4x8x8xf32, #tpu.memory_space<vmem>>, vector<1x8x8xf32>
    %22 = vector.shape_cast %21 : vector<1x8x8xf32> to vector<8x8xf32>
    %cst_28 = arith.constant dense<0.000000e+00> : vector<8x32xf32>
    %23 = tpu.matmul %22, %6, %cst_28 {dimension_numbers = #tpu.dot_dimension_numbers<[1], [0], [0], [1], [0, 0, 1, 1], [], []>} : vector<8x8xf32>, vector<8x32xf32>, vector<8x32xf32> -> vector<8x32xf32>
    %c2_29 = arith.constant 2 : index
    %c0_30 = arith.constant 0 : index
    %c0_31 = arith.constant 0 : index
    %24 = vector.load %arg3[%c2_29, %c0_30, %c0_31] : memref<4x32x32xf32, #tpu.memory_space<vmem>>, vector<1x32x32xf32>
    %25 = vector.shape_cast %24 : vector<1x32x32xf32> to vector<32x32xf32>
    %cst_32 = arith.constant dense<0.000000e+00> : vector<8x32xf32>
    %26 = tpu.matmul %23, %25, %cst_32 {dimension_numbers = #tpu.dot_dimension_numbers<[1], [0], [0], [1], [0, 0, 1, 1], [], []>} : vector<8x32xf32>, vector<32x32xf32>, vector<8x32xf32> -> vector<8x32xf32>
    %27 = arith.addf %20, %26 : vector<8x32xf32>
    %c3 = arith.constant 3 : index
    %c0_33 = arith.constant 0 : index
    %c0_34 = arith.constant 0 : index
    %28 = vector.load %arg2[%c3, %c0_33, %c0_34] : memref<4x8x8xf32, #tpu.memory_space<vmem>>, vector<1x8x8xf32>
    %29 = vector.shape_cast %28 : vector<1x8x8xf32> to vector<8x8xf32>
    %cst_35 = arith.constant dense<0.000000e+00> : vector<8x32xf32>
    %30 = tpu.matmul %29, %6, %cst_35 {dimension_numbers = #tpu.dot_dimension_numbers<[1], [0], [0], [1], [0, 0, 1, 1], [], []>} : vector<8x8xf32>, vector<8x32xf32>, vector<8x32xf32> -> vector<8x32xf32>
    %c3_36 = arith.constant 3 : index
    %c0_37 = arith.constant 0 : index
    %c0_38 = arith.constant 0 : index
    %31 = vector.load %arg3[%c3_36, %c0_37, %c0_38] : memref<4x32x32xf32, #tpu.memory_space<vmem>>, vector<1x32x32xf32>
    %32 = vector.shape_cast %31 : vector<1x32x32xf32> to vector<32x32xf32>
    %cst_39 = arith.constant dense<0.000000e+00> : vector<8x32xf32>
    %33 = tpu.matmul %30, %32, %cst_39 {dimension_numbers = #tpu.dot_dimension_numbers<[1], [0], [0], [1], [0, 0, 1, 1], [], []>} : vector<8x32xf32>, vector<32x32xf32>, vector<8x32xf32> -> vector<8x32xf32>
    %34 = arith.addf %27, %33 : vector<8x32xf32>
    %c0_40 = arith.constant 0 : index
    %c0_41 = arith.constant 0 : index
    %35 = vector.load %arg4[%c0_40, %c0_41] : memref<1x32xf32, #tpu.memory_space<vmem>>, vector<1x32xf32>
    %36 = vector.broadcast %35 : vector<1x32xf32> to vector<8x32xf32>
    %37 = arith.addf %34, %36 : vector<8x32xf32>
    %c0_42 = arith.constant 0 : index
    %c32 = arith.constant 32 : index
    %38 = vector.load %arg5[%c0_42, %c32] : memref<16x96xf32, #tpu.memory_space<vmem>>, vector<8x32xf32>
    tpu.vector_store %arg5[%c0_42, %c32], %37 {strides = array<i32>} : memref<16x96xf32, #tpu.memory_space<vmem>>, vector<8x32xf32>,
    %c0_43 = arith.constant 0 : index
    %c0_44 = arith.constant 0 : index
    %c0_45 = arith.constant 0 : index
    %39 = vector.load %arg2[%c0_43, %c0_44, %c0_45] : memref<4x8x8xf32, #tpu.memory_space<vmem>>, vector<1x8x8xf32>
    %40 = vector.shape_cast %39 : vector<1x8x8xf32> to vector<8x8xf32>
    %cst_46 = arith.constant dense<0.000000e+00> : vector<8x32xf32>
    %41 = tpu.matmul %40, %37, %cst_46 {dimension_numbers = #tpu.dot_dimension_numbers<[1], [0], [0], [1], [0, 0, 1, 1], [], []>} : vector<8x8xf32>, vector<8x32xf32>, vector<8x32xf32> -> vector<8x32xf32>
    %c0_47 = arith.constant 0 : index
    %c0_48 = arith.constant 0 : index
    %c0_49 = arith.constant 0 : index
    %42 = vector.load %arg3[%c0_47, %c0_48, %c0_49] : memref<4x32x32xf32, #tpu.memory_space<vmem>>, vector<1x32x32xf32>
    %43 = vector.shape_cast %42 : vector<1x32x32xf32> to vector<32x32xf32>
    %cst_50 = arith.constant dense<0.000000e+00> : vector<8x32xf32>
    %44 = tpu.matmul %41, %43, %cst_50 {dimension_numbers = #tpu.dot_dimension_numbers<[1], [0], [0], [1], [0, 0, 1, 1], [], []>} : vector<8x32xf32>, vector<32x32xf32>, vector<8x32xf32> -> vector<8x32xf32>
    %c1_51 = arith.constant 1 : index
    %c0_52 = arith.constant 0 : index
    %c0_53 = arith.constant 0 : index
    %45 = vector.load %arg2[%c1_51, %c0_52, %c0_53] : memref<4x8x8xf32, #tpu.memory_space<vmem>>, vector<1x8x8xf32>
    %46 = vector.shape_cast %45 : vector<1x8x8xf32> to vector<8x8xf32>
    %cst_54 = arith.constant dense<0.000000e+00> : vector<8x32xf32>
    %47 = tpu.matmul %46, %37, %cst_54 {dimension_numbers = #tpu.dot_dimension_numbers<[1], [0], [0], [1], [0, 0, 1, 1], [], []>} : vector<8x8xf32>, vector<8x32xf32>, vector<8x32xf32> -> vector<8x32xf32>
    %c1_55 = arith.constant 1 : index
    %c0_56 = arith.constant 0 : index
    %c0_57 = arith.constant 0 : index
    %48 = vector.load %arg3[%c1_55, %c0_56, %c0_57] : memref<4x32x32xf32, #tpu.memory_space<vmem>>, vector<1x32x32xf32>
    %49 = vector.shape_cast %48 : vector<1x32x32xf32> to vector<32x32xf32>
    %cst_58 = arith.constant dense<0.000000e+00> : vector<8x32xf32>
    %50 = tpu.matmul %47, %49, %cst_58 {dimension_numbers = #tpu.dot_dimension_numbers<[1], [0], [0], [1], [0, 0, 1, 1], [], []>} : vector<8x32xf32>, vector<32x32xf32>, vector<8x32xf32> -> vector<8x32xf32>
    %51 = arith.addf %44, %50 : vector<8x32xf32>
    %c2_59 = arith.constant 2 : index
    %c0_60 = arith.constant 0 : index
    %c0_61 = arith.constant 0 : index
    %52 = vector.load %arg2[%c2_59, %c0_60, %c0_61] : memref<4x8x8xf32, #tpu.memory_space<vmem>>, vector<1x8x8xf32>
    %53 = vector.shape_cast %52 : vector<1x8x8xf32> to vector<8x8xf32>
    %cst_62 = arith.constant dense<0.000000e+00> : vector<8x32xf32>
    %54 = tpu.matmul %53, %37, %cst_62 {dimension_numbers = #tpu.dot_dimension_numbers<[1], [0], [0], [1], [0, 0, 1, 1], [], []>} : vector<8x8xf32>, vector<8x32xf32>, vector<8x32xf32> -> vector<8x32xf32>
    %c2_63 = arith.constant 2 : index
    %c0_64 = arith.constant 0 : index
    %c0_65 = arith.constant 0 : index
    %55 = vector.load %arg3[%c2_63, %c0_64, %c0_65] : memref<4x32x32xf32, #tpu.memory_space<vmem>>, vector<1x32x32xf32>
    %56 = vector.shape_cast %55 : vector<1x32x32xf32> to vector<32x32xf32>
    %cst_66 = arith.constant dense<0.000000e+00> : vector<8x32xf32>
    %57 = tpu.matmul %54, %56, %cst_66 {dimension_numbers = #tpu.dot_dimension_numbers<[1], [0], [0], [1], [0, 0, 1, 1], [], []>} : vector<8x32xf32>, vector<32x32xf32>, vector<8x32xf32> -> vector<8x32xf32>
    %58 = arith.addf %51, %57 : vector<8x32xf32>
    %c3_67 = arith.constant 3 : index
    %c0_68 = arith.constant 0 : index
    %c0_69 = arith.constant 0 : index
    %59 = vector.load %arg2[%c3_67, %c0_68, %c0_69] : memref<4x8x8xf32, #tpu.memory_space<vmem>>, vector<1x8x8xf32>
    %60 = vector.shape_cast %59 : vector<1x8x8xf32> to vector<8x8xf32>
    %cst_70 = arith.constant dense<0.000000e+00> : vector<8x32xf32>
    %61 = tpu.matmul %60, %37, %cst_70 {dimension_numbers = #tpu.dot_dimension_numbers<[1], [0], [0], [1], [0, 0, 1, 1], [], []>} : vector<8x8xf32>, vector<8x32xf32>, vector<8x32xf32> -> vector<8x32xf32>
    %c3_71 = arith.constant 3 : index
    %c0_72 = arith.constant 0 : index
    %c0_73 = arith.constant 0 : index
    %62 = vector.load %arg3[%c3_71, %c0_72, %c0_73] : memref<4x32x32xf32, #tpu.memory_space<vmem>>, vector<1x32x32xf32>
    %63 = vector.shape_cast %62 : vector<1x32x32xf32> to vector<32x32xf32>
    %cst_74 = arith.constant dense<0.000000e+00> : vector<8x32xf32>
    %64 = tpu.matmul %61, %63, %cst_74 {dimension_numbers = #tpu.dot_dimension_numbers<[1], [0], [0], [1], [0, 0, 1, 1], [], []>} : vector<8x32xf32>, vector<32x32xf32>, vector<8x32xf32> -> vector<8x32xf32>
    %65 = arith.addf %58, %64 : vector<8x32xf32>
    %c0_75 = arith.constant 0 : index
    %c0_76 = arith.constant 0 : index
    %66 = vector.load %arg4[%c0_75, %c0_76] : memref<1x32xf32, #tpu.memory_space<vmem>>, vector<1x32xf32>
    %67 = vector.broadcast %66 : vector<1x32xf32> to vector<8x32xf32>
    %68 = arith.addf %65, %67 : vector<8x32xf32>
    %cst_77 = arith.constant 2.000000e+00 : f32
    %69 = vector.broadcast %cst_77 : f32 to vector<8x32xf32>
    %70 = arith.mulf %69, %68 : vector<8x32xf32>
    %71 = arith.subf %70, %6 : vector<8x32xf32>
    %c0_78 = arith.constant 0 : index
    %c64 = arith.constant 64 : index
    %72 = vector.load %arg5[%c0_78, %c64] : memref<16x96xf32, #tpu.memory_space<vmem>>, vector<8x32xf32>
    tpu.vector_store %arg5[%c0_78, %c64], %71 {strides = array<i32>} : memref<16x96xf32, #tpu.memory_space<vmem>>, vector<8x32xf32>,
    %c1_79 = arith.constant 1 : index
    %c0_80 = arith.constant 0 : index
    %c0_81 = arith.constant 0 : index
    %73 = vector.load %arg0[%c1_79, %c0_80, %c0_81] : memref<2x8x16xf32, #tpu.memory_space<vmem>>, vector<1x8x16xf32>
    %74 = vector.shape_cast %73 : vector<1x8x16xf32> to vector<8x16xf32>
    %c0_82 = arith.constant 0 : index
    %c0_83 = arith.constant 0 : index
    %75 = vector.load %arg6[%c0_82, %c0_83] : memref<8x32xf32, #tpu.memory_space<vmem>>, vector<8x16xf32>
    tpu.vector_store %arg6[%c0_82, %c0_83], %74 {strides = array<i32>} : memref<8x32xf32, #tpu.memory_space<vmem>>, vector<8x16xf32>,
    %c1_84 = arith.constant 1 : index
    %c0_85 = arith.constant 0 : index
    %c0_86 = arith.constant 0 : index
    %76 = vector.load %arg1[%c1_84, %c0_85, %c0_86] : memref<2x8x16xf32, #tpu.memory_space<vmem>>, vector<1x8x16xf32>
    %77 = vector.shape_cast %76 : vector<1x8x16xf32> to vector<8x16xf32>
    %c0_87 = arith.constant 0 : index
    %c16_88 = arith.constant 16 : index
    %78 = vector.load %arg6[%c0_87, %c16_88] : memref<8x32xf32, #tpu.memory_space<vmem>>, vector<8x16xf32>
    tpu.vector_store %arg6[%c0_87, %c16_88], %77 {strides = array<i32>} : memref<8x32xf32, #tpu.memory_space<vmem>>, vector<8x16xf32>,
    %c0_89 = arith.constant 0 : index
    %c0_90 = arith.constant 0 : index
    %79 = vector.load %arg6[%c0_89, %c0_90] : memref<8x32xf32, #tpu.memory_space<vmem>>, vector<8x32xf32>
    %c8 = arith.constant 8 : index
    %c0_91 = arith.constant 0 : index
    %80 = vector.load %arg5[%c8, %c0_91] : memref<16x96xf32, #tpu.memory_space<vmem>>, vector<8x32xf32>
    tpu.vector_store %arg5[%c8, %c0_91], %79 {strides = array<i32>} : memref<16x96xf32, #tpu.memory_space<vmem>>, vector<8x32xf32>,
    %c0_92 = arith.constant 0 : index
    %c0_93 = arith.constant 0 : index
    %c0_94 = arith.constant 0 : index
    %81 = vector.load %arg2[%c0_92, %c0_93, %c0_94] : memref<4x8x8xf32, #tpu.memory_space<vmem>>, vector<1x8x8xf32>
    %82 = vector.shape_cast %81 : vector<1x8x8xf32> to vector<8x8xf32>
    %cst_95 = arith.constant dense<0.000000e+00> : vector<8x32xf32>
    %83 = tpu.matmul %82, %79, %cst_95 {dimension_numbers = #tpu.dot_dimension_numbers<[1], [0], [0], [1], [0, 0, 1, 1], [], []>} : vector<8x8xf32>, vector<8x32xf32>, vector<8x32xf32> -> vector<8x32xf32>
    %c0_96 = arith.constant 0 : index
    %c0_97 = arith.constant 0 : index
    %c0_98 = arith.constant 0 : index
    %84 = vector.load %arg3[%c0_96, %c0_97, %c0_98] : memref<4x32x32xf32, #tpu.memory_space<vmem>>, vector<1x32x32xf32>
    %85 = vector.shape_cast %84 : vector<1x32x32xf32> to vector<32x32xf32>
    %cst_99 = arith.constant dense<0.000000e+00> : vector<8x32xf32>
    %86 = tpu.matmul %83, %85, %cst_99 {dimension_numbers = #tpu.dot_dimension_numbers<[1], [0], [0], [1], [0, 0, 1, 1], [], []>} : vector<8x32xf32>, vector<32x32xf32>, vector<8x32xf32> -> vector<8x32xf32>
    %c1_100 = arith.constant 1 : index
    %c0_101 = arith.constant 0 : index
    %c0_102 = arith.constant 0 : index
    %87 = vector.load %arg2[%c1_100, %c0_101, %c0_102] : memref<4x8x8xf32, #tpu.memory_space<vmem>>, vector<1x8x8xf32>
    %88 = vector.shape_cast %87 : vector<1x8x8xf32> to vector<8x8xf32>
    %cst_103 = arith.constant dense<0.000000e+00> : vector<8x32xf32>
    %89 = tpu.matmul %88, %79, %cst_103 {dimension_numbers = #tpu.dot_dimension_numbers<[1], [0], [0], [1], [0, 0, 1, 1], [], []>} : vector<8x8xf32>, vector<8x32xf32>, vector<8x32xf32> -> vector<8x32xf32>
    %c1_104 = arith.constant 1 : index
    %c0_105 = arith.constant 0 : index
    %c0_106 = arith.constant 0 : index
    %90 = vector.load %arg3[%c1_104, %c0_105, %c0_106] : memref<4x32x32xf32, #tpu.memory_space<vmem>>, vector<1x32x32xf32>
    %91 = vector.shape_cast %90 : vector<1x32x32xf32> to vector<32x32xf32>
    %cst_107 = arith.constant dense<0.000000e+00> : vector<8x32xf32>
    %92 = tpu.matmul %89, %91, %cst_107 {dimension_numbers = #tpu.dot_dimension_numbers<[1], [0], [0], [1], [0, 0, 1, 1], [], []>} : vector<8x32xf32>, vector<32x32xf32>, vector<8x32xf32> -> vector<8x32xf32>
    %93 = arith.addf %86, %92 : vector<8x32xf32>
    %c2_108 = arith.constant 2 : index
    %c0_109 = arith.constant 0 : index
    %c0_110 = arith.constant 0 : index
    %94 = vector.load %arg2[%c2_108, %c0_109, %c0_110] : memref<4x8x8xf32, #tpu.memory_space<vmem>>, vector<1x8x8xf32>
    %95 = vector.shape_cast %94 : vector<1x8x8xf32> to vector<8x8xf32>
    %cst_111 = arith.constant dense<0.000000e+00> : vector<8x32xf32>
    %96 = tpu.matmul %95, %79, %cst_111 {dimension_numbers = #tpu.dot_dimension_numbers<[1], [0], [0], [1], [0, 0, 1, 1], [], []>} : vector<8x8xf32>, vector<8x32xf32>, vector<8x32xf32> -> vector<8x32xf32>
    %c2_112 = arith.constant 2 : index
    %c0_113 = arith.constant 0 : index
    %c0_114 = arith.constant 0 : index
    %97 = vector.load %arg3[%c2_112, %c0_113, %c0_114] : memref<4x32x32xf32, #tpu.memory_space<vmem>>, vector<1x32x32xf32>
    %98 = vector.shape_cast %97 : vector<1x32x32xf32> to vector<32x32xf32>
    %cst_115 = arith.constant dense<0.000000e+00> : vector<8x32xf32>
    %99 = tpu.matmul %96, %98, %cst_115 {dimension_numbers = #tpu.dot_dimension_numbers<[1], [0], [0], [1], [0, 0, 1, 1], [], []>} : vector<8x32xf32>, vector<32x32xf32>, vector<8x32xf32> -> vector<8x32xf32>
    %100 = arith.addf %93, %99 : vector<8x32xf32>
    %c3_116 = arith.constant 3 : index
    %c0_117 = arith.constant 0 : index
    %c0_118 = arith.constant 0 : index
    %101 = vector.load %arg2[%c3_116, %c0_117, %c0_118] : memref<4x8x8xf32, #tpu.memory_space<vmem>>, vector<1x8x8xf32>
    %102 = vector.shape_cast %101 : vector<1x8x8xf32> to vector<8x8xf32>
    %cst_119 = arith.constant dense<0.000000e+00> : vector<8x32xf32>
    %103 = tpu.matmul %102, %79, %cst_119 {dimension_numbers = #tpu.dot_dimension_numbers<[1], [0], [0], [1], [0, 0, 1, 1], [], []>} : vector<8x8xf32>, vector<8x32xf32>, vector<8x32xf32> -> vector<8x32xf32>
    %c3_120 = arith.constant 3 : index
    %c0_121 = arith.constant 0 : index
    %c0_122 = arith.constant 0 : index
    %104 = vector.load %arg3[%c3_120, %c0_121, %c0_122] : memref<4x32x32xf32, #tpu.memory_space<vmem>>, vector<1x32x32xf32>
    %105 = vector.shape_cast %104 : vector<1x32x32xf32> to vector<32x32xf32>
    %cst_123 = arith.constant dense<0.000000e+00> : vector<8x32xf32>
    %106 = tpu.matmul %103, %105, %cst_123 {dimension_numbers = #tpu.dot_dimension_numbers<[1], [0], [0], [1], [0, 0, 1, 1], [], []>} : vector<8x32xf32>, vector<32x32xf32>, vector<8x32xf32> -> vector<8x32xf32>
    %107 = arith.addf %100, %106 : vector<8x32xf32>
    %c0_124 = arith.constant 0 : index
    %c0_125 = arith.constant 0 : index
    %108 = vector.load %arg4[%c0_124, %c0_125] : memref<1x32xf32, #tpu.memory_space<vmem>>, vector<1x32xf32>
    %109 = vector.broadcast %108 : vector<1x32xf32> to vector<8x32xf32>
    %110 = arith.addf %107, %109 : vector<8x32xf32>
    %c8_126 = arith.constant 8 : index
    %c32_127 = arith.constant 32 : index
    %111 = vector.load %arg5[%c8_126, %c32_127] : memref<16x96xf32, #tpu.memory_space<vmem>>, vector<8x32xf32>
    tpu.vector_store %arg5[%c8_126, %c32_127], %110 {strides = array<i32>} : memref<16x96xf32, #tpu.memory_space<vmem>>, vector<8x32xf32>,
    %c0_128 = arith.constant 0 : index
    %c0_129 = arith.constant 0 : index
    %c0_130 = arith.constant 0 : index
    %112 = vector.load %arg2[%c0_128, %c0_129, %c0_130] : memref<4x8x8xf32, #tpu.memory_space<vmem>>, vector<1x8x8xf32>
    %113 = vector.shape_cast %112 : vector<1x8x8xf32> to vector<8x8xf32>
    %cst_131 = arith.constant dense<0.000000e+00> : vector<8x32xf32>
    %114 = tpu.matmul %113, %110, %cst_131 {dimension_numbers = #tpu.dot_dimension_numbers<[1], [0], [0], [1], [0, 0, 1, 1], [], []>} : vector<8x8xf32>, vector<8x32xf32>, vector<8x32xf32> -> vector<8x32xf32>
    %c0_132 = arith.constant 0 : index
    %c0_133 = arith.constant 0 : index
    %c0_134 = arith.constant 0 : index
    %115 = vector.load %arg3[%c0_132, %c0_133, %c0_134] : memref<4x32x32xf32, #tpu.memory_space<vmem>>, vector<1x32x32xf32>
    %116 = vector.shape_cast %115 : vector<1x32x32xf32> to vector<32x32xf32>
    %cst_135 = arith.constant dense<0.000000e+00> : vector<8x32xf32>
    %117 = tpu.matmul %114, %116, %cst_135 {dimension_numbers = #tpu.dot_dimension_numbers<[1], [0], [0], [1], [0, 0, 1, 1], [], []>} : vector<8x32xf32>, vector<32x32xf32>, vector<8x32xf32> -> vector<8x32xf32>
    %c1_136 = arith.constant 1 : index
    %c0_137 = arith.constant 0 : index
    %c0_138 = arith.constant 0 : index
    %118 = vector.load %arg2[%c1_136, %c0_137, %c0_138] : memref<4x8x8xf32, #tpu.memory_space<vmem>>, vector<1x8x8xf32>
    %119 = vector.shape_cast %118 : vector<1x8x8xf32> to vector<8x8xf32>
    %cst_139 = arith.constant dense<0.000000e+00> : vector<8x32xf32>
    %120 = tpu.matmul %119, %110, %cst_139 {dimension_numbers = #tpu.dot_dimension_numbers<[1], [0], [0], [1], [0, 0, 1, 1], [], []>} : vector<8x8xf32>, vector<8x32xf32>, vector<8x32xf32> -> vector<8x32xf32>
    %c1_140 = arith.constant 1 : index
    %c0_141 = arith.constant 0 : index
    %c0_142 = arith.constant 0 : index
    %121 = vector.load %arg3[%c1_140, %c0_141, %c0_142] : memref<4x32x32xf32, #tpu.memory_space<vmem>>, vector<1x32x32xf32>
    %122 = vector.shape_cast %121 : vector<1x32x32xf32> to vector<32x32xf32>
    %cst_143 = arith.constant dense<0.000000e+00> : vector<8x32xf32>
    %123 = tpu.matmul %120, %122, %cst_143 {dimension_numbers = #tpu.dot_dimension_numbers<[1], [0], [0], [1], [0, 0, 1, 1], [], []>} : vector<8x32xf32>, vector<32x32xf32>, vector<8x32xf32> -> vector<8x32xf32>
    %124 = arith.addf %117, %123 : vector<8x32xf32>
    %c2_144 = arith.constant 2 : index
    %c0_145 = arith.constant 0 : index
    %c0_146 = arith.constant 0 : index
    %125 = vector.load %arg2[%c2_144, %c0_145, %c0_146] : memref<4x8x8xf32, #tpu.memory_space<vmem>>, vector<1x8x8xf32>
    %126 = vector.shape_cast %125 : vector<1x8x8xf32> to vector<8x8xf32>
    %cst_147 = arith.constant dense<0.000000e+00> : vector<8x32xf32>
    %127 = tpu.matmul %126, %110, %cst_147 {dimension_numbers = #tpu.dot_dimension_numbers<[1], [0], [0], [1], [0, 0, 1, 1], [], []>} : vector<8x8xf32>, vector<8x32xf32>, vector<8x32xf32> -> vector<8x32xf32>
    %c2_148 = arith.constant 2 : index
    %c0_149 = arith.constant 0 : index
    %c0_150 = arith.constant 0 : index
    %128 = vector.load %arg3[%c2_148, %c0_149, %c0_150] : memref<4x32x32xf32, #tpu.memory_space<vmem>>, vector<1x32x32xf32>
    %129 = vector.shape_cast %128 : vector<1x32x32xf32> to vector<32x32xf32>
    %cst_151 = arith.constant dense<0.000000e+00> : vector<8x32xf32>
    %130 = tpu.matmul %127, %129, %cst_151 {dimension_numbers = #tpu.dot_dimension_numbers<[1], [0], [0], [1], [0, 0, 1, 1], [], []>} : vector<8x32xf32>, vector<32x32xf32>, vector<8x32xf32> -> vector<8x32xf32>
    %131 = arith.addf %124, %130 : vector<8x32xf32>
    %c3_152 = arith.constant 3 : index
    %c0_153 = arith.constant 0 : index
    %c0_154 = arith.constant 0 : index
    %132 = vector.load %arg2[%c3_152, %c0_153, %c0_154] : memref<4x8x8xf32, #tpu.memory_space<vmem>>, vector<1x8x8xf32>
    %133 = vector.shape_cast %132 : vector<1x8x8xf32> to vector<8x8xf32>
    %cst_155 = arith.constant dense<0.000000e+00> : vector<8x32xf32>
    %134 = tpu.matmul %133, %110, %cst_155 {dimension_numbers = #tpu.dot_dimension_numbers<[1], [0], [0], [1], [0, 0, 1, 1], [], []>} : vector<8x8xf32>, vector<8x32xf32>, vector<8x32xf32> -> vector<8x32xf32>
    %c3_156 = arith.constant 3 : index
    %c0_157 = arith.constant 0 : index
    %c0_158 = arith.constant 0 : index
    %135 = vector.load %arg3[%c3_156, %c0_157, %c0_158] : memref<4x32x32xf32, #tpu.memory_space<vmem>>, vector<1x32x32xf32>
    %136 = vector.shape_cast %135 : vector<1x32x32xf32> to vector<32x32xf32>
    %cst_159 = arith.constant dense<0.000000e+00> : vector<8x32xf32>
    %137 = tpu.matmul %134, %136, %cst_159 {dimension_numbers = #tpu.dot_dimension_numbers<[1], [0], [0], [1], [0, 0, 1, 1], [], []>} : vector<8x32xf32>, vector<32x32xf32>, vector<8x32xf32> -> vector<8x32xf32>
    %138 = arith.addf %131, %137 : vector<8x32xf32>
    %c0_160 = arith.constant 0 : index
    %c0_161 = arith.constant 0 : index
    %139 = vector.load %arg4[%c0_160, %c0_161] : memref<1x32xf32, #tpu.memory_space<vmem>>, vector<1x32xf32>
    %140 = vector.broadcast %139 : vector<1x32xf32> to vector<8x32xf32>
    %141 = arith.addf %138, %140 : vector<8x32xf32>
    %cst_162 = arith.constant 2.000000e+00 : f32
    %142 = vector.broadcast %cst_162 : f32 to vector<8x32xf32>
    %143 = arith.mulf %142, %141 : vector<8x32xf32>
    %144 = arith.subf %143, %79 : vector<8x32xf32>
    %c8_163 = arith.constant 8 : index
    %c64_164 = arith.constant 64 : index
    %145 = vector.load %arg5[%c8_163, %c64_164] : memref<16x96xf32, #tpu.memory_space<vmem>>, vector<8x32xf32>
    tpu.vector_store %arg5[%c8_163, %c64_164], %144 {strides = array<i32>} : memref<16x96xf32, #tpu.memory_space<vmem>>, vector<8x32xf32>,
    return
  }
}

module attributes {stable_mosaic.version = 11 : i64} {
  func.func @kernel(%arg0: memref<16x57xf32, #tpu.memory_space<vmem>>, %arg1: memref<57x16xf32, #tpu.memory_space<vmem>>, %arg2: memref<1x16xf32, #tpu.memory_space<vmem>>, %arg3: memref<2x8x16xf32, #tpu.memory_space<vmem>>, %arg4: memref<2x8x16xf32, #tpu.memory_space<vmem>>, %arg5: memref<8x16xf32, #tpu.memory_space<vmem>>, %arg6: memref<8x16xf32, #tpu.memory_space<vmem>>, %arg7: memref<2x8x16xf32, #tpu.memory_space<vmem>>) attributes {dimension_semantics = [], scalar_prefetch = 0 : i64, scratch_operands = 0 : i64, tpu.core_type = #tpu.core_type<tc>} {
    %c0 = arith.constant 0 : index
    %c0_0 = arith.constant 0 : index
    %0 = vector.load %arg5[%c0, %c0_0] : memref<8x16xf32, #tpu.memory_space<vmem>>, vector<8x16xf32>
    %c0_1 = arith.constant 0 : index
    %c0_2 = arith.constant 0 : index
    %1 = vector.load %arg6[%c0_1, %c0_2] : memref<8x16xf32, #tpu.memory_space<vmem>>, vector<8x16xf32>
    %c0_3 = arith.constant 0 : index
    %c0_4 = arith.constant 0 : index
    %2 = vector.load %arg0[%c0_3, %c0_4] : memref<16x57xf32, #tpu.memory_space<vmem>>, vector<8x57xf32>
    %c0_5 = arith.constant 0 : index
    %c0_6 = arith.constant 0 : index
    %3 = vector.load %arg1[%c0_5, %c0_6] : memref<57x16xf32, #tpu.memory_space<vmem>>, vector<57x16xf32>
    %cst = arith.constant dense<0.000000e+00> : vector<8x16xf32>
    %4 = tpu.matmul %2, %3, %cst {dimension_numbers = #tpu.dot_dimension_numbers<[1], [0], [0], [1], [0, 0, 1, 1], [], []>} : vector<8x57xf32>, vector<57x16xf32>, vector<8x16xf32> -> vector<8x16xf32>
    %c0_7 = arith.constant 0 : index
    %c0_8 = arith.constant 0 : index
    %5 = vector.load %arg2[%c0_7, %c0_8] : memref<1x16xf32, #tpu.memory_space<vmem>>, vector<1x16xf32>
    %6 = vector.broadcast %5 : vector<1x16xf32> to vector<8x16xf32>
    %7 = arith.addf %4, %6 : vector<8x16xf32>
    %c0_9 = arith.constant 0 : index
    %c0_10 = arith.constant 0 : index
    %c0_11 = arith.constant 0 : index
    %8 = vector.load %arg3[%c0_9, %c0_10, %c0_11] : memref<2x8x16xf32, #tpu.memory_space<vmem>>, vector<1x8x16xf32>
    %9 = vector.shape_cast %8 : vector<1x8x16xf32> to vector<8x16xf32>
    %c0_12 = arith.constant 0 : index
    %c0_13 = arith.constant 0 : index
    %c0_14 = arith.constant 0 : index
    %10 = vector.load %arg4[%c0_12, %c0_13, %c0_14] : memref<2x8x16xf32, #tpu.memory_space<vmem>>, vector<1x8x16xf32>
    %11 = vector.shape_cast %10 : vector<1x8x16xf32> to vector<8x16xf32>
    %12 = arith.mulf %9, %11 : vector<8x16xf32>
    %cst_15 = arith.constant 1.000000e+00 : f32
    %13 = vector.broadcast %cst_15 : f32 to vector<8x16xf32>
    %14 = arith.subf %13, %9 : vector<8x16xf32>
    %15 = arith.mulf %14, %7 : vector<8x16xf32>
    %16 = arith.addf %12, %15 : vector<8x16xf32>
    %cst_16 = arith.constant dense<0.000000e+00> : vector<8xf32>
    %17 = vector.multi_reduction <add>, %16, %cst_16 [1] : vector<8x16xf32> to vector<8xf32>
    %18 = vector.shape_cast %17 : vector<8xf32> to vector<8x1xf32>
    %cst_17 = arith.constant dense<0.000000e+00> : vector<1xf32>
    %19 = vector.multi_reduction <add>, %18, %cst_17 [0] : vector<8x1xf32> to vector<1xf32>
    %20 = vector.shape_cast %19 : vector<1xf32> to vector<1x1xf32>
    %cst_18 = arith.constant 7.812500e-03 : f32
    %21 = vector.broadcast %cst_18 : f32 to vector<1x1xf32>
    %22 = arith.mulf %20, %21 : vector<1x1xf32>
    %23 = vector.broadcast %22 : vector<1x1xf32> to vector<8x16xf32>
    %24 = arith.subf %16, %23 : vector<8x16xf32>
    %25 = arith.mulf %24, %24 : vector<8x16xf32>
    %cst_19 = arith.constant dense<0.000000e+00> : vector<8xf32>
    %26 = vector.multi_reduction <add>, %25, %cst_19 [1] : vector<8x16xf32> to vector<8xf32>
    %27 = vector.shape_cast %26 : vector<8xf32> to vector<8x1xf32>
    %cst_20 = arith.constant dense<0.000000e+00> : vector<1xf32>
    %28 = vector.multi_reduction <add>, %27, %cst_20 [0] : vector<8x1xf32> to vector<1xf32>
    %29 = vector.shape_cast %28 : vector<1xf32> to vector<1x1xf32>
    %cst_21 = arith.constant 7.812500e-03 : f32
    %30 = vector.broadcast %cst_21 : f32 to vector<1x1xf32>
    %31 = arith.mulf %29, %30 : vector<1x1xf32>
    %cst_22 = arith.constant 9.99999974E-6 : f32
    %32 = vector.broadcast %cst_22 : f32 to vector<1x1xf32>
    %33 = arith.addf %31, %32 : vector<1x1xf32>
    %34 = math.rsqrt %33 : vector<1x1xf32>
    %35 = vector.broadcast %34 : vector<1x1xf32> to vector<8x16xf32>
    %36 = arith.mulf %24, %35 : vector<8x16xf32>
    %37 = arith.mulf %36, %0 : vector<8x16xf32>
    %38 = arith.addf %37, %1 : vector<8x16xf32>
    %c0_23 = arith.constant 0 : index
    %c0_24 = arith.constant 0 : index
    %c0_25 = arith.constant 0 : index
    %39 = vector.load %arg7[%c0_23, %c0_24, %c0_25] : memref<2x8x16xf32, #tpu.memory_space<vmem>>, vector<1x8x16xf32>
    %40 = vector.shape_cast %39 : vector<1x8x16xf32> to vector<8x16xf32>
    %41 = vector.shape_cast %38 : vector<8x16xf32> to vector<1x8x16xf32>
    tpu.vector_store %arg7[%c0_23, %c0_24, %c0_25], %41 {strides = array<i32>} : memref<2x8x16xf32, #tpu.memory_space<vmem>>, vector<1x8x16xf32>,
    %c8 = arith.constant 8 : index
    %c0_26 = arith.constant 0 : index
    %42 = vector.load %arg0[%c8, %c0_26] : memref<16x57xf32, #tpu.memory_space<vmem>>, vector<8x57xf32>
    %c0_27 = arith.constant 0 : index
    %c0_28 = arith.constant 0 : index
    %43 = vector.load %arg1[%c0_27, %c0_28] : memref<57x16xf32, #tpu.memory_space<vmem>>, vector<57x16xf32>
    %cst_29 = arith.constant dense<0.000000e+00> : vector<8x16xf32>
    %44 = tpu.matmul %42, %43, %cst_29 {dimension_numbers = #tpu.dot_dimension_numbers<[1], [0], [0], [1], [0, 0, 1, 1], [], []>} : vector<8x57xf32>, vector<57x16xf32>, vector<8x16xf32> -> vector<8x16xf32>
    %c0_30 = arith.constant 0 : index
    %c0_31 = arith.constant 0 : index
    %45 = vector.load %arg2[%c0_30, %c0_31] : memref<1x16xf32, #tpu.memory_space<vmem>>, vector<1x16xf32>
    %46 = vector.broadcast %45 : vector<1x16xf32> to vector<8x16xf32>
    %47 = arith.addf %44, %46 : vector<8x16xf32>
    %c1 = arith.constant 1 : index
    %c0_32 = arith.constant 0 : index
    %c0_33 = arith.constant 0 : index
    %48 = vector.load %arg3[%c1, %c0_32, %c0_33] : memref<2x8x16xf32, #tpu.memory_space<vmem>>, vector<1x8x16xf32>
    %49 = vector.shape_cast %48 : vector<1x8x16xf32> to vector<8x16xf32>
    %c1_34 = arith.constant 1 : index
    %c0_35 = arith.constant 0 : index
    %c0_36 = arith.constant 0 : index
    %50 = vector.load %arg4[%c1_34, %c0_35, %c0_36] : memref<2x8x16xf32, #tpu.memory_space<vmem>>, vector<1x8x16xf32>
    %51 = vector.shape_cast %50 : vector<1x8x16xf32> to vector<8x16xf32>
    %52 = arith.mulf %49, %51 : vector<8x16xf32>
    %cst_37 = arith.constant 1.000000e+00 : f32
    %53 = vector.broadcast %cst_37 : f32 to vector<8x16xf32>
    %54 = arith.subf %53, %49 : vector<8x16xf32>
    %55 = arith.mulf %54, %47 : vector<8x16xf32>
    %56 = arith.addf %52, %55 : vector<8x16xf32>
    %cst_38 = arith.constant dense<0.000000e+00> : vector<8xf32>
    %57 = vector.multi_reduction <add>, %56, %cst_38 [1] : vector<8x16xf32> to vector<8xf32>
    %58 = vector.shape_cast %57 : vector<8xf32> to vector<8x1xf32>
    %cst_39 = arith.constant dense<0.000000e+00> : vector<1xf32>
    %59 = vector.multi_reduction <add>, %58, %cst_39 [0] : vector<8x1xf32> to vector<1xf32>
    %60 = vector.shape_cast %59 : vector<1xf32> to vector<1x1xf32>
    %cst_40 = arith.constant 7.812500e-03 : f32
    %61 = vector.broadcast %cst_40 : f32 to vector<1x1xf32>
    %62 = arith.mulf %60, %61 : vector<1x1xf32>
    %63 = vector.broadcast %62 : vector<1x1xf32> to vector<8x16xf32>
    %64 = arith.subf %56, %63 : vector<8x16xf32>
    %65 = arith.mulf %64, %64 : vector<8x16xf32>
    %cst_41 = arith.constant dense<0.000000e+00> : vector<8xf32>
    %66 = vector.multi_reduction <add>, %65, %cst_41 [1] : vector<8x16xf32> to vector<8xf32>
    %67 = vector.shape_cast %66 : vector<8xf32> to vector<8x1xf32>
    %cst_42 = arith.constant dense<0.000000e+00> : vector<1xf32>
    %68 = vector.multi_reduction <add>, %67, %cst_42 [0] : vector<8x1xf32> to vector<1xf32>
    %69 = vector.shape_cast %68 : vector<1xf32> to vector<1x1xf32>
    %cst_43 = arith.constant 7.812500e-03 : f32
    %70 = vector.broadcast %cst_43 : f32 to vector<1x1xf32>
    %71 = arith.mulf %69, %70 : vector<1x1xf32>
    %cst_44 = arith.constant 9.99999974E-6 : f32
    %72 = vector.broadcast %cst_44 : f32 to vector<1x1xf32>
    %73 = arith.addf %71, %72 : vector<1x1xf32>
    %74 = math.rsqrt %73 : vector<1x1xf32>
    %75 = vector.broadcast %74 : vector<1x1xf32> to vector<8x16xf32>
    %76 = arith.mulf %64, %75 : vector<8x16xf32>
    %77 = arith.mulf %76, %0 : vector<8x16xf32>
    %78 = arith.addf %77, %1 : vector<8x16xf32>
    %c1_45 = arith.constant 1 : index
    %c0_46 = arith.constant 0 : index
    %c0_47 = arith.constant 0 : index
    %79 = vector.load %arg7[%c1_45, %c0_46, %c0_47] : memref<2x8x16xf32, #tpu.memory_space<vmem>>, vector<1x8x16xf32>
    %80 = vector.shape_cast %79 : vector<1x8x16xf32> to vector<8x16xf32>
    %81 = vector.shape_cast %78 : vector<8x16xf32> to vector<1x8x16xf32>
    tpu.vector_store %arg7[%c1_45, %c0_46, %c0_47], %81 {strides = array<i32>} : memref<2x8x16xf32, #tpu.memory_space<vmem>>, vector<1x8x16xf32>,
    return
  }
}

module attributes {stable_mosaic.version = 11 : i64} {
  func.func @kernel(%arg0: memref<16x96xf32, #tpu.memory_space<vmem>>, %arg1: memref<96x32xf32, #tpu.memory_space<vmem>>, %arg2: memref<1x32xf32, #tpu.memory_space<vmem>>, %arg3: memref<2x8x16xf32, #tpu.memory_space<vmem>>, %arg4: memref<2x8x16xf32, #tpu.memory_space<vmem>>, %arg5: memref<4x8x8xf32, #tpu.memory_space<vmem>>, %arg6: memref<4x32x32xf32, #tpu.memory_space<vmem>>, %arg7: memref<1x32xf32, #tpu.memory_space<vmem>>, %arg8: memref<2x8x16xf32, #tpu.memory_space<vmem>>, %arg9: memref<16x96xf32, #tpu.memory_space<vmem>>, %arg10: memref<8x32xf32, #tpu.memory_space<vmem>>) attributes {dimension_semantics = [], scalar_prefetch = 0 : i64, scratch_operands = 1 : i64, tpu.core_type = #tpu.core_type<tc>} {
    %c0 = arith.constant 0 : index
    %c0_0 = arith.constant 0 : index
    %0 = vector.load %arg0[%c0, %c0_0] : memref<16x96xf32, #tpu.memory_space<vmem>>, vector<8x96xf32>
    %c0_1 = arith.constant 0 : index
    %c0_2 = arith.constant 0 : index
    %1 = vector.load %arg1[%c0_1, %c0_2] : memref<96x32xf32, #tpu.memory_space<vmem>>, vector<96x32xf32>
    %cst = arith.constant dense<0.000000e+00> : vector<8x32xf32>
    %2 = tpu.matmul %0, %1, %cst {dimension_numbers = #tpu.dot_dimension_numbers<[1], [0], [0], [1], [0, 0, 1, 1], [], []>} : vector<8x96xf32>, vector<96x32xf32>, vector<8x32xf32> -> vector<8x32xf32>
    %c0_3 = arith.constant 0 : index
    %c0_4 = arith.constant 0 : index
    %3 = vector.load %arg2[%c0_3, %c0_4] : memref<1x32xf32, #tpu.memory_space<vmem>>, vector<1x32xf32>
    %4 = vector.broadcast %3 : vector<1x32xf32> to vector<8x32xf32>
    %5 = arith.addf %2, %4 : vector<8x32xf32>
    %6 = arith.negf %5 : vector<8x32xf32>
    %7 = math.exp %6 : vector<8x32xf32>
    %cst_5 = arith.constant 1.000000e+00 : f32
    %8 = vector.broadcast %cst_5 : f32 to vector<8x32xf32>
    %9 = arith.addf %8, %7 : vector<8x32xf32>
    %10 = arith.divf %8, %9 : vector<8x32xf32>
    %11 = vector.extract_strided_slice %10 {offsets = [0, 0], sizes = [8, 16], strides = [1, 1]} : vector<8x32xf32> to vector<8x16xf32>
    %12 = vector.extract_strided_slice %10 {offsets = [0, 16], sizes = [8, 16], strides = [1, 1]} : vector<8x32xf32> to vector<8x16xf32>
    %c0_6 = arith.constant 0 : index
    %c0_7 = arith.constant 0 : index
    %c0_8 = arith.constant 0 : index
    %13 = vector.load %arg8[%c0_6, %c0_7, %c0_8] : memref<2x8x16xf32, #tpu.memory_space<vmem>>, vector<1x8x16xf32>
    %14 = vector.shape_cast %13 : vector<1x8x16xf32> to vector<8x16xf32>
    %15 = vector.shape_cast %12 : vector<8x16xf32> to vector<1x8x16xf32>
    tpu.vector_store %arg8[%c0_6, %c0_7, %c0_8], %15 {strides = array<i32>} : memref<2x8x16xf32, #tpu.memory_space<vmem>>, vector<1x8x16xf32>,
    %c0_9 = arith.constant 0 : index
    %c0_10 = arith.constant 0 : index
    %c0_11 = arith.constant 0 : index
    %16 = vector.load %arg3[%c0_9, %c0_10, %c0_11] : memref<2x8x16xf32, #tpu.memory_space<vmem>>, vector<1x8x16xf32>
    %17 = vector.shape_cast %16 : vector<1x8x16xf32> to vector<8x16xf32>
    %c0_12 = arith.constant 0 : index
    %c0_13 = arith.constant 0 : index
    %18 = vector.load %arg10[%c0_12, %c0_13] : memref<8x32xf32, #tpu.memory_space<vmem>>, vector<8x16xf32>
    tpu.vector_store %arg10[%c0_12, %c0_13], %17 {strides = array<i32>} : memref<8x32xf32, #tpu.memory_space<vmem>>, vector<8x16xf32>,
    %c0_14 = arith.constant 0 : index
    %c0_15 = arith.constant 0 : index
    %c0_16 = arith.constant 0 : index
    %19 = vector.load %arg4[%c0_14, %c0_15, %c0_16] : memref<2x8x16xf32, #tpu.memory_space<vmem>>, vector<1x8x16xf32>
    %20 = vector.shape_cast %19 : vector<1x8x16xf32> to vector<8x16xf32>
    %21 = arith.mulf %11, %20 : vector<8x16xf32>
    %c0_17 = arith.constant 0 : index
    %c16 = arith.constant 16 : index
    %22 = vector.load %arg10[%c0_17, %c16] : memref<8x32xf32, #tpu.memory_space<vmem>>, vector<8x16xf32>
    tpu.vector_store %arg10[%c0_17, %c16], %21 {strides = array<i32>} : memref<8x32xf32, #tpu.memory_space<vmem>>, vector<8x16xf32>,
    %c0_18 = arith.constant 0 : index
    %c0_19 = arith.constant 0 : index
    %23 = vector.load %arg10[%c0_18, %c0_19] : memref<8x32xf32, #tpu.memory_space<vmem>>, vector<8x32xf32>
    %c0_20 = arith.constant 0 : index
    %c0_21 = arith.constant 0 : index
    %24 = vector.load %arg9[%c0_20, %c0_21] : memref<16x96xf32, #tpu.memory_space<vmem>>, vector<8x32xf32>
    tpu.vector_store %arg9[%c0_20, %c0_21], %23 {strides = array<i32>} : memref<16x96xf32, #tpu.memory_space<vmem>>, vector<8x32xf32>,
    %c0_22 = arith.constant 0 : index
    %c0_23 = arith.constant 0 : index
    %c0_24 = arith.constant 0 : index
    %25 = vector.load %arg5[%c0_22, %c0_23, %c0_24] : memref<4x8x8xf32, #tpu.memory_space<vmem>>, vector<1x8x8xf32>
    %26 = vector.shape_cast %25 : vector<1x8x8xf32> to vector<8x8xf32>
    %cst_25 = arith.constant dense<0.000000e+00> : vector<8x32xf32>
    %27 = tpu.matmul %26, %23, %cst_25 {dimension_numbers = #tpu.dot_dimension_numbers<[1], [0], [0], [1], [0, 0, 1, 1], [], []>} : vector<8x8xf32>, vector<8x32xf32>, vector<8x32xf32> -> vector<8x32xf32>
    %c0_26 = arith.constant 0 : index
    %c0_27 = arith.constant 0 : index
    %c0_28 = arith.constant 0 : index
    %28 = vector.load %arg6[%c0_26, %c0_27, %c0_28] : memref<4x32x32xf32, #tpu.memory_space<vmem>>, vector<1x32x32xf32>
    %29 = vector.shape_cast %28 : vector<1x32x32xf32> to vector<32x32xf32>
    %cst_29 = arith.constant dense<0.000000e+00> : vector<8x32xf32>
    %30 = tpu.matmul %27, %29, %cst_29 {dimension_numbers = #tpu.dot_dimension_numbers<[1], [0], [0], [1], [0, 0, 1, 1], [], []>} : vector<8x32xf32>, vector<32x32xf32>, vector<8x32xf32> -> vector<8x32xf32>
    %c1 = arith.constant 1 : index
    %c0_30 = arith.constant 0 : index
    %c0_31 = arith.constant 0 : index
    %31 = vector.load %arg5[%c1, %c0_30, %c0_31] : memref<4x8x8xf32, #tpu.memory_space<vmem>>, vector<1x8x8xf32>
    %32 = vector.shape_cast %31 : vector<1x8x8xf32> to vector<8x8xf32>
    %cst_32 = arith.constant dense<0.000000e+00> : vector<8x32xf32>
    %33 = tpu.matmul %32, %23, %cst_32 {dimension_numbers = #tpu.dot_dimension_numbers<[1], [0], [0], [1], [0, 0, 1, 1], [], []>} : vector<8x8xf32>, vector<8x32xf32>, vector<8x32xf32> -> vector<8x32xf32>
    %c1_33 = arith.constant 1 : index
    %c0_34 = arith.constant 0 : index
    %c0_35 = arith.constant 0 : index
    %34 = vector.load %arg6[%c1_33, %c0_34, %c0_35] : memref<4x32x32xf32, #tpu.memory_space<vmem>>, vector<1x32x32xf32>
    %35 = vector.shape_cast %34 : vector<1x32x32xf32> to vector<32x32xf32>
    %cst_36 = arith.constant dense<0.000000e+00> : vector<8x32xf32>
    %36 = tpu.matmul %33, %35, %cst_36 {dimension_numbers = #tpu.dot_dimension_numbers<[1], [0], [0], [1], [0, 0, 1, 1], [], []>} : vector<8x32xf32>, vector<32x32xf32>, vector<8x32xf32> -> vector<8x32xf32>
    %37 = arith.addf %30, %36 : vector<8x32xf32>
    %c2 = arith.constant 2 : index
    %c0_37 = arith.constant 0 : index
    %c0_38 = arith.constant 0 : index
    %38 = vector.load %arg5[%c2, %c0_37, %c0_38] : memref<4x8x8xf32, #tpu.memory_space<vmem>>, vector<1x8x8xf32>
    %39 = vector.shape_cast %38 : vector<1x8x8xf32> to vector<8x8xf32>
    %cst_39 = arith.constant dense<0.000000e+00> : vector<8x32xf32>
    %40 = tpu.matmul %39, %23, %cst_39 {dimension_numbers = #tpu.dot_dimension_numbers<[1], [0], [0], [1], [0, 0, 1, 1], [], []>} : vector<8x8xf32>, vector<8x32xf32>, vector<8x32xf32> -> vector<8x32xf32>
    %c2_40 = arith.constant 2 : index
    %c0_41 = arith.constant 0 : index
    %c0_42 = arith.constant 0 : index
    %41 = vector.load %arg6[%c2_40, %c0_41, %c0_42] : memref<4x32x32xf32, #tpu.memory_space<vmem>>, vector<1x32x32xf32>
    %42 = vector.shape_cast %41 : vector<1x32x32xf32> to vector<32x32xf32>
    %cst_43 = arith.constant dense<0.000000e+00> : vector<8x32xf32>
    %43 = tpu.matmul %40, %42, %cst_43 {dimension_numbers = #tpu.dot_dimension_numbers<[1], [0], [0], [1], [0, 0, 1, 1], [], []>} : vector<8x32xf32>, vector<32x32xf32>, vector<8x32xf32> -> vector<8x32xf32>
    %44 = arith.addf %37, %43 : vector<8x32xf32>
    %c3 = arith.constant 3 : index
    %c0_44 = arith.constant 0 : index
    %c0_45 = arith.constant 0 : index
    %45 = vector.load %arg5[%c3, %c0_44, %c0_45] : memref<4x8x8xf32, #tpu.memory_space<vmem>>, vector<1x8x8xf32>
    %46 = vector.shape_cast %45 : vector<1x8x8xf32> to vector<8x8xf32>
    %cst_46 = arith.constant dense<0.000000e+00> : vector<8x32xf32>
    %47 = tpu.matmul %46, %23, %cst_46 {dimension_numbers = #tpu.dot_dimension_numbers<[1], [0], [0], [1], [0, 0, 1, 1], [], []>} : vector<8x8xf32>, vector<8x32xf32>, vector<8x32xf32> -> vector<8x32xf32>
    %c3_47 = arith.constant 3 : index
    %c0_48 = arith.constant 0 : index
    %c0_49 = arith.constant 0 : index
    %48 = vector.load %arg6[%c3_47, %c0_48, %c0_49] : memref<4x32x32xf32, #tpu.memory_space<vmem>>, vector<1x32x32xf32>
    %49 = vector.shape_cast %48 : vector<1x32x32xf32> to vector<32x32xf32>
    %cst_50 = arith.constant dense<0.000000e+00> : vector<8x32xf32>
    %50 = tpu.matmul %47, %49, %cst_50 {dimension_numbers = #tpu.dot_dimension_numbers<[1], [0], [0], [1], [0, 0, 1, 1], [], []>} : vector<8x32xf32>, vector<32x32xf32>, vector<8x32xf32> -> vector<8x32xf32>
    %51 = arith.addf %44, %50 : vector<8x32xf32>
    %c0_51 = arith.constant 0 : index
    %c0_52 = arith.constant 0 : index
    %52 = vector.load %arg7[%c0_51, %c0_52] : memref<1x32xf32, #tpu.memory_space<vmem>>, vector<1x32xf32>
    %53 = vector.broadcast %52 : vector<1x32xf32> to vector<8x32xf32>
    %54 = arith.addf %51, %53 : vector<8x32xf32>
    %c0_53 = arith.constant 0 : index
    %c32 = arith.constant 32 : index
    %55 = vector.load %arg9[%c0_53, %c32] : memref<16x96xf32, #tpu.memory_space<vmem>>, vector<8x32xf32>
    tpu.vector_store %arg9[%c0_53, %c32], %54 {strides = array<i32>} : memref<16x96xf32, #tpu.memory_space<vmem>>, vector<8x32xf32>,
    %c0_54 = arith.constant 0 : index
    %c0_55 = arith.constant 0 : index
    %c0_56 = arith.constant 0 : index
    %56 = vector.load %arg5[%c0_54, %c0_55, %c0_56] : memref<4x8x8xf32, #tpu.memory_space<vmem>>, vector<1x8x8xf32>
    %57 = vector.shape_cast %56 : vector<1x8x8xf32> to vector<8x8xf32>
    %cst_57 = arith.constant dense<0.000000e+00> : vector<8x32xf32>
    %58 = tpu.matmul %57, %54, %cst_57 {dimension_numbers = #tpu.dot_dimension_numbers<[1], [0], [0], [1], [0, 0, 1, 1], [], []>} : vector<8x8xf32>, vector<8x32xf32>, vector<8x32xf32> -> vector<8x32xf32>
    %c0_58 = arith.constant 0 : index
    %c0_59 = arith.constant 0 : index
    %c0_60 = arith.constant 0 : index
    %59 = vector.load %arg6[%c0_58, %c0_59, %c0_60] : memref<4x32x32xf32, #tpu.memory_space<vmem>>, vector<1x32x32xf32>
    %60 = vector.shape_cast %59 : vector<1x32x32xf32> to vector<32x32xf32>
    %cst_61 = arith.constant dense<0.000000e+00> : vector<8x32xf32>
    %61 = tpu.matmul %58, %60, %cst_61 {dimension_numbers = #tpu.dot_dimension_numbers<[1], [0], [0], [1], [0, 0, 1, 1], [], []>} : vector<8x32xf32>, vector<32x32xf32>, vector<8x32xf32> -> vector<8x32xf32>
    %c1_62 = arith.constant 1 : index
    %c0_63 = arith.constant 0 : index
    %c0_64 = arith.constant 0 : index
    %62 = vector.load %arg5[%c1_62, %c0_63, %c0_64] : memref<4x8x8xf32, #tpu.memory_space<vmem>>, vector<1x8x8xf32>
    %63 = vector.shape_cast %62 : vector<1x8x8xf32> to vector<8x8xf32>
    %cst_65 = arith.constant dense<0.000000e+00> : vector<8x32xf32>
    %64 = tpu.matmul %63, %54, %cst_65 {dimension_numbers = #tpu.dot_dimension_numbers<[1], [0], [0], [1], [0, 0, 1, 1], [], []>} : vector<8x8xf32>, vector<8x32xf32>, vector<8x32xf32> -> vector<8x32xf32>
    %c1_66 = arith.constant 1 : index
    %c0_67 = arith.constant 0 : index
    %c0_68 = arith.constant 0 : index
    %65 = vector.load %arg6[%c1_66, %c0_67, %c0_68] : memref<4x32x32xf32, #tpu.memory_space<vmem>>, vector<1x32x32xf32>
    %66 = vector.shape_cast %65 : vector<1x32x32xf32> to vector<32x32xf32>
    %cst_69 = arith.constant dense<0.000000e+00> : vector<8x32xf32>
    %67 = tpu.matmul %64, %66, %cst_69 {dimension_numbers = #tpu.dot_dimension_numbers<[1], [0], [0], [1], [0, 0, 1, 1], [], []>} : vector<8x32xf32>, vector<32x32xf32>, vector<8x32xf32> -> vector<8x32xf32>
    %68 = arith.addf %61, %67 : vector<8x32xf32>
    %c2_70 = arith.constant 2 : index
    %c0_71 = arith.constant 0 : index
    %c0_72 = arith.constant 0 : index
    %69 = vector.load %arg5[%c2_70, %c0_71, %c0_72] : memref<4x8x8xf32, #tpu.memory_space<vmem>>, vector<1x8x8xf32>
    %70 = vector.shape_cast %69 : vector<1x8x8xf32> to vector<8x8xf32>
    %cst_73 = arith.constant dense<0.000000e+00> : vector<8x32xf32>
    %71 = tpu.matmul %70, %54, %cst_73 {dimension_numbers = #tpu.dot_dimension_numbers<[1], [0], [0], [1], [0, 0, 1, 1], [], []>} : vector<8x8xf32>, vector<8x32xf32>, vector<8x32xf32> -> vector<8x32xf32>
    %c2_74 = arith.constant 2 : index
    %c0_75 = arith.constant 0 : index
    %c0_76 = arith.constant 0 : index
    %72 = vector.load %arg6[%c2_74, %c0_75, %c0_76] : memref<4x32x32xf32, #tpu.memory_space<vmem>>, vector<1x32x32xf32>
    %73 = vector.shape_cast %72 : vector<1x32x32xf32> to vector<32x32xf32>
    %cst_77 = arith.constant dense<0.000000e+00> : vector<8x32xf32>
    %74 = tpu.matmul %71, %73, %cst_77 {dimension_numbers = #tpu.dot_dimension_numbers<[1], [0], [0], [1], [0, 0, 1, 1], [], []>} : vector<8x32xf32>, vector<32x32xf32>, vector<8x32xf32> -> vector<8x32xf32>
    %75 = arith.addf %68, %74 : vector<8x32xf32>
    %c3_78 = arith.constant 3 : index
    %c0_79 = arith.constant 0 : index
    %c0_80 = arith.constant 0 : index
    %76 = vector.load %arg5[%c3_78, %c0_79, %c0_80] : memref<4x8x8xf32, #tpu.memory_space<vmem>>, vector<1x8x8xf32>
    %77 = vector.shape_cast %76 : vector<1x8x8xf32> to vector<8x8xf32>
    %cst_81 = arith.constant dense<0.000000e+00> : vector<8x32xf32>
    %78 = tpu.matmul %77, %54, %cst_81 {dimension_numbers = #tpu.dot_dimension_numbers<[1], [0], [0], [1], [0, 0, 1, 1], [], []>} : vector<8x8xf32>, vector<8x32xf32>, vector<8x32xf32> -> vector<8x32xf32>
    %c3_82 = arith.constant 3 : index
    %c0_83 = arith.constant 0 : index
    %c0_84 = arith.constant 0 : index
    %79 = vector.load %arg6[%c3_82, %c0_83, %c0_84] : memref<4x32x32xf32, #tpu.memory_space<vmem>>, vector<1x32x32xf32>
    %80 = vector.shape_cast %79 : vector<1x32x32xf32> to vector<32x32xf32>
    %cst_85 = arith.constant dense<0.000000e+00> : vector<8x32xf32>
    %81 = tpu.matmul %78, %80, %cst_85 {dimension_numbers = #tpu.dot_dimension_numbers<[1], [0], [0], [1], [0, 0, 1, 1], [], []>} : vector<8x32xf32>, vector<32x32xf32>, vector<8x32xf32> -> vector<8x32xf32>
    %82 = arith.addf %75, %81 : vector<8x32xf32>
    %c0_86 = arith.constant 0 : index
    %c0_87 = arith.constant 0 : index
    %83 = vector.load %arg7[%c0_86, %c0_87] : memref<1x32xf32, #tpu.memory_space<vmem>>, vector<1x32xf32>
    %84 = vector.broadcast %83 : vector<1x32xf32> to vector<8x32xf32>
    %85 = arith.addf %82, %84 : vector<8x32xf32>
    %cst_88 = arith.constant 2.000000e+00 : f32
    %86 = vector.broadcast %cst_88 : f32 to vector<8x32xf32>
    %87 = arith.mulf %86, %85 : vector<8x32xf32>
    %88 = arith.subf %87, %23 : vector<8x32xf32>
    %c0_89 = arith.constant 0 : index
    %c64 = arith.constant 64 : index
    %89 = vector.load %arg9[%c0_89, %c64] : memref<16x96xf32, #tpu.memory_space<vmem>>, vector<8x32xf32>
    tpu.vector_store %arg9[%c0_89, %c64], %88 {strides = array<i32>} : memref<16x96xf32, #tpu.memory_space<vmem>>, vector<8x32xf32>,
    %c8 = arith.constant 8 : index
    %c0_90 = arith.constant 0 : index
    %90 = vector.load %arg0[%c8, %c0_90] : memref<16x96xf32, #tpu.memory_space<vmem>>, vector<8x96xf32>
    %c0_91 = arith.constant 0 : index
    %c0_92 = arith.constant 0 : index
    %91 = vector.load %arg1[%c0_91, %c0_92] : memref<96x32xf32, #tpu.memory_space<vmem>>, vector<96x32xf32>
    %cst_93 = arith.constant dense<0.000000e+00> : vector<8x32xf32>
    %92 = tpu.matmul %90, %91, %cst_93 {dimension_numbers = #tpu.dot_dimension_numbers<[1], [0], [0], [1], [0, 0, 1, 1], [], []>} : vector<8x96xf32>, vector<96x32xf32>, vector<8x32xf32> -> vector<8x32xf32>
    %c0_94 = arith.constant 0 : index
    %c0_95 = arith.constant 0 : index
    %93 = vector.load %arg2[%c0_94, %c0_95] : memref<1x32xf32, #tpu.memory_space<vmem>>, vector<1x32xf32>
    %94 = vector.broadcast %93 : vector<1x32xf32> to vector<8x32xf32>
    %95 = arith.addf %92, %94 : vector<8x32xf32>
    %96 = arith.negf %95 : vector<8x32xf32>
    %97 = math.exp %96 : vector<8x32xf32>
    %cst_96 = arith.constant 1.000000e+00 : f32
    %98 = vector.broadcast %cst_96 : f32 to vector<8x32xf32>
    %99 = arith.addf %98, %97 : vector<8x32xf32>
    %100 = arith.divf %98, %99 : vector<8x32xf32>
    %101 = vector.extract_strided_slice %100 {offsets = [0, 0], sizes = [8, 16], strides = [1, 1]} : vector<8x32xf32> to vector<8x16xf32>
    %102 = vector.extract_strided_slice %100 {offsets = [0, 16], sizes = [8, 16], strides = [1, 1]} : vector<8x32xf32> to vector<8x16xf32>
    %c1_97 = arith.constant 1 : index
    %c0_98 = arith.constant 0 : index
    %c0_99 = arith.constant 0 : index
    %103 = vector.load %arg8[%c1_97, %c0_98, %c0_99] : memref<2x8x16xf32, #tpu.memory_space<vmem>>, vector<1x8x16xf32>
    %104 = vector.shape_cast %103 : vector<1x8x16xf32> to vector<8x16xf32>
    %105 = vector.shape_cast %102 : vector<8x16xf32> to vector<1x8x16xf32>
    tpu.vector_store %arg8[%c1_97, %c0_98, %c0_99], %105 {strides = array<i32>} : memref<2x8x16xf32, #tpu.memory_space<vmem>>, vector<1x8x16xf32>,
    %c1_100 = arith.constant 1 : index
    %c0_101 = arith.constant 0 : index
    %c0_102 = arith.constant 0 : index
    %106 = vector.load %arg3[%c1_100, %c0_101, %c0_102] : memref<2x8x16xf32, #tpu.memory_space<vmem>>, vector<1x8x16xf32>
    %107 = vector.shape_cast %106 : vector<1x8x16xf32> to vector<8x16xf32>
    %c0_103 = arith.constant 0 : index
    %c0_104 = arith.constant 0 : index
    %108 = vector.load %arg10[%c0_103, %c0_104] : memref<8x32xf32, #tpu.memory_space<vmem>>, vector<8x16xf32>
    tpu.vector_store %arg10[%c0_103, %c0_104], %107 {strides = array<i32>} : memref<8x32xf32, #tpu.memory_space<vmem>>, vector<8x16xf32>,
    %c1_105 = arith.constant 1 : index
    %c0_106 = arith.constant 0 : index
    %c0_107 = arith.constant 0 : index
    %109 = vector.load %arg4[%c1_105, %c0_106, %c0_107] : memref<2x8x16xf32, #tpu.memory_space<vmem>>, vector<1x8x16xf32>
    %110 = vector.shape_cast %109 : vector<1x8x16xf32> to vector<8x16xf32>
    %111 = arith.mulf %101, %110 : vector<8x16xf32>
    %c0_108 = arith.constant 0 : index
    %c16_109 = arith.constant 16 : index
    %112 = vector.load %arg10[%c0_108, %c16_109] : memref<8x32xf32, #tpu.memory_space<vmem>>, vector<8x16xf32>
    tpu.vector_store %arg10[%c0_108, %c16_109], %111 {strides = array<i32>} : memref<8x32xf32, #tpu.memory_space<vmem>>, vector<8x16xf32>,
    %c0_110 = arith.constant 0 : index
    %c0_111 = arith.constant 0 : index
    %113 = vector.load %arg10[%c0_110, %c0_111] : memref<8x32xf32, #tpu.memory_space<vmem>>, vector<8x32xf32>
    %c8_112 = arith.constant 8 : index
    %c0_113 = arith.constant 0 : index
    %114 = vector.load %arg9[%c8_112, %c0_113] : memref<16x96xf32, #tpu.memory_space<vmem>>, vector<8x32xf32>
    tpu.vector_store %arg9[%c8_112, %c0_113], %113 {strides = array<i32>} : memref<16x96xf32, #tpu.memory_space<vmem>>, vector<8x32xf32>,
    %c0_114 = arith.constant 0 : index
    %c0_115 = arith.constant 0 : index
    %c0_116 = arith.constant 0 : index
    %115 = vector.load %arg5[%c0_114, %c0_115, %c0_116] : memref<4x8x8xf32, #tpu.memory_space<vmem>>, vector<1x8x8xf32>
    %116 = vector.shape_cast %115 : vector<1x8x8xf32> to vector<8x8xf32>
    %cst_117 = arith.constant dense<0.000000e+00> : vector<8x32xf32>
    %117 = tpu.matmul %116, %113, %cst_117 {dimension_numbers = #tpu.dot_dimension_numbers<[1], [0], [0], [1], [0, 0, 1, 1], [], []>} : vector<8x8xf32>, vector<8x32xf32>, vector<8x32xf32> -> vector<8x32xf32>
    %c0_118 = arith.constant 0 : index
    %c0_119 = arith.constant 0 : index
    %c0_120 = arith.constant 0 : index
    %118 = vector.load %arg6[%c0_118, %c0_119, %c0_120] : memref<4x32x32xf32, #tpu.memory_space<vmem>>, vector<1x32x32xf32>
    %119 = vector.shape_cast %118 : vector<1x32x32xf32> to vector<32x32xf32>
    %cst_121 = arith.constant dense<0.000000e+00> : vector<8x32xf32>
    %120 = tpu.matmul %117, %119, %cst_121 {dimension_numbers = #tpu.dot_dimension_numbers<[1], [0], [0], [1], [0, 0, 1, 1], [], []>} : vector<8x32xf32>, vector<32x32xf32>, vector<8x32xf32> -> vector<8x32xf32>
    %c1_122 = arith.constant 1 : index
    %c0_123 = arith.constant 0 : index
    %c0_124 = arith.constant 0 : index
    %121 = vector.load %arg5[%c1_122, %c0_123, %c0_124] : memref<4x8x8xf32, #tpu.memory_space<vmem>>, vector<1x8x8xf32>
    %122 = vector.shape_cast %121 : vector<1x8x8xf32> to vector<8x8xf32>
    %cst_125 = arith.constant dense<0.000000e+00> : vector<8x32xf32>
    %123 = tpu.matmul %122, %113, %cst_125 {dimension_numbers = #tpu.dot_dimension_numbers<[1], [0], [0], [1], [0, 0, 1, 1], [], []>} : vector<8x8xf32>, vector<8x32xf32>, vector<8x32xf32> -> vector<8x32xf32>
    %c1_126 = arith.constant 1 : index
    %c0_127 = arith.constant 0 : index
    %c0_128 = arith.constant 0 : index
    %124 = vector.load %arg6[%c1_126, %c0_127, %c0_128] : memref<4x32x32xf32, #tpu.memory_space<vmem>>, vector<1x32x32xf32>
    %125 = vector.shape_cast %124 : vector<1x32x32xf32> to vector<32x32xf32>
    %cst_129 = arith.constant dense<0.000000e+00> : vector<8x32xf32>
    %126 = tpu.matmul %123, %125, %cst_129 {dimension_numbers = #tpu.dot_dimension_numbers<[1], [0], [0], [1], [0, 0, 1, 1], [], []>} : vector<8x32xf32>, vector<32x32xf32>, vector<8x32xf32> -> vector<8x32xf32>
    %127 = arith.addf %120, %126 : vector<8x32xf32>
    %c2_130 = arith.constant 2 : index
    %c0_131 = arith.constant 0 : index
    %c0_132 = arith.constant 0 : index
    %128 = vector.load %arg5[%c2_130, %c0_131, %c0_132] : memref<4x8x8xf32, #tpu.memory_space<vmem>>, vector<1x8x8xf32>
    %129 = vector.shape_cast %128 : vector<1x8x8xf32> to vector<8x8xf32>
    %cst_133 = arith.constant dense<0.000000e+00> : vector<8x32xf32>
    %130 = tpu.matmul %129, %113, %cst_133 {dimension_numbers = #tpu.dot_dimension_numbers<[1], [0], [0], [1], [0, 0, 1, 1], [], []>} : vector<8x8xf32>, vector<8x32xf32>, vector<8x32xf32> -> vector<8x32xf32>
    %c2_134 = arith.constant 2 : index
    %c0_135 = arith.constant 0 : index
    %c0_136 = arith.constant 0 : index
    %131 = vector.load %arg6[%c2_134, %c0_135, %c0_136] : memref<4x32x32xf32, #tpu.memory_space<vmem>>, vector<1x32x32xf32>
    %132 = vector.shape_cast %131 : vector<1x32x32xf32> to vector<32x32xf32>
    %cst_137 = arith.constant dense<0.000000e+00> : vector<8x32xf32>
    %133 = tpu.matmul %130, %132, %cst_137 {dimension_numbers = #tpu.dot_dimension_numbers<[1], [0], [0], [1], [0, 0, 1, 1], [], []>} : vector<8x32xf32>, vector<32x32xf32>, vector<8x32xf32> -> vector<8x32xf32>
    %134 = arith.addf %127, %133 : vector<8x32xf32>
    %c3_138 = arith.constant 3 : index
    %c0_139 = arith.constant 0 : index
    %c0_140 = arith.constant 0 : index
    %135 = vector.load %arg5[%c3_138, %c0_139, %c0_140] : memref<4x8x8xf32, #tpu.memory_space<vmem>>, vector<1x8x8xf32>
    %136 = vector.shape_cast %135 : vector<1x8x8xf32> to vector<8x8xf32>
    %cst_141 = arith.constant dense<0.000000e+00> : vector<8x32xf32>
    %137 = tpu.matmul %136, %113, %cst_141 {dimension_numbers = #tpu.dot_dimension_numbers<[1], [0], [0], [1], [0, 0, 1, 1], [], []>} : vector<8x8xf32>, vector<8x32xf32>, vector<8x32xf32> -> vector<8x32xf32>
    %c3_142 = arith.constant 3 : index
    %c0_143 = arith.constant 0 : index
    %c0_144 = arith.constant 0 : index
    %138 = vector.load %arg6[%c3_142, %c0_143, %c0_144] : memref<4x32x32xf32, #tpu.memory_space<vmem>>, vector<1x32x32xf32>
    %139 = vector.shape_cast %138 : vector<1x32x32xf32> to vector<32x32xf32>
    %cst_145 = arith.constant dense<0.000000e+00> : vector<8x32xf32>
    %140 = tpu.matmul %137, %139, %cst_145 {dimension_numbers = #tpu.dot_dimension_numbers<[1], [0], [0], [1], [0, 0, 1, 1], [], []>} : vector<8x32xf32>, vector<32x32xf32>, vector<8x32xf32> -> vector<8x32xf32>
    %141 = arith.addf %134, %140 : vector<8x32xf32>
    %c0_146 = arith.constant 0 : index
    %c0_147 = arith.constant 0 : index
    %142 = vector.load %arg7[%c0_146, %c0_147] : memref<1x32xf32, #tpu.memory_space<vmem>>, vector<1x32xf32>
    %143 = vector.broadcast %142 : vector<1x32xf32> to vector<8x32xf32>
    %144 = arith.addf %141, %143 : vector<8x32xf32>
    %c8_148 = arith.constant 8 : index
    %c32_149 = arith.constant 32 : index
    %145 = vector.load %arg9[%c8_148, %c32_149] : memref<16x96xf32, #tpu.memory_space<vmem>>, vector<8x32xf32>
    tpu.vector_store %arg9[%c8_148, %c32_149], %144 {strides = array<i32>} : memref<16x96xf32, #tpu.memory_space<vmem>>, vector<8x32xf32>,
    %c0_150 = arith.constant 0 : index
    %c0_151 = arith.constant 0 : index
    %c0_152 = arith.constant 0 : index
    %146 = vector.load %arg5[%c0_150, %c0_151, %c0_152] : memref<4x8x8xf32, #tpu.memory_space<vmem>>, vector<1x8x8xf32>
    %147 = vector.shape_cast %146 : vector<1x8x8xf32> to vector<8x8xf32>
    %cst_153 = arith.constant dense<0.000000e+00> : vector<8x32xf32>
    %148 = tpu.matmul %147, %144, %cst_153 {dimension_numbers = #tpu.dot_dimension_numbers<[1], [0], [0], [1], [0, 0, 1, 1], [], []>} : vector<8x8xf32>, vector<8x32xf32>, vector<8x32xf32> -> vector<8x32xf32>
    %c0_154 = arith.constant 0 : index
    %c0_155 = arith.constant 0 : index
    %c0_156 = arith.constant 0 : index
    %149 = vector.load %arg6[%c0_154, %c0_155, %c0_156] : memref<4x32x32xf32, #tpu.memory_space<vmem>>, vector<1x32x32xf32>
    %150 = vector.shape_cast %149 : vector<1x32x32xf32> to vector<32x32xf32>
    %cst_157 = arith.constant dense<0.000000e+00> : vector<8x32xf32>
    %151 = tpu.matmul %148, %150, %cst_157 {dimension_numbers = #tpu.dot_dimension_numbers<[1], [0], [0], [1], [0, 0, 1, 1], [], []>} : vector<8x32xf32>, vector<32x32xf32>, vector<8x32xf32> -> vector<8x32xf32>
    %c1_158 = arith.constant 1 : index
    %c0_159 = arith.constant 0 : index
    %c0_160 = arith.constant 0 : index
    %152 = vector.load %arg5[%c1_158, %c0_159, %c0_160] : memref<4x8x8xf32, #tpu.memory_space<vmem>>, vector<1x8x8xf32>
    %153 = vector.shape_cast %152 : vector<1x8x8xf32> to vector<8x8xf32>
    %cst_161 = arith.constant dense<0.000000e+00> : vector<8x32xf32>
    %154 = tpu.matmul %153, %144, %cst_161 {dimension_numbers = #tpu.dot_dimension_numbers<[1], [0], [0], [1], [0, 0, 1, 1], [], []>} : vector<8x8xf32>, vector<8x32xf32>, vector<8x32xf32> -> vector<8x32xf32>
    %c1_162 = arith.constant 1 : index
    %c0_163 = arith.constant 0 : index
    %c0_164 = arith.constant 0 : index
    %155 = vector.load %arg6[%c1_162, %c0_163, %c0_164] : memref<4x32x32xf32, #tpu.memory_space<vmem>>, vector<1x32x32xf32>
    %156 = vector.shape_cast %155 : vector<1x32x32xf32> to vector<32x32xf32>
    %cst_165 = arith.constant dense<0.000000e+00> : vector<8x32xf32>
    %157 = tpu.matmul %154, %156, %cst_165 {dimension_numbers = #tpu.dot_dimension_numbers<[1], [0], [0], [1], [0, 0, 1, 1], [], []>} : vector<8x32xf32>, vector<32x32xf32>, vector<8x32xf32> -> vector<8x32xf32>
    %158 = arith.addf %151, %157 : vector<8x32xf32>
    %c2_166 = arith.constant 2 : index
    %c0_167 = arith.constant 0 : index
    %c0_168 = arith.constant 0 : index
    %159 = vector.load %arg5[%c2_166, %c0_167, %c0_168] : memref<4x8x8xf32, #tpu.memory_space<vmem>>, vector<1x8x8xf32>
    %160 = vector.shape_cast %159 : vector<1x8x8xf32> to vector<8x8xf32>
    %cst_169 = arith.constant dense<0.000000e+00> : vector<8x32xf32>
    %161 = tpu.matmul %160, %144, %cst_169 {dimension_numbers = #tpu.dot_dimension_numbers<[1], [0], [0], [1], [0, 0, 1, 1], [], []>} : vector<8x8xf32>, vector<8x32xf32>, vector<8x32xf32> -> vector<8x32xf32>
    %c2_170 = arith.constant 2 : index
    %c0_171 = arith.constant 0 : index
    %c0_172 = arith.constant 0 : index
    %162 = vector.load %arg6[%c2_170, %c0_171, %c0_172] : memref<4x32x32xf32, #tpu.memory_space<vmem>>, vector<1x32x32xf32>
    %163 = vector.shape_cast %162 : vector<1x32x32xf32> to vector<32x32xf32>
    %cst_173 = arith.constant dense<0.000000e+00> : vector<8x32xf32>
    %164 = tpu.matmul %161, %163, %cst_173 {dimension_numbers = #tpu.dot_dimension_numbers<[1], [0], [0], [1], [0, 0, 1, 1], [], []>} : vector<8x32xf32>, vector<32x32xf32>, vector<8x32xf32> -> vector<8x32xf32>
    %165 = arith.addf %158, %164 : vector<8x32xf32>
    %c3_174 = arith.constant 3 : index
    %c0_175 = arith.constant 0 : index
    %c0_176 = arith.constant 0 : index
    %166 = vector.load %arg5[%c3_174, %c0_175, %c0_176] : memref<4x8x8xf32, #tpu.memory_space<vmem>>, vector<1x8x8xf32>
    %167 = vector.shape_cast %166 : vector<1x8x8xf32> to vector<8x8xf32>
    %cst_177 = arith.constant dense<0.000000e+00> : vector<8x32xf32>
    %168 = tpu.matmul %167, %144, %cst_177 {dimension_numbers = #tpu.dot_dimension_numbers<[1], [0], [0], [1], [0, 0, 1, 1], [], []>} : vector<8x8xf32>, vector<8x32xf32>, vector<8x32xf32> -> vector<8x32xf32>
    %c3_178 = arith.constant 3 : index
    %c0_179 = arith.constant 0 : index
    %c0_180 = arith.constant 0 : index
    %169 = vector.load %arg6[%c3_178, %c0_179, %c0_180] : memref<4x32x32xf32, #tpu.memory_space<vmem>>, vector<1x32x32xf32>
    %170 = vector.shape_cast %169 : vector<1x32x32xf32> to vector<32x32xf32>
    %cst_181 = arith.constant dense<0.000000e+00> : vector<8x32xf32>
    %171 = tpu.matmul %168, %170, %cst_181 {dimension_numbers = #tpu.dot_dimension_numbers<[1], [0], [0], [1], [0, 0, 1, 1], [], []>} : vector<8x32xf32>, vector<32x32xf32>, vector<8x32xf32> -> vector<8x32xf32>
    %172 = arith.addf %165, %171 : vector<8x32xf32>
    %c0_182 = arith.constant 0 : index
    %c0_183 = arith.constant 0 : index
    %173 = vector.load %arg7[%c0_182, %c0_183] : memref<1x32xf32, #tpu.memory_space<vmem>>, vector<1x32xf32>
    %174 = vector.broadcast %173 : vector<1x32xf32> to vector<8x32xf32>
    %175 = arith.addf %172, %174 : vector<8x32xf32>
    %cst_184 = arith.constant 2.000000e+00 : f32
    %176 = vector.broadcast %cst_184 : f32 to vector<8x32xf32>
    %177 = arith.mulf %176, %175 : vector<8x32xf32>
    %178 = arith.subf %177, %113 : vector<8x32xf32>
    %c8_185 = arith.constant 8 : index
    %c64_186 = arith.constant 64 : index
    %179 = vector.load %arg9[%c8_185, %c64_186] : memref<16x96xf32, #tpu.memory_space<vmem>>, vector<8x32xf32>
    tpu.vector_store %arg9[%c8_185, %c64_186], %178 {strides = array<i32>} : memref<16x96xf32, #tpu.memory_space<vmem>>, vector<8x32xf32>,
    return
  }
}

module attributes {stable_mosaic.version = 11 : i64} {
  func.func @kernel(%arg0: memref<16x96xf32, #tpu.memory_space<vmem>>, %arg1: memref<96x16xf32, #tpu.memory_space<vmem>>, %arg2: memref<1x16xf32, #tpu.memory_space<vmem>>, %arg3: memref<2x8x16xf32, #tpu.memory_space<vmem>>, %arg4: memref<2x8x16xf32, #tpu.memory_space<vmem>>, %arg5: memref<8x16xf32, #tpu.memory_space<vmem>>, %arg6: memref<8x16xf32, #tpu.memory_space<vmem>>, %arg7: memref<2x8x16xf32, #tpu.memory_space<vmem>>) attributes {dimension_semantics = [], scalar_prefetch = 0 : i64, scratch_operands = 0 : i64, tpu.core_type = #tpu.core_type<tc>} {
    %c0 = arith.constant 0 : index
    %c0_0 = arith.constant 0 : index
    %0 = vector.load %arg5[%c0, %c0_0] : memref<8x16xf32, #tpu.memory_space<vmem>>, vector<8x16xf32>
    %c0_1 = arith.constant 0 : index
    %c0_2 = arith.constant 0 : index
    %1 = vector.load %arg6[%c0_1, %c0_2] : memref<8x16xf32, #tpu.memory_space<vmem>>, vector<8x16xf32>
    %c0_3 = arith.constant 0 : index
    %c0_4 = arith.constant 0 : index
    %2 = vector.load %arg0[%c0_3, %c0_4] : memref<16x96xf32, #tpu.memory_space<vmem>>, vector<8x96xf32>
    %c0_5 = arith.constant 0 : index
    %c0_6 = arith.constant 0 : index
    %3 = vector.load %arg1[%c0_5, %c0_6] : memref<96x16xf32, #tpu.memory_space<vmem>>, vector<96x16xf32>
    %cst = arith.constant dense<0.000000e+00> : vector<8x16xf32>
    %4 = tpu.matmul %2, %3, %cst {dimension_numbers = #tpu.dot_dimension_numbers<[1], [0], [0], [1], [0, 0, 1, 1], [], []>} : vector<8x96xf32>, vector<96x16xf32>, vector<8x16xf32> -> vector<8x16xf32>
    %c0_7 = arith.constant 0 : index
    %c0_8 = arith.constant 0 : index
    %5 = vector.load %arg2[%c0_7, %c0_8] : memref<1x16xf32, #tpu.memory_space<vmem>>, vector<1x16xf32>
    %6 = vector.broadcast %5 : vector<1x16xf32> to vector<8x16xf32>
    %7 = arith.addf %4, %6 : vector<8x16xf32>
    %c0_9 = arith.constant 0 : index
    %c0_10 = arith.constant 0 : index
    %c0_11 = arith.constant 0 : index
    %8 = vector.load %arg3[%c0_9, %c0_10, %c0_11] : memref<2x8x16xf32, #tpu.memory_space<vmem>>, vector<1x8x16xf32>
    %9 = vector.shape_cast %8 : vector<1x8x16xf32> to vector<8x16xf32>
    %c0_12 = arith.constant 0 : index
    %c0_13 = arith.constant 0 : index
    %c0_14 = arith.constant 0 : index
    %10 = vector.load %arg4[%c0_12, %c0_13, %c0_14] : memref<2x8x16xf32, #tpu.memory_space<vmem>>, vector<1x8x16xf32>
    %11 = vector.shape_cast %10 : vector<1x8x16xf32> to vector<8x16xf32>
    %12 = arith.mulf %9, %11 : vector<8x16xf32>
    %cst_15 = arith.constant 1.000000e+00 : f32
    %13 = vector.broadcast %cst_15 : f32 to vector<8x16xf32>
    %14 = arith.subf %13, %9 : vector<8x16xf32>
    %15 = arith.mulf %14, %7 : vector<8x16xf32>
    %16 = arith.addf %12, %15 : vector<8x16xf32>
    %cst_16 = arith.constant dense<0.000000e+00> : vector<8xf32>
    %17 = vector.multi_reduction <add>, %16, %cst_16 [1] : vector<8x16xf32> to vector<8xf32>
    %18 = vector.shape_cast %17 : vector<8xf32> to vector<8x1xf32>
    %cst_17 = arith.constant dense<0.000000e+00> : vector<1xf32>
    %19 = vector.multi_reduction <add>, %18, %cst_17 [0] : vector<8x1xf32> to vector<1xf32>
    %20 = vector.shape_cast %19 : vector<1xf32> to vector<1x1xf32>
    %cst_18 = arith.constant 7.812500e-03 : f32
    %21 = vector.broadcast %cst_18 : f32 to vector<1x1xf32>
    %22 = arith.mulf %20, %21 : vector<1x1xf32>
    %23 = vector.broadcast %22 : vector<1x1xf32> to vector<8x16xf32>
    %24 = arith.subf %16, %23 : vector<8x16xf32>
    %25 = arith.mulf %24, %24 : vector<8x16xf32>
    %cst_19 = arith.constant dense<0.000000e+00> : vector<8xf32>
    %26 = vector.multi_reduction <add>, %25, %cst_19 [1] : vector<8x16xf32> to vector<8xf32>
    %27 = vector.shape_cast %26 : vector<8xf32> to vector<8x1xf32>
    %cst_20 = arith.constant dense<0.000000e+00> : vector<1xf32>
    %28 = vector.multi_reduction <add>, %27, %cst_20 [0] : vector<8x1xf32> to vector<1xf32>
    %29 = vector.shape_cast %28 : vector<1xf32> to vector<1x1xf32>
    %cst_21 = arith.constant 7.812500e-03 : f32
    %30 = vector.broadcast %cst_21 : f32 to vector<1x1xf32>
    %31 = arith.mulf %29, %30 : vector<1x1xf32>
    %cst_22 = arith.constant 9.99999974E-6 : f32
    %32 = vector.broadcast %cst_22 : f32 to vector<1x1xf32>
    %33 = arith.addf %31, %32 : vector<1x1xf32>
    %34 = math.rsqrt %33 : vector<1x1xf32>
    %35 = vector.broadcast %34 : vector<1x1xf32> to vector<8x16xf32>
    %36 = arith.mulf %24, %35 : vector<8x16xf32>
    %37 = arith.mulf %36, %0 : vector<8x16xf32>
    %38 = arith.addf %37, %1 : vector<8x16xf32>
    %c0_23 = arith.constant 0 : index
    %c0_24 = arith.constant 0 : index
    %c0_25 = arith.constant 0 : index
    %39 = vector.load %arg7[%c0_23, %c0_24, %c0_25] : memref<2x8x16xf32, #tpu.memory_space<vmem>>, vector<1x8x16xf32>
    %40 = vector.shape_cast %39 : vector<1x8x16xf32> to vector<8x16xf32>
    %41 = vector.shape_cast %38 : vector<8x16xf32> to vector<1x8x16xf32>
    tpu.vector_store %arg7[%c0_23, %c0_24, %c0_25], %41 {strides = array<i32>} : memref<2x8x16xf32, #tpu.memory_space<vmem>>, vector<1x8x16xf32>,
    %c8 = arith.constant 8 : index
    %c0_26 = arith.constant 0 : index
    %42 = vector.load %arg0[%c8, %c0_26] : memref<16x96xf32, #tpu.memory_space<vmem>>, vector<8x96xf32>
    %c0_27 = arith.constant 0 : index
    %c0_28 = arith.constant 0 : index
    %43 = vector.load %arg1[%c0_27, %c0_28] : memref<96x16xf32, #tpu.memory_space<vmem>>, vector<96x16xf32>
    %cst_29 = arith.constant dense<0.000000e+00> : vector<8x16xf32>
    %44 = tpu.matmul %42, %43, %cst_29 {dimension_numbers = #tpu.dot_dimension_numbers<[1], [0], [0], [1], [0, 0, 1, 1], [], []>} : vector<8x96xf32>, vector<96x16xf32>, vector<8x16xf32> -> vector<8x16xf32>
    %c0_30 = arith.constant 0 : index
    %c0_31 = arith.constant 0 : index
    %45 = vector.load %arg2[%c0_30, %c0_31] : memref<1x16xf32, #tpu.memory_space<vmem>>, vector<1x16xf32>
    %46 = vector.broadcast %45 : vector<1x16xf32> to vector<8x16xf32>
    %47 = arith.addf %44, %46 : vector<8x16xf32>
    %c1 = arith.constant 1 : index
    %c0_32 = arith.constant 0 : index
    %c0_33 = arith.constant 0 : index
    %48 = vector.load %arg3[%c1, %c0_32, %c0_33] : memref<2x8x16xf32, #tpu.memory_space<vmem>>, vector<1x8x16xf32>
    %49 = vector.shape_cast %48 : vector<1x8x16xf32> to vector<8x16xf32>
    %c1_34 = arith.constant 1 : index
    %c0_35 = arith.constant 0 : index
    %c0_36 = arith.constant 0 : index
    %50 = vector.load %arg4[%c1_34, %c0_35, %c0_36] : memref<2x8x16xf32, #tpu.memory_space<vmem>>, vector<1x8x16xf32>
    %51 = vector.shape_cast %50 : vector<1x8x16xf32> to vector<8x16xf32>
    %52 = arith.mulf %49, %51 : vector<8x16xf32>
    %cst_37 = arith.constant 1.000000e+00 : f32
    %53 = vector.broadcast %cst_37 : f32 to vector<8x16xf32>
    %54 = arith.subf %53, %49 : vector<8x16xf32>
    %55 = arith.mulf %54, %47 : vector<8x16xf32>
    %56 = arith.addf %52, %55 : vector<8x16xf32>
    %cst_38 = arith.constant dense<0.000000e+00> : vector<8xf32>
    %57 = vector.multi_reduction <add>, %56, %cst_38 [1] : vector<8x16xf32> to vector<8xf32>
    %58 = vector.shape_cast %57 : vector<8xf32> to vector<8x1xf32>
    %cst_39 = arith.constant dense<0.000000e+00> : vector<1xf32>
    %59 = vector.multi_reduction <add>, %58, %cst_39 [0] : vector<8x1xf32> to vector<1xf32>
    %60 = vector.shape_cast %59 : vector<1xf32> to vector<1x1xf32>
    %cst_40 = arith.constant 7.812500e-03 : f32
    %61 = vector.broadcast %cst_40 : f32 to vector<1x1xf32>
    %62 = arith.mulf %60, %61 : vector<1x1xf32>
    %63 = vector.broadcast %62 : vector<1x1xf32> to vector<8x16xf32>
    %64 = arith.subf %56, %63 : vector<8x16xf32>
    %65 = arith.mulf %64, %64 : vector<8x16xf32>
    %cst_41 = arith.constant dense<0.000000e+00> : vector<8xf32>
    %66 = vector.multi_reduction <add>, %65, %cst_41 [1] : vector<8x16xf32> to vector<8xf32>
    %67 = vector.shape_cast %66 : vector<8xf32> to vector<8x1xf32>
    %cst_42 = arith.constant dense<0.000000e+00> : vector<1xf32>
    %68 = vector.multi_reduction <add>, %67, %cst_42 [0] : vector<8x1xf32> to vector<1xf32>
    %69 = vector.shape_cast %68 : vector<1xf32> to vector<1x1xf32>
    %cst_43 = arith.constant 7.812500e-03 : f32
    %70 = vector.broadcast %cst_43 : f32 to vector<1x1xf32>
    %71 = arith.mulf %69, %70 : vector<1x1xf32>
    %cst_44 = arith.constant 9.99999974E-6 : f32
    %72 = vector.broadcast %cst_44 : f32 to vector<1x1xf32>
    %73 = arith.addf %71, %72 : vector<1x1xf32>
    %74 = math.rsqrt %73 : vector<1x1xf32>
    %75 = vector.broadcast %74 : vector<1x1xf32> to vector<8x16xf32>
    %76 = arith.mulf %64, %75 : vector<8x16xf32>
    %77 = arith.mulf %76, %0 : vector<8x16xf32>
    %78 = arith.addf %77, %1 : vector<8x16xf32>
    %c1_45 = arith.constant 1 : index
    %c0_46 = arith.constant 0 : index
    %c0_47 = arith.constant 0 : index
    %79 = vector.load %arg7[%c1_45, %c0_46, %c0_47] : memref<2x8x16xf32, #tpu.memory_space<vmem>>, vector<1x8x16xf32>
    %80 = vector.shape_cast %79 : vector<1x8x16xf32> to vector<8x16xf32>
    %81 = vector.shape_cast %78 : vector<8x16xf32> to vector<1x8x16xf32>
    tpu.vector_store %arg7[%c1_45, %c0_46, %c0_47], %81 {strides = array<i32>} : memref<2x8x16xf32, #tpu.memory_space<vmem>>, vector<1x8x16xf32>,
    return
  }
}

</mosaic_0001>

<llo_original>
// kernel: decoder_forward.6
$region0: #{decoder_forward.6}
  #allocation0 [shape = 'u32[]', space=smem, size = 0x4, offset = 0x4, fixed_abs, tag = 'smem constant byte address 0x4 - core index']
  #allocation1 [shape = 'u32[72,128]{1,0:T(1,128)}', space=vmem, size = 0x9000, scoped, tag = 'internal scratch']
  #allocation2 [shape = 'f32[8,19]{1,0:T(8,128)}', space=vmem, size = 0x1000, scoped, tag = 'scratch operand']
  %s0 = inlined_call_operand.vmem [shape: f32[2,8,3], index: 0, kind: input, shape index: {}]
  %s1 = inlined_call_operand.vmem [shape: f32[2,8,16], index: 1, kind: input, shape index: {}]
  %s2 = inlined_call_operand.vmem [shape: f32[4,8,8], index: 2, kind: input, shape index: {}]
  %s3 = inlined_call_operand.vmem [shape: f32[4,19,19], index: 3, kind: input, shape index: {}]
  %s4 = inlined_call_operand.vmem [shape: f32[1,19], index: 4, kind: input, shape index: {}]
  %s5 = inlined_call_operand.vmem [shape: f32[16,57], index: 5, kind: output, shape index: {}]
  %s6 = sld [smem:[#allocation0]]
  $region30: #{decoder_forward.6} parent=0
    _
  %s8 = ssub.s32 1, %s6
  %s9 = scalar_select 0, %s8, %s6
  // Predicated region
  $region2: #{decoder_forward.6} parent=0 // pred_check
    _
  $region3: #{decoder_forward.6} parent=0 // pred_check_branch
    %11 = sbr.rel (0) target = $region5
  $region4: #{decoder_forward.6} parent=0 // pred_region
    _
  $region5: #{decoder_forward.6} parent=0 // pred_fallthru
    _
  // Predicated region
  $region6: #{decoder_forward.6} parent=0 // pred_check
    _
  $region7: #{decoder_forward.6} parent=0 // pred_check_branch
    %13 = sbr.rel (0) target = $region9
  $region8: #{decoder_forward.6} parent=0 // pred_region
    _
  $region9: #{decoder_forward.6} parent=0 // pred_fallthru
    _
  // Predicated region
  $region10: #{decoder_forward.6} parent=0 // pred_check
    _
  $region11: #{decoder_forward.6} parent=0 // pred_check_branch
    %15 = sbr.rel (0) target = $region13
  $region12: #{decoder_forward.6} parent=0 // pred_region
    _
  $region13: #{decoder_forward.6} parent=0 // pred_fallthru
    _
  // Predicated region
  $region14: #{decoder_forward.6} parent=0 // pred_check
    _
  $region15: #{decoder_forward.6} parent=0 // pred_check_branch
    %17 = sbr.rel (0) target = $region17
  $region16: #{decoder_forward.6} parent=0 // pred_region
    _
  $region17: #{decoder_forward.6} parent=0 // pred_fallthru
    _
  // Predicated region
  $region18: #{decoder_forward.6} parent=0 // pred_check
    _
  $region19: #{decoder_forward.6} parent=0 // pred_check_branch
    %19 = sbr.rel (0) target = $region21
  $region20: #{decoder_forward.6} parent=0 // pred_region
    _
  $region21: #{decoder_forward.6} parent=0 // pred_fallthru
    _
  %v20 = vld [vmem:[%s0] sm:$0xff]
  %vm21 = vcmask 23552
  %22 = vst.msk [vmem:[#allocation2] sm:$0xff] %vm21, %v20
  %v23 = vld [vmem:[%s1] sm:$0xff]
  %25 = vrot.lane.b32.xlu0 %v23, 3
  %v26 = vpop.permute.xlu0 %25
  %vm28 = vcmask 154648
  %29 = vst.msk [vmem:[#allocation2] sm:$0xff] %vm28, %v26
  %v30 = vld [vmem:[#allocation2] sm:$0xff]
  %vm31 = vcmask 154624
  %32 = vst.msk [vmem:[%s5] sm:$0xff] %vm31, %v30
  %v33 = vld [vmem:[%s2] sm:$0xff]
  %vm34 = vcmask 64512
  %v36 = vsel %vm34, %v33, 0
  %38 = vmatpush.msra.mxu0 0.0
  %39 = vmatpush.msra.mxu0 0.0
  %40 = vmatpush.msra.mxu0 0.0
  %41 = vmatpush.msra.mxu0 0.0
  %42 = vmatpush.msra.mxu0 0.0
  %43 = vmatpush.msra.mxu0 0.0
  %44 = vmatpush.msra.mxu0 0.0
  %45 = vmatpush.msra.mxu0 0.0
  %46 = vmatpush.msra.mxu0 0.0
  %47 = vmatpush.msra.mxu0 0.0
  %48 = vmatpush.msra.mxu0 0.0
  %49 = vmatpush.msra.mxu0 0.0
  %50 = vmatpush.msra.mxu0 0.0
  %51 = vmatpush.msra.mxu0 0.0
  %52 = vmatpush.msra.mxu0 0.0
  %53 = vmatpush.msra.mxu0 %v30
  %54 = vmatmul.f32.gmra.mxu0 %v36
  %v55 = vpop.f32.mrf.mxu0
  %v56 = vadd.f32 0.0, %v55
  %57 = vdwg.mxu0
  %v58 = vld [vmem:[%s3] sm:$0xff]
  %v59 = vld [vmem:[%s3 + $0x8] sm:$0xff]
  %v60 = vld [vmem:[%s3 + $0x10] sm:$0x7]
  %s61 = scalar_lea.vmem %s2, 8
  %v62 = vld [vmem:[%s61] sm:$0xff]
  %v64 = vsel %vm34, %v62, 0
  %66 = vmatpush.msra.mxu0 0.0
  %67 = vmatpush.msra.mxu0 0.0
  %68 = vmatpush.msra.mxu0 0.0
  %69 = vmatpush.msra.mxu0 0.0
  %70 = vmatpush.msra.mxu0 0.0
  %71 = vmatpush.msra.mxu0 0.0
  %72 = vmatpush.msra.mxu0 0.0
  %73 = vmatpush.msra.mxu0 0.0
  %74 = vmatpush.msra.mxu0 0.0
  %75 = vmatpush.msra.mxu0 0.0
  %76 = vmatpush.msra.mxu0 0.0
  %77 = vmatpush.msra.mxu0 0.0
  %78 = vmatpush.msra.mxu0 0.0
  %79 = vmatpush.msra.mxu0 0.0
  %80 = vmatpush.msra.mxu0 0.0
  %81 = vmatpush.msra.mxu0 %v30
  %82 = vmatmul.f32.gmra.mxu0 %v64
  %v83 = vpop.f32.mrf.mxu0
  %v84 = vadd.f32 0.0, %v83
  %85 = vdwg.mxu0
  %s86 = scalar_lea.vmem %s3, 24
  %v87 = vld [vmem:[%s86] sm:$0xff]
  %v88 = vld [vmem:[%s86 + $0x8] sm:$0xff]
  %v89 = vld [vmem:[%s86 + $0x10] sm:$0x7]
  %v91 = vsel %vm31, %v84, 0
  %vm93 = vcmask 1042432
  %v95 = vsel %vm93, %v89, 0
  %97 = vmatpush.msra.mxu0 0.0
  %98 = vmatpush.msra.mxu0 0.0
  %99 = vmatpush.msra.mxu0 0.0
  %100 = vmatpush.msra.mxu0 0.0
  %101 = vmatpush.msra.mxu0 0.0
  %102 = vmatpush.msra.mxu0 0.0
  %103 = vmatpush.msra.mxu0 0.0
  %104 = vmatpush.msra.mxu0 0.0
  %105 = vmatpush.msra.mxu0 0.0
  %106 = vmatpush.msra.mxu0 0.0
  %107 = vmatpush.msra.mxu0 0.0
  %108 = vmatpush.msra.mxu0 0.0
  %109 = vmatpush.msra.mxu0 0.0
  %110 = vmatpush.msra.mxu0 %v95
  %111 = vmatpush.msra.mxu0 %v88
  %112 = vmatpush.msra.mxu0 %v87
  %113 = vmatmul.f32.gmra.mxu0 %v91
  %v114 = vpop.f32.mrf.mxu0
  %v115 = vadd.f32 0.0, %v114
  %116 = vdwg.mxu0
  %v118 = vsel %vm31, %v56, 0
  %v121 = vsel %vm93, %v60, 0
  %123 = vmatpush.msra.mxu0 0.0
  %124 = vmatpush.msra.mxu0 0.0
  %125 = vmatpush.msra.mxu0 0.0
  %126 = vmatpush.msra.mxu0 0.0
  %127 = vmatpush.msra.mxu0 0.0
  %128 = vmatpush.msra.mxu0 0.0
  %129 = vmatpush.msra.mxu0 0.0
  %130 = vmatpush.msra.mxu0 0.0
  %131 = vmatpush.msra.mxu0 0.0
  %132 = vmatpush.msra.mxu0 0.0
  %133 = vmatpush.msra.mxu0 0.0
  %134 = vmatpush.msra.mxu0 0.0
  %135 = vmatpush.msra.mxu0 0.0
  %136 = vmatpush.msra.mxu0 %v121
  %137 = vmatpush.msra.mxu0 %v59
  %138 = vmatpush.msra.mxu0 %v58
  %139 = vmatmul.f32.gmra.mxu0 %v118
  %v140 = vpop.f32.mrf.mxu0
  %v141 = vadd.f32 %v115, %v140
  %142 = vdwg.mxu0
  %s143 = scalar_lea.vmem %s2, 16
  %v144 = vld [vmem:[%s143] sm:$0xff]
  %v146 = vsel %vm34, %v144, 0
  %148 = vmatpush.msra.mxu0 0.0
  %149 = vmatpush.msra.mxu0 0.0
  %150 = vmatpush.msra.mxu0 0.0
  %151 = vmatpush.msra.mxu0 0.0
  %152 = vmatpush.msra.mxu0 0.0
  %153 = vmatpush.msra.mxu0 0.0
  %154 = vmatpush.msra.mxu0 0.0
  %155 = vmatpush.msra.mxu0 0.0
  %156 = vmatpush.msra.mxu0 0.0
  %157 = vmatpush.msra.mxu0 0.0
  %158 = vmatpush.msra.mxu0 0.0
  %159 = vmatpush.msra.mxu0 0.0
  %160 = vmatpush.msra.mxu0 0.0
  %161 = vmatpush.msra.mxu0 0.0
  %162 = vmatpush.msra.mxu0 0.0
  %163 = vmatpush.msra.mxu0 %v30
  %164 = vmatmul.f32.gmra.mxu0 %v146
  %v165 = vpop.f32.mrf.mxu0
  %v166 = vadd.f32 0.0, %v165
  %167 = vdwg.mxu0
  %s168 = scalar_lea.vmem %s3, 48
  %v169 = vld [vmem:[%s168] sm:$0xff]
  %v170 = vld [vmem:[%s168 + $0x8] sm:$0xff]
  %v171 = vld [vmem:[%s168 + $0x10] sm:$0x7]
  %v173 = vsel %vm31, %v166, 0
  %v176 = vsel %vm93, %v171, 0
  %178 = vmatpush.msra.mxu0 0.0
  %179 = vmatpush.msra.mxu0 0.0
  %180 = vmatpush.msra.mxu0 0.0
  %181 = vmatpush.msra.mxu0 0.0
  %182 = vmatpush.msra.mxu0 0.0
  %183 = vmatpush.msra.mxu0 0.0
  %184 = vmatpush.msra.mxu0 0.0
  %185 = vmatpush.msra.mxu0 0.0
  %186 = vmatpush.msra.mxu0 0.0
  %187 = vmatpush.msra.mxu0 0.0
  %188 = vmatpush.msra.mxu0 0.0
  %189 = vmatpush.msra.mxu0 0.0
  %190 = vmatpush.msra.mxu0 0.0
  %191 = vmatpush.msra.mxu0 %v176
  %192 = vmatpush.msra.mxu0 %v170
  %193 = vmatpush.msra.mxu0 %v169
  %194 = vmatmul.f32.gmra.mxu0 %v173
  %v195 = vpop.f32.mrf.mxu0
  %v196 = vadd.f32 0.0, %v195
  %197 = vdwg.mxu0
  %v198 = vadd.f32 %v141, %v196
  %s199 = scalar_lea.vmem %s2, 24
  %v200 = vld [vmem:[%s199] sm:$0xff]
  %v202 = vsel %vm34, %v200, 0
  %204 = vmatpush.msra.mxu0 0.0
  %205 = vmatpush.msra.mxu0 0.0
  %206 = vmatpush.msra.mxu0 0.0
  %207 = vmatpush.msra.mxu0 0.0
  %208 = vmatpush.msra.mxu0 0.0
  %209 = vmatpush.msra.mxu0 0.0
  %210 = vmatpush.msra.mxu0 0.0
  %211 = vmatpush.msra.mxu0 0.0
  %212 = vmatpush.msra.mxu0 0.0
  %213 = vmatpush.msra.mxu0 0.0
  %214 = vmatpush.msra.mxu0 0.0
  %215 = vmatpush.msra.mxu0 0.0
  %216 = vmatpush.msra.mxu0 0.0
  %217 = vmatpush.msra.mxu0 0.0
  %218 = vmatpush.msra.mxu0 0.0
  %219 = vmatpush.msra.mxu0 %v30
  %220 = vmatmul.f32.gmra.mxu0 %v202
  %v221 = vpop.f32.mrf.mxu0
  %v222 = vadd.f32 0.0, %v221
  %223 = vdwg.mxu0
  %s224 = scalar_lea.vmem %s3, 72
  %v225 = vld [vmem:[%s224] sm:$0xff]
  %v226 = vld [vmem:[%s224 + $0x8] sm:$0xff]
  %v227 = vld [vmem:[%s224 + $0x10] sm:$0x7]
  %v229 = vsel %vm31, %v222, 0
  %v232 = vsel %vm93, %v227, 0
  %234 = vmatpush.msra.mxu0 0.0
  %235 = vmatpush.msra.mxu0 0.0
  %236 = vmatpush.msra.mxu0 0.0
  %237 = vmatpush.msra.mxu0 0.0
  %238 = vmatpush.msra.mxu0 0.0
  %239 = vmatpush.msra.mxu0 0.0
  %240 = vmatpush.msra.mxu0 0.0
  %241 = vmatpush.msra.mxu0 0.0
  %242 = vmatpush.msra.mxu0 0.0
  %243 = vmatpush.msra.mxu0 0.0
  %244 = vmatpush.msra.mxu0 0.0
  %245 = vmatpush.msra.mxu0 0.0
  %246 = vmatpush.msra.mxu0 0.0
  %247 = vmatpush.msra.mxu0 %v232
  %248 = vmatpush.msra.mxu0 %v226
  %249 = vmatpush.msra.mxu0 %v225
  %250 = vmatmul.f32.gmra.mxu0 %v229
  %v251 = vpop.f32.mrf.mxu0
  %v252 = vadd.f32 0.0, %v251
  %253 = vdwg.mxu0
  %v254 = vadd.f32 %v198, %v252
  %v255 = vld [vmem:[%s4] sm:$0x1]
  %v257 = vperm.slane %v255, 0
  %v259 = vadd.f32 %v254, %v257
  %261 = vrot.lane.b32.xlu0 %v259, 19
  %v262 = vpop.permute.xlu0 %261
  %vm264 = vcmask 310424
  %265 = vst.msk [vmem:[%s5] sm:$0xff] %vm264, %v262
  %v266 = vld [vmem:[%s2] sm:$0xff]
  %v268 = vsel %vm34, %v266, 0
  %270 = vmatpush.msra.mxu0 0.0
  %271 = vmatpush.msra.mxu0 0.0
  %272 = vmatpush.msra.mxu0 0.0
  %273 = vmatpush.msra.mxu0 0.0
  %274 = vmatpush.msra.mxu0 0.0
  %275 = vmatpush.msra.mxu0 0.0
  %276 = vmatpush.msra.mxu0 0.0
  %277 = vmatpush.msra.mxu0 0.0
  %278 = vmatpush.msra.mxu0 0.0
  %279 = vmatpush.msra.mxu0 0.0
  %280 = vmatpush.msra.mxu0 0.0
  %281 = vmatpush.msra.mxu0 0.0
  %282 = vmatpush.msra.mxu0 0.0
  %283 = vmatpush.msra.mxu0 0.0
  %284 = vmatpush.msra.mxu0 0.0
  %285 = vmatpush.msra.mxu0 %v259
  %286 = vmatmul.f32.gmra.mxu0 %v268
  %v287 = vpop.f32.mrf.mxu0
  %v288 = vadd.f32 0.0, %v287
  %289 = vdwg.mxu0
  %v290 = vld [vmem:[%s3] sm:$0xff]
  %v291 = vld [vmem:[%s3 + $0x8] sm:$0xff]
  %v292 = vld [vmem:[%s3 + $0x10] sm:$0x7]
  %v293 = vld [vmem:[%s61] sm:$0xff]
  %v295 = vsel %vm34, %v293, 0
  %297 = vmatpush.msra.mxu0 0.0
  %298 = vmatpush.msra.mxu0 0.0
  %299 = vmatpush.msra.mxu0 0.0
  %300 = vmatpush.msra.mxu0 0.0
  %301 = vmatpush.msra.mxu0 0.0
  %302 = vmatpush.msra.mxu0 0.0
  %303 = vmatpush.msra.mxu0 0.0
  %304 = vmatpush.msra.mxu0 0.0
  %305 = vmatpush.msra.mxu0 0.0
  %306 = vmatpush.msra.mxu0 0.0
  %307 = vmatpush.msra.mxu0 0.0
  %308 = vmatpush.msra.mxu0 0.0
  %309 = vmatpush.msra.mxu0 0.0
  %310 = vmatpush.msra.mxu0 0.0
  %311 = vmatpush.msra.mxu0 0.0
  %312 = vmatpush.msra.mxu0 %v259
  %313 = vmatmul.f32.gmra.mxu0 %v295
  %v314 = vpop.f32.mrf.mxu0
  %v315 = vadd.f32 0.0, %v314
  %316 = vdwg.mxu0
  %v317 = vld [vmem:[%s86] sm:$0xff]
  %v318 = vld [vmem:[%s86 + $0x8] sm:$0xff]
  %v319 = vld [vmem:[%s86 + $0x10] sm:$0x7]
  %v321 = vsel %vm31, %v315, 0
  %v324 = vsel %vm93, %v319, 0
  %326 = vmatpush.msra.mxu0 0.0
  %327 = vmatpush.msra.mxu0 0.0
  %328 = vmatpush.msra.mxu0 0.0
  %329 = vmatpush.msra.mxu0 0.0
  %330 = vmatpush.msra.mxu0 0.0
  %331 = vmatpush.msra.mxu0 0.0
  %332 = vmatpush.msra.mxu0 0.0
  %333 = vmatpush.msra.mxu0 0.0
  %334 = vmatpush.msra.mxu0 0.0
  %335 = vmatpush.msra.mxu0 0.0
  %336 = vmatpush.msra.mxu0 0.0
  %337 = vmatpush.msra.mxu0 0.0
  %338 = vmatpush.msra.mxu0 0.0
  %339 = vmatpush.msra.mxu0 %v324
  %340 = vmatpush.msra.mxu0 %v318
  %341 = vmatpush.msra.mxu0 %v317
  %342 = vmatmul.f32.gmra.mxu0 %v321
  %v343 = vpop.f32.mrf.mxu0
  %v344 = vadd.f32 0.0, %v343
  %345 = vdwg.mxu0
  %v347 = vsel %vm31, %v288, 0
  %v350 = vsel %vm93, %v292, 0
  %352 = vmatpush.msra.mxu0 0.0
  %353 = vmatpush.msra.mxu0 0.0
  %354 = vmatpush.msra.mxu0 0.0
  %355 = vmatpush.msra.mxu0 0.0
  %356 = vmatpush.msra.mxu0 0.0
  %357 = vmatpush.msra.mxu0 0.0
  %358 = vmatpush.msra.mxu0 0.0
  %359 = vmatpush.msra.mxu0 0.0
  %360 = vmatpush.msra.mxu0 0.0
  %361 = vmatpush.msra.mxu0 0.0
  %362 = vmatpush.msra.mxu0 0.0
  %363 = vmatpush.msra.mxu0 0.0
  %364 = vmatpush.msra.mxu0 0.0
  %365 = vmatpush.msra.mxu0 %v350
  %366 = vmatpush.msra.mxu0 %v291
  %367 = vmatpush.msra.mxu0 %v290
  %368 = vmatmul.f32.gmra.mxu0 %v347
  %v369 = vpop.f32.mrf.mxu0
  %v370 = vadd.f32 %v344, %v369
  %371 = vdwg.mxu0
  %v372 = vld [vmem:[%s143] sm:$0xff]
  %v374 = vsel %vm34, %v372, 0
  %376 = vmatpush.msra.mxu0 0.0
  %377 = vmatpush.msra.mxu0 0.0
  %378 = vmatpush.msra.mxu0 0.0
  %379 = vmatpush.msra.mxu0 0.0
  %380 = vmatpush.msra.mxu0 0.0
  %381 = vmatpush.msra.mxu0 0.0
  %382 = vmatpush.msra.mxu0 0.0
  %383 = vmatpush.msra.mxu0 0.0
  %384 = vmatpush.msra.mxu0 0.0
  %385 = vmatpush.msra.mxu0 0.0
  %386 = vmatpush.msra.mxu0 0.0
  %387 = vmatpush.msra.mxu0 0.0
  %388 = vmatpush.msra.mxu0 0.0
  %389 = vmatpush.msra.mxu0 0.0
  %390 = vmatpush.msra.mxu0 0.0
  %391 = vmatpush.msra.mxu0 %v259
  %392 = vmatmul.f32.gmra.mxu0 %v374
  %v393 = vpop.f32.mrf.mxu0
  %v394 = vadd.f32 0.0, %v393
  %395 = vdwg.mxu0
  %v396 = vld [vmem:[%s168] sm:$0xff]
  %v397 = vld [vmem:[%s168 + $0x8] sm:$0xff]
  %v398 = vld [vmem:[%s168 + $0x10] sm:$0x7]
  %v400 = vsel %vm31, %v394, 0
  %v403 = vsel %vm93, %v398, 0
  %405 = vmatpush.msra.mxu0 0.0
  %406 = vmatpush.msra.mxu0 0.0
  %407 = vmatpush.msra.mxu0 0.0
  %408 = vmatpush.msra.mxu0 0.0
  %409 = vmatpush.msra.mxu0 0.0
  %410 = vmatpush.msra.mxu0 0.0
  %411 = vmatpush.msra.mxu0 0.0
  %412 = vmatpush.msra.mxu0 0.0
  %413 = vmatpush.msra.mxu0 0.0
  %414 = vmatpush.msra.mxu0 0.0
  %415 = vmatpush.msra.mxu0 0.0
  %416 = vmatpush.msra.mxu0 0.0
  %417 = vmatpush.msra.mxu0 0.0
  %418 = vmatpush.msra.mxu0 %v403
  %419 = vmatpush.msra.mxu0 %v397
  %420 = vmatpush.msra.mxu0 %v396
  %421 = vmatmul.f32.gmra.mxu0 %v400
  %v422 = vpop.f32.mrf.mxu0
  %v423 = vadd.f32 0.0, %v422
  %424 = vdwg.mxu0
  %v425 = vadd.f32 %v370, %v423
  %v426 = vld [vmem:[%s199] sm:$0xff]
  %v428 = vsel %vm34, %v426, 0
  %430 = vmatpush.msra.mxu0 0.0
  %431 = vmatpush.msra.mxu0 0.0
  %432 = vmatpush.msra.mxu0 0.0
  %433 = vmatpush.msra.mxu0 0.0
  %434 = vmatpush.msra.mxu0 0.0
  %435 = vmatpush.msra.mxu0 0.0
  %436 = vmatpush.msra.mxu0 0.0
  %437 = vmatpush.msra.mxu0 0.0
  %438 = vmatpush.msra.mxu0 0.0
  %439 = vmatpush.msra.mxu0 0.0
  %440 = vmatpush.msra.mxu0 0.0
  %441 = vmatpush.msra.mxu0 0.0
  %442 = vmatpush.msra.mxu0 0.0
  %443 = vmatpush.msra.mxu0 0.0
  %444 = vmatpush.msra.mxu0 0.0
  %445 = vmatpush.msra.mxu0 %v259
  %446 = vmatmul.f32.gmra.mxu0 %v428
  %v447 = vpop.f32.mrf.mxu0
  %v448 = vadd.f32 0.0, %v447
  %449 = vdwg.mxu0
  %v450 = vld [vmem:[%s224] sm:$0xff]
  %v451 = vld [vmem:[%s224 + $0x8] sm:$0xff]
  %v452 = vld [vmem:[%s224 + $0x10] sm:$0x7]
  %v454 = vsel %vm31, %v448, 0
  %v457 = vsel %vm93, %v452, 0
  %459 = vmatpush.msra.mxu0 0.0
  %460 = vmatpush.msra.mxu0 0.0
  %461 = vmatpush.msra.mxu0 0.0
  %462 = vmatpush.msra.mxu0 0.0
  %463 = vmatpush.msra.mxu0 0.0
  %464 = vmatpush.msra.mxu0 0.0
  %465 = vmatpush.msra.mxu0 0.0
  %466 = vmatpush.msra.mxu0 0.0
  %467 = vmatpush.msra.mxu0 0.0
  %468 = vmatpush.msra.mxu0 0.0
  %469 = vmatpush.msra.mxu0 0.0
  %470 = vmatpush.msra.mxu0 0.0
  %471 = vmatpush.msra.mxu0 0.0
  %472 = vmatpush.msra.mxu0 %v457
  %473 = vmatpush.msra.mxu0 %v451
  %474 = vmatpush.msra.mxu0 %v450
  %475 = vmatmul.f32.gmra.mxu0 %v454
  %v476 = vpop.f32.mrf.mxu0
  %v477 = vadd.f32 0.0, %v476
  %478 = vdwg.mxu0
  %v479 = vadd.f32 %v425, %v477
  %v480 = vld [vmem:[%s4] sm:$0x1]
  %v482 = vperm.slane %v480, 0
  %v484 = vadd.f32 %v479, %v482
  %v485 = vmul.f32 %v484, 2.0
  %v486 = vsub.f32 %v485, %v30
  %488 = vrot.lane.b32.xlu0 %v486, 38
  %v489 = vpop.permute.xlu0 %488
  %vm491 = vcmask 466224
  %492 = vst.msk [vmem:[%s5] sm:$0xff] %vm491, %v489
  %s493 = scalar_lea.vmem %s0, 8
  %v494 = vld [vmem:[%s493] sm:$0xff]
  %495 = vst.msk [vmem:[#allocation2] sm:$0xff] %vm21, %v494
  %s496 = scalar_lea.vmem %s1, 8
  %v497 = vld [vmem:[%s496] sm:$0xff]
  %499 = vrot.lane.b32.xlu0 %v497, 3
  %v500 = vpop.permute.xlu0 %499
  %502 = vst.msk [vmem:[#allocation2] sm:$0xff] %vm28, %v500
  %v503 = vld [vmem:[#allocation2] sm:$0xff]
  %504 = vst.msk [vmem:[%s5 + $0x8] sm:$0xff] %vm31, %v503
  %v505 = vld [vmem:[%s2] sm:$0xff]
  %v507 = vsel %vm34, %v505, 0
  %509 = vmatpush.msra.mxu0 0.0
  %510 = vmatpush.msra.mxu0 0.0
  %511 = vmatpush.msra.mxu0 0.0
  %512 = vmatpush.msra.mxu0 0.0
  %513 = vmatpush.msra.mxu0 0.0
  %514 = vmatpush.msra.mxu0 0.0
  %515 = vmatpush.msra.mxu0 0.0
  %516 = vmatpush.msra.mxu0 0.0
  %517 = vmatpush.msra.mxu0 0.0
  %518 = vmatpush.msra.mxu0 0.0
  %519 = vmatpush.msra.mxu0 0.0
  %520 = vmatpush.msra.mxu0 0.0
  %521 = vmatpush.msra.mxu0 0.0
  %522 = vmatpush.msra.mxu0 0.0
  %523 = vmatpush.msra.mxu0 0.0
  %524 = vmatpush.msra.mxu0 %v503
  %525 = vmatmul.f32.gmra.mxu0 %v507
  %v526 = vpop.f32.mrf.mxu0
  %v527 = vadd.f32 0.0, %v526
  %528 = vdwg.mxu0
  %v529 = vld [vmem:[%s3] sm:$0xff]
  %v530 = vld [vmem:[%s3 + $0x8] sm:$0xff]
  %v531 = vld [vmem:[%s3 + $0x10] sm:$0x7]
  %v532 = vld [vmem:[%s61] sm:$0xff]
  %v534 = vsel %vm34, %v532, 0
  %536 = vmatpush.msra.mxu0 0.0
  %537 = vmatpush.msra.mxu0 0.0
  %538 = vmatpush.msra.mxu0 0.0
  %539 = vmatpush.msra.mxu0 0.0
  %540 = vmatpush.msra.mxu0 0.0
  %541 = vmatpush.msra.mxu0 0.0
  %542 = vmatpush.msra.mxu0 0.0
  %543 = vmatpush.msra.mxu0 0.0
  %544 = vmatpush.msra.mxu0 0.0
  %545 = vmatpush.msra.mxu0 0.0
  %546 = vmatpush.msra.mxu0 0.0
  %547 = vmatpush.msra.mxu0 0.0
  %548 = vmatpush.msra.mxu0 0.0
  %549 = vmatpush.msra.mxu0 0.0
  %550 = vmatpush.msra.mxu0 0.0
  %551 = vmatpush.msra.mxu0 %v503
  %552 = vmatmul.f32.gmra.mxu0 %v534
  %v553 = vpop.f32.mrf.mxu0
  %v554 = vadd.f32 0.0, %v553
  %555 = vdwg.mxu0
  %v556 = vld [vmem:[%s86] sm:$0xff]
  %v557 = vld [vmem:[%s86 + $0x8] sm:$0xff]
  %v558 = vld [vmem:[%s86 + $0x10] sm:$0x7]
  %v560 = vsel %vm31, %v554, 0
  %v563 = vsel %vm93, %v558, 0
  %565 = vmatpush.msra.mxu0 0.0
  %566 = vmatpush.msra.mxu0 0.0
  %567 = vmatpush.msra.mxu0 0.0
  %568 = vmatpush.msra.mxu0 0.0
  %569 = vmatpush.msra.mxu0 0.0
  %570 = vmatpush.msra.mxu0 0.0
  %571 = vmatpush.msra.mxu0 0.0
  %572 = vmatpush.msra.mxu0 0.0
  %573 = vmatpush.msra.mxu0 0.0
  %574 = vmatpush.msra.mxu0 0.0
  %575 = vmatpush.msra.mxu0 0.0
  %576 = vmatpush.msra.mxu0 0.0
  %577 = vmatpush.msra.mxu0 0.0
  %578 = vmatpush.msra.mxu0 %v563
  %579 = vmatpush.msra.mxu0 %v557
  %580 = vmatpush.msra.mxu0 %v556
  %581 = vmatmul.f32.gmra.mxu0 %v560
  %v582 = vpop.f32.mrf.mxu0
  %v583 = vadd.f32 0.0, %v582
  %584 = vdwg.mxu0
  %v586 = vsel %vm31, %v527, 0
  %v589 = vsel %vm93, %v531, 0
  %591 = vmatpush.msra.mxu0 0.0
  %592 = vmatpush.msra.mxu0 0.0
  %593 = vmatpush.msra.mxu0 0.0
  %594 = vmatpush.msra.mxu0 0.0
  %595 = vmatpush.msra.mxu0 0.0
  %596 = vmatpush.msra.mxu0 0.0
  %597 = vmatpush.msra.mxu0 0.0
  %598 = vmatpush.msra.mxu0 0.0
  %599 = vmatpush.msra.mxu0 0.0
  %600 = vmatpush.msra.mxu0 0.0
  %601 = vmatpush.msra.mxu0 0.0
  %602 = vmatpush.msra.mxu0 0.0
  %603 = vmatpush.msra.mxu0 0.0
  %604 = vmatpush.msra.mxu0 %v589
  %605 = vmatpush.msra.mxu0 %v530
  %606 = vmatpush.msra.mxu0 %v529
  %607 = vmatmul.f32.gmra.mxu0 %v586
  %v608 = vpop.f32.mrf.mxu0
  %v609 = vadd.f32 %v583, %v608
  %610 = vdwg.mxu0
  %v611 = vld [vmem:[%s143] sm:$0xff]
  %v613 = vsel %vm34, %v611, 0
  %615 = vmatpush.msra.mxu0 0.0
  %616 = vmatpush.msra.mxu0 0.0
  %617 = vmatpush.msra.mxu0 0.0
  %618 = vmatpush.msra.mxu0 0.0
  %619 = vmatpush.msra.mxu0 0.0
  %620 = vmatpush.msra.mxu0 0.0
  %621 = vmatpush.msra.mxu0 0.0
  %622 = vmatpush.msra.mxu0 0.0
  %623 = vmatpush.msra.mxu0 0.0
  %624 = vmatpush.msra.mxu0 0.0
  %625 = vmatpush.msra.mxu0 0.0
  %626 = vmatpush.msra.mxu0 0.0
  %627 = vmatpush.msra.mxu0 0.0
  %628 = vmatpush.msra.mxu0 0.0
  %629 = vmatpush.msra.mxu0 0.0
  %630 = vmatpush.msra.mxu0 %v503
  %631 = vmatmul.f32.gmra.mxu0 %v613
  %v632 = vpop.f32.mrf.mxu0
  %v633 = vadd.f32 0.0, %v632
  %634 = vdwg.mxu0
  %v635 = vld [vmem:[%s168] sm:$0xff]
  %v636 = vld [vmem:[%s168 + $0x8] sm:$0xff]
  %v637 = vld [vmem:[%s168 + $0x10] sm:$0x7]
  %v639 = vsel %vm31, %v633, 0
  %v642 = vsel %vm93, %v637, 0
  %644 = vmatpush.msra.mxu0 0.0
  %645 = vmatpush.msra.mxu0 0.0
  %646 = vmatpush.msra.mxu0 0.0
  %647 = vmatpush.msra.mxu0 0.0
  %648 = vmatpush.msra.mxu0 0.0
  %649 = vmatpush.msra.mxu0 0.0
  %650 = vmatpush.msra.mxu0 0.0
  %651 = vmatpush.msra.mxu0 0.0
  %652 = vmatpush.msra.mxu0 0.0
  %653 = vmatpush.msra.mxu0 0.0
  %654 = vmatpush.msra.mxu0 0.0
  %655 = vmatpush.msra.mxu0 0.0
  %656 = vmatpush.msra.mxu0 0.0
  %657 = vmatpush.msra.mxu0 %v642
  %658 = vmatpush.msra.mxu0 %v636
  %659 = vmatpush.msra.mxu0 %v635
  %660 = vmatmul.f32.gmra.mxu0 %v639
  %v661 = vpop.f32.mrf.mxu0
  %v662 = vadd.f32 0.0, %v661
  %663 = vdwg.mxu0
  %v664 = vadd.f32 %v609, %v662
  %v665 = vld [vmem:[%s199] sm:$0xff]
  %v667 = vsel %vm34, %v665, 0
  %669 = vmatpush.msra.mxu0 0.0
  %670 = vmatpush.msra.mxu0 0.0
  %671 = vmatpush.msra.mxu0 0.0
  %672 = vmatpush.msra.mxu0 0.0
  %673 = vmatpush.msra.mxu0 0.0
  %674 = vmatpush.msra.mxu0 0.0
  %675 = vmatpush.msra.mxu0 0.0
  %676 = vmatpush.msra.mxu0 0.0
  %677 = vmatpush.msra.mxu0 0.0
  %678 = vmatpush.msra.mxu0 0.0
  %679 = vmatpush.msra.mxu0 0.0
  %680 = vmatpush.msra.mxu0 0.0
  %681 = vmatpush.msra.mxu0 0.0
  %682 = vmatpush.msra.mxu0 0.0
  %683 = vmatpush.msra.mxu0 0.0
  %684 = vmatpush.msra.mxu0 %v503
  %685 = vmatmul.f32.gmra.mxu0 %v667
  %v686 = vpop.f32.mrf.mxu0
  %v687 = vadd.f32 0.0, %v686
  %688 = vdwg.mxu0
  %v689 = vld [vmem:[%s224] sm:$0xff]
  %v690 = vld [vmem:[%s224 + $0x8] sm:$0xff]
  %v691 = vld [vmem:[%s224 + $0x10] sm:$0x7]
  %v693 = vsel %vm31, %v687, 0
  %v696 = vsel %vm93, %v691, 0
  %698 = vmatpush.msra.mxu0 0.0
  %699 = vmatpush.msra.mxu0 0.0
  %700 = vmatpush.msra.mxu0 0.0
  %701 = vmatpush.msra.mxu0 0.0
  %702 = vmatpush.msra.mxu0 0.0
  %703 = vmatpush.msra.mxu0 0.0
  %704 = vmatpush.msra.mxu0 0.0
  %705 = vmatpush.msra.mxu0 0.0
  %706 = vmatpush.msra.mxu0 0.0
  %707 = vmatpush.msra.mxu0 0.0
  %708 = vmatpush.msra.mxu0 0.0
  %709 = vmatpush.msra.mxu0 0.0
  %710 = vmatpush.msra.mxu0 0.0
  %711 = vmatpush.msra.mxu0 %v696
  %712 = vmatpush.msra.mxu0 %v690
  %713 = vmatpush.msra.mxu0 %v689
  %714 = vmatmul.f32.gmra.mxu0 %v693
  %v715 = vpop.f32.mrf.mxu0
  %v716 = vadd.f32 0.0, %v715
  %717 = vdwg.mxu0
  %v718 = vadd.f32 %v664, %v716
  %v719 = vld [vmem:[%s4] sm:$0x1]
  %v721 = vperm.slane %v719, 0
  %v723 = vadd.f32 %v718, %v721
  %725 = vrot.lane.b32.xlu0 %v723, 19
  %v726 = vpop.permute.xlu0 %725
  %728 = vst.msk [vmem:[%s5 + $0x8] sm:$0xff] %vm264, %v726
  %v729 = vld [vmem:[%s2] sm:$0xff]
  %v731 = vsel %vm34, %v729, 0
  %733 = vmatpush.msra.mxu0 0.0
  %734 = vmatpush.msra.mxu0 0.0
  %735 = vmatpush.msra.mxu0 0.0
  %736 = vmatpush.msra.mxu0 0.0
  %737 = vmatpush.msra.mxu0 0.0
  %738 = vmatpush.msra.mxu0 0.0
  %739 = vmatpush.msra.mxu0 0.0
  %740 = vmatpush.msra.mxu0 0.0
  %741 = vmatpush.msra.mxu0 0.0
  %742 = vmatpush.msra.mxu0 0.0
  %743 = vmatpush.msra.mxu0 0.0
  %744 = vmatpush.msra.mxu0 0.0
  %745 = vmatpush.msra.mxu0 0.0
  %746 = vmatpush.msra.mxu0 0.0
  %747 = vmatpush.msra.mxu0 0.0
  %748 = vmatpush.msra.mxu0 %v723
  %749 = vmatmul.f32.gmra.mxu0 %v731
  %v750 = vpop.f32.mrf.mxu0
  %v751 = vadd.f32 0.0, %v750
  %752 = vdwg.mxu0
  %v753 = vld [vmem:[%s3] sm:$0xff]
  %v754 = vld [vmem:[%s3 + $0x8] sm:$0xff]
  %v755 = vld [vmem:[%s3 + $0x10] sm:$0x7]
  %v756 = vld [vmem:[%s61] sm:$0xff]
  %v758 = vsel %vm34, %v756, 0
  %760 = vmatpush.msra.mxu0 0.0
  %761 = vmatpush.msra.mxu0 0.0
  %762 = vmatpush.msra.mxu0 0.0
  %763 = vmatpush.msra.mxu0 0.0
  %764 = vmatpush.msra.mxu0 0.0
  %765 = vmatpush.msra.mxu0 0.0
  %766 = vmatpush.msra.mxu0 0.0
  %767 = vmatpush.msra.mxu0 0.0
  %768 = vmatpush.msra.mxu0 0.0
  %769 = vmatpush.msra.mxu0 0.0
  %770 = vmatpush.msra.mxu0 0.0
  %771 = vmatpush.msra.mxu0 0.0
  %772 = vmatpush.msra.mxu0 0.0
  %773 = vmatpush.msra.mxu0 0.0
  %774 = vmatpush.msra.mxu0 0.0
  %775 = vmatpush.msra.mxu0 %v723
  %776 = vmatmul.f32.gmra.mxu0 %v758
  %v777 = vpop.f32.mrf.mxu0
  %v778 = vadd.f32 0.0, %v777
  %779 = vdwg.mxu0
  %v780 = vld [vmem:[%s86] sm:$0xff]
  %v781 = vld [vmem:[%s86 + $0x8] sm:$0xff]
  %v782 = vld [vmem:[%s86 + $0x10] sm:$0x7]
  %v784 = vsel %vm31, %v778, 0
  %v787 = vsel %vm93, %v782, 0
  %789 = vmatpush.msra.mxu0 0.0
  %790 = vmatpush.msra.mxu0 0.0
  %791 = vmatpush.msra.mxu0 0.0
  %792 = vmatpush.msra.mxu0 0.0
  %793 = vmatpush.msra.mxu0 0.0
  %794 = vmatpush.msra.mxu0 0.0
  %795 = vmatpush.msra.mxu0 0.0
  %796 = vmatpush.msra.mxu0 0.0
  %797 = vmatpush.msra.mxu0 0.0
  %798 = vmatpush.msra.mxu0 0.0
  %799 = vmatpush.msra.mxu0 0.0
  %800 = vmatpush.msra.mxu0 0.0
  %801 = vmatpush.msra.mxu0 0.0
  %802 = vmatpush.msra.mxu0 %v787
  %803 = vmatpush.msra.mxu0 %v781
  %804 = vmatpush.msra.mxu0 %v780
  %805 = vmatmul.f32.gmra.mxu0 %v784
  %v806 = vpop.f32.mrf.mxu0
  %v807 = vadd.f32 0.0, %v806
  %808 = vdwg.mxu0
  %v810 = vsel %vm31, %v751, 0
  %v813 = vsel %vm93, %v755, 0
  %815 = vmatpush.msra.mxu0 0.0
  %816 = vmatpush.msra.mxu0 0.0
  %817 = vmatpush.msra.mxu0 0.0
  %818 = vmatpush.msra.mxu0 0.0
  %819 = vmatpush.msra.mxu0 0.0
  %820 = vmatpush.msra.mxu0 0.0
  %821 = vmatpush.msra.mxu0 0.0
  %822 = vmatpush.msra.mxu0 0.0
  %823 = vmatpush.msra.mxu0 0.0
  %824 = vmatpush.msra.mxu0 0.0
  %825 = vmatpush.msra.mxu0 0.0
  %826 = vmatpush.msra.mxu0 0.0
  %827 = vmatpush.msra.mxu0 0.0
  %828 = vmatpush.msra.mxu0 %v813
  %829 = vmatpush.msra.mxu0 %v754
  %830 = vmatpush.msra.mxu0 %v753
  %831 = vmatmul.f32.gmra.mxu0 %v810
  %v832 = vpop.f32.mrf.mxu0
  %v833 = vadd.f32 %v807, %v832
  %834 = vdwg.mxu0
  %v835 = vld [vmem:[%s143] sm:$0xff]
  %v837 = vsel %vm34, %v835, 0
  %839 = vmatpush.msra.mxu0 0.0
  %840 = vmatpush.msra.mxu0 0.0
  %841 = vmatpush.msra.mxu0 0.0
  %842 = vmatpush.msra.mxu0 0.0
  %843 = vmatpush.msra.mxu0 0.0
  %844 = vmatpush.msra.mxu0 0.0
  %845 = vmatpush.msra.mxu0 0.0
  %846 = vmatpush.msra.mxu0 0.0
  %847 = vmatpush.msra.mxu0 0.0
  %848 = vmatpush.msra.mxu0 0.0
  %849 = vmatpush.msra.mxu0 0.0
  %850 = vmatpush.msra.mxu0 0.0
  %851 = vmatpush.msra.mxu0 0.0
  %852 = vmatpush.msra.mxu0 0.0
  %853 = vmatpush.msra.mxu0 0.0
  %854 = vmatpush.msra.mxu0 %v723
  %855 = vmatmul.f32.gmra.mxu0 %v837
  %v856 = vpop.f32.mrf.mxu0
  %v857 = vadd.f32 0.0, %v856
  %858 = vdwg.mxu0
  %v859 = vld [vmem:[%s168] sm:$0xff]
  %v860 = vld [vmem:[%s168 + $0x8] sm:$0xff]
  %v861 = vld [vmem:[%s168 + $0x10] sm:$0x7]
  %v863 = vsel %vm31, %v857, 0
  %v866 = vsel %vm93, %v861, 0
  %868 = vmatpush.msra.mxu0 0.0
  %869 = vmatpush.msra.mxu0 0.0
  %870 = vmatpush.msra.mxu0 0.0
  %871 = vmatpush.msra.mxu0 0.0
  %872 = vmatpush.msra.mxu0 0.0
  %873 = vmatpush.msra.mxu0 0.0
  %874 = vmatpush.msra.mxu0 0.0
  %875 = vmatpush.msra.mxu0 0.0
  %876 = vmatpush.msra.mxu0 0.0
  %877 = vmatpush.msra.mxu0 0.0
  %878 = vmatpush.msra.mxu0 0.0
  %879 = vmatpush.msra.mxu0 0.0
  %880 = vmatpush.msra.mxu0 0.0
  %881 = vmatpush.msra.mxu0 %v866
  %882 = vmatpush.msra.mxu0 %v860
  %883 = vmatpush.msra.mxu0 %v859
  %884 = vmatmul.f32.gmra.mxu0 %v863
  %v885 = vpop.f32.mrf.mxu0
  %v886 = vadd.f32 0.0, %v885
  %887 = vdwg.mxu0
  %v888 = vadd.f32 %v833, %v886
  %v889 = vld [vmem:[%s199] sm:$0xff]
  %v891 = vsel %vm34, %v889, 0
  %893 = vmatpush.msra.mxu0 0.0
  %894 = vmatpush.msra.mxu0 0.0
  %895 = vmatpush.msra.mxu0 0.0
  %896 = vmatpush.msra.mxu0 0.0
  %897 = vmatpush.msra.mxu0 0.0
  %898 = vmatpush.msra.mxu0 0.0
  %899 = vmatpush.msra.mxu0 0.0
  %900 = vmatpush.msra.mxu0 0.0
  %901 = vmatpush.msra.mxu0 0.0
  %902 = vmatpush.msra.mxu0 0.0
  %903 = vmatpush.msra.mxu0 0.0
  %904 = vmatpush.msra.mxu0 0.0
  %905 = vmatpush.msra.mxu0 0.0
  %906 = vmatpush.msra.mxu0 0.0
  %907 = vmatpush.msra.mxu0 0.0
  %908 = vmatpush.msra.mxu0 %v723
  %909 = vmatmul.f32.gmra.mxu0 %v891
  %v910 = vpop.f32.mrf.mxu0
  %v911 = vadd.f32 0.0, %v910
  %912 = vdwg.mxu0
  %v913 = vld [vmem:[%s224] sm:$0xff]
  %v914 = vld [vmem:[%s224 + $0x8] sm:$0xff]
  %v915 = vld [vmem:[%s224 + $0x10] sm:$0x7]
  %v917 = vsel %vm31, %v911, 0
  %v920 = vsel %vm93, %v915, 0
  %922 = vmatpush.msra.mxu0 0.0
  %923 = vmatpush.msra.mxu0 0.0
  %924 = vmatpush.msra.mxu0 0.0
  %925 = vmatpush.msra.mxu0 0.0
  %926 = vmatpush.msra.mxu0 0.0
  %927 = vmatpush.msra.mxu0 0.0
  %928 = vmatpush.msra.mxu0 0.0
  %929 = vmatpush.msra.mxu0 0.0
  %930 = vmatpush.msra.mxu0 0.0
  %931 = vmatpush.msra.mxu0 0.0
  %932 = vmatpush.msra.mxu0 0.0
  %933 = vmatpush.msra.mxu0 0.0
  %934 = vmatpush.msra.mxu0 0.0
  %935 = vmatpush.msra.mxu0 %v920
  %936 = vmatpush.msra.mxu0 %v914
  %937 = vmatpush.msra.mxu0 %v913
  %938 = vmatmul.f32.gmra.mxu0 %v917
  %v939 = vpop.f32.mrf.mxu0
  %v940 = vadd.f32 0.0, %v939
  %941 = vdwg.mxu0
  %v942 = vadd.f32 %v888, %v940
  %v943 = vld [vmem:[%s4] sm:$0x1]
  %v945 = vperm.slane %v943, 0
  %v947 = vadd.f32 %v942, %v945
  %v948 = vmul.f32 %v947, 2.0
  %v949 = vsub.f32 %v948, %v503
  %951 = vrot.lane.b32.xlu0 %v949, 38
  %v952 = vpop.permute.xlu0 %951
  %954 = vst.msk [vmem:[%s5 + $0x8] sm:$0xff] %vm491, %v952
  // Predicated region
  $region22: #{decoder_forward.6} parent=0 // pred_check
    _
  $region23: #{decoder_forward.6} parent=0 // pred_check_branch
    %956 = sbr.rel (0) target = $region25
  $region24: #{decoder_forward.6} parent=0 // pred_region
    _
  $region25: #{decoder_forward.6} parent=0 // pred_fallthru
    _
  // Predicated region
  $region26: #{decoder_forward.6} parent=0 // pred_check
    _
  $region27: #{decoder_forward.6} parent=0 // pred_check_branch
    %958 = sbr.rel (0) target = $region29
  $region28: #{decoder_forward.6} parent=0 // pred_region
    _
  $region29: #{decoder_forward.6} parent=0 // pred_fallthru
    _

// kernel: decoder_forward.8
$region0: #{decoder_forward.8}
  #allocation0 [shape = 'u32[]', space=smem, size = 0x4, offset = 0x4, fixed_abs, tag = 'smem constant byte address 0x4 - core index']
  #allocation1 [shape = 'u32[72,128]{1,0:T(1,128)}', space=vmem, size = 0x9000, scoped, tag = 'internal scratch']
  %s0 = inlined_call_operand.vmem [shape: f32[16,57], index: 0, kind: input, shape index: {}]
  %s1 = inlined_call_operand.vmem [shape: f32[57,16], index: 1, kind: input, shape index: {}]
  %s2 = inlined_call_operand.vmem [shape: f32[1,16], index: 2, kind: input, shape index: {}]
  %s3 = inlined_call_operand.vmem [shape: f32[2,8,16], index: 3, kind: input, shape index: {}]
  %s4 = inlined_call_operand.vmem [shape: f32[2,8,16], index: 4, kind: input, shape index: {}]
  %s5 = inlined_call_operand.vmem [shape: f32[8,16], index: 5, kind: input, shape index: {}]
  %s6 = inlined_call_operand.vmem [shape: f32[8,16], index: 6, kind: input, shape index: {}]
  %s7 = inlined_call_operand.vmem [shape: f32[2,8,16], index: 7, kind: output, shape index: {}]
  %s8 = sld [smem:[#allocation0]]
  $region38: #{decoder_forward.8} parent=0
    _
  %s10 = ssub.s32 1, %s8
  %s11 = scalar_select 0, %s10, %s8
  // Predicated region
  $region2: #{decoder_forward.8} parent=0 // pred_check
    _
  $region3: #{decoder_forward.8} parent=0 // pred_check_branch
    %13 = sbr.rel (0) target = $region5
  $region4: #{decoder_forward.8} parent=0 // pred_region
    _
  $region5: #{decoder_forward.8} parent=0 // pred_fallthru
    _
  // Predicated region
  $region6: #{decoder_forward.8} parent=0 // pred_check
    _
  $region7: #{decoder_forward.8} parent=0 // pred_check_branch
    %15 = sbr.rel (0) target = $region9
  $region8: #{decoder_forward.8} parent=0 // pred_region
    _
  $region9: #{decoder_forward.8} parent=0 // pred_fallthru
    _
  // Predicated region
  $region10: #{decoder_forward.8} parent=0 // pred_check
    _
  $region11: #{decoder_forward.8} parent=0 // pred_check_branch
    %17 = sbr.rel (0) target = $region13
  $region12: #{decoder_forward.8} parent=0 // pred_region
    _
  $region13: #{decoder_forward.8} parent=0 // pred_fallthru
    _
  // Predicated region
  $region14: #{decoder_forward.8} parent=0 // pred_check
    _
  $region15: #{decoder_forward.8} parent=0 // pred_check_branch
    %19 = sbr.rel (0) target = $region17
  $region16: #{decoder_forward.8} parent=0 // pred_region
    _
  $region17: #{decoder_forward.8} parent=0 // pred_fallthru
    _
  // Predicated region
  $region18: #{decoder_forward.8} parent=0 // pred_check
    _
  $region19: #{decoder_forward.8} parent=0 // pred_check_branch
    %21 = sbr.rel (0) target = $region21
  $region20: #{decoder_forward.8} parent=0 // pred_region
    _
  $region21: #{decoder_forward.8} parent=0 // pred_fallthru
    _
  // Predicated region
  $region22: #{decoder_forward.8} parent=0 // pred_check
    _
  $region23: #{decoder_forward.8} parent=0 // pred_check_branch
    %23 = sbr.rel (0) target = $region25
  $region24: #{decoder_forward.8} parent=0 // pred_region
    _
  $region25: #{decoder_forward.8} parent=0 // pred_fallthru
    _
  // Predicated region
  $region26: #{decoder_forward.8} parent=0 // pred_check
    _
  $region27: #{decoder_forward.8} parent=0 // pred_check_branch
    %25 = sbr.rel (0) target = $region29
  $region28: #{decoder_forward.8} parent=0 // pred_region
    _
  $region29: #{decoder_forward.8} parent=0 // pred_fallthru
    _
  %v26 = vld [vmem:[%s5] sm:$0xff]
  %v27 = vld [vmem:[%s6] sm:$0xff]
  %v28 = vld [vmem:[%s0] sm:$0xff]
  %v29 = vld [vmem:[%s1] sm:$0xff]
  %v30 = vld [vmem:[%s1 + $0x8] sm:$0xff]
  %v31 = vld [vmem:[%s1 + $0x10] sm:$0xff]
  %v32 = vld [vmem:[%s1 + $0x18] sm:$0xff]
  %v33 = vld [vmem:[%s1 + $0x20] sm:$0xff]
  %v34 = vld [vmem:[%s1 + $0x28] sm:$0xff]
  %v35 = vld [vmem:[%s1 + $0x30] sm:$0xff]
  %v36 = vld [vmem:[%s1 + $0x38] sm:$0x1]
  %v37 = vld [vmem:[%s2] sm:$0x1]
  %v39 = vperm.slane %v37, 0
  %vm41 = vcmask 465920
  %v43 = vsel %vm41, %v28, 0
  %vm45 = vcmask 1040384
  %v47 = vsel %vm45, %v36, 0
  %49 = vmatpush.msra.mxu0 0.0
  %50 = vmatpush.msra.mxu0 0.0
  %51 = vmatpush.msra.mxu0 0.0
  %52 = vmatpush.msra.mxu0 0.0
  %53 = vmatpush.msra.mxu0 0.0
  %54 = vmatpush.msra.mxu0 0.0
  %55 = vmatpush.msra.mxu0 0.0
  %56 = vmatpush.msra.mxu0 0.0
  %57 = vmatpush.msra.mxu0 %v47
  %58 = vmatpush.msra.mxu0 %v35
  %59 = vmatpush.msra.mxu0 %v34
  %60 = vmatpush.msra.mxu0 %v33
  %61 = vmatpush.msra.mxu0 %v32
  %62 = vmatpush.msra.mxu0 %v31
  %63 = vmatpush.msra.mxu0 %v30
  %64 = vmatpush.msra.mxu0 %v29
  %65 = vmatmul.f32.gmra.mxu0 %v43
  %v66 = vpop.f32.mrf.mxu0
  %v67 = vadd.f32 %v39, %v66
  %68 = vdwg.mxu0
  %v69 = vld [vmem:[%s3] sm:$0xff]
  %v70 = vld [vmem:[%s4] sm:$0xff]
  %v71 = vmul.f32 %v69, %v70
  %v72 = vsub.f32 1.0, %v69
  %v73 = vmul.f32 %v72, %v67
  %v74 = vadd.f32 %v71, %v73
  %vm75 = vcmask 130048
  %v76 = vsel %vm75, %v74, 0.0
  %77 = vadd.xlane.f32.xlu0 %v76
  %v78 = vpop.xlane.xlu0 %77
  %v79 = vrot.slane %v78, 4
  %v80 = vadd.f32 %v78, %v79
  %v81 = vrot.slane %v80, 2
  %v82 = vadd.f32 %v80, %v81
  %v83 = vrot.slane %v82, 1
  %v84 = vadd.f32 %v82, %v83
  %v85 = vmul.f32 %v84, 0.0078125
  %v86 = vsub.f32 %v74, %v85
  %v87 = vmul.f32 %v86, %v86
  %v88 = vsel %vm75, %v87, 0.0
  %89 = vadd.xlane.f32.xlu0 %v88
  %v90 = vpop.xlane.xlu0 %89
  %v91 = vrot.slane %v90, 4
  %v92 = vadd.f32 %v90, %v91
  %v93 = vrot.slane %v92, 2
  %v94 = vadd.f32 %v92, %v93
  %v95 = vrot.slane %v94, 1
  %v96 = vadd.f32 %v94, %v95
  %v97 = vmul.f32 %v96, 0.0078125
  %v98 = vadd.f32 %v97, 1e-05
  %v99 = vrsqrt.pop %v98
  %v100 = vmul.f32 %v99, %v98
  %v101 = vmul.f32 %v100, %v99
  %v102 = vmul.f32 0.5, %v101
  %v103 = vsub.f32 1.5, %v102
  %v104 = vmul.f32 %v99, %v103
  %vm105 = vweird.f32 %v98
  %vm106 = vweird.f32 %v99
  %vm107 = vmor %vm105, %vm106
  %v108 = vsel %vm107, %v99, %v104
  %v109 = vmul.f32 %v86, %v108
  %v110 = vmul.f32 %v109, %v26
  %v111 = vadd.f32 %v110, %v27
  %112 = vst.msk [vmem:[%s7] sm:$0xff] %vm75, %v111
  %v113 = vld [vmem:[%s0 + $0x8] sm:$0xff]
  %v114 = vld [vmem:[%s1] sm:$0xff]
  %v115 = vld [vmem:[%s1 + $0x8] sm:$0xff]
  %v116 = vld [vmem:[%s1 + $0x10] sm:$0xff]
  %v117 = vld [vmem:[%s1 + $0x18] sm:$0xff]
  %v118 = vld [vmem:[%s1 + $0x20] sm:$0xff]
  %v119 = vld [vmem:[%s1 + $0x28] sm:$0xff]
  %v120 = vld [vmem:[%s1 + $0x30] sm:$0xff]
  %v121 = vld [vmem:[%s1 + $0x38] sm:$0x1]
  %v122 = vld [vmem:[%s2] sm:$0x1]
  %v124 = vperm.slane %v122, 0
  %v127 = vsel %vm41, %v113, 0
  %v130 = vsel %vm45, %v121, 0
  %132 = vmatpush.msra.mxu0 0.0
  %133 = vmatpush.msra.mxu0 0.0
  %134 = vmatpush.msra.mxu0 0.0
  %135 = vmatpush.msra.mxu0 0.0
  %136 = vmatpush.msra.mxu0 0.0
  %137 = vmatpush.msra.mxu0 0.0
  %138 = vmatpush.msra.mxu0 0.0
  %139 = vmatpush.msra.mxu0 0.0
  %140 = vmatpush.msra.mxu0 %v130
  %141 = vmatpush.msra.mxu0 %v120
  %142 = vmatpush.msra.mxu0 %v119
  %143 = vmatpush.msra.mxu0 %v118
  %144 = vmatpush.msra.mxu0 %v117
  %145 = vmatpush.msra.mxu0 %v116
  %146 = vmatpush.msra.mxu0 %v115
  %147 = vmatpush.msra.mxu0 %v114
  %148 = vmatmul.f32.gmra.mxu0 %v127
  %v149 = vpop.f32.mrf.mxu0
  %v150 = vadd.f32 %v124, %v149
  %151 = vdwg.mxu0
  %s152 = scalar_lea.vmem %s3, 8
  %v153 = vld [vmem:[%s152] sm:$0xff]
  %s154 = scalar_lea.vmem %s4, 8
  %v155 = vld [vmem:[%s154] sm:$0xff]
  %v156 = vmul.f32 %v153, %v155
  %v157 = vsub.f32 1.0, %v153
  %v158 = vmul.f32 %v157, %v150
  %v159 = vadd.f32 %v156, %v158
  %v160 = vsel %vm75, %v159, 0.0
  %161 = vadd.xlane.f32.xlu0 %v160
  %v162 = vpop.xlane.xlu0 %161
  %v163 = vrot.slane %v162, 4
  %v164 = vadd.f32 %v162, %v163
  %v165 = vrot.slane %v164, 2
  %v166 = vadd.f32 %v164, %v165
  %v167 = vrot.slane %v166, 1
  %v168 = vadd.f32 %v166, %v167
  %v169 = vmul.f32 %v168, 0.0078125
  %v170 = vsub.f32 %v159, %v169
  %v171 = vmul.f32 %v170, %v170
  %v172 = vsel %vm75, %v171, 0.0
  %173 = vadd.xlane.f32.xlu0 %v172
  %v174 = vpop.xlane.xlu0 %173
  %v175 = vrot.slane %v174, 4
  %v176 = vadd.f32 %v174, %v175
  %v177 = vrot.slane %v176, 2
  %v178 = vadd.f32 %v176, %v177
  %v179 = vrot.slane %v178, 1
  %v180 = vadd.f32 %v178, %v179
  %v181 = vmul.f32 %v180, 0.0078125
  %v182 = vadd.f32 %v181, 1e-05
  %v183 = vrsqrt.pop %v182
  %v184 = vmul.f32 %v183, %v182
  %v185 = vmul.f32 %v184, %v183
  %v186 = vmul.f32 0.5, %v185
  %v187 = vsub.f32 1.5, %v186
  %v188 = vmul.f32 %v183, %v187
  %vm189 = vweird.f32 %v182
  %vm190 = vweird.f32 %v183
  %vm191 = vmor %vm189, %vm190
  %v192 = vsel %vm191, %v183, %v188
  %v193 = vmul.f32 %v170, %v192
  %v194 = vmul.f32 %v193, %v26
  %v195 = vadd.f32 %v194, %v27
  %s196 = scalar_lea.vmem %s7, 8
  %197 = vst.msk [vmem:[%s196] sm:$0xff] %vm75, %v195
  // Predicated region
  $region30: #{decoder_forward.8} parent=0 // pred_check
    _
  $region31: #{decoder_forward.8} parent=0 // pred_check_branch
    %199 = sbr.rel (0) target = $region33
  $region32: #{decoder_forward.8} parent=0 // pred_region
    _
  $region33: #{decoder_forward.8} parent=0 // pred_fallthru
    _
  // Predicated region
  $region34: #{decoder_forward.8} parent=0 // pred_check
    _
  $region35: #{decoder_forward.8} parent=0 // pred_check_branch
    %201 = sbr.rel (0) target = $region37
  $region36: #{decoder_forward.8} parent=0 // pred_region
    _
  $region37: #{decoder_forward.8} parent=0 // pred_fallthru
    _

// kernel: decoder_forward.9
$region0: #{decoder_forward.9}
  #allocation0 [shape = 'u32[]', space=smem, size = 0x4, offset = 0x4, fixed_abs, tag = 'smem constant byte address 0x4 - core index']
  #allocation1 [shape = 'u32[72,128]{1,0:T(1,128)}', space=vmem, size = 0x9000, scoped, tag = 'internal scratch']
  #allocation2 [shape = 'f32[8,32]{1,0:T(8,128)}', space=vmem, size = 0x1000, scoped, tag = 'scratch operand']
  %s0 = inlined_call_operand.vmem [shape: f32[2,8,16], index: 0, kind: input, shape index: {}]
  %s1 = inlined_call_operand.vmem [shape: f32[2,8,16], index: 1, kind: input, shape index: {}]
  %s2 = inlined_call_operand.vmem [shape: f32[4,8,8], index: 2, kind: input, shape index: {}]
  %s3 = inlined_call_operand.vmem [shape: f32[4,32,32], index: 3, kind: input, shape index: {}]
  %s4 = inlined_call_operand.vmem [shape: f32[1,32], index: 4, kind: input, shape index: {}]
  %s5 = inlined_call_operand.vmem [shape: f32[16,96], index: 5, kind: output, shape index: {}]
  %s6 = sld [smem:[#allocation0]]
  $region30: #{decoder_forward.9} parent=0
    _
  %s8 = ssub.s32 1, %s6
  %s9 = scalar_select 0, %s8, %s6
  // Predicated region
  $region2: #{decoder_forward.9} parent=0 // pred_check
    _
  $region3: #{decoder_forward.9} parent=0 // pred_check_branch
    %11 = sbr.rel (0) target = $region5
  $region4: #{decoder_forward.9} parent=0 // pred_region
    _
  $region5: #{decoder_forward.9} parent=0 // pred_fallthru
    _
  // Predicated region
  $region6: #{decoder_forward.9} parent=0 // pred_check
    _
  $region7: #{decoder_forward.9} parent=0 // pred_check_branch
    %13 = sbr.rel (0) target = $region9
  $region8: #{decoder_forward.9} parent=0 // pred_region
    _
  $region9: #{decoder_forward.9} parent=0 // pred_fallthru
    _
  // Predicated region
  $region10: #{decoder_forward.9} parent=0 // pred_check
    _
  $region11: #{decoder_forward.9} parent=0 // pred_check_branch
    %15 = sbr.rel (0) target = $region13
  $region12: #{decoder_forward.9} parent=0 // pred_region
    _
  $region13: #{decoder_forward.9} parent=0 // pred_fallthru
    _
  // Predicated region
  $region14: #{decoder_forward.9} parent=0 // pred_check
    _
  $region15: #{decoder_forward.9} parent=0 // pred_check_branch
    %17 = sbr.rel (0) target = $region17
  $region16: #{decoder_forward.9} parent=0 // pred_region
    _
  $region17: #{decoder_forward.9} parent=0 // pred_fallthru
    _
  // Predicated region
  $region18: #{decoder_forward.9} parent=0 // pred_check
    _
  $region19: #{decoder_forward.9} parent=0 // pred_check_branch
    %19 = sbr.rel (0) target = $region21
  $region20: #{decoder_forward.9} parent=0 // pred_region
    _
  $region21: #{decoder_forward.9} parent=0 // pred_fallthru
    _
  %v20 = vld [vmem:[%s0] sm:$0xff]
  %vm21 = vcmask 130048
  %22 = vst.msk [vmem:[#allocation2] sm:$0xff] %vm21, %v20
  %v23 = vld [vmem:[%s1] sm:$0xff]
  %25 = vrot.lane.b32.xlu0 %v23, 16
  %v26 = vpop.permute.xlu0 %25
  %vm28 = vcmask 261248
  %29 = vst.msk [vmem:[#allocation2] sm:$0xff] %vm28, %v26
  %v30 = vld [vmem:[#allocation2] sm:$0xff]
  %vm31 = vcmask 261120
  %32 = vst.msk [vmem:[%s5] sm:$0xff] %vm31, %v30
  %v33 = vld [vmem:[%s2] sm:$0xff]
  %vm34 = vcmask 64512
  %v36 = vsel %vm34, %v33, 0
  %38 = vmatpush.msra.mxu0 0.0
  %39 = vmatpush.msra.mxu0 0.0
  %40 = vmatpush.msra.mxu0 0.0
  %41 = vmatpush.msra.mxu0 0.0
  %42 = vmatpush.msra.mxu0 0.0
  %43 = vmatpush.msra.mxu0 0.0
  %44 = vmatpush.msra.mxu0 0.0
  %45 = vmatpush.msra.mxu0 0.0
  %46 = vmatpush.msra.mxu0 0.0
  %47 = vmatpush.msra.mxu0 0.0
  %48 = vmatpush.msra.mxu0 0.0
  %49 = vmatpush.msra.mxu0 0.0
  %50 = vmatpush.msra.mxu0 0.0
  %51 = vmatpush.msra.mxu0 0.0
  %52 = vmatpush.msra.mxu0 0.0
  %53 = vmatpush.msra.mxu0 %v30
  %54 = vmatmul.f32.gmra.mxu0 %v36
  %v55 = vpop.f32.mrf.mxu0
  %v56 = vadd.f32 0.0, %v55
  %57 = vdwg.mxu0
  %v58 = vld [vmem:[%s3] sm:$0xff]
  %v59 = vld [vmem:[%s3 + $0x8] sm:$0xff]
  %v60 = vld [vmem:[%s3 + $0x10] sm:$0xff]
  %v61 = vld [vmem:[%s3 + $0x18] sm:$0xff]
  %s62 = scalar_lea.vmem %s2, 8
  %v63 = vld [vmem:[%s62] sm:$0xff]
  %v65 = vsel %vm34, %v63, 0
  %67 = vmatpush.msra.mxu0 0.0
  %68 = vmatpush.msra.mxu0 0.0
  %69 = vmatpush.msra.mxu0 0.0
  %70 = vmatpush.msra.mxu0 0.0
  %71 = vmatpush.msra.mxu0 0.0
  %72 = vmatpush.msra.mxu0 0.0
  %73 = vmatpush.msra.mxu0 0.0
  %74 = vmatpush.msra.mxu0 0.0
  %75 = vmatpush.msra.mxu0 0.0
  %76 = vmatpush.msra.mxu0 0.0
  %77 = vmatpush.msra.mxu0 0.0
  %78 = vmatpush.msra.mxu0 0.0
  %79 = vmatpush.msra.mxu0 0.0
  %80 = vmatpush.msra.mxu0 0.0
  %81 = vmatpush.msra.mxu0 0.0
  %82 = vmatpush.msra.mxu0 %v30
  %83 = vmatmul.f32.gmra.mxu0 %v65
  %v84 = vpop.f32.mrf.mxu0
  %v85 = vadd.f32 0.0, %v84
  %86 = vdwg.mxu0
  %s87 = scalar_lea.vmem %s3, 32
  %v88 = vld [vmem:[%s87] sm:$0xff]
  %v89 = vld [vmem:[%s87 + $0x8] sm:$0xff]
  %v90 = vld [vmem:[%s87 + $0x10] sm:$0xff]
  %v91 = vld [vmem:[%s87 + $0x18] sm:$0xff]
  %v93 = vsel %vm31, %v85, 0
  %95 = vmatpush.msra.mxu0 0.0
  %96 = vmatpush.msra.mxu0 0.0
  %97 = vmatpush.msra.mxu0 0.0
  %98 = vmatpush.msra.mxu0 0.0
  %99 = vmatpush.msra.mxu0 0.0
  %100 = vmatpush.msra.mxu0 0.0
  %101 = vmatpush.msra.mxu0 0.0
  %102 = vmatpush.msra.mxu0 0.0
  %103 = vmatpush.msra.mxu0 0.0
  %104 = vmatpush.msra.mxu0 0.0
  %105 = vmatpush.msra.mxu0 0.0
  %106 = vmatpush.msra.mxu0 0.0
  %107 = vmatpush.msra.mxu0 %v91
  %108 = vmatpush.msra.mxu0 %v90
  %109 = vmatpush.msra.mxu0 %v89
  %110 = vmatpush.msra.mxu0 %v88
  %111 = vmatmul.f32.gmra.mxu0 %v93
  %v112 = vpop.f32.mrf.mxu0
  %v113 = vadd.f32 0.0, %v112
  %114 = vdwg.mxu0
  %v116 = vsel %vm31, %v56, 0
  %118 = vmatpush.msra.mxu0 0.0
  %119 = vmatpush.msra.mxu0 0.0
  %120 = vmatpush.msra.mxu0 0.0
  %121 = vmatpush.msra.mxu0 0.0
  %122 = vmatpush.msra.mxu0 0.0
  %123 = vmatpush.msra.mxu0 0.0
  %124 = vmatpush.msra.mxu0 0.0
  %125 = vmatpush.msra.mxu0 0.0
  %126 = vmatpush.msra.mxu0 0.0
  %127 = vmatpush.msra.mxu0 0.0
  %128 = vmatpush.msra.mxu0 0.0
  %129 = vmatpush.msra.mxu0 0.0
  %130 = vmatpush.msra.mxu0 %v61
  %131 = vmatpush.msra.mxu0 %v60
  %132 = vmatpush.msra.mxu0 %v59
  %133 = vmatpush.msra.mxu0 %v58
  %134 = vmatmul.f32.gmra.mxu0 %v116
  %v135 = vpop.f32.mrf.mxu0
  %v136 = vadd.f32 %v113, %v135
  %137 = vdwg.mxu0
  %s138 = scalar_lea.vmem %s2, 16
  %v139 = vld [vmem:[%s138] sm:$0xff]
  %v141 = vsel %vm34, %v139, 0
  %143 = vmatpush.msra.mxu0 0.0
  %144 = vmatpush.msra.mxu0 0.0
  %145 = vmatpush.msra.mxu0 0.0
  %146 = vmatpush.msra.mxu0 0.0
  %147 = vmatpush.msra.mxu0 0.0
  %148 = vmatpush.msra.mxu0 0.0
  %149 = vmatpush.msra.mxu0 0.0
  %150 = vmatpush.msra.mxu0 0.0
  %151 = vmatpush.msra.mxu0 0.0
  %152 = vmatpush.msra.mxu0 0.0
  %153 = vmatpush.msra.mxu0 0.0
  %154 = vmatpush.msra.mxu0 0.0
  %155 = vmatpush.msra.mxu0 0.0
  %156 = vmatpush.msra.mxu0 0.0
  %157 = vmatpush.msra.mxu0 0.0
  %158 = vmatpush.msra.mxu0 %v30
  %159 = vmatmul.f32.gmra.mxu0 %v141
  %v160 = vpop.f32.mrf.mxu0
  %v161 = vadd.f32 0.0, %v160
  %162 = vdwg.mxu0
  %s163 = scalar_lea.vmem %s3, 64
  %v164 = vld [vmem:[%s163] sm:$0xff]
  %v165 = vld [vmem:[%s163 + $0x8] sm:$0xff]
  %v166 = vld [vmem:[%s163 + $0x10] sm:$0xff]
  %v167 = vld [vmem:[%s163 + $0x18] sm:$0xff]
  %v169 = vsel %vm31, %v161, 0
  %171 = vmatpush.msra.mxu0 0.0
  %172 = vmatpush.msra.mxu0 0.0
  %173 = vmatpush.msra.mxu0 0.0
  %174 = vmatpush.msra.mxu0 0.0
  %175 = vmatpush.msra.mxu0 0.0
  %176 = vmatpush.msra.mxu0 0.0
  %177 = vmatpush.msra.mxu0 0.0
  %178 = vmatpush.msra.mxu0 0.0
  %179 = vmatpush.msra.mxu0 0.0
  %180 = vmatpush.msra.mxu0 0.0
  %181 = vmatpush.msra.mxu0 0.0
  %182 = vmatpush.msra.mxu0 0.0
  %183 = vmatpush.msra.mxu0 %v167
  %184 = vmatpush.msra.mxu0 %v166
  %185 = vmatpush.msra.mxu0 %v165
  %186 = vmatpush.msra.mxu0 %v164
  %187 = vmatmul.f32.gmra.mxu0 %v169
  %v188 = vpop.f32.mrf.mxu0
  %v189 = vadd.f32 0.0, %v188
  %190 = vdwg.mxu0
  %v191 = vadd.f32 %v136, %v189
  %s192 = scalar_lea.vmem %s2, 24
  %v193 = vld [vmem:[%s192] sm:$0xff]
  %v195 = vsel %vm34, %v193, 0
  %197 = vmatpush.msra.mxu0 0.0
  %198 = vmatpush.msra.mxu0 0.0
  %199 = vmatpush.msra.mxu0 0.0
  %200 = vmatpush.msra.mxu0 0.0
  %201 = vmatpush.msra.mxu0 0.0
  %202 = vmatpush.msra.mxu0 0.0
  %203 = vmatpush.msra.mxu0 0.0
  %204 = vmatpush.msra.mxu0 0.0
  %205 = vmatpush.msra.mxu0 0.0
  %206 = vmatpush.msra.mxu0 0.0
  %207 = vmatpush.msra.mxu0 0.0
  %208 = vmatpush.msra.mxu0 0.0
  %209 = vmatpush.msra.mxu0 0.0
  %210 = vmatpush.msra.mxu0 0.0
  %211 = vmatpush.msra.mxu0 0.0
  %212 = vmatpush.msra.mxu0 %v30
  %213 = vmatmul.f32.gmra.mxu0 %v195
  %v214 = vpop.f32.mrf.mxu0
  %v215 = vadd.f32 0.0, %v214
  %216 = vdwg.mxu0
  %s217 = scalar_lea.vmem %s3, 96
  %v218 = vld [vmem:[%s217] sm:$0xff]
  %v219 = vld [vmem:[%s217 + $0x8] sm:$0xff]
  %v220 = vld [vmem:[%s217 + $0x10] sm:$0xff]
  %v221 = vld [vmem:[%s217 + $0x18] sm:$0xff]
  %v223 = vsel %vm31, %v215, 0
  %225 = vmatpush.msra.mxu0 0.0
  %226 = vmatpush.msra.mxu0 0.0
  %227 = vmatpush.msra.mxu0 0.0
  %228 = vmatpush.msra.mxu0 0.0
  %229 = vmatpush.msra.mxu0 0.0
  %230 = vmatpush.msra.mxu0 0.0
  %231 = vmatpush.msra.mxu0 0.0
  %232 = vmatpush.msra.mxu0 0.0
  %233 = vmatpush.msra.mxu0 0.0
  %234 = vmatpush.msra.mxu0 0.0
  %235 = vmatpush.msra.mxu0 0.0
  %236 = vmatpush.msra.mxu0 0.0
  %237 = vmatpush.msra.mxu0 %v221
  %238 = vmatpush.msra.mxu0 %v220
  %239 = vmatpush.msra.mxu0 %v219
  %240 = vmatpush.msra.mxu0 %v218
  %241 = vmatmul.f32.gmra.mxu0 %v223
  %v242 = vpop.f32.mrf.mxu0
  %v243 = vadd.f32 0.0, %v242
  %244 = vdwg.mxu0
  %v245 = vadd.f32 %v191, %v243
  %v246 = vld [vmem:[%s4] sm:$0x1]
  %v248 = vperm.slane %v246, 0
  %v250 = vadd.f32 %v245, %v248
  %252 = vrot.lane.b32.xlu0 %v250, 32
  %v253 = vpop.permute.xlu0 %252
  %vm255 = vcmask 523520
  %256 = vst.msk [vmem:[%s5] sm:$0xff] %vm255, %v253
  %v257 = vld [vmem:[%s2] sm:$0xff]
  %v259 = vsel %vm34, %v257, 0
  %261 = vmatpush.msra.mxu0 0.0
  %262 = vmatpush.msra.mxu0 0.0
  %263 = vmatpush.msra.mxu0 0.0
  %264 = vmatpush.msra.mxu0 0.0
  %265 = vmatpush.msra.mxu0 0.0
  %266 = vmatpush.msra.mxu0 0.0
  %267 = vmatpush.msra.mxu0 0.0
  %268 = vmatpush.msra.mxu0 0.0
  %269 = vmatpush.msra.mxu0 0.0
  %270 = vmatpush.msra.mxu0 0.0
  %271 = vmatpush.msra.mxu0 0.0
  %272 = vmatpush.msra.mxu0 0.0
  %273 = vmatpush.msra.mxu0 0.0
  %274 = vmatpush.msra.mxu0 0.0
  %275 = vmatpush.msra.mxu0 0.0
  %276 = vmatpush.msra.mxu0 %v250
  %277 = vmatmul.f32.gmra.mxu0 %v259
  %v278 = vpop.f32.mrf.mxu0
  %v279 = vadd.f32 0.0, %v278
  %280 = vdwg.mxu0
  %v281 = vld [vmem:[%s3] sm:$0xff]
  %v282 = vld [vmem:[%s3 + $0x8] sm:$0xff]
  %v283 = vld [vmem:[%s3 + $0x10] sm:$0xff]
  %v284 = vld [vmem:[%s3 + $0x18] sm:$0xff]
  %v285 = vld [vmem:[%s62] sm:$0xff]
  %v287 = vsel %vm34, %v285, 0
  %289 = vmatpush.msra.mxu0 0.0
  %290 = vmatpush.msra.mxu0 0.0
  %291 = vmatpush.msra.mxu0 0.0
  %292 = vmatpush.msra.mxu0 0.0
  %293 = vmatpush.msra.mxu0 0.0
  %294 = vmatpush.msra.mxu0 0.0
  %295 = vmatpush.msra.mxu0 0.0
  %296 = vmatpush.msra.mxu0 0.0
  %297 = vmatpush.msra.mxu0 0.0
  %298 = vmatpush.msra.mxu0 0.0
  %299 = vmatpush.msra.mxu0 0.0
  %300 = vmatpush.msra.mxu0 0.0
  %301 = vmatpush.msra.mxu0 0.0
  %302 = vmatpush.msra.mxu0 0.0
  %303 = vmatpush.msra.mxu0 0.0
  %304 = vmatpush.msra.mxu0 %v250
  %305 = vmatmul.f32.gmra.mxu0 %v287
  %v306 = vpop.f32.mrf.mxu0
  %v307 = vadd.f32 0.0, %v306
  %308 = vdwg.mxu0
  %v309 = vld [vmem:[%s87] sm:$0xff]
  %v310 = vld [vmem:[%s87 + $0x8] sm:$0xff]
  %v311 = vld [vmem:[%s87 + $0x10] sm:$0xff]
  %v312 = vld [vmem:[%s87 + $0x18] sm:$0xff]
  %v314 = vsel %vm31, %v307, 0
  %316 = vmatpush.msra.mxu0 0.0
  %317 = vmatpush.msra.mxu0 0.0
  %318 = vmatpush.msra.mxu0 0.0
  %319 = vmatpush.msra.mxu0 0.0
  %320 = vmatpush.msra.mxu0 0.0
  %321 = vmatpush.msra.mxu0 0.0
  %322 = vmatpush.msra.mxu0 0.0
  %323 = vmatpush.msra.mxu0 0.0
  %324 = vmatpush.msra.mxu0 0.0
  %325 = vmatpush.msra.mxu0 0.0
  %326 = vmatpush.msra.mxu0 0.0
  %327 = vmatpush.msra.mxu0 0.0
  %328 = vmatpush.msra.mxu0 %v312
  %329 = vmatpush.msra.mxu0 %v311
  %330 = vmatpush.msra.mxu0 %v310
  %331 = vmatpush.msra.mxu0 %v309
  %332 = vmatmul.f32.gmra.mxu0 %v314
  %v333 = vpop.f32.mrf.mxu0
  %v334 = vadd.f32 0.0, %v333
  %335 = vdwg.mxu0
  %v337 = vsel %vm31, %v279, 0
  %339 = vmatpush.msra.mxu0 0.0
  %340 = vmatpush.msra.mxu0 0.0
  %341 = vmatpush.msra.mxu0 0.0
  %342 = vmatpush.msra.mxu0 0.0
  %343 = vmatpush.msra.mxu0 0.0
  %344 = vmatpush.msra.mxu0 0.0
  %345 = vmatpush.msra.mxu0 0.0
  %346 = vmatpush.msra.mxu0 0.0
  %347 = vmatpush.msra.mxu0 0.0
  %348 = vmatpush.msra.mxu0 0.0
  %349 = vmatpush.msra.mxu0 0.0
  %350 = vmatpush.msra.mxu0 0.0
  %351 = vmatpush.msra.mxu0 %v284
  %352 = vmatpush.msra.mxu0 %v283
  %353 = vmatpush.msra.mxu0 %v282
  %354 = vmatpush.msra.mxu0 %v281
  %355 = vmatmul.f32.gmra.mxu0 %v337
  %v356 = vpop.f32.mrf.mxu0
  %v357 = vadd.f32 %v334, %v356
  %358 = vdwg.mxu0
  %v359 = vld [vmem:[%s138] sm:$0xff]
  %v361 = vsel %vm34, %v359, 0
  %363 = vmatpush.msra.mxu0 0.0
  %364 = vmatpush.msra.mxu0 0.0
  %365 = vmatpush.msra.mxu0 0.0
  %366 = vmatpush.msra.mxu0 0.0
  %367 = vmatpush.msra.mxu0 0.0
  %368 = vmatpush.msra.mxu0 0.0
  %369 = vmatpush.msra.mxu0 0.0
  %370 = vmatpush.msra.mxu0 0.0
  %371 = vmatpush.msra.mxu0 0.0
  %372 = vmatpush.msra.mxu0 0.0
  %373 = vmatpush.msra.mxu0 0.0
  %374 = vmatpush.msra.mxu0 0.0
  %375 = vmatpush.msra.mxu0 0.0
  %376 = vmatpush.msra.mxu0 0.0
  %377 = vmatpush.msra.mxu0 0.0
  %378 = vmatpush.msra.mxu0 %v250
  %379 = vmatmul.f32.gmra.mxu0 %v361
  %v380 = vpop.f32.mrf.mxu0
  %v381 = vadd.f32 0.0, %v380
  %382 = vdwg.mxu0
  %v383 = vld [vmem:[%s163] sm:$0xff]
  %v384 = vld [vmem:[%s163 + $0x8] sm:$0xff]
  %v385 = vld [vmem:[%s163 + $0x10] sm:$0xff]
  %v386 = vld [vmem:[%s163 + $0x18] sm:$0xff]
  %v388 = vsel %vm31, %v381, 0
  %390 = vmatpush.msra.mxu0 0.0
  %391 = vmatpush.msra.mxu0 0.0
  %392 = vmatpush.msra.mxu0 0.0
  %393 = vmatpush.msra.mxu0 0.0
  %394 = vmatpush.msra.mxu0 0.0
  %395 = vmatpush.msra.mxu0 0.0
  %396 = vmatpush.msra.mxu0 0.0
  %397 = vmatpush.msra.mxu0 0.0
  %398 = vmatpush.msra.mxu0 0.0
  %399 = vmatpush.msra.mxu0 0.0
  %400 = vmatpush.msra.mxu0 0.0
  %401 = vmatpush.msra.mxu0 0.0
  %402 = vmatpush.msra.mxu0 %v386
  %403 = vmatpush.msra.mxu0 %v385
  %404 = vmatpush.msra.mxu0 %v384
  %405 = vmatpush.msra.mxu0 %v383
  %406 = vmatmul.f32.gmra.mxu0 %v388
  %v407 = vpop.f32.mrf.mxu0
  %v408 = vadd.f32 0.0, %v407
  %409 = vdwg.mxu0
  %v410 = vadd.f32 %v357, %v408
  %v411 = vld [vmem:[%s192] sm:$0xff]
  %v413 = vsel %vm34, %v411, 0
  %415 = vmatpush.msra.mxu0 0.0
  %416 = vmatpush.msra.mxu0 0.0
  %417 = vmatpush.msra.mxu0 0.0
  %418 = vmatpush.msra.mxu0 0.0
  %419 = vmatpush.msra.mxu0 0.0
  %420 = vmatpush.msra.mxu0 0.0
  %421 = vmatpush.msra.mxu0 0.0
  %422 = vmatpush.msra.mxu0 0.0
  %423 = vmatpush.msra.mxu0 0.0
  %424 = vmatpush.msra.mxu0 0.0
  %425 = vmatpush.msra.mxu0 0.0
  %426 = vmatpush.msra.mxu0 0.0
  %427 = vmatpush.msra.mxu0 0.0
  %428 = vmatpush.msra.mxu0 0.0
  %429 = vmatpush.msra.mxu0 0.0
  %430 = vmatpush.msra.mxu0 %v250
  %431 = vmatmul.f32.gmra.mxu0 %v413
  %v432 = vpop.f32.mrf.mxu0
  %v433 = vadd.f32 0.0, %v432
  %434 = vdwg.mxu0
  %v435 = vld [vmem:[%s217] sm:$0xff]
  %v436 = vld [vmem:[%s217 + $0x8] sm:$0xff]
  %v437 = vld [vmem:[%s217 + $0x10] sm:$0xff]
  %v438 = vld [vmem:[%s217 + $0x18] sm:$0xff]
  %v440 = vsel %vm31, %v433, 0
  %442 = vmatpush.msra.mxu0 0.0
  %443 = vmatpush.msra.mxu0 0.0
  %444 = vmatpush.msra.mxu0 0.0
  %445 = vmatpush.msra.mxu0 0.0
  %446 = vmatpush.msra.mxu0 0.0
  %447 = vmatpush.msra.mxu0 0.0
  %448 = vmatpush.msra.mxu0 0.0
  %449 = vmatpush.msra.mxu0 0.0
  %450 = vmatpush.msra.mxu0 0.0
  %451 = vmatpush.msra.mxu0 0.0
  %452 = vmatpush.msra.mxu0 0.0
  %453 = vmatpush.msra.mxu0 0.0
  %454 = vmatpush.msra.mxu0 %v438
  %455 = vmatpush.msra.mxu0 %v437
  %456 = vmatpush.msra.mxu0 %v436
  %457 = vmatpush.msra.mxu0 %v435
  %458 = vmatmul.f32.gmra.mxu0 %v440
  %v459 = vpop.f32.mrf.mxu0
  %v460 = vadd.f32 0.0, %v459
  %461 = vdwg.mxu0
  %v462 = vadd.f32 %v410, %v460
  %v463 = vld [vmem:[%s4] sm:$0x1]
  %v465 = vperm.slane %v463, 0
  %v467 = vadd.f32 %v462, %v465
  %v468 = vmul.f32 %v467, 2.0
  %v469 = vsub.f32 %v468, %v30
  %471 = vrot.lane.b32.xlu0 %v469, 64
  %v472 = vpop.permute.xlu0 %471
  %vm474 = vcmask 785920
  %475 = vst.msk [vmem:[%s5] sm:$0xff] %vm474, %v472
  %s476 = scalar_lea.vmem %s0, 8
  %v477 = vld [vmem:[%s476] sm:$0xff]
  %478 = vst.msk [vmem:[#allocation2] sm:$0xff] %vm21, %v477
  %s479 = scalar_lea.vmem %s1, 8
  %v480 = vld [vmem:[%s479] sm:$0xff]
  %482 = vrot.lane.b32.xlu0 %v480, 16
  %v483 = vpop.permute.xlu0 %482
  %485 = vst.msk [vmem:[#allocation2] sm:$0xff] %vm28, %v483
  %v486 = vld [vmem:[#allocation2] sm:$0xff]
  %487 = vst.msk [vmem:[%s5 + $0x8] sm:$0xff] %vm31, %v486
  %v488 = vld [vmem:[%s2] sm:$0xff]
  %v490 = vsel %vm34, %v488, 0
  %492 = vmatpush.msra.mxu0 0.0
  %493 = vmatpush.msra.mxu0 0.0
  %494 = vmatpush.msra.mxu0 0.0
  %495 = vmatpush.msra.mxu0 0.0
  %496 = vmatpush.msra.mxu0 0.0
  %497 = vmatpush.msra.mxu0 0.0
  %498 = vmatpush.msra.mxu0 0.0
  %499 = vmatpush.msra.mxu0 0.0
  %500 = vmatpush.msra.mxu0 0.0
  %501 = vmatpush.msra.mxu0 0.0
  %502 = vmatpush.msra.mxu0 0.0
  %503 = vmatpush.msra.mxu0 0.0
  %504 = vmatpush.msra.mxu0 0.0
  %505 = vmatpush.msra.mxu0 0.0
  %506 = vmatpush.msra.mxu0 0.0
  %507 = vmatpush.msra.mxu0 %v486
  %508 = vmatmul.f32.gmra.mxu0 %v490
  %v509 = vpop.f32.mrf.mxu0
  %v510 = vadd.f32 0.0, %v509
  %511 = vdwg.mxu0
  %v512 = vld [vmem:[%s3] sm:$0xff]
  %v513 = vld [vmem:[%s3 + $0x8] sm:$0xff]
  %v514 = vld [vmem:[%s3 + $0x10] sm:$0xff]
  %v515 = vld [vmem:[%s3 + $0x18] sm:$0xff]
  %v516 = vld [vmem:[%s62] sm:$0xff]
  %v518 = vsel %vm34, %v516, 0
  %520 = vmatpush.msra.mxu0 0.0
  %521 = vmatpush.msra.mxu0 0.0
  %522 = vmatpush.msra.mxu0 0.0
  %523 = vmatpush.msra.mxu0 0.0
  %524 = vmatpush.msra.mxu0 0.0
  %525 = vmatpush.msra.mxu0 0.0
  %526 = vmatpush.msra.mxu0 0.0
  %527 = vmatpush.msra.mxu0 0.0
  %528 = vmatpush.msra.mxu0 0.0
  %529 = vmatpush.msra.mxu0 0.0
  %530 = vmatpush.msra.mxu0 0.0
  %531 = vmatpush.msra.mxu0 0.0
  %532 = vmatpush.msra.mxu0 0.0
  %533 = vmatpush.msra.mxu0 0.0
  %534 = vmatpush.msra.mxu0 0.0
  %535 = vmatpush.msra.mxu0 %v486
  %536 = vmatmul.f32.gmra.mxu0 %v518
  %v537 = vpop.f32.mrf.mxu0
  %v538 = vadd.f32 0.0, %v537
  %539 = vdwg.mxu0
  %v540 = vld [vmem:[%s87] sm:$0xff]
  %v541 = vld [vmem:[%s87 + $0x8] sm:$0xff]
  %v542 = vld [vmem:[%s87 + $0x10] sm:$0xff]
  %v543 = vld [vmem:[%s87 + $0x18] sm:$0xff]
  %v545 = vsel %vm31, %v538, 0
  %547 = vmatpush.msra.mxu0 0.0
  %548 = vmatpush.msra.mxu0 0.0
  %549 = vmatpush.msra.mxu0 0.0
  %550 = vmatpush.msra.mxu0 0.0
  %551 = vmatpush.msra.mxu0 0.0
  %552 = vmatpush.msra.mxu0 0.0
  %553 = vmatpush.msra.mxu0 0.0
  %554 = vmatpush.msra.mxu0 0.0
  %555 = vmatpush.msra.mxu0 0.0
  %556 = vmatpush.msra.mxu0 0.0
  %557 = vmatpush.msra.mxu0 0.0
  %558 = vmatpush.msra.mxu0 0.0
  %559 = vmatpush.msra.mxu0 %v543
  %560 = vmatpush.msra.mxu0 %v542
  %561 = vmatpush.msra.mxu0 %v541
  %562 = vmatpush.msra.mxu0 %v540
  %563 = vmatmul.f32.gmra.mxu0 %v545
  %v564 = vpop.f32.mrf.mxu0
  %v565 = vadd.f32 0.0, %v564
  %566 = vdwg.mxu0
  %v568 = vsel %vm31, %v510, 0
  %570 = vmatpush.msra.mxu0 0.0
  %571 = vmatpush.msra.mxu0 0.0
  %572 = vmatpush.msra.mxu0 0.0
  %573 = vmatpush.msra.mxu0 0.0
  %574 = vmatpush.msra.mxu0 0.0
  %575 = vmatpush.msra.mxu0 0.0
  %576 = vmatpush.msra.mxu0 0.0
  %577 = vmatpush.msra.mxu0 0.0
  %578 = vmatpush.msra.mxu0 0.0
  %579 = vmatpush.msra.mxu0 0.0
  %580 = vmatpush.msra.mxu0 0.0
  %581 = vmatpush.msra.mxu0 0.0
  %582 = vmatpush.msra.mxu0 %v515
  %583 = vmatpush.msra.mxu0 %v514
  %584 = vmatpush.msra.mxu0 %v513
  %585 = vmatpush.msra.mxu0 %v512
  %586 = vmatmul.f32.gmra.mxu0 %v568
  %v587 = vpop.f32.mrf.mxu0
  %v588 = vadd.f32 %v565, %v587
  %589 = vdwg.mxu0
  %v590 = vld [vmem:[%s138] sm:$0xff]
  %v592 = vsel %vm34, %v590, 0
  %594 = vmatpush.msra.mxu0 0.0
  %595 = vmatpush.msra.mxu0 0.0
  %596 = vmatpush.msra.mxu0 0.0
  %597 = vmatpush.msra.mxu0 0.0
  %598 = vmatpush.msra.mxu0 0.0
  %599 = vmatpush.msra.mxu0 0.0
  %600 = vmatpush.msra.mxu0 0.0
  %601 = vmatpush.msra.mxu0 0.0
  %602 = vmatpush.msra.mxu0 0.0
  %603 = vmatpush.msra.mxu0 0.0
  %604 = vmatpush.msra.mxu0 0.0
  %605 = vmatpush.msra.mxu0 0.0
  %606 = vmatpush.msra.mxu0 0.0
  %607 = vmatpush.msra.mxu0 0.0
  %608 = vmatpush.msra.mxu0 0.0
  %609 = vmatpush.msra.mxu0 %v486
  %610 = vmatmul.f32.gmra.mxu0 %v592
  %v611 = vpop.f32.mrf.mxu0
  %v612 = vadd.f32 0.0, %v611
  %613 = vdwg.mxu0
  %v614 = vld [vmem:[%s163] sm:$0xff]
  %v615 = vld [vmem:[%s163 + $0x8] sm:$0xff]
  %v616 = vld [vmem:[%s163 + $0x10] sm:$0xff]
  %v617 = vld [vmem:[%s163 + $0x18] sm:$0xff]
  %v619 = vsel %vm31, %v612, 0
  %621 = vmatpush.msra.mxu0 0.0
  %622 = vmatpush.msra.mxu0 0.0
  %623 = vmatpush.msra.mxu0 0.0
  %624 = vmatpush.msra.mxu0 0.0
  %625 = vmatpush.msra.mxu0 0.0
  %626 = vmatpush.msra.mxu0 0.0
  %627 = vmatpush.msra.mxu0 0.0
  %628 = vmatpush.msra.mxu0 0.0
  %629 = vmatpush.msra.mxu0 0.0
  %630 = vmatpush.msra.mxu0 0.0
  %631 = vmatpush.msra.mxu0 0.0
  %632 = vmatpush.msra.mxu0 0.0
  %633 = vmatpush.msra.mxu0 %v617
  %634 = vmatpush.msra.mxu0 %v616
  %635 = vmatpush.msra.mxu0 %v615
  %636 = vmatpush.msra.mxu0 %v614
  %637 = vmatmul.f32.gmra.mxu0 %v619
  %v638 = vpop.f32.mrf.mxu0
  %v639 = vadd.f32 0.0, %v638
  %640 = vdwg.mxu0
  %v641 = vadd.f32 %v588, %v639
  %v642 = vld [vmem:[%s192] sm:$0xff]
  %v644 = vsel %vm34, %v642, 0
  %646 = vmatpush.msra.mxu0 0.0
  %647 = vmatpush.msra.mxu0 0.0
  %648 = vmatpush.msra.mxu0 0.0
  %649 = vmatpush.msra.mxu0 0.0
  %650 = vmatpush.msra.mxu0 0.0
  %651 = vmatpush.msra.mxu0 0.0
  %652 = vmatpush.msra.mxu0 0.0
  %653 = vmatpush.msra.mxu0 0.0
  %654 = vmatpush.msra.mxu0 0.0
  %655 = vmatpush.msra.mxu0 0.0
  %656 = vmatpush.msra.mxu0 0.0
  %657 = vmatpush.msra.mxu0 0.0
  %658 = vmatpush.msra.mxu0 0.0
  %659 = vmatpush.msra.mxu0 0.0
  %660 = vmatpush.msra.mxu0 0.0
  %661 = vmatpush.msra.mxu0 %v486
  %662 = vmatmul.f32.gmra.mxu0 %v644
  %v663 = vpop.f32.mrf.mxu0
  %v664 = vadd.f32 0.0, %v663
  %665 = vdwg.mxu0
  %v666 = vld [vmem:[%s217] sm:$0xff]
  %v667 = vld [vmem:[%s217 + $0x8] sm:$0xff]
  %v668 = vld [vmem:[%s217 + $0x10] sm:$0xff]
  %v669 = vld [vmem:[%s217 + $0x18] sm:$0xff]
  %v671 = vsel %vm31, %v664, 0
  %673 = vmatpush.msra.mxu0 0.0
  %674 = vmatpush.msra.mxu0 0.0
  %675 = vmatpush.msra.mxu0 0.0
  %676 = vmatpush.msra.mxu0 0.0
  %677 = vmatpush.msra.mxu0 0.0
  %678 = vmatpush.msra.mxu0 0.0
  %679 = vmatpush.msra.mxu0 0.0
  %680 = vmatpush.msra.mxu0 0.0
  %681 = vmatpush.msra.mxu0 0.0
  %682 = vmatpush.msra.mxu0 0.0
  %683 = vmatpush.msra.mxu0 0.0
  %684 = vmatpush.msra.mxu0 0.0
  %685 = vmatpush.msra.mxu0 %v669
  %686 = vmatpush.msra.mxu0 %v668
  %687 = vmatpush.msra.mxu0 %v667
  %688 = vmatpush.msra.mxu0 %v666
  %689 = vmatmul.f32.gmra.mxu0 %v671
  %v690 = vpop.f32.mrf.mxu0
  %v691 = vadd.f32 0.0, %v690
  %692 = vdwg.mxu0
  %v693 = vadd.f32 %v641, %v691
  %v694 = vld [vmem:[%s4] sm:$0x1]
  %v696 = vperm.slane %v694, 0
  %v698 = vadd.f32 %v693, %v696
  %700 = vrot.lane.b32.xlu0 %v698, 32
  %v701 = vpop.permute.xlu0 %700
  %703 = vst.msk [vmem:[%s5 + $0x8] sm:$0xff] %vm255, %v701
  %v704 = vld [vmem:[%s2] sm:$0xff]
  %v706 = vsel %vm34, %v704, 0
  %708 = vmatpush.msra.mxu0 0.0
  %709 = vmatpush.msra.mxu0 0.0
  %710 = vmatpush.msra.mxu0 0.0
  %711 = vmatpush.msra.mxu0 0.0
  %712 = vmatpush.msra.mxu0 0.0
  %713 = vmatpush.msra.mxu0 0.0
  %714 = vmatpush.msra.mxu0 0.0
  %715 = vmatpush.msra.mxu0 0.0
  %716 = vmatpush.msra.mxu0 0.0
  %717 = vmatpush.msra.mxu0 0.0
  %718 = vmatpush.msra.mxu0 0.0
  %719 = vmatpush.msra.mxu0 0.0
  %720 = vmatpush.msra.mxu0 0.0
  %721 = vmatpush.msra.mxu0 0.0
  %722 = vmatpush.msra.mxu0 0.0
  %723 = vmatpush.msra.mxu0 %v698
  %724 = vmatmul.f32.gmra.mxu0 %v706
  %v725 = vpop.f32.mrf.mxu0
  %v726 = vadd.f32 0.0, %v725
  %727 = vdwg.mxu0
  %v728 = vld [vmem:[%s3] sm:$0xff]
  %v729 = vld [vmem:[%s3 + $0x8] sm:$0xff]
  %v730 = vld [vmem:[%s3 + $0x10] sm:$0xff]
  %v731 = vld [vmem:[%s3 + $0x18] sm:$0xff]
  %v732 = vld [vmem:[%s62] sm:$0xff]
  %v734 = vsel %vm34, %v732, 0
  %736 = vmatpush.msra.mxu0 0.0
  %737 = vmatpush.msra.mxu0 0.0
  %738 = vmatpush.msra.mxu0 0.0
  %739 = vmatpush.msra.mxu0 0.0
  %740 = vmatpush.msra.mxu0 0.0
  %741 = vmatpush.msra.mxu0 0.0
  %742 = vmatpush.msra.mxu0 0.0
  %743 = vmatpush.msra.mxu0 0.0
  %744 = vmatpush.msra.mxu0 0.0
  %745 = vmatpush.msra.mxu0 0.0
  %746 = vmatpush.msra.mxu0 0.0
  %747 = vmatpush.msra.mxu0 0.0
  %748 = vmatpush.msra.mxu0 0.0
  %749 = vmatpush.msra.mxu0 0.0
  %750 = vmatpush.msra.mxu0 0.0
  %751 = vmatpush.msra.mxu0 %v698
  %752 = vmatmul.f32.gmra.mxu0 %v734
  %v753 = vpop.f32.mrf.mxu0
  %v754 = vadd.f32 0.0, %v753
  %755 = vdwg.mxu0
  %v756 = vld [vmem:[%s87] sm:$0xff]
  %v757 = vld [vmem:[%s87 + $0x8] sm:$0xff]
  %v758 = vld [vmem:[%s87 + $0x10] sm:$0xff]
  %v759 = vld [vmem:[%s87 + $0x18] sm:$0xff]
  %v761 = vsel %vm31, %v754, 0
  %763 = vmatpush.msra.mxu0 0.0
  %764 = vmatpush.msra.mxu0 0.0
  %765 = vmatpush.msra.mxu0 0.0
  %766 = vmatpush.msra.mxu0 0.0
  %767 = vmatpush.msra.mxu0 0.0
  %768 = vmatpush.msra.mxu0 0.0
  %769 = vmatpush.msra.mxu0 0.0
  %770 = vmatpush.msra.mxu0 0.0
  %771 = vmatpush.msra.mxu0 0.0
  %772 = vmatpush.msra.mxu0 0.0
  %773 = vmatpush.msra.mxu0 0.0
  %774 = vmatpush.msra.mxu0 0.0
  %775 = vmatpush.msra.mxu0 %v759
  %776 = vmatpush.msra.mxu0 %v758
  %777 = vmatpush.msra.mxu0 %v757
  %778 = vmatpush.msra.mxu0 %v756
  %779 = vmatmul.f32.gmra.mxu0 %v761
  %v780 = vpop.f32.mrf.mxu0
  %v781 = vadd.f32 0.0, %v780
  %782 = vdwg.mxu0
  %v784 = vsel %vm31, %v726, 0
  %786 = vmatpush.msra.mxu0 0.0
  %787 = vmatpush.msra.mxu0 0.0
  %788 = vmatpush.msra.mxu0 0.0
  %789 = vmatpush.msra.mxu0 0.0
  %790 = vmatpush.msra.mxu0 0.0
  %791 = vmatpush.msra.mxu0 0.0
  %792 = vmatpush.msra.mxu0 0.0
  %793 = vmatpush.msra.mxu0 0.0
  %794 = vmatpush.msra.mxu0 0.0
  %795 = vmatpush.msra.mxu0 0.0
  %796 = vmatpush.msra.mxu0 0.0
  %797 = vmatpush.msra.mxu0 0.0
  %798 = vmatpush.msra.mxu0 %v731
  %799 = vmatpush.msra.mxu0 %v730
  %800 = vmatpush.msra.mxu0 %v729
  %801 = vmatpush.msra.mxu0 %v728
  %802 = vmatmul.f32.gmra.mxu0 %v784
  %v803 = vpop.f32.mrf.mxu0
  %v804 = vadd.f32 %v781, %v803
  %805 = vdwg.mxu0
  %v806 = vld [vmem:[%s138] sm:$0xff]
  %v808 = vsel %vm34, %v806, 0
  %810 = vmatpush.msra.mxu0 0.0
  %811 = vmatpush.msra.mxu0 0.0
  %812 = vmatpush.msra.mxu0 0.0
  %813 = vmatpush.msra.mxu0 0.0
  %814 = vmatpush.msra.mxu0 0.0
  %815 = vmatpush.msra.mxu0 0.0
  %816 = vmatpush.msra.mxu0 0.0
  %817 = vmatpush.msra.mxu0 0.0
  %818 = vmatpush.msra.mxu0 0.0
  %819 = vmatpush.msra.mxu0 0.0
  %820 = vmatpush.msra.mxu0 0.0
  %821 = vmatpush.msra.mxu0 0.0
  %822 = vmatpush.msra.mxu0 0.0
  %823 = vmatpush.msra.mxu0 0.0
  %824 = vmatpush.msra.mxu0 0.0
  %825 = vmatpush.msra.mxu0 %v698
  %826 = vmatmul.f32.gmra.mxu0 %v808
  %v827 = vpop.f32.mrf.mxu0
  %v828 = vadd.f32 0.0, %v827
  %829 = vdwg.mxu0
  %v830 = vld [vmem:[%s163] sm:$0xff]
  %v831 = vld [vmem:[%s163 + $0x8] sm:$0xff]
  %v832 = vld [vmem:[%s163 + $0x10] sm:$0xff]
  %v833 = vld [vmem:[%s163 + $0x18] sm:$0xff]
  %v835 = vsel %vm31, %v828, 0
  %837 = vmatpush.msra.mxu0 0.0
  %838 = vmatpush.msra.mxu0 0.0
  %839 = vmatpush.msra.mxu0 0.0
  %840 = vmatpush.msra.mxu0 0.0
  %841 = vmatpush.msra.mxu0 0.0
  %842 = vmatpush.msra.mxu0 0.0
  %843 = vmatpush.msra.mxu0 0.0
  %844 = vmatpush.msra.mxu0 0.0
  %845 = vmatpush.msra.mxu0 0.0
  %846 = vmatpush.msra.mxu0 0.0
  %847 = vmatpush.msra.mxu0 0.0
  %848 = vmatpush.msra.mxu0 0.0
  %849 = vmatpush.msra.mxu0 %v833
  %850 = vmatpush.msra.mxu0 %v832
  %851 = vmatpush.msra.mxu0 %v831
  %852 = vmatpush.msra.mxu0 %v830
  %853 = vmatmul.f32.gmra.mxu0 %v835
  %v854 = vpop.f32.mrf.mxu0
  %v855 = vadd.f32 0.0, %v854
  %856 = vdwg.mxu0
  %v857 = vadd.f32 %v804, %v855
  %v858 = vld [vmem:[%s192] sm:$0xff]
  %v860 = vsel %vm34, %v858, 0
  %862 = vmatpush.msra.mxu0 0.0
  %863 = vmatpush.msra.mxu0 0.0
  %864 = vmatpush.msra.mxu0 0.0
  %865 = vmatpush.msra.mxu0 0.0
  %866 = vmatpush.msra.mxu0 0.0
  %867 = vmatpush.msra.mxu0 0.0
  %868 = vmatpush.msra.mxu0 0.0
  %869 = vmatpush.msra.mxu0 0.0
  %870 = vmatpush.msra.mxu0 0.0
  %871 = vmatpush.msra.mxu0 0.0
  %872 = vmatpush.msra.mxu0 0.0
  %873 = vmatpush.msra.mxu0 0.0
  %874 = vmatpush.msra.mxu0 0.0
  %875 = vmatpush.msra.mxu0 0.0
  %876 = vmatpush.msra.mxu0 0.0
  %877 = vmatpush.msra.mxu0 %v698
  %878 = vmatmul.f32.gmra.mxu0 %v860
  %v879 = vpop.f32.mrf.mxu0
  %v880 = vadd.f32 0.0, %v879
  %881 = vdwg.mxu0
  %v882 = vld [vmem:[%s217] sm:$0xff]
  %v883 = vld [vmem:[%s217 + $0x8] sm:$0xff]
  %v884 = vld [vmem:[%s217 + $0x10] sm:$0xff]
  %v885 = vld [vmem:[%s217 + $0x18] sm:$0xff]
  %v887 = vsel %vm31, %v880, 0
  %889 = vmatpush.msra.mxu0 0.0
  %890 = vmatpush.msra.mxu0 0.0
  %891 = vmatpush.msra.mxu0 0.0
  %892 = vmatpush.msra.mxu0 0.0
  %893 = vmatpush.msra.mxu0 0.0
  %894 = vmatpush.msra.mxu0 0.0
  %895 = vmatpush.msra.mxu0 0.0
  %896 = vmatpush.msra.mxu0 0.0
  %897 = vmatpush.msra.mxu0 0.0
  %898 = vmatpush.msra.mxu0 0.0
  %899 = vmatpush.msra.mxu0 0.0
  %900 = vmatpush.msra.mxu0 0.0
  %901 = vmatpush.msra.mxu0 %v885
  %902 = vmatpush.msra.mxu0 %v884
  %903 = vmatpush.msra.mxu0 %v883
  %904 = vmatpush.msra.mxu0 %v882
  %905 = vmatmul.f32.gmra.mxu0 %v887
  %v906 = vpop.f32.mrf.mxu0
  %v907 = vadd.f32 0.0, %v906
  %908 = vdwg.mxu0
  %v909 = vadd.f32 %v857, %v907
  %v910 = vld [vmem:[%s4] sm:$0x1]
  %v912 = vperm.slane %v910, 0
  %v914 = vadd.f32 %v909, %v912
  %v915 = vmul.f32 %v914, 2.0
  %v916 = vsub.f32 %v915, %v486
  %918 = vrot.lane.b32.xlu0 %v916, 64
  %v919 = vpop.permute.xlu0 %918
  %921 = vst.msk [vmem:[%s5 + $0x8] sm:$0xff] %vm474, %v919
  // Predicated region
  $region22: #{decoder_forward.9} parent=0 // pred_check
    _
  $region23: #{decoder_forward.9} parent=0 // pred_check_branch
    %923 = sbr.rel (0) target = $region25
  $region24: #{decoder_forward.9} parent=0 // pred_region
    _
  $region25: #{decoder_forward.9} parent=0 // pred_fallthru
    _
  // Predicated region
  $region26: #{decoder_forward.9} parent=0 // pred_check
    _
  $region27: #{decoder_forward.9} parent=0 // pred_check_branch
    %925 = sbr.rel (0) target = $region29
  $region28: #{decoder_forward.9} parent=0 // pred_region
    _
  $region29: #{decoder_forward.9} parent=0 // pred_fallthru
    _

// kernel: decoder_forward.7
$region0: #{decoder_forward.7}
  #allocation0 [shape = 'u32[]', space=smem, size = 0x4, offset = 0x4, fixed_abs, tag = 'smem constant byte address 0x4 - core index']
  #allocation1 [shape = 'u32[72,128]{1,0:T(1,128)}', space=vmem, size = 0x9000, scoped, tag = 'internal scratch']
  #allocation2 [shape = 'f32[8,19]{1,0:T(8,128)}', space=vmem, size = 0x1000, scoped, tag = 'scratch operand']
  %s0 = inlined_call_operand.vmem [shape: f32[16,57], index: 0, kind: input, shape index: {}]
  %s1 = inlined_call_operand.vmem [shape: f32[57,32], index: 1, kind: input, shape index: {}]
  %s2 = inlined_call_operand.vmem [shape: f32[1,32], index: 2, kind: input, shape index: {}]
  %s3 = inlined_call_operand.vmem [shape: f32[2,8,3], index: 3, kind: input, shape index: {}]
  %s4 = inlined_call_operand.vmem [shape: f32[2,8,16], index: 4, kind: input, shape index: {}]
  %s5 = inlined_call_operand.vmem [shape: f32[4,8,8], index: 5, kind: input, shape index: {}]
  %s6 = inlined_call_operand.vmem [shape: f32[4,19,19], index: 6, kind: input, shape index: {}]
  %s7 = inlined_call_operand.vmem [shape: f32[1,19], index: 7, kind: input, shape index: {}]
  %s8 = inlined_call_operand.vmem [shape: f32[2,8,16], index: 8, kind: output, shape index: {0}]
  %s9 = inlined_call_operand.vmem [shape: f32[16,57], index: 9, kind: output, shape index: {1}]
  %10 = xla_tuple %s8, %s9
  %s11 = sld [smem:[#allocation0]]
  $region50: #{decoder_forward.7} parent=0
    _
  %s13 = ssub.s32 1, %s11
  %s14 = scalar_select 0, %s13, %s11
  // Predicated region
  $region2: #{decoder_forward.7} parent=0 // pred_check
    _
  $region3: #{decoder_forward.7} parent=0 // pred_check_branch
    %16 = sbr.rel (0) target = $region5
  $region4: #{decoder_forward.7} parent=0 // pred_region
    _
  $region5: #{decoder_forward.7} parent=0 // pred_fallthru
    _
  // Predicated region
  $region6: #{decoder_forward.7} parent=0 // pred_check
    _
  $region7: #{decoder_forward.7} parent=0 // pred_check_branch
    %18 = sbr.rel (0) target = $region9
  $region8: #{decoder_forward.7} parent=0 // pred_region
    _
  $region9: #{decoder_forward.7} parent=0 // pred_fallthru
    _
  // Predicated region
  $region10: #{decoder_forward.7} parent=0 // pred_check
    _
  $region11: #{decoder_forward.7} parent=0 // pred_check_branch
    %20 = sbr.rel (0) target = $region13
  $region12: #{decoder_forward.7} parent=0 // pred_region
    _
  $region13: #{decoder_forward.7} parent=0 // pred_fallthru
    _
  // Predicated region
  $region14: #{decoder_forward.7} parent=0 // pred_check
    _
  $region15: #{decoder_forward.7} parent=0 // pred_check_branch
    %22 = sbr.rel (0) target = $region17
  $region16: #{decoder_forward.7} parent=0 // pred_region
    _
  $region17: #{decoder_forward.7} parent=0 // pred_fallthru
    _
  // Predicated region
  $region18: #{decoder_forward.7} parent=0 // pred_check
    _
  $region19: #{decoder_forward.7} parent=0 // pred_check_branch
    %24 = sbr.rel (0) target = $region21
  $region20: #{decoder_forward.7} parent=0 // pred_region
    _
  $region21: #{decoder_forward.7} parent=0 // pred_fallthru
    _
  // Predicated region
  $region22: #{decoder_forward.7} parent=0 // pred_check
    _
  $region23: #{decoder_forward.7} parent=0 // pred_check_branch
    %26 = sbr.rel (0) target = $region25
  $region24: #{decoder_forward.7} parent=0 // pred_region
    _
  $region25: #{decoder_forward.7} parent=0 // pred_fallthru
    _
  // Predicated region
  $region26: #{decoder_forward.7} parent=0 // pred_check
    _
  $region27: #{decoder_forward.7} parent=0 // pred_check_branch
    %28 = sbr.rel (0) target = $region29
  $region28: #{decoder_forward.7} parent=0 // pred_region
    _
  $region29: #{decoder_forward.7} parent=0 // pred_fallthru
    _
  // Predicated region
  $region30: #{decoder_forward.7} parent=0 // pred_check
    _
  $region31: #{decoder_forward.7} parent=0 // pred_check_branch
    %30 = sbr.rel (0) target = $region33
  $region32: #{decoder_forward.7} parent=0 // pred_region
    _
  $region33: #{decoder_forward.7} parent=0 // pred_fallthru
    _
  %v31 = vld [vmem:[%s0] sm:$0xff]
  %v32 = vld [vmem:[%s1] sm:$0xff]
  %v33 = vld [vmem:[%s1 + $0x8] sm:$0xff]
  %v34 = vld [vmem:[%s1 + $0x10] sm:$0xff]
  %v35 = vld [vmem:[%s1 + $0x18] sm:$0xff]
  %v36 = vld [vmem:[%s1 + $0x20] sm:$0xff]
  %v37 = vld [vmem:[%s1 + $0x28] sm:$0xff]
  %v38 = vld [vmem:[%s1 + $0x30] sm:$0xff]
  %v39 = vld [vmem:[%s1 + $0x38] sm:$0x1]
  %v40 = vld [vmem:[%s2] sm:$0x1]
  %v42 = vperm.slane %v40, 0
  %vm44 = vcmask 465920
  %v46 = vsel %vm44, %v31, 0
  %vm48 = vcmask 1040384
  %v50 = vsel %vm48, %v39, 0
  %52 = vmatpush.msra.mxu0 0.0
  %53 = vmatpush.msra.mxu0 0.0
  %54 = vmatpush.msra.mxu0 0.0
  %55 = vmatpush.msra.mxu0 0.0
  %56 = vmatpush.msra.mxu0 0.0
  %57 = vmatpush.msra.mxu0 0.0
  %58 = vmatpush.msra.mxu0 0.0
  %59 = vmatpush.msra.mxu0 0.0
  %60 = vmatpush.msra.mxu0 %v50
  %61 = vmatpush.msra.mxu0 %v38
  %62 = vmatpush.msra.mxu0 %v37
  %63 = vmatpush.msra.mxu0 %v36
  %64 = vmatpush.msra.mxu0 %v35
  %65 = vmatpush.msra.mxu0 %v34
  %66 = vmatpush.msra.mxu0 %v33
  %67 = vmatpush.msra.mxu0 %v32
  %68 = vmatmul.f32.gmra.mxu0 %v46
  %v69 = vpop.f32.mrf.mxu0
  %v70 = vadd.f32 %v42, %v69
  %71 = vdwg.mxu0
  %v72 = vxor.u32 %v70, 2147483648
  %v73 = vmul.f32 %v72, 1.442695
  %v74 = vpow.pop %v73
  %v75 = vadd.f32 %v74, 1.0
  %v76 = vrcp.pop %v75
  %v77 = vmul.f32 %v75, %v76
  %v78 = vsub.f32 1.0, %v77
  %v79 = vmul.f32 %v76, %v78
  %v80 = vadd.f32 %v76, %v79
  %vm81 = vweird.f32 %v75
  %vm82 = vweird.f32 %v76
  %vm83 = vmor %vm81, %vm82
  %v84 = vsel %vm83, %v76, %v80
  %v85 = vand.u32 2147483647, %v75
  %vm86 = vcmp.eq.f32.partialorder %v85, 8.507059e+37
  %v87 = vand.u32 %v75, 2147483648
  %v88 = vor.u32 1.1754944e-38, %v87
  %v89 = vsel %vm86, %v88, %v84
  %v90 = vmul.f32 1.0, %v89
  %92 = vrot.lane.b32.xlu0 %v90, 112
  %v93 = vpop.permute.xlu0 %92
  %vm95 = vcmask 130048
  %96 = vst.msk [vmem:[%s8] sm:$0xff] %vm95, %v93
  %v97 = vld [vmem:[%s3] sm:$0xff]
  %vm98 = vcmask 23552
  %99 = vst.msk [vmem:[#allocation2] sm:$0xff] %vm98, %v97
  %v100 = vld [vmem:[%s4] sm:$0xff]
  %v101 = vmul.f32 %v90, %v100
  %103 = vrot.lane.b32.xlu0 %v101, 3
  %v104 = vpop.permute.xlu0 %103
  %vm106 = vcmask 154648
  %107 = vst.msk [vmem:[#allocation2] sm:$0xff] %vm106, %v104
  %v108 = vld [vmem:[#allocation2] sm:$0xff]
  %vm109 = vcmask 154624
  %110 = vst.msk [vmem:[%s9] sm:$0xff] %vm109, %v108
  %v111 = vld [vmem:[%s5] sm:$0xff]
  %vm112 = vcmask 64512
  %v114 = vsel %vm112, %v111, 0
  %116 = vmatpush.msra.mxu0 0.0
  %117 = vmatpush.msra.mxu0 0.0
  %118 = vmatpush.msra.mxu0 0.0
  %119 = vmatpush.msra.mxu0 0.0
  %120 = vmatpush.msra.mxu0 0.0
  %121 = vmatpush.msra.mxu0 0.0
  %122 = vmatpush.msra.mxu0 0.0
  %123 = vmatpush.msra.mxu0 0.0
  %124 = vmatpush.msra.mxu0 0.0
  %125 = vmatpush.msra.mxu0 0.0
  %126 = vmatpush.msra.mxu0 0.0
  %127 = vmatpush.msra.mxu0 0.0
  %128 = vmatpush.msra.mxu0 0.0
  %129 = vmatpush.msra.mxu0 0.0
  %130 = vmatpush.msra.mxu0 0.0
  %131 = vmatpush.msra.mxu0 %v108
  %132 = vmatmul.f32.gmra.mxu0 %v114
  %v133 = vpop.f32.mrf.mxu0
  %v134 = vadd.f32 0.0, %v133
  %135 = vdwg.mxu0
  %v136 = vld [vmem:[%s6] sm:$0xff]
  %v137 = vld [vmem:[%s6 + $0x8] sm:$0xff]
  %v138 = vld [vmem:[%s6 + $0x10] sm:$0x7]
  %s139 = scalar_lea.vmem %s5, 8
  %v140 = vld [vmem:[%s139] sm:$0xff]
  %v142 = vsel %vm112, %v140, 0
  %144 = vmatpush.msra.mxu0 0.0
  %145 = vmatpush.msra.mxu0 0.0
  %146 = vmatpush.msra.mxu0 0.0
  %147 = vmatpush.msra.mxu0 0.0
  %148 = vmatpush.msra.mxu0 0.0
  %149 = vmatpush.msra.mxu0 0.0
  %150 = vmatpush.msra.mxu0 0.0
  %151 = vmatpush.msra.mxu0 0.0
  %152 = vmatpush.msra.mxu0 0.0
  %153 = vmatpush.msra.mxu0 0.0
  %154 = vmatpush.msra.mxu0 0.0
  %155 = vmatpush.msra.mxu0 0.0
  %156 = vmatpush.msra.mxu0 0.0
  %157 = vmatpush.msra.mxu0 0.0
  %158 = vmatpush.msra.mxu0 0.0
  %159 = vmatpush.msra.mxu0 %v108
  %160 = vmatmul.f32.gmra.mxu0 %v142
  %v161 = vpop.f32.mrf.mxu0
  %v162 = vadd.f32 0.0, %v161
  %163 = vdwg.mxu0
  %s164 = scalar_lea.vmem %s6, 24
  %v165 = vld [vmem:[%s164] sm:$0xff]
  %v166 = vld [vmem:[%s164 + $0x8] sm:$0xff]
  %v167 = vld [vmem:[%s164 + $0x10] sm:$0x7]
  %v169 = vsel %vm109, %v162, 0
  %vm171 = vcmask 1042432
  %v173 = vsel %vm171, %v167, 0
  %175 = vmatpush.msra.mxu0 0.0
  %176 = vmatpush.msra.mxu0 0.0
  %177 = vmatpush.msra.mxu0 0.0
  %178 = vmatpush.msra.mxu0 0.0
  %179 = vmatpush.msra.mxu0 0.0
  %180 = vmatpush.msra.mxu0 0.0
  %181 = vmatpush.msra.mxu0 0.0
  %182 = vmatpush.msra.mxu0 0.0
  %183 = vmatpush.msra.mxu0 0.0
  %184 = vmatpush.msra.mxu0 0.0
  %185 = vmatpush.msra.mxu0 0.0
  %186 = vmatpush.msra.mxu0 0.0
  %187 = vmatpush.msra.mxu0 0.0
  %188 = vmatpush.msra.mxu0 %v173
  %189 = vmatpush.msra.mxu0 %v166
  %190 = vmatpush.msra.mxu0 %v165
  %191 = vmatmul.f32.gmra.mxu0 %v169
  %v192 = vpop.f32.mrf.mxu0
  %v193 = vadd.f32 0.0, %v192
  %194 = vdwg.mxu0
  %v196 = vsel %vm109, %v134, 0
  %v199 = vsel %vm171, %v138, 0
  %201 = vmatpush.msra.mxu0 0.0
  %202 = vmatpush.msra.mxu0 0.0
  %203 = vmatpush.msra.mxu0 0.0
  %204 = vmatpush.msra.mxu0 0.0
  %205 = vmatpush.msra.mxu0 0.0
  %206 = vmatpush.msra.mxu0 0.0
  %207 = vmatpush.msra.mxu0 0.0
  %208 = vmatpush.msra.mxu0 0.0
  %209 = vmatpush.msra.mxu0 0.0
  %210 = vmatpush.msra.mxu0 0.0
  %211 = vmatpush.msra.mxu0 0.0
  %212 = vmatpush.msra.mxu0 0.0
  %213 = vmatpush.msra.mxu0 0.0
  %214 = vmatpush.msra.mxu0 %v199
  %215 = vmatpush.msra.mxu0 %v137
  %216 = vmatpush.msra.mxu0 %v136
  %217 = vmatmul.f32.gmra.mxu0 %v196
  %v218 = vpop.f32.mrf.mxu0
  %v219 = vadd.f32 %v193, %v218
  %220 = vdwg.mxu0
  %s221 = scalar_lea.vmem %s5, 16
  %v222 = vld [vmem:[%s221] sm:$0xff]
  %v224 = vsel %vm112, %v222, 0
  %226 = vmatpush.msra.mxu0 0.0
  %227 = vmatpush.msra.mxu0 0.0
  %228 = vmatpush.msra.mxu0 0.0
  %229 = vmatpush.msra.mxu0 0.0
  %230 = vmatpush.msra.mxu0 0.0
  %231 = vmatpush.msra.mxu0 0.0
  %232 = vmatpush.msra.mxu0 0.0
  %233 = vmatpush.msra.mxu0 0.0
  %234 = vmatpush.msra.mxu0 0.0
  %235 = vmatpush.msra.mxu0 0.0
  %236 = vmatpush.msra.mxu0 0.0
  %237 = vmatpush.msra.mxu0 0.0
  %238 = vmatpush.msra.mxu0 0.0
  %239 = vmatpush.msra.mxu0 0.0
  %240 = vmatpush.msra.mxu0 0.0
  %241 = vmatpush.msra.mxu0 %v108
  %242 = vmatmul.f32.gmra.mxu0 %v224
  %v243 = vpop.f32.mrf.mxu0
  %v244 = vadd.f32 0.0, %v243
  %245 = vdwg.mxu0
  %s246 = scalar_lea.vmem %s6, 48
  %v247 = vld [vmem:[%s246] sm:$0xff]
  %v248 = vld [vmem:[%s246 + $0x8] sm:$0xff]
  %v249 = vld [vmem:[%s246 + $0x10] sm:$0x7]
  %v251 = vsel %vm109, %v244, 0
  %v254 = vsel %vm171, %v249, 0
  %256 = vmatpush.msra.mxu0 0.0
  %257 = vmatpush.msra.mxu0 0.0
  %258 = vmatpush.msra.mxu0 0.0
  %259 = vmatpush.msra.mxu0 0.0
  %260 = vmatpush.msra.mxu0 0.0
  %261 = vmatpush.msra.mxu0 0.0
  %262 = vmatpush.msra.mxu0 0.0
  %263 = vmatpush.msra.mxu0 0.0
  %264 = vmatpush.msra.mxu0 0.0
  %265 = vmatpush.msra.mxu0 0.0
  %266 = vmatpush.msra.mxu0 0.0
  %267 = vmatpush.msra.mxu0 0.0
  %268 = vmatpush.msra.mxu0 0.0
  %269 = vmatpush.msra.mxu0 %v254
  %270 = vmatpush.msra.mxu0 %v248
  %271 = vmatpush.msra.mxu0 %v247
  %272 = vmatmul.f32.gmra.mxu0 %v251
  %v273 = vpop.f32.mrf.mxu0
  %v274 = vadd.f32 0.0, %v273
  %275 = vdwg.mxu0
  %v276 = vadd.f32 %v219, %v274
  %s277 = scalar_lea.vmem %s5, 24
  %v278 = vld [vmem:[%s277] sm:$0xff]
  %v280 = vsel %vm112, %v278, 0
  %282 = vmatpush.msra.mxu0 0.0
  %283 = vmatpush.msra.mxu0 0.0
  %284 = vmatpush.msra.mxu0 0.0
  %285 = vmatpush.msra.mxu0 0.0
  %286 = vmatpush.msra.mxu0 0.0
  %287 = vmatpush.msra.mxu0 0.0
  %288 = vmatpush.msra.mxu0 0.0
  %289 = vmatpush.msra.mxu0 0.0
  %290 = vmatpush.msra.mxu0 0.0
  %291 = vmatpush.msra.mxu0 0.0
  %292 = vmatpush.msra.mxu0 0.0
  %293 = vmatpush.msra.mxu0 0.0
  %294 = vmatpush.msra.mxu0 0.0
  %295 = vmatpush.msra.mxu0 0.0
  %296 = vmatpush.msra.mxu0 0.0
  %297 = vmatpush.msra.mxu0 %v108
  %298 = vmatmul.f32.gmra.mxu0 %v280
  %v299 = vpop.f32.mrf.mxu0
  %v300 = vadd.f32 0.0, %v299
  %301 = vdwg.mxu0
  %s302 = scalar_lea.vmem %s6, 72
  %v303 = vld [vmem:[%s302] sm:$0xff]
  %v304 = vld [vmem:[%s302 + $0x8] sm:$0xff]
  %v305 = vld [vmem:[%s302 + $0x10] sm:$0x7]
  %v307 = vsel %vm109, %v300, 0
  %v310 = vsel %vm171, %v305, 0
  %312 = vmatpush.msra.mxu0 0.0
  %313 = vmatpush.msra.mxu0 0.0
  %314 = vmatpush.msra.mxu0 0.0
  %315 = vmatpush.msra.mxu0 0.0
  %316 = vmatpush.msra.mxu0 0.0
  %317 = vmatpush.msra.mxu0 0.0
  %318 = vmatpush.msra.mxu0 0.0
  %319 = vmatpush.msra.mxu0 0.0
  %320 = vmatpush.msra.mxu0 0.0
  %321 = vmatpush.msra.mxu0 0.0
  %322 = vmatpush.msra.mxu0 0.0
  %323 = vmatpush.msra.mxu0 0.0
  %324 = vmatpush.msra.mxu0 0.0
  %325 = vmatpush.msra.mxu0 %v310
  %326 = vmatpush.msra.mxu0 %v304
  %327 = vmatpush.msra.mxu0 %v303
  %328 = vmatmul.f32.gmra.mxu0 %v307
  %v329 = vpop.f32.mrf.mxu0
  %v330 = vadd.f32 0.0, %v329
  %331 = vdwg.mxu0
  %v332 = vadd.f32 %v276, %v330
  %v333 = vld [vmem:[%s7] sm:$0x1]
  %v335 = vperm.slane %v333, 0
  %v337 = vadd.f32 %v332, %v335
  %339 = vrot.lane.b32.xlu0 %v337, 19
  %v340 = vpop.permute.xlu0 %339
  %vm342 = vcmask 310424
  %343 = vst.msk [vmem:[%s9] sm:$0xff] %vm342, %v340
  %v344 = vld [vmem:[%s5] sm:$0xff]
  %v346 = vsel %vm112, %v344, 0
  %348 = vmatpush.msra.mxu0 0.0
  %349 = vmatpush.msra.mxu0 0.0
  %350 = vmatpush.msra.mxu0 0.0
  %351 = vmatpush.msra.mxu0 0.0
  %352 = vmatpush.msra.mxu0 0.0
  %353 = vmatpush.msra.mxu0 0.0
  %354 = vmatpush.msra.mxu0 0.0
  %355 = vmatpush.msra.mxu0 0.0
  %356 = vmatpush.msra.mxu0 0.0
  %357 = vmatpush.msra.mxu0 0.0
  %358 = vmatpush.msra.mxu0 0.0
  %359 = vmatpush.msra.mxu0 0.0
  %360 = vmatpush.msra.mxu0 0.0
  %361 = vmatpush.msra.mxu0 0.0
  %362 = vmatpush.msra.mxu0 0.0
  %363 = vmatpush.msra.mxu0 %v337
  %364 = vmatmul.f32.gmra.mxu0 %v346
  %v365 = vpop.f32.mrf.mxu0
  %v366 = vadd.f32 0.0, %v365
  %367 = vdwg.mxu0
  %v368 = vld [vmem:[%s6] sm:$0xff]
  %v369 = vld [vmem:[%s6 + $0x8] sm:$0xff]
  %v370 = vld [vmem:[%s6 + $0x10] sm:$0x7]
  %v371 = vld [vmem:[%s139] sm:$0xff]
  %v373 = vsel %vm112, %v371, 0
  %375 = vmatpush.msra.mxu0 0.0
  %376 = vmatpush.msra.mxu0 0.0
  %377 = vmatpush.msra.mxu0 0.0
  %378 = vmatpush.msra.mxu0 0.0
  %379 = vmatpush.msra.mxu0 0.0
  %380 = vmatpush.msra.mxu0 0.0
  %381 = vmatpush.msra.mxu0 0.0
  %382 = vmatpush.msra.mxu0 0.0
  %383 = vmatpush.msra.mxu0 0.0
  %384 = vmatpush.msra.mxu0 0.0
  %385 = vmatpush.msra.mxu0 0.0
  %386 = vmatpush.msra.mxu0 0.0
  %387 = vmatpush.msra.mxu0 0.0
  %388 = vmatpush.msra.mxu0 0.0
  %389 = vmatpush.msra.mxu0 0.0
  %390 = vmatpush.msra.mxu0 %v337
  %391 = vmatmul.f32.gmra.mxu0 %v373
  %v392 = vpop.f32.mrf.mxu0
  %v393 = vadd.f32 0.0, %v392
  %394 = vdwg.mxu0
  %v395 = vld [vmem:[%s164] sm:$0xff]
  %v396 = vld [vmem:[%s164 + $0x8] sm:$0xff]
  %v397 = vld [vmem:[%s164 + $0x10] sm:$0x7]
  %v399 = vsel %vm109, %v393, 0
  %v402 = vsel %vm171, %v397, 0
  %404 = vmatpush.msra.mxu0 0.0
  %405 = vmatpush.msra.mxu0 0.0
  %406 = vmatpush.msra.mxu0 0.0
  %407 = vmatpush.msra.mxu0 0.0
  %408 = vmatpush.msra.mxu0 0.0
  %409 = vmatpush.msra.mxu0 0.0
  %410 = vmatpush.msra.mxu0 0.0
  %411 = vmatpush.msra.mxu0 0.0
  %412 = vmatpush.msra.mxu0 0.0
  %413 = vmatpush.msra.mxu0 0.0
  %414 = vmatpush.msra.mxu0 0.0
  %415 = vmatpush.msra.mxu0 0.0
  %416 = vmatpush.msra.mxu0 0.0
  %417 = vmatpush.msra.mxu0 %v402
  %418 = vmatpush.msra.mxu0 %v396
  %419 = vmatpush.msra.mxu0 %v395
  %420 = vmatmul.f32.gmra.mxu0 %v399
  %v421 = vpop.f32.mrf.mxu0
  %v422 = vadd.f32 0.0, %v421
  %423 = vdwg.mxu0
  %v425 = vsel %vm109, %v366, 0
  %v428 = vsel %vm171, %v370, 0
  %430 = vmatpush.msra.mxu0 0.0
  %431 = vmatpush.msra.mxu0 0.0
  %432 = vmatpush.msra.mxu0 0.0
  %433 = vmatpush.msra.mxu0 0.0
  %434 = vmatpush.msra.mxu0 0.0
  %435 = vmatpush.msra.mxu0 0.0
  %436 = vmatpush.msra.mxu0 0.0
  %437 = vmatpush.msra.mxu0 0.0
  %438 = vmatpush.msra.mxu0 0.0
  %439 = vmatpush.msra.mxu0 0.0
  %440 = vmatpush.msra.mxu0 0.0
  %441 = vmatpush.msra.mxu0 0.0
  %442 = vmatpush.msra.mxu0 0.0
  %443 = vmatpush.msra.mxu0 %v428
  %444 = vmatpush.msra.mxu0 %v369
  %445 = vmatpush.msra.mxu0 %v368
  %446 = vmatmul.f32.gmra.mxu0 %v425
  %v447 = vpop.f32.mrf.mxu0
  %v448 = vadd.f32 %v422, %v447
  %449 = vdwg.mxu0
  %v450 = vld [vmem:[%s221] sm:$0xff]
  %v452 = vsel %vm112, %v450, 0
  %454 = vmatpush.msra.mxu0 0.0
  %455 = vmatpush.msra.mxu0 0.0
  %456 = vmatpush.msra.mxu0 0.0
  %457 = vmatpush.msra.mxu0 0.0
  %458 = vmatpush.msra.mxu0 0.0
  %459 = vmatpush.msra.mxu0 0.0
  %460 = vmatpush.msra.mxu0 0.0
  %461 = vmatpush.msra.mxu0 0.0
  %462 = vmatpush.msra.mxu0 0.0
  %463 = vmatpush.msra.mxu0 0.0
  %464 = vmatpush.msra.mxu0 0.0
  %465 = vmatpush.msra.mxu0 0.0
  %466 = vmatpush.msra.mxu0 0.0
  %467 = vmatpush.msra.mxu0 0.0
  %468 = vmatpush.msra.mxu0 0.0
  %469 = vmatpush.msra.mxu0 %v337
  %470 = vmatmul.f32.gmra.mxu0 %v452
  %v471 = vpop.f32.mrf.mxu0
  %v472 = vadd.f32 0.0, %v471
  %473 = vdwg.mxu0
  %v474 = vld [vmem:[%s246] sm:$0xff]
  %v475 = vld [vmem:[%s246 + $0x8] sm:$0xff]
  %v476 = vld [vmem:[%s246 + $0x10] sm:$0x7]
  %v478 = vsel %vm109, %v472, 0
  %v481 = vsel %vm171, %v476, 0
  %483 = vmatpush.msra.mxu0 0.0
  %484 = vmatpush.msra.mxu0 0.0
  %485 = vmatpush.msra.mxu0 0.0
  %486 = vmatpush.msra.mxu0 0.0
  %487 = vmatpush.msra.mxu0 0.0
  %488 = vmatpush.msra.mxu0 0.0
  %489 = vmatpush.msra.mxu0 0.0
  %490 = vmatpush.msra.mxu0 0.0
  %491 = vmatpush.msra.mxu0 0.0
  %492 = vmatpush.msra.mxu0 0.0
  %493 = vmatpush.msra.mxu0 0.0
  %494 = vmatpush.msra.mxu0 0.0
  %495 = vmatpush.msra.mxu0 0.0
  %496 = vmatpush.msra.mxu0 %v481
  %497 = vmatpush.msra.mxu0 %v475
  %498 = vmatpush.msra.mxu0 %v474
  %499 = vmatmul.f32.gmra.mxu0 %v478
  %v500 = vpop.f32.mrf.mxu0
  %v501 = vadd.f32 0.0, %v500
  %502 = vdwg.mxu0
  %v503 = vadd.f32 %v448, %v501
  %v504 = vld [vmem:[%s277] sm:$0xff]
  %v506 = vsel %vm112, %v504, 0
  %508 = vmatpush.msra.mxu0 0.0
  %509 = vmatpush.msra.mxu0 0.0
  %510 = vmatpush.msra.mxu0 0.0
  %511 = vmatpush.msra.mxu0 0.0
  %512 = vmatpush.msra.mxu0 0.0
  %513 = vmatpush.msra.mxu0 0.0
  %514 = vmatpush.msra.mxu0 0.0
  %515 = vmatpush.msra.mxu0 0.0
  %516 = vmatpush.msra.mxu0 0.0
  %517 = vmatpush.msra.mxu0 0.0
  %518 = vmatpush.msra.mxu0 0.0
  %519 = vmatpush.msra.mxu0 0.0
  %520 = vmatpush.msra.mxu0 0.0
  %521 = vmatpush.msra.mxu0 0.0
  %522 = vmatpush.msra.mxu0 0.0
  %523 = vmatpush.msra.mxu0 %v337
  %524 = vmatmul.f32.gmra.mxu0 %v506
  %v525 = vpop.f32.mrf.mxu0
  %v526 = vadd.f32 0.0, %v525
  %527 = vdwg.mxu0
  %v528 = vld [vmem:[%s302] sm:$0xff]
  %v529 = vld [vmem:[%s302 + $0x8] sm:$0xff]
  %v530 = vld [vmem:[%s302 + $0x10] sm:$0x7]
  %v532 = vsel %vm109, %v526, 0
  %v535 = vsel %vm171, %v530, 0
  %537 = vmatpush.msra.mxu0 0.0
  %538 = vmatpush.msra.mxu0 0.0
  %539 = vmatpush.msra.mxu0 0.0
  %540 = vmatpush.msra.mxu0 0.0
  %541 = vmatpush.msra.mxu0 0.0
  %542 = vmatpush.msra.mxu0 0.0
  %543 = vmatpush.msra.mxu0 0.0
  %544 = vmatpush.msra.mxu0 0.0
  %545 = vmatpush.msra.mxu0 0.0
  %546 = vmatpush.msra.mxu0 0.0
  %547 = vmatpush.msra.mxu0 0.0
  %548 = vmatpush.msra.mxu0 0.0
  %549 = vmatpush.msra.mxu0 0.0
  %550 = vmatpush.msra.mxu0 %v535
  %551 = vmatpush.msra.mxu0 %v529
  %552 = vmatpush.msra.mxu0 %v528
  %553 = vmatmul.f32.gmra.mxu0 %v532
  %v554 = vpop.f32.mrf.mxu0
  %v555 = vadd.f32 0.0, %v554
  %556 = vdwg.mxu0
  %v557 = vadd.f32 %v503, %v555
  %v558 = vld [vmem:[%s7] sm:$0x1]
  %v560 = vperm.slane %v558, 0
  %v562 = vadd.f32 %v557, %v560
  %v563 = vmul.f32 %v562, 2.0
  %v564 = vsub.f32 %v563, %v108
  %566 = vrot.lane.b32.xlu0 %v564, 38
  %v567 = vpop.permute.xlu0 %566
  %vm569 = vcmask 466224
  %570 = vst.msk [vmem:[%s9] sm:$0xff] %vm569, %v567
  %v571 = vld [vmem:[%s0 + $0x8] sm:$0xff]
  %v572 = vld [vmem:[%s1] sm:$0xff]
  %v573 = vld [vmem:[%s1 + $0x8] sm:$0xff]
  %v574 = vld [vmem:[%s1 + $0x10] sm:$0xff]
  %v575 = vld [vmem:[%s1 + $0x18] sm:$0xff]
  %v576 = vld [vmem:[%s1 + $0x20] sm:$0xff]
  %v577 = vld [vmem:[%s1 + $0x28] sm:$0xff]
  %v578 = vld [vmem:[%s1 + $0x30] sm:$0xff]
  %v579 = vld [vmem:[%s1 + $0x38] sm:$0x1]
  %v580 = vld [vmem:[%s2] sm:$0x1]
  %v582 = vperm.slane %v580, 0
  %v585 = vsel %vm44, %v571, 0
  %v588 = vsel %vm48, %v579, 0
  %590 = vmatpush.msra.mxu0 0.0
  %591 = vmatpush.msra.mxu0 0.0
  %592 = vmatpush.msra.mxu0 0.0
  %593 = vmatpush.msra.mxu0 0.0
  %594 = vmatpush.msra.mxu0 0.0
  %595 = vmatpush.msra.mxu0 0.0
  %596 = vmatpush.msra.mxu0 0.0
  %597 = vmatpush.msra.mxu0 0.0
  %598 = vmatpush.msra.mxu0 %v588
  %599 = vmatpush.msra.mxu0 %v578
  %600 = vmatpush.msra.mxu0 %v577
  %601 = vmatpush.msra.mxu0 %v576
  %602 = vmatpush.msra.mxu0 %v575
  %603 = vmatpush.msra.mxu0 %v574
  %604 = vmatpush.msra.mxu0 %v573
  %605 = vmatpush.msra.mxu0 %v572
  %606 = vmatmul.f32.gmra.mxu0 %v585
  %v607 = vpop.f32.mrf.mxu0
  %v608 = vadd.f32 %v582, %v607
  %609 = vdwg.mxu0
  %v610 = vxor.u32 %v608, 2147483648
  %v611 = vmul.f32 %v610, 1.442695
  %v612 = vpow.pop %v611
  %v613 = vadd.f32 %v612, 1.0
  %v614 = vrcp.pop %v613
  %v615 = vmul.f32 %v613, %v614
  %v616 = vsub.f32 1.0, %v615
  %v617 = vmul.f32 %v614, %v616
  %v618 = vadd.f32 %v614, %v617
  %vm619 = vweird.f32 %v613
  %vm620 = vweird.f32 %v614
  %vm621 = vmor %vm619, %vm620
  %v622 = vsel %vm621, %v614, %v618
  %v623 = vand.u32 2147483647, %v613
  %vm624 = vcmp.eq.f32.partialorder %v623, 8.507059e+37
  %v625 = vand.u32 %v613, 2147483648
  %v626 = vor.u32 1.1754944e-38, %v625
  %v627 = vsel %vm624, %v626, %v622
  %v628 = vmul.f32 1.0, %v627
  %630 = vrot.lane.b32.xlu0 %v628, 112
  %v631 = vpop.permute.xlu0 %630
  %s633 = scalar_lea.vmem %s8, 8
  %634 = vst.msk [vmem:[%s633] sm:$0xff] %vm95, %v631
  %s635 = scalar_lea.vmem %s3, 8
  %v636 = vld [vmem:[%s635] sm:$0xff]
  %637 = vst.msk [vmem:[#allocation2] sm:$0xff] %vm98, %v636
  %s638 = scalar_lea.vmem %s4, 8
  %v639 = vld [vmem:[%s638] sm:$0xff]
  %v640 = vmul.f32 %v628, %v639
  %642 = vrot.lane.b32.xlu0 %v640, 3
  %v643 = vpop.permute.xlu0 %642
  %645 = vst.msk [vmem:[#allocation2] sm:$0xff] %vm106, %v643
  %v646 = vld [vmem:[#allocation2] sm:$0xff]
  %647 = vst.msk [vmem:[%s9 + $0x8] sm:$0xff] %vm109, %v646
  %v648 = vld [vmem:[%s5] sm:$0xff]
  %v650 = vsel %vm112, %v648, 0
  %652 = vmatpush.msra.mxu0 0.0
  %653 = vmatpush.msra.mxu0 0.0
  %654 = vmatpush.msra.mxu0 0.0
  %655 = vmatpush.msra.mxu0 0.0
  %656 = vmatpush.msra.mxu0 0.0
  %657 = vmatpush.msra.mxu0 0.0
  %658 = vmatpush.msra.mxu0 0.0
  %659 = vmatpush.msra.mxu0 0.0
  %660 = vmatpush.msra.mxu0 0.0
  %661 = vmatpush.msra.mxu0 0.0
  %662 = vmatpush.msra.mxu0 0.0
  %663 = vmatpush.msra.mxu0 0.0
  %664 = vmatpush.msra.mxu0 0.0
  %665 = vmatpush.msra.mxu0 0.0
  %666 = vmatpush.msra.mxu0 0.0
  %667 = vmatpush.msra.mxu0 %v646
  %668 = vmatmul.f32.gmra.mxu0 %v650
  %v669 = vpop.f32.mrf.mxu0
  %v670 = vadd.f32 0.0, %v669
  %671 = vdwg.mxu0
  %v672 = vld [vmem:[%s6] sm:$0xff]
  %v673 = vld [vmem:[%s6 + $0x8] sm:$0xff]
  %v674 = vld [vmem:[%s6 + $0x10] sm:$0x7]
  %v675 = vld [vmem:[%s139] sm:$0xff]
  %v677 = vsel %vm112, %v675, 0
  %679 = vmatpush.msra.mxu0 0.0
  %680 = vmatpush.msra.mxu0 0.0
  %681 = vmatpush.msra.mxu0 0.0
  %682 = vmatpush.msra.mxu0 0.0
  %683 = vmatpush.msra.mxu0 0.0
  %684 = vmatpush.msra.mxu0 0.0
  %685 = vmatpush.msra.mxu0 0.0
  %686 = vmatpush.msra.mxu0 0.0
  %687 = vmatpush.msra.mxu0 0.0
  %688 = vmatpush.msra.mxu0 0.0
  %689 = vmatpush.msra.mxu0 0.0
  %690 = vmatpush.msra.mxu0 0.0
  %691 = vmatpush.msra.mxu0 0.0
  %692 = vmatpush.msra.mxu0 0.0
  %693 = vmatpush.msra.mxu0 0.0
  %694 = vmatpush.msra.mxu0 %v646
  %695 = vmatmul.f32.gmra.mxu0 %v677
  %v696 = vpop.f32.mrf.mxu0
  %v697 = vadd.f32 0.0, %v696
  %698 = vdwg.mxu0
  %v699 = vld [vmem:[%s164] sm:$0xff]
  %v700 = vld [vmem:[%s164 + $0x8] sm:$0xff]
  %v701 = vld [vmem:[%s164 + $0x10] sm:$0x7]
  %v703 = vsel %vm109, %v697, 0
  %v706 = vsel %vm171, %v701, 0
  %708 = vmatpush.msra.mxu0 0.0
  %709 = vmatpush.msra.mxu0 0.0
  %710 = vmatpush.msra.mxu0 0.0
  %711 = vmatpush.msra.mxu0 0.0
  %712 = vmatpush.msra.mxu0 0.0
  %713 = vmatpush.msra.mxu0 0.0
  %714 = vmatpush.msra.mxu0 0.0
  %715 = vmatpush.msra.mxu0 0.0
  %716 = vmatpush.msra.mxu0 0.0
  %717 = vmatpush.msra.mxu0 0.0
  %718 = vmatpush.msra.mxu0 0.0
  %719 = vmatpush.msra.mxu0 0.0
  %720 = vmatpush.msra.mxu0 0.0
  %721 = vmatpush.msra.mxu0 %v706
  %722 = vmatpush.msra.mxu0 %v700
  %723 = vmatpush.msra.mxu0 %v699
  %724 = vmatmul.f32.gmra.mxu0 %v703
  %v725 = vpop.f32.mrf.mxu0
  %v726 = vadd.f32 0.0, %v725
  %727 = vdwg.mxu0
  %v729 = vsel %vm109, %v670, 0
  %v732 = vsel %vm171, %v674, 0
  %734 = vmatpush.msra.mxu0 0.0
  %735 = vmatpush.msra.mxu0 0.0
  %736 = vmatpush.msra.mxu0 0.0
  %737 = vmatpush.msra.mxu0 0.0
  %738 = vmatpush.msra.mxu0 0.0
  %739 = vmatpush.msra.mxu0 0.0
  %740 = vmatpush.msra.mxu0 0.0
  %741 = vmatpush.msra.mxu0 0.0
  %742 = vmatpush.msra.mxu0 0.0
  %743 = vmatpush.msra.mxu0 0.0
  %744 = vmatpush.msra.mxu0 0.0
  %745 = vmatpush.msra.mxu0 0.0
  %746 = vmatpush.msra.mxu0 0.0
  %747 = vmatpush.msra.mxu0 %v732
  %748 = vmatpush.msra.mxu0 %v673
  %749 = vmatpush.msra.mxu0 %v672
  %750 = vmatmul.f32.gmra.mxu0 %v729
  %v751 = vpop.f32.mrf.mxu0
  %v752 = vadd.f32 %v726, %v751
  %753 = vdwg.mxu0
  %v754 = vld [vmem:[%s221] sm:$0xff]
  %v756 = vsel %vm112, %v754, 0
  %758 = vmatpush.msra.mxu0 0.0
  %759 = vmatpush.msra.mxu0 0.0
  %760 = vmatpush.msra.mxu0 0.0
  %761 = vmatpush.msra.mxu0 0.0
  %762 = vmatpush.msra.mxu0 0.0
  %763 = vmatpush.msra.mxu0 0.0
  %764 = vmatpush.msra.mxu0 0.0
  %765 = vmatpush.msra.mxu0 0.0
  %766 = vmatpush.msra.mxu0 0.0
  %767 = vmatpush.msra.mxu0 0.0
  %768 = vmatpush.msra.mxu0 0.0
  %769 = vmatpush.msra.mxu0 0.0
  %770 = vmatpush.msra.mxu0 0.0
  %771 = vmatpush.msra.mxu0 0.0
  %772 = vmatpush.msra.mxu0 0.0
  %773 = vmatpush.msra.mxu0 %v646
  %774 = vmatmul.f32.gmra.mxu0 %v756
  %v775 = vpop.f32.mrf.mxu0
  %v776 = vadd.f32 0.0, %v775
  %777 = vdwg.mxu0
  %v778 = vld [vmem:[%s246] sm:$0xff]
  %v779 = vld [vmem:[%s246 + $0x8] sm:$0xff]
  %v780 = vld [vmem:[%s246 + $0x10] sm:$0x7]
  %v782 = vsel %vm109, %v776, 0
  %v785 = vsel %vm171, %v780, 0
  %787 = vmatpush.msra.mxu0 0.0
  %788 = vmatpush.msra.mxu0 0.0
  %789 = vmatpush.msra.mxu0 0.0
  %790 = vmatpush.msra.mxu0 0.0
  %791 = vmatpush.msra.mxu0 0.0
  %792 = vmatpush.msra.mxu0 0.0
  %793 = vmatpush.msra.mxu0 0.0
  %794 = vmatpush.msra.mxu0 0.0
  %795 = vmatpush.msra.mxu0 0.0
  %796 = vmatpush.msra.mxu0 0.0
  %797 = vmatpush.msra.mxu0 0.0
  %798 = vmatpush.msra.mxu0 0.0
  %799 = vmatpush.msra.mxu0 0.0
  %800 = vmatpush.msra.mxu0 %v785
  %801 = vmatpush.msra.mxu0 %v779
  %802 = vmatpush.msra.mxu0 %v778
  %803 = vmatmul.f32.gmra.mxu0 %v782
  %v804 = vpop.f32.mrf.mxu0
  %v805 = vadd.f32 0.0, %v804
  %806 = vdwg.mxu0
  %v807 = vadd.f32 %v752, %v805
  %v808 = vld [vmem:[%s277] sm:$0xff]
  %v810 = vsel %vm112, %v808, 0
  %812 = vmatpush.msra.mxu0 0.0
  %813 = vmatpush.msra.mxu0 0.0
  %814 = vmatpush.msra.mxu0 0.0
  %815 = vmatpush.msra.mxu0 0.0
  %816 = vmatpush.msra.mxu0 0.0
  %817 = vmatpush.msra.mxu0 0.0
  %818 = vmatpush.msra.mxu0 0.0
  %819 = vmatpush.msra.mxu0 0.0
  %820 = vmatpush.msra.mxu0 0.0
  %821 = vmatpush.msra.mxu0 0.0
  %822 = vmatpush.msra.mxu0 0.0
  %823 = vmatpush.msra.mxu0 0.0
  %824 = vmatpush.msra.mxu0 0.0
  %825 = vmatpush.msra.mxu0 0.0
  %826 = vmatpush.msra.mxu0 0.0
  %827 = vmatpush.msra.mxu0 %v646
  %828 = vmatmul.f32.gmra.mxu0 %v810
  %v829 = vpop.f32.mrf.mxu0
  %v830 = vadd.f32 0.0, %v829
  %831 = vdwg.mxu0
  %v832 = vld [vmem:[%s302] sm:$0xff]
  %v833 = vld [vmem:[%s302 + $0x8] sm:$0xff]
  %v834 = vld [vmem:[%s302 + $0x10] sm:$0x7]
  %v836 = vsel %vm109, %v830, 0
  %v839 = vsel %vm171, %v834, 0
  %841 = vmatpush.msra.mxu0 0.0
  %842 = vmatpush.msra.mxu0 0.0
  %843 = vmatpush.msra.mxu0 0.0
  %844 = vmatpush.msra.mxu0 0.0
  %845 = vmatpush.msra.mxu0 0.0
  %846 = vmatpush.msra.mxu0 0.0
  %847 = vmatpush.msra.mxu0 0.0
  %848 = vmatpush.msra.mxu0 0.0
  %849 = vmatpush.msra.mxu0 0.0
  %850 = vmatpush.msra.mxu0 0.0
  %851 = vmatpush.msra.mxu0 0.0
  %852 = vmatpush.msra.mxu0 0.0
  %853 = vmatpush.msra.mxu0 0.0
  %854 = vmatpush.msra.mxu0 %v839
  %855 = vmatpush.msra.mxu0 %v833
  %856 = vmatpush.msra.mxu0 %v832
  %857 = vmatmul.f32.gmra.mxu0 %v836
  %v858 = vpop.f32.mrf.mxu0
  %v859 = vadd.f32 0.0, %v858
  %860 = vdwg.mxu0
  %v861 = vadd.f32 %v807, %v859
  %v862 = vld [vmem:[%s7] sm:$0x1]
  %v864 = vperm.slane %v862, 0
  %v866 = vadd.f32 %v861, %v864
  %868 = vrot.lane.b32.xlu0 %v866, 19
  %v869 = vpop.permute.xlu0 %868
  %871 = vst.msk [vmem:[%s9 + $0x8] sm:$0xff] %vm342, %v869
  %v872 = vld [vmem:[%s5] sm:$0xff]
  %v874 = vsel %vm112, %v872, 0
  %876 = vmatpush.msra.mxu0 0.0
  %877 = vmatpush.msra.mxu0 0.0
  %878 = vmatpush.msra.mxu0 0.0
  %879 = vmatpush.msra.mxu0 0.0
  %880 = vmatpush.msra.mxu0 0.0
  %881 = vmatpush.msra.mxu0 0.0
  %882 = vmatpush.msra.mxu0 0.0
  %883 = vmatpush.msra.mxu0 0.0
  %884 = vmatpush.msra.mxu0 0.0
  %885 = vmatpush.msra.mxu0 0.0
  %886 = vmatpush.msra.mxu0 0.0
  %887 = vmatpush.msra.mxu0 0.0
  %888 = vmatpush.msra.mxu0 0.0
  %889 = vmatpush.msra.mxu0 0.0
  %890 = vmatpush.msra.mxu0 0.0
  %891 = vmatpush.msra.mxu0 %v866
  %892 = vmatmul.f32.gmra.mxu0 %v874
  %v893 = vpop.f32.mrf.mxu0
  %v894 = vadd.f32 0.0, %v893
  %895 = vdwg.mxu0
  %v896 = vld [vmem:[%s6] sm:$0xff]
  %v897 = vld [vmem:[%s6 + $0x8] sm:$0xff]
  %v898 = vld [vmem:[%s6 + $0x10] sm:$0x7]
  %v899 = vld [vmem:[%s139] sm:$0xff]
  %v901 = vsel %vm112, %v899, 0
  %903 = vmatpush.msra.mxu0 0.0
  %904 = vmatpush.msra.mxu0 0.0
  %905 = vmatpush.msra.mxu0 0.0
  %906 = vmatpush.msra.mxu0 0.0
  %907 = vmatpush.msra.mxu0 0.0
  %908 = vmatpush.msra.mxu0 0.0
  %909 = vmatpush.msra.mxu0 0.0
  %910 = vmatpush.msra.mxu0 0.0
  %911 = vmatpush.msra.mxu0 0.0
  %912 = vmatpush.msra.mxu0 0.0
  %913 = vmatpush.msra.mxu0 0.0
  %914 = vmatpush.msra.mxu0 0.0
  %915 = vmatpush.msra.mxu0 0.0
  %916 = vmatpush.msra.mxu0 0.0
  %917 = vmatpush.msra.mxu0 0.0
  %918 = vmatpush.msra.mxu0 %v866
  %919 = vmatmul.f32.gmra.mxu0 %v901
  %v920 = vpop.f32.mrf.mxu0
  %v921 = vadd.f32 0.0, %v920
  %922 = vdwg.mxu0
  %v923 = vld [vmem:[%s164] sm:$0xff]
  %v924 = vld [vmem:[%s164 + $0x8] sm:$0xff]
  %v925 = vld [vmem:[%s164 + $0x10] sm:$0x7]
  %v927 = vsel %vm109, %v921, 0
  %v930 = vsel %vm171, %v925, 0
  %932 = vmatpush.msra.mxu0 0.0
  %933 = vmatpush.msra.mxu0 0.0
  %934 = vmatpush.msra.mxu0 0.0
  %935 = vmatpush.msra.mxu0 0.0
  %936 = vmatpush.msra.mxu0 0.0
  %937 = vmatpush.msra.mxu0 0.0
  %938 = vmatpush.msra.mxu0 0.0
  %939 = vmatpush.msra.mxu0 0.0
  %940 = vmatpush.msra.mxu0 0.0
  %941 = vmatpush.msra.mxu0 0.0
  %942 = vmatpush.msra.mxu0 0.0
  %943 = vmatpush.msra.mxu0 0.0
  %944 = vmatpush.msra.mxu0 0.0
  %945 = vmatpush.msra.mxu0 %v930
  %946 = vmatpush.msra.mxu0 %v924
  %947 = vmatpush.msra.mxu0 %v923
  %948 = vmatmul.f32.gmra.mxu0 %v927
  %v949 = vpop.f32.mrf.mxu0
  %v950 = vadd.f32 0.0, %v949
  %951 = vdwg.mxu0
  %v953 = vsel %vm109, %v894, 0
  %v956 = vsel %vm171, %v898, 0
  %958 = vmatpush.msra.mxu0 0.0
  %959 = vmatpush.msra.mxu0 0.0
  %960 = vmatpush.msra.mxu0 0.0
  %961 = vmatpush.msra.mxu0 0.0
  %962 = vmatpush.msra.mxu0 0.0
  %963 = vmatpush.msra.mxu0 0.0
  %964 = vmatpush.msra.mxu0 0.0
  %965 = vmatpush.msra.mxu0 0.0
  %966 = vmatpush.msra.mxu0 0.0
  %967 = vmatpush.msra.mxu0 0.0
  %968 = vmatpush.msra.mxu0 0.0
  %969 = vmatpush.msra.mxu0 0.0
  %970 = vmatpush.msra.mxu0 0.0
  %971 = vmatpush.msra.mxu0 %v956
  %972 = vmatpush.msra.mxu0 %v897
  %973 = vmatpush.msra.mxu0 %v896
  %974 = vmatmul.f32.gmra.mxu0 %v953
  %v975 = vpop.f32.mrf.mxu0
  %v976 = vadd.f32 %v950, %v975
  %977 = vdwg.mxu0
  %v978 = vld [vmem:[%s221] sm:$0xff]
  %v980 = vsel %vm112, %v978, 0
  %982 = vmatpush.msra.mxu0 0.0
  %983 = vmatpush.msra.mxu0 0.0
  %984 = vmatpush.msra.mxu0 0.0
  %985 = vmatpush.msra.mxu0 0.0
  %986 = vmatpush.msra.mxu0 0.0
  %987 = vmatpush.msra.mxu0 0.0
  %988 = vmatpush.msra.mxu0 0.0
  %989 = vmatpush.msra.mxu0 0.0
  %990 = vmatpush.msra.mxu0 0.0
  %991 = vmatpush.msra.mxu0 0.0
  %992 = vmatpush.msra.mxu0 0.0
  %993 = vmatpush.msra.mxu0 0.0
  %994 = vmatpush.msra.mxu0 0.0
  %995 = vmatpush.msra.mxu0 0.0
  %996 = vmatpush.msra.mxu0 0.0
  %997 = vmatpush.msra.mxu0 %v866
  %998 = vmatmul.f32.gmra.mxu0 %v980
  %v999 = vpop.f32.mrf.mxu0
  %v1000 = vadd.f32 0.0, %v999
  %1001 = vdwg.mxu0
  %v1002 = vld [vmem:[%s246] sm:$0xff]
  %v1003 = vld [vmem:[%s246 + $0x8] sm:$0xff]
  %v1004 = vld [vmem:[%s246 + $0x10] sm:$0x7]
  %v1006 = vsel %vm109, %v1000, 0
  %v1009 = vsel %vm171, %v1004, 0
  %1011 = vmatpush.msra.mxu0 0.0
  %1012 = vmatpush.msra.mxu0 0.0
  %1013 = vmatpush.msra.mxu0 0.0
  %1014 = vmatpush.msra.mxu0 0.0
  %1015 = vmatpush.msra.mxu0 0.0
  %1016 = vmatpush.msra.mxu0 0.0
  %1017 = vmatpush.msra.mxu0 0.0
  %1018 = vmatpush.msra.mxu0 0.0
  %1019 = vmatpush.msra.mxu0 0.0
  %1020 = vmatpush.msra.mxu0 0.0
  %1021 = vmatpush.msra.mxu0 0.0
  %1022 = vmatpush.msra.mxu0 0.0
  %1023 = vmatpush.msra.mxu0 0.0
  %1024 = vmatpush.msra.mxu0 %v1009
  %1025 = vmatpush.msra.mxu0 %v1003
  %1026 = vmatpush.msra.mxu0 %v1002
  %1027 = vmatmul.f32.gmra.mxu0 %v1006
  %v1028 = vpop.f32.mrf.mxu0
  %v1029 = vadd.f32 0.0, %v1028
  %1030 = vdwg.mxu0
  %v1031 = vadd.f32 %v976, %v1029
  %v1032 = vld [vmem:[%s277] sm:$0xff]
  %v1034 = vsel %vm112, %v1032, 0
  %1036 = vmatpush.msra.mxu0 0.0
  %1037 = vmatpush.msra.mxu0 0.0
  %1038 = vmatpush.msra.mxu0 0.0
  %1039 = vmatpush.msra.mxu0 0.0
  %1040 = vmatpush.msra.mxu0 0.0
  %1041 = vmatpush.msra.mxu0 0.0
  %1042 = vmatpush.msra.mxu0 0.0
  %1043 = vmatpush.msra.mxu0 0.0
  %1044 = vmatpush.msra.mxu0 0.0
  %1045 = vmatpush.msra.mxu0 0.0
  %1046 = vmatpush.msra.mxu0 0.0
  %1047 = vmatpush.msra.mxu0 0.0
  %1048 = vmatpush.msra.mxu0 0.0
  %1049 = vmatpush.msra.mxu0 0.0
  %1050 = vmatpush.msra.mxu0 0.0
  %1051 = vmatpush.msra.mxu0 %v866
  %1052 = vmatmul.f32.gmra.mxu0 %v1034
  %v1053 = vpop.f32.mrf.mxu0
  %v1054 = vadd.f32 0.0, %v1053
  %1055 = vdwg.mxu0
  %v1056 = vld [vmem:[%s302] sm:$0xff]
  %v1057 = vld [vmem:[%s302 + $0x8] sm:$0xff]
  %v1058 = vld [vmem:[%s302 + $0x10] sm:$0x7]
  %v1060 = vsel %vm109, %v1054, 0
  %v1063 = vsel %vm171, %v1058, 0
  %1065 = vmatpush.msra.mxu0 0.0
  %1066 = vmatpush.msra.mxu0 0.0
  %1067 = vmatpush.msra.mxu0 0.0
  %1068 = vmatpush.msra.mxu0 0.0
  %1069 = vmatpush.msra.mxu0 0.0
  %1070 = vmatpush.msra.mxu0 0.0
  %1071 = vmatpush.msra.mxu0 0.0
  %1072 = vmatpush.msra.mxu0 0.0
  %1073 = vmatpush.msra.mxu0 0.0
  %1074 = vmatpush.msra.mxu0 0.0
  %1075 = vmatpush.msra.mxu0 0.0
  %1076 = vmatpush.msra.mxu0 0.0
  %1077 = vmatpush.msra.mxu0 0.0
  %1078 = vmatpush.msra.mxu0 %v1063
  %1079 = vmatpush.msra.mxu0 %v1057
  %1080 = vmatpush.msra.mxu0 %v1056
  %1081 = vmatmul.f32.gmra.mxu0 %v1060
  %v1082 = vpop.f32.mrf.mxu0
  %v1083 = vadd.f32 0.0, %v1082
  %1084 = vdwg.mxu0
  %v1085 = vadd.f32 %v1031, %v1083
  %v1086 = vld [vmem:[%s7] sm:$0x1]
  %v1088 = vperm.slane %v1086, 0
  %v1090 = vadd.f32 %v1085, %v1088
  %v1091 = vmul.f32 %v1090, 2.0
  %v1092 = vsub.f32 %v1091, %v646
  %1094 = vrot.lane.b32.xlu0 %v1092, 38
  %v1095 = vpop.permute.xlu0 %1094
  %1097 = vst.msk [vmem:[%s9 + $0x8] sm:$0xff] %vm569, %v1095
  // Predicated region
  $region34: #{decoder_forward.7} parent=0 // pred_check
    _
  $region35: #{decoder_forward.7} parent=0 // pred_check_branch
    %1099 = sbr.rel (0) target = $region37
  $region36: #{decoder_forward.7} parent=0 // pred_region
    _
  $region37: #{decoder_forward.7} parent=0 // pred_fallthru
    _
  // Predicated region
  $region38: #{decoder_forward.7} parent=0 // pred_check
    _
  $region39: #{decoder_forward.7} parent=0 // pred_check_branch
    %1101 = sbr.rel (0) target = $region41
  $region40: #{decoder_forward.7} parent=0 // pred_region
    _
  $region41: #{decoder_forward.7} parent=0 // pred_fallthru
    _
  // Predicated region
  $region42: #{decoder_forward.7} parent=0 // pred_check
    _
  $region43: #{decoder_forward.7} parent=0 // pred_check_branch
    %1103 = sbr.rel (0) target = $region45
  $region44: #{decoder_forward.7} parent=0 // pred_region
    _
  $region45: #{decoder_forward.7} parent=0 // pred_fallthru
    _
  // Predicated region
  $region46: #{decoder_forward.7} parent=0 // pred_check
    _
  $region47: #{decoder_forward.7} parent=0 // pred_check_branch
    %1105 = sbr.rel (0) target = $region49
  $region48: #{decoder_forward.7} parent=0 // pred_region
    _
  $region49: #{decoder_forward.7} parent=0 // pred_fallthru
    _

// kernel: decoder_forward.11
$region0: #{decoder_forward.11}
  #allocation0 [shape = 'u32[]', space=smem, size = 0x4, offset = 0x4, fixed_abs, tag = 'smem constant byte address 0x4 - core index']
  #allocation1 [shape = 'u32[72,128]{1,0:T(1,128)}', space=vmem, size = 0x9000, scoped, tag = 'internal scratch']
  %s0 = inlined_call_operand.vmem [shape: f32[16,96], index: 0, kind: input, shape index: {}]
  %s1 = inlined_call_operand.vmem [shape: f32[96,16], index: 1, kind: input, shape index: {}]
  %s2 = inlined_call_operand.vmem [shape: f32[1,16], index: 2, kind: input, shape index: {}]
  %s3 = inlined_call_operand.vmem [shape: f32[2,8,16], index: 3, kind: input, shape index: {}]
  %s4 = inlined_call_operand.vmem [shape: f32[2,8,16], index: 4, kind: input, shape index: {}]
  %s5 = inlined_call_operand.vmem [shape: f32[8,16], index: 5, kind: input, shape index: {}]
  %s6 = inlined_call_operand.vmem [shape: f32[8,16], index: 6, kind: input, shape index: {}]
  %s7 = inlined_call_operand.vmem [shape: f32[2,8,16], index: 7, kind: output, shape index: {}]
  %s8 = sld [smem:[#allocation0]]
  $region38: #{decoder_forward.11} parent=0
    _
  %s10 = ssub.s32 1, %s8
  %s11 = scalar_select 0, %s10, %s8
  // Predicated region
  $region2: #{decoder_forward.11} parent=0 // pred_check
    _
  $region3: #{decoder_forward.11} parent=0 // pred_check_branch
    %13 = sbr.rel (0) target = $region5
  $region4: #{decoder_forward.11} parent=0 // pred_region
    _
  $region5: #{decoder_forward.11} parent=0 // pred_fallthru
    _
  // Predicated region
  $region6: #{decoder_forward.11} parent=0 // pred_check
    _
  $region7: #{decoder_forward.11} parent=0 // pred_check_branch
    %15 = sbr.rel (0) target = $region9
  $region8: #{decoder_forward.11} parent=0 // pred_region
    _
  $region9: #{decoder_forward.11} parent=0 // pred_fallthru
    _
  // Predicated region
  $region10: #{decoder_forward.11} parent=0 // pred_check
    _
  $region11: #{decoder_forward.11} parent=0 // pred_check_branch
    %17 = sbr.rel (0) target = $region13
  $region12: #{decoder_forward.11} parent=0 // pred_region
    _
  $region13: #{decoder_forward.11} parent=0 // pred_fallthru
    _
  // Predicated region
  $region14: #{decoder_forward.11} parent=0 // pred_check
    _
  $region15: #{decoder_forward.11} parent=0 // pred_check_branch
    %19 = sbr.rel (0) target = $region17
  $region16: #{decoder_forward.11} parent=0 // pred_region
    _
  $region17: #{decoder_forward.11} parent=0 // pred_fallthru
    _
  // Predicated region
  $region18: #{decoder_forward.11} parent=0 // pred_check
    _
  $region19: #{decoder_forward.11} parent=0 // pred_check_branch
    %21 = sbr.rel (0) target = $region21
  $region20: #{decoder_forward.11} parent=0 // pred_region
    _
  $region21: #{decoder_forward.11} parent=0 // pred_fallthru
    _
  // Predicated region
  $region22: #{decoder_forward.11} parent=0 // pred_check
    _
  $region23: #{decoder_forward.11} parent=0 // pred_check_branch
    %23 = sbr.rel (0) target = $region25
  $region24: #{decoder_forward.11} parent=0 // pred_region
    _
  $region25: #{decoder_forward.11} parent=0 // pred_fallthru
    _
  // Predicated region
  $region26: #{decoder_forward.11} parent=0 // pred_check
    _
  $region27: #{decoder_forward.11} parent=0 // pred_check_branch
    %25 = sbr.rel (0) target = $region29
  $region28: #{decoder_forward.11} parent=0 // pred_region
    _
  $region29: #{decoder_forward.11} parent=0 // pred_fallthru
    _
  %v26 = vld [vmem:[%s5] sm:$0xff]
  %v27 = vld [vmem:[%s6] sm:$0xff]
  %v28 = vld [vmem:[%s0] sm:$0xff]
  %v29 = vld [vmem:[%s1] sm:$0xff]
  %v30 = vld [vmem:[%s1 + $0x8] sm:$0xff]
  %v31 = vld [vmem:[%s1 + $0x10] sm:$0xff]
  %v32 = vld [vmem:[%s1 + $0x18] sm:$0xff]
  %v33 = vld [vmem:[%s1 + $0x20] sm:$0xff]
  %v34 = vld [vmem:[%s1 + $0x28] sm:$0xff]
  %v35 = vld [vmem:[%s1 + $0x30] sm:$0xff]
  %v36 = vld [vmem:[%s1 + $0x38] sm:$0xff]
  %v37 = vld [vmem:[%s1 + $0x40] sm:$0xff]
  %v38 = vld [vmem:[%s1 + $0x48] sm:$0xff]
  %v39 = vld [vmem:[%s1 + $0x50] sm:$0xff]
  %v40 = vld [vmem:[%s1 + $0x58] sm:$0xff]
  %v41 = vld [vmem:[%s2] sm:$0x1]
  %v43 = vperm.slane %v41, 0
  %vm45 = vcmask 785408
  %v47 = vsel %vm45, %v28, 0
  %49 = vmatpush.msra.mxu0 0.0
  %50 = vmatpush.msra.mxu0 0.0
  %51 = vmatpush.msra.mxu0 0.0
  %52 = vmatpush.msra.mxu0 0.0
  %53 = vmatpush.msra.mxu0 %v40
  %54 = vmatpush.msra.mxu0 %v39
  %55 = vmatpush.msra.mxu0 %v38
  %56 = vmatpush.msra.mxu0 %v37
  %57 = vmatpush.msra.mxu0 %v36
  %58 = vmatpush.msra.mxu0 %v35
  %59 = vmatpush.msra.mxu0 %v34
  %60 = vmatpush.msra.mxu0 %v33
  %61 = vmatpush.msra.mxu0 %v32
  %62 = vmatpush.msra.mxu0 %v31
  %63 = vmatpush.msra.mxu0 %v30
  %64 = vmatpush.msra.mxu0 %v29
  %65 = vmatmul.f32.gmra.mxu0 %v47
  %v66 = vpop.f32.mrf.mxu0
  %v67 = vadd.f32 %v43, %v66
  %68 = vdwg.mxu0
  %v69 = vld [vmem:[%s3] sm:$0xff]
  %v70 = vld [vmem:[%s4] sm:$0xff]
  %v71 = vmul.f32 %v69, %v70
  %v72 = vsub.f32 1.0, %v69
  %v73 = vmul.f32 %v72, %v67
  %v74 = vadd.f32 %v71, %v73
  %vm75 = vcmask 130048
  %v76 = vsel %vm75, %v74, 0.0
  %77 = vadd.xlane.f32.xlu0 %v76
  %v78 = vpop.xlane.xlu0 %77
  %v79 = vrot.slane %v78, 4
  %v80 = vadd.f32 %v78, %v79
  %v81 = vrot.slane %v80, 2
  %v82 = vadd.f32 %v80, %v81
  %v83 = vrot.slane %v82, 1
  %v84 = vadd.f32 %v82, %v83
  %v85 = vmul.f32 %v84, 0.0078125
  %v86 = vsub.f32 %v74, %v85
  %v87 = vmul.f32 %v86, %v86
  %v88 = vsel %vm75, %v87, 0.0
  %89 = vadd.xlane.f32.xlu0 %v88
  %v90 = vpop.xlane.xlu0 %89
  %v91 = vrot.slane %v90, 4
  %v92 = vadd.f32 %v90, %v91
  %v93 = vrot.slane %v92, 2
  %v94 = vadd.f32 %v92, %v93
  %v95 = vrot.slane %v94, 1
  %v96 = vadd.f32 %v94, %v95
  %v97 = vmul.f32 %v96, 0.0078125
  %v98 = vadd.f32 %v97, 1e-05
  %v99 = vrsqrt.pop %v98
  %v100 = vmul.f32 %v99, %v98
  %v101 = vmul.f32 %v100, %v99
  %v102 = vmul.f32 0.5, %v101
  %v103 = vsub.f32 1.5, %v102
  %v104 = vmul.f32 %v99, %v103
  %vm105 = vweird.f32 %v98
  %vm106 = vweird.f32 %v99
  %vm107 = vmor %vm105, %vm106
  %v108 = vsel %vm107, %v99, %v104
  %v109 = vmul.f32 %v86, %v108
  %v110 = vmul.f32 %v109, %v26
  %v111 = vadd.f32 %v110, %v27
  %112 = vst.msk [vmem:[%s7] sm:$0xff] %vm75, %v111
  %v113 = vld [vmem:[%s0 + $0x8] sm:$0xff]
  %v114 = vld [vmem:[%s1] sm:$0xff]
  %v115 = vld [vmem:[%s1 + $0x8] sm:$0xff]
  %v116 = vld [vmem:[%s1 + $0x10] sm:$0xff]
  %v117 = vld [vmem:[%s1 + $0x18] sm:$0xff]
  %v118 = vld [vmem:[%s1 + $0x20] sm:$0xff]
  %v119 = vld [vmem:[%s1 + $0x28] sm:$0xff]
  %v120 = vld [vmem:[%s1 + $0x30] sm:$0xff]
  %v121 = vld [vmem:[%s1 + $0x38] sm:$0xff]
  %v122 = vld [vmem:[%s1 + $0x40] sm:$0xff]
  %v123 = vld [vmem:[%s1 + $0x48] sm:$0xff]
  %v124 = vld [vmem:[%s1 + $0x50] sm:$0xff]
  %v125 = vld [vmem:[%s1 + $0x58] sm:$0xff]
  %v126 = vld [vmem:[%s2] sm:$0x1]
  %v128 = vperm.slane %v126, 0
  %v131 = vsel %vm45, %v113, 0
  %133 = vmatpush.msra.mxu0 0.0
  %134 = vmatpush.msra.mxu0 0.0
  %135 = vmatpush.msra.mxu0 0.0
  %136 = vmatpush.msra.mxu0 0.0
  %137 = vmatpush.msra.mxu0 %v125
  %138 = vmatpush.msra.mxu0 %v124
  %139 = vmatpush.msra.mxu0 %v123
  %140 = vmatpush.msra.mxu0 %v122
  %141 = vmatpush.msra.mxu0 %v121
  %142 = vmatpush.msra.mxu0 %v120
  %143 = vmatpush.msra.mxu0 %v119
  %144 = vmatpush.msra.mxu0 %v118
  %145 = vmatpush.msra.mxu0 %v117
  %146 = vmatpush.msra.mxu0 %v116
  %147 = vmatpush.msra.mxu0 %v115
  %148 = vmatpush.msra.mxu0 %v114
  %149 = vmatmul.f32.gmra.mxu0 %v131
  %v150 = vpop.f32.mrf.mxu0
  %v151 = vadd.f32 %v128, %v150
  %152 = vdwg.mxu0
  %s153 = scalar_lea.vmem %s3, 8
  %v154 = vld [vmem:[%s153] sm:$0xff]
  %s155 = scalar_lea.vmem %s4, 8
  %v156 = vld [vmem:[%s155] sm:$0xff]
  %v157 = vmul.f32 %v154, %v156
  %v158 = vsub.f32 1.0, %v154
  %v159 = vmul.f32 %v158, %v151
  %v160 = vadd.f32 %v157, %v159
  %v161 = vsel %vm75, %v160, 0.0
  %162 = vadd.xlane.f32.xlu0 %v161
  %v163 = vpop.xlane.xlu0 %162
  %v164 = vrot.slane %v163, 4
  %v165 = vadd.f32 %v163, %v164
  %v166 = vrot.slane %v165, 2
  %v167 = vadd.f32 %v165, %v166
  %v168 = vrot.slane %v167, 1
  %v169 = vadd.f32 %v167, %v168
  %v170 = vmul.f32 %v169, 0.0078125
  %v171 = vsub.f32 %v160, %v170
  %v172 = vmul.f32 %v171, %v171
  %v173 = vsel %vm75, %v172, 0.0
  %174 = vadd.xlane.f32.xlu0 %v173
  %v175 = vpop.xlane.xlu0 %174
  %v176 = vrot.slane %v175, 4
  %v177 = vadd.f32 %v175, %v176
  %v178 = vrot.slane %v177, 2
  %v179 = vadd.f32 %v177, %v178
  %v180 = vrot.slane %v179, 1
  %v181 = vadd.f32 %v179, %v180
  %v182 = vmul.f32 %v181, 0.0078125
  %v183 = vadd.f32 %v182, 1e-05
  %v184 = vrsqrt.pop %v183
  %v185 = vmul.f32 %v184, %v183
  %v186 = vmul.f32 %v185, %v184
  %v187 = vmul.f32 0.5, %v186
  %v188 = vsub.f32 1.5, %v187
  %v189 = vmul.f32 %v184, %v188
  %vm190 = vweird.f32 %v183
  %vm191 = vweird.f32 %v184
  %vm192 = vmor %vm190, %vm191
  %v193 = vsel %vm192, %v184, %v189
  %v194 = vmul.f32 %v171, %v193
  %v195 = vmul.f32 %v194, %v26
  %v196 = vadd.f32 %v195, %v27
  %s197 = scalar_lea.vmem %s7, 8
  %198 = vst.msk [vmem:[%s197] sm:$0xff] %vm75, %v196
  // Predicated region
  $region30: #{decoder_forward.11} parent=0 // pred_check
    _
  $region31: #{decoder_forward.11} parent=0 // pred_check_branch
    %200 = sbr.rel (0) target = $region33
  $region32: #{decoder_forward.11} parent=0 // pred_region
    _
  $region33: #{decoder_forward.11} parent=0 // pred_fallthru
    _
  // Predicated region
  $region34: #{decoder_forward.11} parent=0 // pred_check
    _
  $region35: #{decoder_forward.11} parent=0 // pred_check_branch
    %202 = sbr.rel (0) target = $region37
  $region36: #{decoder_forward.11} parent=0 // pred_region
    _
  $region37: #{decoder_forward.11} parent=0 // pred_fallthru
    _

// kernel: decoder_forward.10
$region0: #{decoder_forward.10}
  #allocation0 [shape = 'u32[]', space=smem, size = 0x4, offset = 0x4, fixed_abs, tag = 'smem constant byte address 0x4 - core index']
  #allocation1 [shape = 'u32[72,128]{1,0:T(1,128)}', space=vmem, size = 0x9000, scoped, tag = 'internal scratch']
  #allocation2 [shape = 'f32[8,32]{1,0:T(8,128)}', space=vmem, size = 0x1000, scoped, tag = 'scratch operand']
  %s0 = inlined_call_operand.vmem [shape: f32[16,96], index: 0, kind: input, shape index: {}]
  %s1 = inlined_call_operand.vmem [shape: f32[96,32], index: 1, kind: input, shape index: {}]
  %s2 = inlined_call_operand.vmem [shape: f32[1,32], index: 2, kind: input, shape index: {}]
  %s3 = inlined_call_operand.vmem [shape: f32[2,8,16], index: 3, kind: input, shape index: {}]
  %s4 = inlined_call_operand.vmem [shape: f32[2,8,16], index: 4, kind: input, shape index: {}]
  %s5 = inlined_call_operand.vmem [shape: f32[4,8,8], index: 5, kind: input, shape index: {}]
  %s6 = inlined_call_operand.vmem [shape: f32[4,32,32], index: 6, kind: input, shape index: {}]
  %s7 = inlined_call_operand.vmem [shape: f32[1,32], index: 7, kind: input, shape index: {}]
  %s8 = inlined_call_operand.vmem [shape: f32[2,8,16], index: 8, kind: output, shape index: {0}]
  %s9 = inlined_call_operand.vmem [shape: f32[16,96], index: 9, kind: output, shape index: {1}]
  %10 = xla_tuple %s8, %s9
  %s11 = sld [smem:[#allocation0]]
  $region50: #{decoder_forward.10} parent=0
    _
  %s13 = ssub.s32 1, %s11
  %s14 = scalar_select 0, %s13, %s11
  // Predicated region
  $region2: #{decoder_forward.10} parent=0 // pred_check
    _
  $region3: #{decoder_forward.10} parent=0 // pred_check_branch
    %16 = sbr.rel (0) target = $region5
  $region4: #{decoder_forward.10} parent=0 // pred_region
    _
  $region5: #{decoder_forward.10} parent=0 // pred_fallthru
    _
  // Predicated region
  $region6: #{decoder_forward.10} parent=0 // pred_check
    _
  $region7: #{decoder_forward.10} parent=0 // pred_check_branch
    %18 = sbr.rel (0) target = $region9
  $region8: #{decoder_forward.10} parent=0 // pred_region
    _
  $region9: #{decoder_forward.10} parent=0 // pred_fallthru
    _
  // Predicated region
  $region10: #{decoder_forward.10} parent=0 // pred_check
    _
  $region11: #{decoder_forward.10} parent=0 // pred_check_branch
    %20 = sbr.rel (0) target = $region13
  $region12: #{decoder_forward.10} parent=0 // pred_region
    _
  $region13: #{decoder_forward.10} parent=0 // pred_fallthru
    _
  // Predicated region
  $region14: #{decoder_forward.10} parent=0 // pred_check
    _
  $region15: #{decoder_forward.10} parent=0 // pred_check_branch
    %22 = sbr.rel (0) target = $region17
  $region16: #{decoder_forward.10} parent=0 // pred_region
    _
  $region17: #{decoder_forward.10} parent=0 // pred_fallthru
    _
  // Predicated region
  $region18: #{decoder_forward.10} parent=0 // pred_check
    _
  $region19: #{decoder_forward.10} parent=0 // pred_check_branch
    %24 = sbr.rel (0) target = $region21
  $region20: #{decoder_forward.10} parent=0 // pred_region
    _
  $region21: #{decoder_forward.10} parent=0 // pred_fallthru
    _
  // Predicated region
  $region22: #{decoder_forward.10} parent=0 // pred_check
    _
  $region23: #{decoder_forward.10} parent=0 // pred_check_branch
    %26 = sbr.rel (0) target = $region25
  $region24: #{decoder_forward.10} parent=0 // pred_region
    _
  $region25: #{decoder_forward.10} parent=0 // pred_fallthru
    _
  // Predicated region
  $region26: #{decoder_forward.10} parent=0 // pred_check
    _
  $region27: #{decoder_forward.10} parent=0 // pred_check_branch
    %28 = sbr.rel (0) target = $region29
  $region28: #{decoder_forward.10} parent=0 // pred_region
    _
  $region29: #{decoder_forward.10} parent=0 // pred_fallthru
    _
  // Predicated region
  $region30: #{decoder_forward.10} parent=0 // pred_check
    _
  $region31: #{decoder_forward.10} parent=0 // pred_check_branch
    %30 = sbr.rel (0) target = $region33
  $region32: #{decoder_forward.10} parent=0 // pred_region
    _
  $region33: #{decoder_forward.10} parent=0 // pred_fallthru
    _
  %v31 = vld [vmem:[%s0] sm:$0xff]
  %v32 = vld [vmem:[%s1] sm:$0xff]
  %v33 = vld [vmem:[%s1 + $0x8] sm:$0xff]
  %v34 = vld [vmem:[%s1 + $0x10] sm:$0xff]
  %v35 = vld [vmem:[%s1 + $0x18] sm:$0xff]
  %v36 = vld [vmem:[%s1 + $0x20] sm:$0xff]
  %v37 = vld [vmem:[%s1 + $0x28] sm:$0xff]
  %v38 = vld [vmem:[%s1 + $0x30] sm:$0xff]
  %v39 = vld [vmem:[%s1 + $0x38] sm:$0xff]
  %v40 = vld [vmem:[%s1 + $0x40] sm:$0xff]
  %v41 = vld [vmem:[%s1 + $0x48] sm:$0xff]
  %v42 = vld [vmem:[%s1 + $0x50] sm:$0xff]
  %v43 = vld [vmem:[%s1 + $0x58] sm:$0xff]
  %v44 = vld [vmem:[%s2] sm:$0x1]
  %v46 = vperm.slane %v44, 0
  %vm48 = vcmask 785408
  %v50 = vsel %vm48, %v31, 0
  %52 = vmatpush.msra.mxu0 0.0
  %53 = vmatpush.msra.mxu0 0.0
  %54 = vmatpush.msra.mxu0 0.0
  %55 = vmatpush.msra.mxu0 0.0
  %56 = vmatpush.msra.mxu0 %v43
  %57 = vmatpush.msra.mxu0 %v42
  %58 = vmatpush.msra.mxu0 %v41
  %59 = vmatpush.msra.mxu0 %v40
  %60 = vmatpush.msra.mxu0 %v39
  %61 = vmatpush.msra.mxu0 %v38
  %62 = vmatpush.msra.mxu0 %v37
  %63 = vmatpush.msra.mxu0 %v36
  %64 = vmatpush.msra.mxu0 %v35
  %65 = vmatpush.msra.mxu0 %v34
  %66 = vmatpush.msra.mxu0 %v33
  %67 = vmatpush.msra.mxu0 %v32
  %68 = vmatmul.f32.gmra.mxu0 %v50
  %v69 = vpop.f32.mrf.mxu0
  %v70 = vadd.f32 %v46, %v69
  %71 = vdwg.mxu0
  %v72 = vxor.u32 %v70, 2147483648
  %v73 = vmul.f32 %v72, 1.442695
  %v74 = vpow.pop %v73
  %v75 = vadd.f32 %v74, 1.0
  %v76 = vrcp.pop %v75
  %v77 = vmul.f32 %v75, %v76
  %v78 = vsub.f32 1.0, %v77
  %v79 = vmul.f32 %v76, %v78
  %v80 = vadd.f32 %v76, %v79
  %vm81 = vweird.f32 %v75
  %vm82 = vweird.f32 %v76
  %vm83 = vmor %vm81, %vm82
  %v84 = vsel %vm83, %v76, %v80
  %v85 = vand.u32 2147483647, %v75
  %vm86 = vcmp.eq.f32.partialorder %v85, 8.507059e+37
  %v87 = vand.u32 %v75, 2147483648
  %v88 = vor.u32 1.1754944e-38, %v87
  %v89 = vsel %vm86, %v88, %v84
  %v90 = vmul.f32 1.0, %v89
  %92 = vrot.lane.b32.xlu0 %v90, 112
  %v93 = vpop.permute.xlu0 %92
  %vm95 = vcmask 130048
  %96 = vst.msk [vmem:[%s8] sm:$0xff] %vm95, %v93
  %v97 = vld [vmem:[%s3] sm:$0xff]
  %98 = vst.msk [vmem:[#allocation2] sm:$0xff] %vm95, %v97
  %v99 = vld [vmem:[%s4] sm:$0xff]
  %v100 = vmul.f32 %v90, %v99
  %102 = vrot.lane.b32.xlu0 %v100, 16
  %v103 = vpop.permute.xlu0 %102
  %vm105 = vcmask 261248
  %106 = vst.msk [vmem:[#allocation2] sm:$0xff] %vm105, %v103
  %v107 = vld [vmem:[#allocation2] sm:$0xff]
  %vm108 = vcmask 261120
  %109 = vst.msk [vmem:[%s9] sm:$0xff] %vm108, %v107
  %v110 = vld [vmem:[%s5] sm:$0xff]
  %vm111 = vcmask 64512
  %v113 = vsel %vm111, %v110, 0
  %115 = vmatpush.msra.mxu0 0.0
  %116 = vmatpush.msra.mxu0 0.0
  %117 = vmatpush.msra.mxu0 0.0
  %118 = vmatpush.msra.mxu0 0.0
  %119 = vmatpush.msra.mxu0 0.0
  %120 = vmatpush.msra.mxu0 0.0
  %121 = vmatpush.msra.mxu0 0.0
  %122 = vmatpush.msra.mxu0 0.0
  %123 = vmatpush.msra.mxu0 0.0
  %124 = vmatpush.msra.mxu0 0.0
  %125 = vmatpush.msra.mxu0 0.0
  %126 = vmatpush.msra.mxu0 0.0
  %127 = vmatpush.msra.mxu0 0.0
  %128 = vmatpush.msra.mxu0 0.0
  %129 = vmatpush.msra.mxu0 0.0
  %130 = vmatpush.msra.mxu0 %v107
  %131 = vmatmul.f32.gmra.mxu0 %v113
  %v132 = vpop.f32.mrf.mxu0
  %v133 = vadd.f32 0.0, %v132
  %134 = vdwg.mxu0
  %v135 = vld [vmem:[%s6] sm:$0xff]
  %v136 = vld [vmem:[%s6 + $0x8] sm:$0xff]
  %v137 = vld [vmem:[%s6 + $0x10] sm:$0xff]
  %v138 = vld [vmem:[%s6 + $0x18] sm:$0xff]
  %s139 = scalar_lea.vmem %s5, 8
  %v140 = vld [vmem:[%s139] sm:$0xff]
  %v142 = vsel %vm111, %v140, 0
  %144 = vmatpush.msra.mxu0 0.0
  %145 = vmatpush.msra.mxu0 0.0
  %146 = vmatpush.msra.mxu0 0.0
  %147 = vmatpush.msra.mxu0 0.0
  %148 = vmatpush.msra.mxu0 0.0
  %149 = vmatpush.msra.mxu0 0.0
  %150 = vmatpush.msra.mxu0 0.0
  %151 = vmatpush.msra.mxu0 0.0
  %152 = vmatpush.msra.mxu0 0.0
  %153 = vmatpush.msra.mxu0 0.0
  %154 = vmatpush.msra.mxu0 0.0
  %155 = vmatpush.msra.mxu0 0.0
  %156 = vmatpush.msra.mxu0 0.0
  %157 = vmatpush.msra.mxu0 0.0
  %158 = vmatpush.msra.mxu0 0.0
  %159 = vmatpush.msra.mxu0 %v107
  %160 = vmatmul.f32.gmra.mxu0 %v142
  %v161 = vpop.f32.mrf.mxu0
  %v162 = vadd.f32 0.0, %v161
  %163 = vdwg.mxu0
  %s164 = scalar_lea.vmem %s6, 32
  %v165 = vld [vmem:[%s164] sm:$0xff]
  %v166 = vld [vmem:[%s164 + $0x8] sm:$0xff]
  %v167 = vld [vmem:[%s164 + $0x10] sm:$0xff]
  %v168 = vld [vmem:[%s164 + $0x18] sm:$0xff]
  %v170 = vsel %vm108, %v162, 0
  %172 = vmatpush.msra.mxu0 0.0
  %173 = vmatpush.msra.mxu0 0.0
  %174 = vmatpush.msra.mxu0 0.0
  %175 = vmatpush.msra.mxu0 0.0
  %176 = vmatpush.msra.mxu0 0.0
  %177 = vmatpush.msra.mxu0 0.0
  %178 = vmatpush.msra.mxu0 0.0
  %179 = vmatpush.msra.mxu0 0.0
  %180 = vmatpush.msra.mxu0 0.0
  %181 = vmatpush.msra.mxu0 0.0
  %182 = vmatpush.msra.mxu0 0.0
  %183 = vmatpush.msra.mxu0 0.0
  %184 = vmatpush.msra.mxu0 %v168
  %185 = vmatpush.msra.mxu0 %v167
  %186 = vmatpush.msra.mxu0 %v166
  %187 = vmatpush.msra.mxu0 %v165
  %188 = vmatmul.f32.gmra.mxu0 %v170
  %v189 = vpop.f32.mrf.mxu0
  %v190 = vadd.f32 0.0, %v189
  %191 = vdwg.mxu0
  %v193 = vsel %vm108, %v133, 0
  %195 = vmatpush.msra.mxu0 0.0
  %196 = vmatpush.msra.mxu0 0.0
  %197 = vmatpush.msra.mxu0 0.0
  %198 = vmatpush.msra.mxu0 0.0
  %199 = vmatpush.msra.mxu0 0.0
  %200 = vmatpush.msra.mxu0 0.0
  %201 = vmatpush.msra.mxu0 0.0
  %202 = vmatpush.msra.mxu0 0.0
  %203 = vmatpush.msra.mxu0 0.0
  %204 = vmatpush.msra.mxu0 0.0
  %205 = vmatpush.msra.mxu0 0.0
  %206 = vmatpush.msra.mxu0 0.0
  %207 = vmatpush.msra.mxu0 %v138
  %208 = vmatpush.msra.mxu0 %v137
  %209 = vmatpush.msra.mxu0 %v136
  %210 = vmatpush.msra.mxu0 %v135
  %211 = vmatmul.f32.gmra.mxu0 %v193
  %v212 = vpop.f32.mrf.mxu0
  %v213 = vadd.f32 %v190, %v212
  %214 = vdwg.mxu0
  %s215 = scalar_lea.vmem %s5, 16
  %v216 = vld [vmem:[%s215] sm:$0xff]
  %v218 = vsel %vm111, %v216, 0
  %220 = vmatpush.msra.mxu0 0.0
  %221 = vmatpush.msra.mxu0 0.0
  %222 = vmatpush.msra.mxu0 0.0
  %223 = vmatpush.msra.mxu0 0.0
  %224 = vmatpush.msra.mxu0 0.0
  %225 = vmatpush.msra.mxu0 0.0
  %226 = vmatpush.msra.mxu0 0.0
  %227 = vmatpush.msra.mxu0 0.0
  %228 = vmatpush.msra.mxu0 0.0
  %229 = vmatpush.msra.mxu0 0.0
  %230 = vmatpush.msra.mxu0 0.0
  %231 = vmatpush.msra.mxu0 0.0
  %232 = vmatpush.msra.mxu0 0.0
  %233 = vmatpush.msra.mxu0 0.0
  %234 = vmatpush.msra.mxu0 0.0
  %235 = vmatpush.msra.mxu0 %v107
  %236 = vmatmul.f32.gmra.mxu0 %v218
  %v237 = vpop.f32.mrf.mxu0
  %v238 = vadd.f32 0.0, %v237
  %239 = vdwg.mxu0
  %s240 = scalar_lea.vmem %s6, 64
  %v241 = vld [vmem:[%s240] sm:$0xff]
  %v242 = vld [vmem:[%s240 + $0x8] sm:$0xff]
  %v243 = vld [vmem:[%s240 + $0x10] sm:$0xff]
  %v244 = vld [vmem:[%s240 + $0x18] sm:$0xff]
  %v246 = vsel %vm108, %v238, 0
  %248 = vmatpush.msra.mxu0 0.0
  %249 = vmatpush.msra.mxu0 0.0
  %250 = vmatpush.msra.mxu0 0.0
  %251 = vmatpush.msra.mxu0 0.0
  %252 = vmatpush.msra.mxu0 0.0
  %253 = vmatpush.msra.mxu0 0.0
  %254 = vmatpush.msra.mxu0 0.0
  %255 = vmatpush.msra.mxu0 0.0
  %256 = vmatpush.msra.mxu0 0.0
  %257 = vmatpush.msra.mxu0 0.0
  %258 = vmatpush.msra.mxu0 0.0
  %259 = vmatpush.msra.mxu0 0.0
  %260 = vmatpush.msra.mxu0 %v244
  %261 = vmatpush.msra.mxu0 %v243
  %262 = vmatpush.msra.mxu0 %v242
  %263 = vmatpush.msra.mxu0 %v241
  %264 = vmatmul.f32.gmra.mxu0 %v246
  %v265 = vpop.f32.mrf.mxu0
  %v266 = vadd.f32 0.0, %v265
  %267 = vdwg.mxu0
  %v268 = vadd.f32 %v213, %v266
  %s269 = scalar_lea.vmem %s5, 24
  %v270 = vld [vmem:[%s269] sm:$0xff]
  %v272 = vsel %vm111, %v270, 0
  %274 = vmatpush.msra.mxu0 0.0
  %275 = vmatpush.msra.mxu0 0.0
  %276 = vmatpush.msra.mxu0 0.0
  %277 = vmatpush.msra.mxu0 0.0
  %278 = vmatpush.msra.mxu0 0.0
  %279 = vmatpush.msra.mxu0 0.0
  %280 = vmatpush.msra.mxu0 0.0
  %281 = vmatpush.msra.mxu0 0.0
  %282 = vmatpush.msra.mxu0 0.0
  %283 = vmatpush.msra.mxu0 0.0
  %284 = vmatpush.msra.mxu0 0.0
  %285 = vmatpush.msra.mxu0 0.0
  %286 = vmatpush.msra.mxu0 0.0
  %287 = vmatpush.msra.mxu0 0.0
  %288 = vmatpush.msra.mxu0 0.0
  %289 = vmatpush.msra.mxu0 %v107
  %290 = vmatmul.f32.gmra.mxu0 %v272
  %v291 = vpop.f32.mrf.mxu0
  %v292 = vadd.f32 0.0, %v291
  %293 = vdwg.mxu0
  %s294 = scalar_lea.vmem %s6, 96
  %v295 = vld [vmem:[%s294] sm:$0xff]
  %v296 = vld [vmem:[%s294 + $0x8] sm:$0xff]
  %v297 = vld [vmem:[%s294 + $0x10] sm:$0xff]
  %v298 = vld [vmem:[%s294 + $0x18] sm:$0xff]
  %v300 = vsel %vm108, %v292, 0
  %302 = vmatpush.msra.mxu0 0.0
  %303 = vmatpush.msra.mxu0 0.0
  %304 = vmatpush.msra.mxu0 0.0
  %305 = vmatpush.msra.mxu0 0.0
  %306 = vmatpush.msra.mxu0 0.0
  %307 = vmatpush.msra.mxu0 0.0
  %308 = vmatpush.msra.mxu0 0.0
  %309 = vmatpush.msra.mxu0 0.0
  %310 = vmatpush.msra.mxu0 0.0
  %311 = vmatpush.msra.mxu0 0.0
  %312 = vmatpush.msra.mxu0 0.0
  %313 = vmatpush.msra.mxu0 0.0
  %314 = vmatpush.msra.mxu0 %v298
  %315 = vmatpush.msra.mxu0 %v297
  %316 = vmatpush.msra.mxu0 %v296
  %317 = vmatpush.msra.mxu0 %v295
  %318 = vmatmul.f32.gmra.mxu0 %v300
  %v319 = vpop.f32.mrf.mxu0
  %v320 = vadd.f32 0.0, %v319
  %321 = vdwg.mxu0
  %v322 = vadd.f32 %v268, %v320
  %v323 = vld [vmem:[%s7] sm:$0x1]
  %v325 = vperm.slane %v323, 0
  %v327 = vadd.f32 %v322, %v325
  %329 = vrot.lane.b32.xlu0 %v327, 32
  %v330 = vpop.permute.xlu0 %329
  %vm332 = vcmask 523520
  %333 = vst.msk [vmem:[%s9] sm:$0xff] %vm332, %v330
  %v334 = vld [vmem:[%s5] sm:$0xff]
  %v336 = vsel %vm111, %v334, 0
  %338 = vmatpush.msra.mxu0 0.0
  %339 = vmatpush.msra.mxu0 0.0
  %340 = vmatpush.msra.mxu0 0.0
  %341 = vmatpush.msra.mxu0 0.0
  %342 = vmatpush.msra.mxu0 0.0
  %343 = vmatpush.msra.mxu0 0.0
  %344 = vmatpush.msra.mxu0 0.0
  %345 = vmatpush.msra.mxu0 0.0
  %346 = vmatpush.msra.mxu0 0.0
  %347 = vmatpush.msra.mxu0 0.0
  %348 = vmatpush.msra.mxu0 0.0
  %349 = vmatpush.msra.mxu0 0.0
  %350 = vmatpush.msra.mxu0 0.0
  %351 = vmatpush.msra.mxu0 0.0
  %352 = vmatpush.msra.mxu0 0.0
  %353 = vmatpush.msra.mxu0 %v327
  %354 = vmatmul.f32.gmra.mxu0 %v336
  %v355 = vpop.f32.mrf.mxu0
  %v356 = vadd.f32 0.0, %v355
  %357 = vdwg.mxu0
  %v358 = vld [vmem:[%s6] sm:$0xff]
  %v359 = vld [vmem:[%s6 + $0x8] sm:$0xff]
  %v360 = vld [vmem:[%s6 + $0x10] sm:$0xff]
  %v361 = vld [vmem:[%s6 + $0x18] sm:$0xff]
  %v362 = vld [vmem:[%s139] sm:$0xff]
  %v364 = vsel %vm111, %v362, 0
  %366 = vmatpush.msra.mxu0 0.0
  %367 = vmatpush.msra.mxu0 0.0
  %368 = vmatpush.msra.mxu0 0.0
  %369 = vmatpush.msra.mxu0 0.0
  %370 = vmatpush.msra.mxu0 0.0
  %371 = vmatpush.msra.mxu0 0.0
  %372 = vmatpush.msra.mxu0 0.0
  %373 = vmatpush.msra.mxu0 0.0
  %374 = vmatpush.msra.mxu0 0.0
  %375 = vmatpush.msra.mxu0 0.0
  %376 = vmatpush.msra.mxu0 0.0
  %377 = vmatpush.msra.mxu0 0.0
  %378 = vmatpush.msra.mxu0 0.0
  %379 = vmatpush.msra.mxu0 0.0
  %380 = vmatpush.msra.mxu0 0.0
  %381 = vmatpush.msra.mxu0 %v327
  %382 = vmatmul.f32.gmra.mxu0 %v364
  %v383 = vpop.f32.mrf.mxu0
  %v384 = vadd.f32 0.0, %v383
  %385 = vdwg.mxu0
  %v386 = vld [vmem:[%s164] sm:$0xff]
  %v387 = vld [vmem:[%s164 + $0x8] sm:$0xff]
  %v388 = vld [vmem:[%s164 + $0x10] sm:$0xff]
  %v389 = vld [vmem:[%s164 + $0x18] sm:$0xff]
  %v391 = vsel %vm108, %v384, 0
  %393 = vmatpush.msra.mxu0 0.0
  %394 = vmatpush.msra.mxu0 0.0
  %395 = vmatpush.msra.mxu0 0.0
  %396 = vmatpush.msra.mxu0 0.0
  %397 = vmatpush.msra.mxu0 0.0
  %398 = vmatpush.msra.mxu0 0.0
  %399 = vmatpush.msra.mxu0 0.0
  %400 = vmatpush.msra.mxu0 0.0
  %401 = vmatpush.msra.mxu0 0.0
  %402 = vmatpush.msra.mxu0 0.0
  %403 = vmatpush.msra.mxu0 0.0
  %404 = vmatpush.msra.mxu0 0.0
  %405 = vmatpush.msra.mxu0 %v389
  %406 = vmatpush.msra.mxu0 %v388
  %407 = vmatpush.msra.mxu0 %v387
  %408 = vmatpush.msra.mxu0 %v386
  %409 = vmatmul.f32.gmra.mxu0 %v391
  %v410 = vpop.f32.mrf.mxu0
  %v411 = vadd.f32 0.0, %v410
  %412 = vdwg.mxu0
  %v414 = vsel %vm108, %v356, 0
  %416 = vmatpush.msra.mxu0 0.0
  %417 = vmatpush.msra.mxu0 0.0
  %418 = vmatpush.msra.mxu0 0.0
  %419 = vmatpush.msra.mxu0 0.0
  %420 = vmatpush.msra.mxu0 0.0
  %421 = vmatpush.msra.mxu0 0.0
  %422 = vmatpush.msra.mxu0 0.0
  %423 = vmatpush.msra.mxu0 0.0
  %424 = vmatpush.msra.mxu0 0.0
  %425 = vmatpush.msra.mxu0 0.0
  %426 = vmatpush.msra.mxu0 0.0
  %427 = vmatpush.msra.mxu0 0.0
  %428 = vmatpush.msra.mxu0 %v361
  %429 = vmatpush.msra.mxu0 %v360
  %430 = vmatpush.msra.mxu0 %v359
  %431 = vmatpush.msra.mxu0 %v358
  %432 = vmatmul.f32.gmra.mxu0 %v414
  %v433 = vpop.f32.mrf.mxu0
  %v434 = vadd.f32 %v411, %v433
  %435 = vdwg.mxu0
  %v436 = vld [vmem:[%s215] sm:$0xff]
  %v438 = vsel %vm111, %v436, 0
  %440 = vmatpush.msra.mxu0 0.0
  %441 = vmatpush.msra.mxu0 0.0
  %442 = vmatpush.msra.mxu0 0.0
  %443 = vmatpush.msra.mxu0 0.0
  %444 = vmatpush.msra.mxu0 0.0
  %445 = vmatpush.msra.mxu0 0.0
  %446 = vmatpush.msra.mxu0 0.0
  %447 = vmatpush.msra.mxu0 0.0
  %448 = vmatpush.msra.mxu0 0.0
  %449 = vmatpush.msra.mxu0 0.0
  %450 = vmatpush.msra.mxu0 0.0
  %451 = vmatpush.msra.mxu0 0.0
  %452 = vmatpush.msra.mxu0 0.0
  %453 = vmatpush.msra.mxu0 0.0
  %454 = vmatpush.msra.mxu0 0.0
  %455 = vmatpush.msra.mxu0 %v327
  %456 = vmatmul.f32.gmra.mxu0 %v438
  %v457 = vpop.f32.mrf.mxu0
  %v458 = vadd.f32 0.0, %v457
  %459 = vdwg.mxu0
  %v460 = vld [vmem:[%s240] sm:$0xff]
  %v461 = vld [vmem:[%s240 + $0x8] sm:$0xff]
  %v462 = vld [vmem:[%s240 + $0x10] sm:$0xff]
  %v463 = vld [vmem:[%s240 + $0x18] sm:$0xff]
  %v465 = vsel %vm108, %v458, 0
  %467 = vmatpush.msra.mxu0 0.0
  %468 = vmatpush.msra.mxu0 0.0
  %469 = vmatpush.msra.mxu0 0.0
  %470 = vmatpush.msra.mxu0 0.0
  %471 = vmatpush.msra.mxu0 0.0
  %472 = vmatpush.msra.mxu0 0.0
  %473 = vmatpush.msra.mxu0 0.0
  %474 = vmatpush.msra.mxu0 0.0
  %475 = vmatpush.msra.mxu0 0.0
  %476 = vmatpush.msra.mxu0 0.0
  %477 = vmatpush.msra.mxu0 0.0
  %478 = vmatpush.msra.mxu0 0.0
  %479 = vmatpush.msra.mxu0 %v463
  %480 = vmatpush.msra.mxu0 %v462
  %481 = vmatpush.msra.mxu0 %v461
  %482 = vmatpush.msra.mxu0 %v460
  %483 = vmatmul.f32.gmra.mxu0 %v465
  %v484 = vpop.f32.mrf.mxu0
  %v485 = vadd.f32 0.0, %v484
  %486 = vdwg.mxu0
  %v487 = vadd.f32 %v434, %v485
  %v488 = vld [vmem:[%s269] sm:$0xff]
  %v490 = vsel %vm111, %v488, 0
  %492 = vmatpush.msra.mxu0 0.0
  %493 = vmatpush.msra.mxu0 0.0
  %494 = vmatpush.msra.mxu0 0.0
  %495 = vmatpush.msra.mxu0 0.0
  %496 = vmatpush.msra.mxu0 0.0
  %497 = vmatpush.msra.mxu0 0.0
  %498 = vmatpush.msra.mxu0 0.0
  %499 = vmatpush.msra.mxu0 0.0
  %500 = vmatpush.msra.mxu0 0.0
  %501 = vmatpush.msra.mxu0 0.0
  %502 = vmatpush.msra.mxu0 0.0
  %503 = vmatpush.msra.mxu0 0.0
  %504 = vmatpush.msra.mxu0 0.0
  %505 = vmatpush.msra.mxu0 0.0
  %506 = vmatpush.msra.mxu0 0.0
  %507 = vmatpush.msra.mxu0 %v327
  %508 = vmatmul.f32.gmra.mxu0 %v490
  %v509 = vpop.f32.mrf.mxu0
  %v510 = vadd.f32 0.0, %v509
  %511 = vdwg.mxu0
  %v512 = vld [vmem:[%s294] sm:$0xff]
  %v513 = vld [vmem:[%s294 + $0x8] sm:$0xff]
  %v514 = vld [vmem:[%s294 + $0x10] sm:$0xff]
  %v515 = vld [vmem:[%s294 + $0x18] sm:$0xff]
  %v517 = vsel %vm108, %v510, 0
  %519 = vmatpush.msra.mxu0 0.0
  %520 = vmatpush.msra.mxu0 0.0
  %521 = vmatpush.msra.mxu0 0.0
  %522 = vmatpush.msra.mxu0 0.0
  %523 = vmatpush.msra.mxu0 0.0
  %524 = vmatpush.msra.mxu0 0.0
  %525 = vmatpush.msra.mxu0 0.0
  %526 = vmatpush.msra.mxu0 0.0
  %527 = vmatpush.msra.mxu0 0.0
  %528 = vmatpush.msra.mxu0 0.0
  %529 = vmatpush.msra.mxu0 0.0
  %530 = vmatpush.msra.mxu0 0.0
  %531 = vmatpush.msra.mxu0 %v515
  %532 = vmatpush.msra.mxu0 %v514
  %533 = vmatpush.msra.mxu0 %v513
  %534 = vmatpush.msra.mxu0 %v512
  %535 = vmatmul.f32.gmra.mxu0 %v517
  %v536 = vpop.f32.mrf.mxu0
  %v537 = vadd.f32 0.0, %v536
  %538 = vdwg.mxu0
  %v539 = vadd.f32 %v487, %v537
  %v540 = vld [vmem:[%s7] sm:$0x1]
  %v542 = vperm.slane %v540, 0
  %v544 = vadd.f32 %v539, %v542
  %v545 = vmul.f32 %v544, 2.0
  %v546 = vsub.f32 %v545, %v107
  %548 = vrot.lane.b32.xlu0 %v546, 64
  %v549 = vpop.permute.xlu0 %548
  %vm551 = vcmask 785920
  %552 = vst.msk [vmem:[%s9] sm:$0xff] %vm551, %v549
  %v553 = vld [vmem:[%s0 + $0x8] sm:$0xff]
  %v554 = vld [vmem:[%s1] sm:$0xff]
  %v555 = vld [vmem:[%s1 + $0x8] sm:$0xff]
  %v556 = vld [vmem:[%s1 + $0x10] sm:$0xff]
  %v557 = vld [vmem:[%s1 + $0x18] sm:$0xff]
  %v558 = vld [vmem:[%s1 + $0x20] sm:$0xff]
  %v559 = vld [vmem:[%s1 + $0x28] sm:$0xff]
  %v560 = vld [vmem:[%s1 + $0x30] sm:$0xff]
  %v561 = vld [vmem:[%s1 + $0x38] sm:$0xff]
  %v562 = vld [vmem:[%s1 + $0x40] sm:$0xff]
  %v563 = vld [vmem:[%s1 + $0x48] sm:$0xff]
  %v564 = vld [vmem:[%s1 + $0x50] sm:$0xff]
  %v565 = vld [vmem:[%s1 + $0x58] sm:$0xff]
  %v566 = vld [vmem:[%s2] sm:$0x1]
  %v568 = vperm.slane %v566, 0
  %v571 = vsel %vm48, %v553, 0
  %573 = vmatpush.msra.mxu0 0.0
  %574 = vmatpush.msra.mxu0 0.0
  %575 = vmatpush.msra.mxu0 0.0
  %576 = vmatpush.msra.mxu0 0.0
  %577 = vmatpush.msra.mxu0 %v565
  %578 = vmatpush.msra.mxu0 %v564
  %579 = vmatpush.msra.mxu0 %v563
  %580 = vmatpush.msra.mxu0 %v562
  %581 = vmatpush.msra.mxu0 %v561
  %582 = vmatpush.msra.mxu0 %v560
  %583 = vmatpush.msra.mxu0 %v559
  %584 = vmatpush.msra.mxu0 %v558
  %585 = vmatpush.msra.mxu0 %v557
  %586 = vmatpush.msra.mxu0 %v556
  %587 = vmatpush.msra.mxu0 %v555
  %588 = vmatpush.msra.mxu0 %v554
  %589 = vmatmul.f32.gmra.mxu0 %v571
  %v590 = vpop.f32.mrf.mxu0
  %v591 = vadd.f32 %v568, %v590
  %592 = vdwg.mxu0
  %v593 = vxor.u32 %v591, 2147483648
  %v594 = vmul.f32 %v593, 1.442695
  %v595 = vpow.pop %v594
  %v596 = vadd.f32 %v595, 1.0
  %v597 = vrcp.pop %v596
  %v598 = vmul.f32 %v596, %v597
  %v599 = vsub.f32 1.0, %v598
  %v600 = vmul.f32 %v597, %v599
  %v601 = vadd.f32 %v597, %v600
  %vm602 = vweird.f32 %v596
  %vm603 = vweird.f32 %v597
  %vm604 = vmor %vm602, %vm603
  %v605 = vsel %vm604, %v597, %v601
  %v606 = vand.u32 2147483647, %v596
  %vm607 = vcmp.eq.f32.partialorder %v606, 8.507059e+37
  %v608 = vand.u32 %v596, 2147483648
  %v609 = vor.u32 1.1754944e-38, %v608
  %v610 = vsel %vm607, %v609, %v605
  %v611 = vmul.f32 1.0, %v610
  %613 = vrot.lane.b32.xlu0 %v611, 112
  %v614 = vpop.permute.xlu0 %613
  %s616 = scalar_lea.vmem %s8, 8
  %617 = vst.msk [vmem:[%s616] sm:$0xff] %vm95, %v614
  %s618 = scalar_lea.vmem %s3, 8
  %v619 = vld [vmem:[%s618] sm:$0xff]
  %620 = vst.msk [vmem:[#allocation2] sm:$0xff] %vm95, %v619
  %s621 = scalar_lea.vmem %s4, 8
  %v622 = vld [vmem:[%s621] sm:$0xff]
  %v623 = vmul.f32 %v611, %v622
  %625 = vrot.lane.b32.xlu0 %v623, 16
  %v626 = vpop.permute.xlu0 %625
  %628 = vst.msk [vmem:[#allocation2] sm:$0xff] %vm105, %v626
  %v629 = vld [vmem:[#allocation2] sm:$0xff]
  %630 = vst.msk [vmem:[%s9 + $0x8] sm:$0xff] %vm108, %v629
  %v631 = vld [vmem:[%s5] sm:$0xff]
  %v633 = vsel %vm111, %v631, 0
  %635 = vmatpush.msra.mxu0 0.0
  %636 = vmatpush.msra.mxu0 0.0
  %637 = vmatpush.msra.mxu0 0.0
  %638 = vmatpush.msra.mxu0 0.0
  %639 = vmatpush.msra.mxu0 0.0
  %640 = vmatpush.msra.mxu0 0.0
  %641 = vmatpush.msra.mxu0 0.0
  %642 = vmatpush.msra.mxu0 0.0
  %643 = vmatpush.msra.mxu0 0.0
  %644 = vmatpush.msra.mxu0 0.0
  %645 = vmatpush.msra.mxu0 0.0
  %646 = vmatpush.msra.mxu0 0.0
  %647 = vmatpush.msra.mxu0 0.0
  %648 = vmatpush.msra.mxu0 0.0
  %649 = vmatpush.msra.mxu0 0.0
  %650 = vmatpush.msra.mxu0 %v629
  %651 = vmatmul.f32.gmra.mxu0 %v633
  %v652 = vpop.f32.mrf.mxu0
  %v653 = vadd.f32 0.0, %v652
  %654 = vdwg.mxu0
  %v655 = vld [vmem:[%s6] sm:$0xff]
  %v656 = vld [vmem:[%s6 + $0x8] sm:$0xff]
  %v657 = vld [vmem:[%s6 + $0x10] sm:$0xff]
  %v658 = vld [vmem:[%s6 + $0x18] sm:$0xff]
  %v659 = vld [vmem:[%s139] sm:$0xff]
  %v661 = vsel %vm111, %v659, 0
  %663 = vmatpush.msra.mxu0 0.0
  %664 = vmatpush.msra.mxu0 0.0
  %665 = vmatpush.msra.mxu0 0.0
  %666 = vmatpush.msra.mxu0 0.0
  %667 = vmatpush.msra.mxu0 0.0
  %668 = vmatpush.msra.mxu0 0.0
  %669 = vmatpush.msra.mxu0 0.0
  %670 = vmatpush.msra.mxu0 0.0
  %671 = vmatpush.msra.mxu0 0.0
  %672 = vmatpush.msra.mxu0 0.0
  %673 = vmatpush.msra.mxu0 0.0
  %674 = vmatpush.msra.mxu0 0.0
  %675 = vmatpush.msra.mxu0 0.0
  %676 = vmatpush.msra.mxu0 0.0
  %677 = vmatpush.msra.mxu0 0.0
  %678 = vmatpush.msra.mxu0 %v629
  %679 = vmatmul.f32.gmra.mxu0 %v661
  %v680 = vpop.f32.mrf.mxu0
  %v681 = vadd.f32 0.0, %v680
  %682 = vdwg.mxu0
  %v683 = vld [vmem:[%s164] sm:$0xff]
  %v684 = vld [vmem:[%s164 + $0x8] sm:$0xff]
  %v685 = vld [vmem:[%s164 + $0x10] sm:$0xff]
  %v686 = vld [vmem:[%s164 + $0x18] sm:$0xff]
  %v688 = vsel %vm108, %v681, 0
  %690 = vmatpush.msra.mxu0 0.0
  %691 = vmatpush.msra.mxu0 0.0
  %692 = vmatpush.msra.mxu0 0.0
  %693 = vmatpush.msra.mxu0 0.0
  %694 = vmatpush.msra.mxu0 0.0
  %695 = vmatpush.msra.mxu0 0.0
  %696 = vmatpush.msra.mxu0 0.0
  %697 = vmatpush.msra.mxu0 0.0
  %698 = vmatpush.msra.mxu0 0.0
  %699 = vmatpush.msra.mxu0 0.0
  %700 = vmatpush.msra.mxu0 0.0
  %701 = vmatpush.msra.mxu0 0.0
  %702 = vmatpush.msra.mxu0 %v686
  %703 = vmatpush.msra.mxu0 %v685
  %704 = vmatpush.msra.mxu0 %v684
  %705 = vmatpush.msra.mxu0 %v683
  %706 = vmatmul.f32.gmra.mxu0 %v688
  %v707 = vpop.f32.mrf.mxu0
  %v708 = vadd.f32 0.0, %v707
  %709 = vdwg.mxu0
  %v711 = vsel %vm108, %v653, 0
  %713 = vmatpush.msra.mxu0 0.0
  %714 = vmatpush.msra.mxu0 0.0
  %715 = vmatpush.msra.mxu0 0.0
  %716 = vmatpush.msra.mxu0 0.0
  %717 = vmatpush.msra.mxu0 0.0
  %718 = vmatpush.msra.mxu0 0.0
  %719 = vmatpush.msra.mxu0 0.0
  %720 = vmatpush.msra.mxu0 0.0
  %721 = vmatpush.msra.mxu0 0.0
  %722 = vmatpush.msra.mxu0 0.0
  %723 = vmatpush.msra.mxu0 0.0
  %724 = vmatpush.msra.mxu0 0.0
  %725 = vmatpush.msra.mxu0 %v658
  %726 = vmatpush.msra.mxu0 %v657
  %727 = vmatpush.msra.mxu0 %v656
  %728 = vmatpush.msra.mxu0 %v655
  %729 = vmatmul.f32.gmra.mxu0 %v711
  %v730 = vpop.f32.mrf.mxu0
  %v731 = vadd.f32 %v708, %v730
  %732 = vdwg.mxu0
  %v733 = vld [vmem:[%s215] sm:$0xff]
  %v735 = vsel %vm111, %v733, 0
  %737 = vmatpush.msra.mxu0 0.0
  %738 = vmatpush.msra.mxu0 0.0
  %739 = vmatpush.msra.mxu0 0.0
  %740 = vmatpush.msra.mxu0 0.0
  %741 = vmatpush.msra.mxu0 0.0
  %742 = vmatpush.msra.mxu0 0.0
  %743 = vmatpush.msra.mxu0 0.0
  %744 = vmatpush.msra.mxu0 0.0
  %745 = vmatpush.msra.mxu0 0.0
  %746 = vmatpush.msra.mxu0 0.0
  %747 = vmatpush.msra.mxu0 0.0
  %748 = vmatpush.msra.mxu0 0.0
  %749 = vmatpush.msra.mxu0 0.0
  %750 = vmatpush.msra.mxu0 0.0
  %751 = vmatpush.msra.mxu0 0.0
  %752 = vmatpush.msra.mxu0 %v629
  %753 = vmatmul.f32.gmra.mxu0 %v735
  %v754 = vpop.f32.mrf.mxu0
  %v755 = vadd.f32 0.0, %v754
  %756 = vdwg.mxu0
  %v757 = vld [vmem:[%s240] sm:$0xff]
  %v758 = vld [vmem:[%s240 + $0x8] sm:$0xff]
  %v759 = vld [vmem:[%s240 + $0x10] sm:$0xff]
  %v760 = vld [vmem:[%s240 + $0x18] sm:$0xff]
  %v762 = vsel %vm108, %v755, 0
  %764 = vmatpush.msra.mxu0 0.0
  %765 = vmatpush.msra.mxu0 0.0
  %766 = vmatpush.msra.mxu0 0.0
  %767 = vmatpush.msra.mxu0 0.0
  %768 = vmatpush.msra.mxu0 0.0
  %769 = vmatpush.msra.mxu0 0.0
  %770 = vmatpush.msra.mxu0 0.0
  %771 = vmatpush.msra.mxu0 0.0
  %772 = vmatpush.msra.mxu0 0.0
  %773 = vmatpush.msra.mxu0 0.0
  %774 = vmatpush.msra.mxu0 0.0
  %775 = vmatpush.msra.mxu0 0.0
  %776 = vmatpush.msra.mxu0 %v760
  %777 = vmatpush.msra.mxu0 %v759
  %778 = vmatpush.msra.mxu0 %v758
  %779 = vmatpush.msra.mxu0 %v757
  %780 = vmatmul.f32.gmra.mxu0 %v762
  %v781 = vpop.f32.mrf.mxu0
  %v782 = vadd.f32 0.0, %v781
  %783 = vdwg.mxu0
  %v784 = vadd.f32 %v731, %v782
  %v785 = vld [vmem:[%s269] sm:$0xff]
  %v787 = vsel %vm111, %v785, 0
  %789 = vmatpush.msra.mxu0 0.0
  %790 = vmatpush.msra.mxu0 0.0
  %791 = vmatpush.msra.mxu0 0.0
  %792 = vmatpush.msra.mxu0 0.0
  %793 = vmatpush.msra.mxu0 0.0
  %794 = vmatpush.msra.mxu0 0.0
  %795 = vmatpush.msra.mxu0 0.0
  %796 = vmatpush.msra.mxu0 0.0
  %797 = vmatpush.msra.mxu0 0.0
  %798 = vmatpush.msra.mxu0 0.0
  %799 = vmatpush.msra.mxu0 0.0
  %800 = vmatpush.msra.mxu0 0.0
  %801 = vmatpush.msra.mxu0 0.0
  %802 = vmatpush.msra.mxu0 0.0
  %803 = vmatpush.msra.mxu0 0.0
  %804 = vmatpush.msra.mxu0 %v629
  %805 = vmatmul.f32.gmra.mxu0 %v787
  %v806 = vpop.f32.mrf.mxu0
  %v807 = vadd.f32 0.0, %v806
  %808 = vdwg.mxu0
  %v809 = vld [vmem:[%s294] sm:$0xff]
  %v810 = vld [vmem:[%s294 + $0x8] sm:$0xff]
  %v811 = vld [vmem:[%s294 + $0x10] sm:$0xff]
  %v812 = vld [vmem:[%s294 + $0x18] sm:$0xff]
  %v814 = vsel %vm108, %v807, 0
  %816 = vmatpush.msra.mxu0 0.0
  %817 = vmatpush.msra.mxu0 0.0
  %818 = vmatpush.msra.mxu0 0.0
  %819 = vmatpush.msra.mxu0 0.0
  %820 = vmatpush.msra.mxu0 0.0
  %821 = vmatpush.msra.mxu0 0.0
  %822 = vmatpush.msra.mxu0 0.0
  %823 = vmatpush.msra.mxu0 0.0
  %824 = vmatpush.msra.mxu0 0.0
  %825 = vmatpush.msra.mxu0 0.0
  %826 = vmatpush.msra.mxu0 0.0
  %827 = vmatpush.msra.mxu0 0.0
  %828 = vmatpush.msra.mxu0 %v812
  %829 = vmatpush.msra.mxu0 %v811
  %830 = vmatpush.msra.mxu0 %v810
  %831 = vmatpush.msra.mxu0 %v809
  %832 = vmatmul.f32.gmra.mxu0 %v814
  %v833 = vpop.f32.mrf.mxu0
  %v834 = vadd.f32 0.0, %v833
  %835 = vdwg.mxu0
  %v836 = vadd.f32 %v784, %v834
  %v837 = vld [vmem:[%s7] sm:$0x1]
  %v839 = vperm.slane %v837, 0
  %v841 = vadd.f32 %v836, %v839
  %843 = vrot.lane.b32.xlu0 %v841, 32
  %v844 = vpop.permute.xlu0 %843
  %846 = vst.msk [vmem:[%s9 + $0x8] sm:$0xff] %vm332, %v844
  %v847 = vld [vmem:[%s5] sm:$0xff]
  %v849 = vsel %vm111, %v847, 0
  %851 = vmatpush.msra.mxu0 0.0
  %852 = vmatpush.msra.mxu0 0.0
  %853 = vmatpush.msra.mxu0 0.0
  %854 = vmatpush.msra.mxu0 0.0
  %855 = vmatpush.msra.mxu0 0.0
  %856 = vmatpush.msra.mxu0 0.0
  %857 = vmatpush.msra.mxu0 0.0
  %858 = vmatpush.msra.mxu0 0.0
  %859 = vmatpush.msra.mxu0 0.0
  %860 = vmatpush.msra.mxu0 0.0
  %861 = vmatpush.msra.mxu0 0.0
  %862 = vmatpush.msra.mxu0 0.0
  %863 = vmatpush.msra.mxu0 0.0
  %864 = vmatpush.msra.mxu0 0.0
  %865 = vmatpush.msra.mxu0 0.0
  %866 = vmatpush.msra.mxu0 %v841
  %867 = vmatmul.f32.gmra.mxu0 %v849
  %v868 = vpop.f32.mrf.mxu0
  %v869 = vadd.f32 0.0, %v868
  %870 = vdwg.mxu0
  %v871 = vld [vmem:[%s6] sm:$0xff]
  %v872 = vld [vmem:[%s6 + $0x8] sm:$0xff]
  %v873 = vld [vmem:[%s6 + $0x10] sm:$0xff]
  %v874 = vld [vmem:[%s6 + $0x18] sm:$0xff]
  %v875 = vld [vmem:[%s139] sm:$0xff]
  %v877 = vsel %vm111, %v875, 0
  %879 = vmatpush.msra.mxu0 0.0
  %880 = vmatpush.msra.mxu0 0.0
  %881 = vmatpush.msra.mxu0 0.0
  %882 = vmatpush.msra.mxu0 0.0
  %883 = vmatpush.msra.mxu0 0.0
  %884 = vmatpush.msra.mxu0 0.0
  %885 = vmatpush.msra.mxu0 0.0
  %886 = vmatpush.msra.mxu0 0.0
  %887 = vmatpush.msra.mxu0 0.0
  %888 = vmatpush.msra.mxu0 0.0
  %889 = vmatpush.msra.mxu0 0.0
  %890 = vmatpush.msra.mxu0 0.0
  %891 = vmatpush.msra.mxu0 0.0
  %892 = vmatpush.msra.mxu0 0.0
  %893 = vmatpush.msra.mxu0 0.0
  %894 = vmatpush.msra.mxu0 %v841
  %895 = vmatmul.f32.gmra.mxu0 %v877
  %v896 = vpop.f32.mrf.mxu0
  %v897 = vadd.f32 0.0, %v896
  %898 = vdwg.mxu0
  %v899 = vld [vmem:[%s164] sm:$0xff]
  %v900 = vld [vmem:[%s164 + $0x8] sm:$0xff]
  %v901 = vld [vmem:[%s164 + $0x10] sm:$0xff]
  %v902 = vld [vmem:[%s164 + $0x18] sm:$0xff]
  %v904 = vsel %vm108, %v897, 0
  %906 = vmatpush.msra.mxu0 0.0
  %907 = vmatpush.msra.mxu0 0.0
  %908 = vmatpush.msra.mxu0 0.0
  %909 = vmatpush.msra.mxu0 0.0
  %910 = vmatpush.msra.mxu0 0.0
  %911 = vmatpush.msra.mxu0 0.0
  %912 = vmatpush.msra.mxu0 0.0
  %913 = vmatpush.msra.mxu0 0.0
  %914 = vmatpush.msra.mxu0 0.0
  %915 = vmatpush.msra.mxu0 0.0
  %916 = vmatpush.msra.mxu0 0.0
  %917 = vmatpush.msra.mxu0 0.0
  %918 = vmatpush.msra.mxu0 %v902
  %919 = vmatpush.msra.mxu0 %v901
  %920 = vmatpush.msra.mxu0 %v900
  %921 = vmatpush.msra.mxu0 %v899
  %922 = vmatmul.f32.gmra.mxu0 %v904
  %v923 = vpop.f32.mrf.mxu0
  %v924 = vadd.f32 0.0, %v923
  %925 = vdwg.mxu0
  %v927 = vsel %vm108, %v869, 0
  %929 = vmatpush.msra.mxu0 0.0
  %930 = vmatpush.msra.mxu0 0.0
  %931 = vmatpush.msra.mxu0 0.0
  %932 = vmatpush.msra.mxu0 0.0
  %933 = vmatpush.msra.mxu0 0.0
  %934 = vmatpush.msra.mxu0 0.0
  %935 = vmatpush.msra.mxu0 0.0
  %936 = vmatpush.msra.mxu0 0.0
  %937 = vmatpush.msra.mxu0 0.0
  %938 = vmatpush.msra.mxu0 0.0
  %939 = vmatpush.msra.mxu0 0.0
  %940 = vmatpush.msra.mxu0 0.0
  %941 = vmatpush.msra.mxu0 %v874
  %942 = vmatpush.msra.mxu0 %v873
  %943 = vmatpush.msra.mxu0 %v872
  %944 = vmatpush.msra.mxu0 %v871
  %945 = vmatmul.f32.gmra.mxu0 %v927
  %v946 = vpop.f32.mrf.mxu0
  %v947 = vadd.f32 %v924, %v946
  %948 = vdwg.mxu0
  %v949 = vld [vmem:[%s215] sm:$0xff]
  %v951 = vsel %vm111, %v949, 0
  %953 = vmatpush.msra.mxu0 0.0
  %954 = vmatpush.msra.mxu0 0.0
  %955 = vmatpush.msra.mxu0 0.0
  %956 = vmatpush.msra.mxu0 0.0
  %957 = vmatpush.msra.mxu0 0.0
  %958 = vmatpush.msra.mxu0 0.0
  %959 = vmatpush.msra.mxu0 0.0
  %960 = vmatpush.msra.mxu0 0.0
  %961 = vmatpush.msra.mxu0 0.0
  %962 = vmatpush.msra.mxu0 0.0
  %963 = vmatpush.msra.mxu0 0.0
  %964 = vmatpush.msra.mxu0 0.0
  %965 = vmatpush.msra.mxu0 0.0
  %966 = vmatpush.msra.mxu0 0.0
  %967 = vmatpush.msra.mxu0 0.0
  %968 = vmatpush.msra.mxu0 %v841
  %969 = vmatmul.f32.gmra.mxu0 %v951
  %v970 = vpop.f32.mrf.mxu0
  %v971 = vadd.f32 0.0, %v970
  %972 = vdwg.mxu0
  %v973 = vld [vmem:[%s240] sm:$0xff]
  %v974 = vld [vmem:[%s240 + $0x8] sm:$0xff]
  %v975 = vld [vmem:[%s240 + $0x10] sm:$0xff]
  %v976 = vld [vmem:[%s240 + $0x18] sm:$0xff]
  %v978 = vsel %vm108, %v971, 0
  %980 = vmatpush.msra.mxu0 0.0
  %981 = vmatpush.msra.mxu0 0.0
  %982 = vmatpush.msra.mxu0 0.0
  %983 = vmatpush.msra.mxu0 0.0
  %984 = vmatpush.msra.mxu0 0.0
  %985 = vmatpush.msra.mxu0 0.0
  %986 = vmatpush.msra.mxu0 0.0
  %987 = vmatpush.msra.mxu0 0.0
  %988 = vmatpush.msra.mxu0 0.0
  %989 = vmatpush.msra.mxu0 0.0
  %990 = vmatpush.msra.mxu0 0.0
  %991 = vmatpush.msra.mxu0 0.0
  %992 = vmatpush.msra.mxu0 %v976
  %993 = vmatpush.msra.mxu0 %v975
  %994 = vmatpush.msra.mxu0 %v974
  %995 = vmatpush.msra.mxu0 %v973
  %996 = vmatmul.f32.gmra.mxu0 %v978
  %v997 = vpop.f32.mrf.mxu0
  %v998 = vadd.f32 0.0, %v997
  %999 = vdwg.mxu0
  %v1000 = vadd.f32 %v947, %v998
  %v1001 = vld [vmem:[%s269] sm:$0xff]
  %v1003 = vsel %vm111, %v1001, 0
  %1005 = vmatpush.msra.mxu0 0.0
  %1006 = vmatpush.msra.mxu0 0.0
  %1007 = vmatpush.msra.mxu0 0.0
  %1008 = vmatpush.msra.mxu0 0.0
  %1009 = vmatpush.msra.mxu0 0.0
  %1010 = vmatpush.msra.mxu0 0.0
  %1011 = vmatpush.msra.mxu0 0.0
  %1012 = vmatpush.msra.mxu0 0.0
  %1013 = vmatpush.msra.mxu0 0.0
  %1014 = vmatpush.msra.mxu0 0.0
  %1015 = vmatpush.msra.mxu0 0.0
  %1016 = vmatpush.msra.mxu0 0.0
  %1017 = vmatpush.msra.mxu0 0.0
  %1018 = vmatpush.msra.mxu0 0.0
  %1019 = vmatpush.msra.mxu0 0.0
  %1020 = vmatpush.msra.mxu0 %v841
  %1021 = vmatmul.f32.gmra.mxu0 %v1003
  %v1022 = vpop.f32.mrf.mxu0
  %v1023 = vadd.f32 0.0, %v1022
  %1024 = vdwg.mxu0
  %v1025 = vld [vmem:[%s294] sm:$0xff]
  %v1026 = vld [vmem:[%s294 + $0x8] sm:$0xff]
  %v1027 = vld [vmem:[%s294 + $0x10] sm:$0xff]
  %v1028 = vld [vmem:[%s294 + $0x18] sm:$0xff]
  %v1030 = vsel %vm108, %v1023, 0
  %1032 = vmatpush.msra.mxu0 0.0
  %1033 = vmatpush.msra.mxu0 0.0
  %1034 = vmatpush.msra.mxu0 0.0
  %1035 = vmatpush.msra.mxu0 0.0
  %1036 = vmatpush.msra.mxu0 0.0
  %1037 = vmatpush.msra.mxu0 0.0
  %1038 = vmatpush.msra.mxu0 0.0
  %1039 = vmatpush.msra.mxu0 0.0
  %1040 = vmatpush.msra.mxu0 0.0
  %1041 = vmatpush.msra.mxu0 0.0
  %1042 = vmatpush.msra.mxu0 0.0
  %1043 = vmatpush.msra.mxu0 0.0
  %1044 = vmatpush.msra.mxu0 %v1028
  %1045 = vmatpush.msra.mxu0 %v1027
  %1046 = vmatpush.msra.mxu0 %v1026
  %1047 = vmatpush.msra.mxu0 %v1025
  %1048 = vmatmul.f32.gmra.mxu0 %v1030
  %v1049 = vpop.f32.mrf.mxu0
  %v1050 = vadd.f32 0.0, %v1049
  %1051 = vdwg.mxu0
  %v1052 = vadd.f32 %v1000, %v1050
  %v1053 = vld [vmem:[%s7] sm:$0x1]
  %v1055 = vperm.slane %v1053, 0
  %v1057 = vadd.f32 %v1052, %v1055
  %v1058 = vmul.f32 %v1057, 2.0
  %v1059 = vsub.f32 %v1058, %v629
  %1061 = vrot.lane.b32.xlu0 %v1059, 64
  %v1062 = vpop.permute.xlu0 %1061
  %1064 = vst.msk [vmem:[%s9 + $0x8] sm:$0xff] %vm551, %v1062
  // Predicated region
  $region34: #{decoder_forward.10} parent=0 // pred_check
    _
  $region35: #{decoder_forward.10} parent=0 // pred_check_branch
    %1066 = sbr.rel (0) target = $region37
  $region36: #{decoder_forward.10} parent=0 // pred_region
    _
  $region37: #{decoder_forward.10} parent=0 // pred_fallthru
    _
  // Predicated region
  $region38: #{decoder_forward.10} parent=0 // pred_check
    _
  $region39: #{decoder_forward.10} parent=0 // pred_check_branch
    %1068 = sbr.rel (0) target = $region41
  $region40: #{decoder_forward.10} parent=0 // pred_region
    _
  $region41: #{decoder_forward.10} parent=0 // pred_fallthru
    _
  // Predicated region
  $region42: #{decoder_forward.10} parent=0 // pred_check
    _
  $region43: #{decoder_forward.10} parent=0 // pred_check_branch
    %1070 = sbr.rel (0) target = $region45
  $region44: #{decoder_forward.10} parent=0 // pred_region
    _
  $region45: #{decoder_forward.10} parent=0 // pred_fallthru
    _
  // Predicated region
  $region46: #{decoder_forward.10} parent=0 // pred_check
    _
  $region47: #{decoder_forward.10} parent=0 // pred_check_branch
    %1072 = sbr.rel (0) target = $region49
  $region48: #{decoder_forward.10} parent=0 // pred_region
    _
  $region49: #{decoder_forward.10} parent=0 // pred_fallthru
    _

</llo_original>
